<compile_context>
chip_gen: v7x
topology: tpu7x:2x2x1
jax: 0.10.0
libtpu: 0.0.40
codegen_flags: <defaults>
</compile_context>

<pallas_src>
import jax
import jax.numpy as jnp
import numpy as np
from jax.experimental import pallas as pl
from jax.experimental.pallas import tpu as pltpu

C_IN = 128       # Conv1d in-channels  (fixed by the module)
C_OUT = 1024     # Conv1d out-channels (fixed by the module)
PRIM = 8         # prim_vec_size
CHUNK = 1024     # output-channel chunk folded per MXU burst (>=512 lanes)
NUM_POINTS = 64  # small num_points for the example (module default is 2048)
BATCH = 2
EPS = 1e-5


def primary_caps_kernel(x_ref, w_ref, b_ref, o_ref):
    """Grid = (batch_chunks, point_chunks); the points (reduction) axis is innermost.

    x_ref : (BB, TN, C_IN)         bf16 input points, NWC tile
    w_ref : (C_IN, PRIM*C_OUT)     bf16 fused BN-folded 1x1-conv weights (VMEM resident)
    b_ref : (1, PRIM*C_OUT)        f32 fused BN-folded biases (VMEM resident)
    o_ref : (BB, 1, PRIM*C_OUT)    f32 output block; doubles as the running-max
                                   accumulator (block index constant over the
                                   points grid axis -> VMEM resident)
    """
    k = pl.program_id(1)
    bb, tn, c_in = x_ref.shape
    n_out = o_ref.shape[-1]                    # PRIM * C_OUT (static)

    @pl.when(k == 0)
    def _():
        o_ref[...] = jnp.full(o_ref.shape, -jnp.inf, dtype=o_ref.dtype)

    x = x_ref[...].reshape(bb * tn, c_in)      # leading-dim merge (free), bf16

    # Chunked matmul with the max-pool folded into the result stream: each
    # 1024-lane output-channel chunk is reduced over the points axis right away,
    # so the full (bb*tn, 8192) f32 activation tile is never written to / re-read
    # from VMEM (this removes ~4K vst/vld per grid step vs. the unchunked form).
    for c in range(0, n_out, CHUNK):           # static unroll (8 chunks)
        zc = jnp.dot(x, w_ref[:, c:c + CHUNK],
                     preferred_element_type=jnp.float32)      # (bb*tn, CHUNK) f32
        zc = zc.reshape(bb, tn, CHUNK)                         # leading-dim split (free)
        mx = jnp.max(zc, axis=1, keepdims=True)                # (bb, 1, CHUNK)
        o_ref[:, :, c:c + CHUNK] = jnp.maximum(o_ref[:, :, c:c + CHUNK], mx)

    @pl.when(k == pl.num_programs(1) - 1)
    def _():
        # Bias hoisted past the max-pool (exact since bias is constant over points).
        u = o_ref[...] + b_ref[...]            # (bb,1,F) + (1,F) -> (bb,1,F)

        # squash over the capsule axis: out = u * sqrt(s) / (1 + s), s = sum_p u_p^2
        s = jnp.zeros((bb, 1, C_OUT), jnp.float32)
        for p in range(PRIM):                  # static, 1024-aligned lane slices
            up = u[:, :, p * C_OUT:(p + 1) * C_OUT]
            s = s + up * up
        factor = jnp.sqrt(s) / (1.0 + s)       # exact (epilogue is tiny)
        for p in range(PRIM):
            o_ref[:, :, p * C_OUT:(p + 1) * C_OUT] = (
                u[:, :, p * C_OUT:(p + 1) * C_OUT] * factor).astype(o_ref.dtype)


def _round_up(n, m):
    return ((n + m - 1) // m) * m


def primary_point_caps_forward(x_ncw, conv_w, conv_b, gamma, beta,
                               run_mean, run_var, *, block_n=None, block_b=None):
    """x_ncw: (B, C_IN, N) float32 (PyTorch NCW).  Returns (B, C_OUT, PRIM)."""
    B, _, N = x_ncw.shape

    # Fold BatchNorm (eval mode) into the 1x1 conv:
    #   y = ((Wx + b) - mean) / sqrt(var + eps) * gamma + beta
    scale = gamma / jnp.sqrt(run_var + EPS)                       # (PRIM, C_OUT)
    w_folded = conv_w * scale[:, None, :]                         # (PRIM, C_IN, C_OUT)
    b_folded = (conv_b - run_mean) * scale + beta                 # (PRIM, C_OUT)

    # Fuse all capsules into one weight matrix (column index = p*C_OUT + o), bf16 for MXU.
    w_fused = jnp.transpose(w_folded, (1, 0, 2)).reshape(C_IN, PRIM * C_OUT)
    w_fused = w_fused.astype(jnp.bfloat16)
    b_fused = b_folded.reshape(1, PRIM * C_OUT).astype(jnp.float32)

    # NOTE: the NCW->NWC transpose + bf16 cast stays a single fused XLA op in the
    # wrapper (proven-safe path); folding it into the kernel is a v5e-only
    # HBM-traffic optimization left for later.
    x_nwc = jnp.transpose(x_ncw, (0, 2, 1)).astype(jnp.bfloat16)  # (B, N, C_IN)

    # --- Tiling ---------------------------------------------------------------
    # Points axis: tiles up to 512, padded with a replicated existing point so any
    # num_points keeps the MXU M-dimension filled (replicated points cannot change
    # the max-pool result, so no in-kernel masking is needed).
    if block_n is None:
        block_n = min(512, _round_up(N, 8))
    N_pad = _round_up(N, block_n)

    # Batch axis: keep >= 2 steps on the "parallel" grid axis when B >= 2 (v7x has
    # 2 TensorCores sharded over parallel axes), while capping block_b*block_n at
    # 1024 rows so the per-chunk f32 MXU result stays <= 4 MiB of VMEM.
    if block_b is None:
        row_cap = max(1, 1024 // block_n)
        block_b = max(1, min(row_cap, B // 2)) if B >= 2 else 1
    B_pad = _round_up(B, block_b)

    if N_pad != N:
        x_nwc = jnp.concatenate(
            [x_nwc, jnp.broadcast_to(x_nwc[:, -1:, :], (B, N_pad - N, C_IN))], axis=1)
    if B_pad != B:
        x_nwc = jnp.concatenate(
            [x_nwc, jnp.broadcast_to(x_nwc[-1:], (B_pad - B, N_pad, C_IN))], axis=0)

    grid = (B_pad // block_b, N_pad // block_n)

    out = pl.pallas_call(
        primary_caps_kernel,
        # Output keeps a size-1 middle dim so the last-two block dims (1, 8192)
        # satisfy the (8,128)/full-dim rule for any block_b; it is lane-dense.
        out_shape=jax.ShapeDtypeStruct((B_pad, 1, PRIM * C_OUT), jnp.float32),
        grid_spec=pltpu.PrefetchScalarGridSpec(
            num_scalar_prefetch=0,
            grid=grid,
            in_specs=[
                pl.BlockSpec((block_b, block_n, C_IN), lambda i, k: (i, k, 0)),
                # Weights / bias: whole-array VMEM residents (no double-buffering).
                pl.BlockSpec(memory_space=pltpu.MemorySpace.VMEM),
                pl.BlockSpec(memory_space=pltpu.MemorySpace.VMEM),
            ],
            out_specs=pl.BlockSpec((block_b, 1, PRIM * C_OUT), lambda i, k: (i, 0, 0)),
        ),
        compiler_params=pltpu.CompilerParams(
            dimension_semantics=("parallel", "arbitrary")),
    )(x_nwc, w_fused, b_fused)

    out = out[:B, 0, :]                                        # (B, PRIM*C_OUT)
    # Back to the PyTorch layout (B, 1024, PRIM); squash was done over the PRIM axis.
    return jnp.transpose(out.reshape(B, PRIM, C_OUT), (0, 2, 1))


def reference_forward(x_ncw, conv_w, conv_b, gamma, beta, run_mean, run_var):
    """Pure-JAX f32 reference mirroring the PyTorch module (eval-mode BN)."""
    z = jnp.einsum("bcn,pco->bpon", x_ncw, conv_w) + conv_b[:, :, None]
    z = (z - run_mean[:, :, None]) / jnp.sqrt(run_var[:, :, None] + EPS)
    z = z * gamma[:, :, None] + beta[:, :, None]
    u = jnp.max(z, axis=-1)                                  # (B, PRIM, C_OUT)
    u = jnp.transpose(u, (0, 2, 1))                          # (B, C_OUT, PRIM)
    sq = jnp.sum(u * u, axis=-1, keepdims=True)
    return sq * u / ((1.0 + sq) * jnp.sqrt(sq))


if __name__ == "__main__":
    key = jax.random.PRNGKey(0)
    kx, kw, kb, kg, kbeta, km, kv = jax.random.split(key, 7)

    x = jax.random.normal(kx, (BATCH, C_IN, NUM_POINTS), dtype=jnp.float32)

    # Deterministic synthetic parameters (one set per capsule).
    conv_w = 0.05 * jax.random.normal(kw, (PRIM, C_IN, C_OUT), dtype=jnp.float32)
    conv_b = 0.05 * jax.random.normal(kb, (PRIM, C_OUT), dtype=jnp.float32)
    gamma = 1.0 + 0.1 * jax.random.normal(kg, (PRIM, C_OUT), dtype=jnp.float32)
    beta = 0.1 * jax.random.normal(kbeta, (PRIM, C_OUT), dtype=jnp.float32)
    run_mean = 0.1 * jax.random.normal(km, (PRIM, C_OUT), dtype=jnp.float32)
    run_var = jax.random.uniform(kv, (PRIM, C_OUT), dtype=jnp.float32,
                                 minval=0.5, maxval=1.5)

    out = primary_point_caps_forward(x, conv_w, conv_b, gamma, beta, run_mean, run_var)
    out = jax.block_until_ready(out)

    ref = reference_forward(x, conv_w, conv_b, gamma, beta, run_mean, run_var)
    # bf16 inputs to the MXU (f32 accumulation) -> relaxed tolerance (squash math is exact).
    np.testing.assert_allclose(np.asarray(out), np.asarray(ref), rtol=3e-2, atol=3e-2)

    assert out.shape == (BATCH, C_OUT, PRIM)
    print("KERNEL_OK")
</pallas_src>

<mosaic_0001>
module attributes {stable_mosaic.version = 11 : i64} {
  func.func @primary_caps_kernel(%arg0: i32, %arg1: i32, %arg2: memref<1x64x128xbf16, #tpu.memory_space<vmem>>, %arg3: memref<128x8192xbf16, #tpu.memory_space<vmem>>, %arg4: memref<1x8192xf32, #tpu.memory_space<vmem>>, %arg5: memref<1x1x8192xf32, #tpu.memory_space<vmem>>) attributes {dimension_semantics = [#tpu.dimension_semantics<parallel>, #tpu.dimension_semantics<arbitrary>], iteration_bounds = array<i64: 2, 1>, scalar_prefetch = 0 : i64, scratch_operands = 0 : i64, tpu.core_type = #tpu.core_type<tc>, window_params = [{transform_indices = @transform_0, window_bounds = array<i64: 1, 64, 128>}, {pipeline_mode = #tpu.pipeline_mode<synchronous>, transform_indices = @transform_1, window_bounds = array<i64: 128, 8192>}, {pipeline_mode = #tpu.pipeline_mode<synchronous>, transform_indices = @transform_2, window_bounds = array<i64: 1, 8192>}, {transform_indices = @transform_3, window_bounds = array<i64: 1, 1, 8192>}]} {
    %c0_i32 = arith.constant 0 : i32
    %0 = arith.cmpi eq, %arg1, %c0_i32 : i32
    %1 = arith.extui %0 : i1 to i32
    %c0_i32_0 = arith.constant 0 : i32
    %2 = arith.cmpi ne, %1, %c0_i32_0 : i32
    scf.if %2 {
      %cst_77 = arith.constant 0xFF800000 : f32
      %72 = vector.broadcast %cst_77 : f32 to vector<1x1x8192xf32>
      %c0_78 = arith.constant 0 : index
      %c0_79 = arith.constant 0 : index
      %c0_80 = arith.constant 0 : index
      %73 = vector.load %arg5[%c0_78, %c0_79, %c0_80] : memref<1x1x8192xf32, #tpu.memory_space<vmem>>, vector<1x1x8192xf32>
      tpu.vector_store %arg5[%c0_78, %c0_79, %c0_80], %72 {strides = array<i32>} : memref<1x1x8192xf32, #tpu.memory_space<vmem>>, vector<1x1x8192xf32>,
    } else {
    }
    %c0 = arith.constant 0 : index
    %c0_1 = arith.constant 0 : index
    %c0_2 = arith.constant 0 : index
    %3 = vector.load %arg2[%c0, %c0_1, %c0_2] : memref<1x64x128xbf16, #tpu.memory_space<vmem>>, vector<1x64x128xbf16>
    %4 = vector.shape_cast %3 : vector<1x64x128xbf16> to vector<64x128xbf16>
    %c0_3 = arith.constant 0 : index
    %c0_4 = arith.constant 0 : index
    %5 = vector.load %arg3[%c0_3, %c0_4] : memref<128x8192xbf16, #tpu.memory_space<vmem>>, vector<128x1024xbf16>
    %cst = arith.constant dense<0.000000e+00> : vector<64x1024xf32>
    %6 = tpu.matmul %4, %5, %cst {dimension_numbers = #tpu.dot_dimension_numbers<[1], [0], [0], [1], [0, 0, 1, 1], [], []>} : vector<64x128xbf16>, vector<128x1024xbf16>, vector<64x1024xf32> -> vector<64x1024xf32>
    %7 = vector.shape_cast %6 : vector<64x1024xf32> to vector<1x64x1024xf32>
    %cst_5 = arith.constant dense<0xFF800000> : vector<1x1024xf32>
    %8 = vector.multi_reduction <maximumf>, %7, %cst_5 [1] : vector<1x64x1024xf32> to vector<1x1024xf32>
    %9 = vector.shape_cast %8 : vector<1x1024xf32> to vector<1x1x1024xf32>
    %c0_6 = arith.constant 0 : index
    %c0_7 = arith.constant 0 : index
    %c0_8 = arith.constant 0 : index
    %10 = vector.load %arg5[%c0_6, %c0_7, %c0_8] : memref<1x1x8192xf32, #tpu.memory_space<vmem>>, vector<1x1x1024xf32>
    %11 = arith.maximumf %10, %9 : vector<1x1x1024xf32>
    %c0_9 = arith.constant 0 : index
    %c0_10 = arith.constant 0 : index
    %c0_11 = arith.constant 0 : index
    %12 = vector.load %arg5[%c0_9, %c0_10, %c0_11] : memref<1x1x8192xf32, #tpu.memory_space<vmem>>, vector<1x1x1024xf32>
    tpu.vector_store %arg5[%c0_9, %c0_10, %c0_11], %11 {strides = array<i32>} : memref<1x1x8192xf32, #tpu.memory_space<vmem>>, vector<1x1x1024xf32>,
    %c0_12 = arith.constant 0 : index
    %c1024 = arith.constant 1024 : index
    %13 = vector.load %arg3[%c0_12, %c1024] : memref<128x8192xbf16, #tpu.memory_space<vmem>>, vector<128x1024xbf16>
    %cst_13 = arith.constant dense<0.000000e+00> : vector<64x1024xf32>
    %14 = tpu.matmul %4, %13, %cst_13 {dimension_numbers = #tpu.dot_dimension_numbers<[1], [0], [0], [1], [0, 0, 1, 1], [], []>} : vector<64x128xbf16>, vector<128x1024xbf16>, vector<64x1024xf32> -> vector<64x1024xf32>
    %15 = vector.shape_cast %14 : vector<64x1024xf32> to vector<1x64x1024xf32>
    %cst_14 = arith.constant dense<0xFF800000> : vector<1x1024xf32>
    %16 = vector.multi_reduction <maximumf>, %15, %cst_14 [1] : vector<1x64x1024xf32> to vector<1x1024xf32>
    %17 = vector.shape_cast %16 : vector<1x1024xf32> to vector<1x1x1024xf32>
    %c0_15 = arith.constant 0 : index
    %c0_16 = arith.constant 0 : index
    %c1024_17 = arith.constant 1024 : index
    %18 = vector.load %arg5[%c0_15, %c0_16, %c1024_17] : memref<1x1x8192xf32, #tpu.memory_space<vmem>>, vector<1x1x1024xf32>
    %19 = arith.maximumf %18, %17 : vector<1x1x1024xf32>
    %c0_18 = arith.constant 0 : index
    %c0_19 = arith.constant 0 : index
    %c1024_20 = arith.constant 1024 : index
    %20 = vector.load %arg5[%c0_18, %c0_19, %c1024_20] : memref<1x1x8192xf32, #tpu.memory_space<vmem>>, vector<1x1x1024xf32>
    tpu.vector_store %arg5[%c0_18, %c0_19, %c1024_20], %19 {strides = array<i32>} : memref<1x1x8192xf32, #tpu.memory_space<vmem>>, vector<1x1x1024xf32>,
    %c0_21 = arith.constant 0 : index
    %c2048 = arith.constant 2048 : index
    %21 = vector.load %arg3[%c0_21, %c2048] : memref<128x8192xbf16, #tpu.memory_space<vmem>>, vector<128x1024xbf16>
    %cst_22 = arith.constant dense<0.000000e+00> : vector<64x1024xf32>
    %22 = tpu.matmul %4, %21, %cst_22 {dimension_numbers = #tpu.dot_dimension_numbers<[1], [0], [0], [1], [0, 0, 1, 1], [], []>} : vector<64x128xbf16>, vector<128x1024xbf16>, vector<64x1024xf32> -> vector<64x1024xf32>
    %23 = vector.shape_cast %22 : vector<64x1024xf32> to vector<1x64x1024xf32>
    %cst_23 = arith.constant dense<0xFF800000> : vector<1x1024xf32>
    %24 = vector.multi_reduction <maximumf>, %23, %cst_23 [1] : vector<1x64x1024xf32> to vector<1x1024xf32>
    %25 = vector.shape_cast %24 : vector<1x1024xf32> to vector<1x1x1024xf32>
    %c0_24 = arith.constant 0 : index
    %c0_25 = arith.constant 0 : index
    %c2048_26 = arith.constant 2048 : index
    %26 = vector.load %arg5[%c0_24, %c0_25, %c2048_26] : memref<1x1x8192xf32, #tpu.memory_space<vmem>>, vector<1x1x1024xf32>
    %27 = arith.maximumf %26, %25 : vector<1x1x1024xf32>
    %c0_27 = arith.constant 0 : index
    %c0_28 = arith.constant 0 : index
    %c2048_29 = arith.constant 2048 : index
    %28 = vector.load %arg5[%c0_27, %c0_28, %c2048_29] : memref<1x1x8192xf32, #tpu.memory_space<vmem>>, vector<1x1x1024xf32>
    tpu.vector_store %arg5[%c0_27, %c0_28, %c2048_29], %27 {strides = array<i32>} : memref<1x1x8192xf32, #tpu.memory_space<vmem>>, vector<1x1x1024xf32>,
    %c0_30 = arith.constant 0 : index
    %c3072 = arith.constant 3072 : index
    %29 = vector.load %arg3[%c0_30, %c3072] : memref<128x8192xbf16, #tpu.memory_space<vmem>>, vector<128x1024xbf16>
    %cst_31 = arith.constant dense<0.000000e+00> : vector<64x1024xf32>
    %30 = tpu.matmul %4, %29, %cst_31 {dimension_numbers = #tpu.dot_dimension_numbers<[1], [0], [0], [1], [0, 0, 1, 1], [], []>} : vector<64x128xbf16>, vector<128x1024xbf16>, vector<64x1024xf32> -> vector<64x1024xf32>
    %31 = vector.shape_cast %30 : vector<64x1024xf32> to vector<1x64x1024xf32>
    %cst_32 = arith.constant dense<0xFF800000> : vector<1x1024xf32>
    %32 = vector.multi_reduction <maximumf>, %31, %cst_32 [1] : vector<1x64x1024xf32> to vector<1x1024xf32>
    %33 = vector.shape_cast %32 : vector<1x1024xf32> to vector<1x1x1024xf32>
    %c0_33 = arith.constant 0 : index
    %c0_34 = arith.constant 0 : index
    %c3072_35 = arith.constant 3072 : index
    %34 = vector.load %arg5[%c0_33, %c0_34, %c3072_35] : memref<1x1x8192xf32, #tpu.memory_space<vmem>>, vector<1x1x1024xf32>
    %35 = arith.maximumf %34, %33 : vector<1x1x1024xf32>
    %c0_36 = arith.constant 0 : index
    %c0_37 = arith.constant 0 : index
    %c3072_38 = arith.constant 3072 : index
    %36 = vector.load %arg5[%c0_36, %c0_37, %c3072_38] : memref<1x1x8192xf32, #tpu.memory_space<vmem>>, vector<1x1x1024xf32>
    tpu.vector_store %arg5[%c0_36, %c0_37, %c3072_38], %35 {strides = array<i32>} : memref<1x1x8192xf32, #tpu.memory_space<vmem>>, vector<1x1x1024xf32>,
    %c0_39 = arith.constant 0 : index
    %c4096 = arith.constant 4096 : index
    %37 = vector.load %arg3[%c0_39, %c4096] : memref<128x8192xbf16, #tpu.memory_space<vmem>>, vector<128x1024xbf16>
    %cst_40 = arith.constant dense<0.000000e+00> : vector<64x1024xf32>
    %38 = tpu.matmul %4, %37, %cst_40 {dimension_numbers = #tpu.dot_dimension_numbers<[1], [0], [0], [1], [0, 0, 1, 1], [], []>} : vector<64x128xbf16>, vector<128x1024xbf16>, vector<64x1024xf32> -> vector<64x1024xf32>
    %39 = vector.shape_cast %38 : vector<64x1024xf32> to vector<1x64x1024xf32>
    %cst_41 = arith.constant dense<0xFF800000> : vector<1x1024xf32>
    %40 = vector.multi_reduction <maximumf>, %39, %cst_41 [1] : vector<1x64x1024xf32> to vector<1x1024xf32>
    %41 = vector.shape_cast %40 : vector<1x1024xf32> to vector<1x1x1024xf32>
    %c0_42 = arith.constant 0 : index
    %c0_43 = arith.constant 0 : index
    %c4096_44 = arith.constant 4096 : index
    %42 = vector.load %arg5[%c0_42, %c0_43, %c4096_44] : memref<1x1x8192xf32, #tpu.memory_space<vmem>>, vector<1x1x1024xf32>
    %43 = arith.maximumf %42, %41 : vector<1x1x1024xf32>
    %c0_45 = arith.constant 0 : index
    %c0_46 = arith.constant 0 : index
    %c4096_47 = arith.constant 4096 : index
    %44 = vector.load %arg5[%c0_45, %c0_46, %c4096_47] : memref<1x1x8192xf32, #tpu.memory_space<vmem>>, vector<1x1x1024xf32>
    tpu.vector_store %arg5[%c0_45, %c0_46, %c4096_47], %43 {strides = array<i32>} : memref<1x1x8192xf32, #tpu.memory_space<vmem>>, vector<1x1x1024xf32>,
    %c0_48 = arith.constant 0 : index
    %c5120 = arith.constant 5120 : index
    %45 = vector.load %arg3[%c0_48, %c5120] : memref<128x8192xbf16, #tpu.memory_space<vmem>>, vector<128x1024xbf16>
    %cst_49 = arith.constant dense<0.000000e+00> : vector<64x1024xf32>
    %46 = tpu.matmul %4, %45, %cst_49 {dimension_numbers = #tpu.dot_dimension_numbers<[1], [0], [0], [1], [0, 0, 1, 1], [], []>} : vector<64x128xbf16>, vector<128x1024xbf16>, vector<64x1024xf32> -> vector<64x1024xf32>
    %47 = vector.shape_cast %46 : vector<64x1024xf32> to vector<1x64x1024xf32>
    %cst_50 = arith.constant dense<0xFF800000> : vector<1x1024xf32>
    %48 = vector.multi_reduction <maximumf>, %47, %cst_50 [1] : vector<1x64x1024xf32> to vector<1x1024xf32>
    %49 = vector.shape_cast %48 : vector<1x1024xf32> to vector<1x1x1024xf32>
    %c0_51 = arith.constant 0 : index
    %c0_52 = arith.constant 0 : index
    %c5120_53 = arith.constant 5120 : index
    %50 = vector.load %arg5[%c0_51, %c0_52, %c5120_53] : memref<1x1x8192xf32, #tpu.memory_space<vmem>>, vector<1x1x1024xf32>
    %51 = arith.maximumf %50, %49 : vector<1x1x1024xf32>
    %c0_54 = arith.constant 0 : index
    %c0_55 = arith.constant 0 : index
    %c5120_56 = arith.constant 5120 : index
    %52 = vector.load %arg5[%c0_54, %c0_55, %c5120_56] : memref<1x1x8192xf32, #tpu.memory_space<vmem>>, vector<1x1x1024xf32>
    tpu.vector_store %arg5[%c0_54, %c0_55, %c5120_56], %51 {strides = array<i32>} : memref<1x1x8192xf32, #tpu.memory_space<vmem>>, vector<1x1x1024xf32>,
    %c0_57 = arith.constant 0 : index
    %c6144 = arith.constant 6144 : index
    %53 = vector.load %arg3[%c0_57, %c6144] : memref<128x8192xbf16, #tpu.memory_space<vmem>>, vector<128x1024xbf16>
    %cst_58 = arith.constant dense<0.000000e+00> : vector<64x1024xf32>
    %54 = tpu.matmul %4, %53, %cst_58 {dimension_numbers = #tpu.dot_dimension_numbers<[1], [0], [0], [1], [0, 0, 1, 1], [], []>} : vector<64x128xbf16>, vector<128x1024xbf16>, vector<64x1024xf32> -> vector<64x1024xf32>
    %55 = vector.shape_cast %54 : vector<64x1024xf32> to vector<1x64x1024xf32>
    %cst_59 = arith.constant dense<0xFF800000> : vector<1x1024xf32>
    %56 = vector.multi_reduction <maximumf>, %55, %cst_59 [1] : vector<1x64x1024xf32> to vector<1x1024xf32>
    %57 = vector.shape_cast %56 : vector<1x1024xf32> to vector<1x1x1024xf32>
    %c0_60 = arith.constant 0 : index
    %c0_61 = arith.constant 0 : index
    %c6144_62 = arith.constant 6144 : index
    %58 = vector.load %arg5[%c0_60, %c0_61, %c6144_62] : memref<1x1x8192xf32, #tpu.memory_space<vmem>>, vector<1x1x1024xf32>
    %59 = arith.maximumf %58, %57 : vector<1x1x1024xf32>
    %c0_63 = arith.constant 0 : index
    %c0_64 = arith.constant 0 : index
    %c6144_65 = arith.constant 6144 : index
    %60 = vector.load %arg5[%c0_63, %c0_64, %c6144_65] : memref<1x1x8192xf32, #tpu.memory_space<vmem>>, vector<1x1x1024xf32>
    tpu.vector_store %arg5[%c0_63, %c0_64, %c6144_65], %59 {strides = array<i32>} : memref<1x1x8192xf32, #tpu.memory_space<vmem>>, vector<1x1x1024xf32>,
    %c0_66 = arith.constant 0 : index
    %c7168 = arith.constant 7168 : index
    %61 = vector.load %arg3[%c0_66, %c7168] : memref<128x8192xbf16, #tpu.memory_space<vmem>>, vector<128x1024xbf16>
    %cst_67 = arith.constant dense<0.000000e+00> : vector<64x1024xf32>
    %62 = tpu.matmul %4, %61, %cst_67 {dimension_numbers = #tpu.dot_dimension_numbers<[1], [0], [0], [1], [0, 0, 1, 1], [], []>} : vector<64x128xbf16>, vector<128x1024xbf16>, vector<64x1024xf32> -> vector<64x1024xf32>
    %63 = vector.shape_cast %62 : vector<64x1024xf32> to vector<1x64x1024xf32>
    %cst_68 = arith.constant dense<0xFF800000> : vector<1x1024xf32>
    %64 = vector.multi_reduction <maximumf>, %63, %cst_68 [1] : vector<1x64x1024xf32> to vector<1x1024xf32>
    %65 = vector.shape_cast %64 : vector<1x1024xf32> to vector<1x1x1024xf32>
    %c0_69 = arith.constant 0 : index
    %c0_70 = arith.constant 0 : index
    %c7168_71 = arith.constant 7168 : index
    %66 = vector.load %arg5[%c0_69, %c0_70, %c7168_71] : memref<1x1x8192xf32, #tpu.memory_space<vmem>>, vector<1x1x1024xf32>
    %67 = arith.maximumf %66, %65 : vector<1x1x1024xf32>
    %c0_72 = arith.constant 0 : index
    %c0_73 = arith.constant 0 : index
    %c7168_74 = arith.constant 7168 : index
    %68 = vector.load %arg5[%c0_72, %c0_73, %c7168_74] : memref<1x1x8192xf32, #tpu.memory_space<vmem>>, vector<1x1x1024xf32>
    tpu.vector_store %arg5[%c0_72, %c0_73, %c7168_74], %67 {strides = array<i32>} : memref<1x1x8192xf32, #tpu.memory_space<vmem>>, vector<1x1x1024xf32>,
    %c0_i32_75 = arith.constant 0 : i32
    %69 = arith.cmpi eq, %arg1, %c0_i32_75 : i32
    %70 = arith.extui %69 : i1 to i32
    %c0_i32_76 = arith.constant 0 : i32
    %71 = arith.cmpi ne, %70, %c0_i32_76 : i32
    scf.if %71 {
      %c0_77 = arith.constant 0 : index
      %c0_78 = arith.constant 0 : index
      %c0_79 = arith.constant 0 : index
      %72 = vector.load %arg5[%c0_77, %c0_78, %c0_79] : memref<1x1x8192xf32, #tpu.memory_space<vmem>>, vector<1x1x8192xf32>
      %c0_80 = arith.constant 0 : index
      %c0_81 = arith.constant 0 : index
      %73 = vector.load %arg4[%c0_80, %c0_81] : memref<1x8192xf32, #tpu.memory_space<vmem>>, vector<1x8192xf32>
      %74 = vector.shape_cast %73 : vector<1x8192xf32> to vector<1x1x8192xf32>
      %75 = arith.addf %72, %74 : vector<1x1x8192xf32>
      %cst_82 = arith.constant 0.000000e+00 : f32
      %76 = vector.broadcast %cst_82 : f32 to vector<1x1x1024xf32>
      %77 = vector.extract_strided_slice %75 {offsets = [0, 0, 0], sizes = [1, 1, 1024], strides = [1, 1, 1]} : vector<1x1x8192xf32> to vector<1x1x1024xf32>
      %78 = arith.mulf %77, %77 : vector<1x1x1024xf32>
      %79 = arith.addf %76, %78 : vector<1x1x1024xf32>
      %80 = vector.extract_strided_slice %75 {offsets = [0, 0, 1024], sizes = [1, 1, 1024], strides = [1, 1, 1]} : vector<1x1x8192xf32> to vector<1x1x1024xf32>
      %81 = arith.mulf %80, %80 : vector<1x1x1024xf32>
      %82 = arith.addf %79, %81 : vector<1x1x1024xf32>
      %83 = vector.extract_strided_slice %75 {offsets = [0, 0, 2048], sizes = [1, 1, 1024], strides = [1, 1, 1]} : vector<1x1x8192xf32> to vector<1x1x1024xf32>
      %84 = arith.mulf %83, %83 : vector<1x1x1024xf32>
      %85 = arith.addf %82, %84 : vector<1x1x1024xf32>
      %86 = vector.extract_strided_slice %75 {offsets = [0, 0, 3072], sizes = [1, 1, 1024], strides = [1, 1, 1]} : vector<1x1x8192xf32> to vector<1x1x1024xf32>
      %87 = arith.mulf %86, %86 : vector<1x1x1024xf32>
      %88 = arith.addf %85, %87 : vector<1x1x1024xf32>
      %89 = vector.extract_strided_slice %75 {offsets = [0, 0, 4096], sizes = [1, 1, 1024], strides = [1, 1, 1]} : vector<1x1x8192xf32> to vector<1x1x1024xf32>
      %90 = arith.mulf %89, %89 : vector<1x1x1024xf32>
      %91 = arith.addf %88, %90 : vector<1x1x1024xf32>
      %92 = vector.extract_strided_slice %75 {offsets = [0, 0, 5120], sizes = [1, 1, 1024], strides = [1, 1, 1]} : vector<1x1x8192xf32> to vector<1x1x1024xf32>
      %93 = arith.mulf %92, %92 : vector<1x1x1024xf32>
      %94 = arith.addf %91, %93 : vector<1x1x1024xf32>
      %95 = vector.extract_strided_slice %75 {offsets = [0, 0, 6144], sizes = [1, 1, 1024], strides = [1, 1, 1]} : vector<1x1x8192xf32> to vector<1x1x1024xf32>
      %96 = arith.mulf %95, %95 : vector<1x1x1024xf32>
      %97 = arith.addf %94, %96 : vector<1x1x1024xf32>
      %98 = vector.extract_strided_slice %75 {offsets = [0, 0, 7168], sizes = [1, 1, 1024], strides = [1, 1, 1]} : vector<1x1x8192xf32> to vector<1x1x1024xf32>
      %99 = arith.mulf %98, %98 : vector<1x1x1024xf32>
      %100 = arith.addf %97, %99 : vector<1x1x1024xf32>
      %101 = math.sqrt %100 : vector<1x1x1024xf32>
      %cst_83 = arith.constant 1.000000e+00 : f32
      %102 = vector.broadcast %cst_83 : f32 to vector<1x1x1024xf32>
      %103 = arith.addf %102, %100 : vector<1x1x1024xf32>
      %104 = arith.divf %101, %103 : vector<1x1x1024xf32>
      %105 = vector.extract_strided_slice %75 {offsets = [0, 0, 0], sizes = [1, 1, 1024], strides = [1, 1, 1]} : vector<1x1x8192xf32> to vector<1x1x1024xf32>
      %106 = arith.mulf %105, %104 : vector<1x1x1024xf32>
      %c0_84 = arith.constant 0 : index
      %c0_85 = arith.constant 0 : index
      %c0_86 = arith.constant 0 : index
      %107 = vector.load %arg5[%c0_84, %c0_85, %c0_86] : memref<1x1x8192xf32, #tpu.memory_space<vmem>>, vector<1x1x1024xf32>
      tpu.vector_store %arg5[%c0_84, %c0_85, %c0_86], %106 {strides = array<i32>} : memref<1x1x8192xf32, #tpu.memory_space<vmem>>, vector<1x1x1024xf32>,
      %108 = vector.extract_strided_slice %75 {offsets = [0, 0, 1024], sizes = [1, 1, 1024], strides = [1, 1, 1]} : vector<1x1x8192xf32> to vector<1x1x1024xf32>
      %109 = arith.mulf %108, %104 : vector<1x1x1024xf32>
      %c0_87 = arith.constant 0 : index
      %c0_88 = arith.constant 0 : index
      %c1024_89 = arith.constant 1024 : index
      %110 = vector.load %arg5[%c0_87, %c0_88, %c1024_89] : memref<1x1x8192xf32, #tpu.memory_space<vmem>>, vector<1x1x1024xf32>
      tpu.vector_store %arg5[%c0_87, %c0_88, %c1024_89], %109 {strides = array<i32>} : memref<1x1x8192xf32, #tpu.memory_space<vmem>>, vector<1x1x1024xf32>,
      %111 = vector.extract_strided_slice %75 {offsets = [0, 0, 2048], sizes = [1, 1, 1024], strides = [1, 1, 1]} : vector<1x1x8192xf32> to vector<1x1x1024xf32>
      %112 = arith.mulf %111, %104 : vector<1x1x1024xf32>
      %c0_90 = arith.constant 0 : index
      %c0_91 = arith.constant 0 : index
      %c2048_92 = arith.constant 2048 : index
      %113 = vector.load %arg5[%c0_90, %c0_91, %c2048_92] : memref<1x1x8192xf32, #tpu.memory_space<vmem>>, vector<1x1x1024xf32>
      tpu.vector_store %arg5[%c0_90, %c0_91, %c2048_92], %112 {strides = array<i32>} : memref<1x1x8192xf32, #tpu.memory_space<vmem>>, vector<1x1x1024xf32>,
      %114 = vector.extract_strided_slice %75 {offsets = [0, 0, 3072], sizes = [1, 1, 1024], strides = [1, 1, 1]} : vector<1x1x8192xf32> to vector<1x1x1024xf32>
      %115 = arith.mulf %114, %104 : vector<1x1x1024xf32>
      %c0_93 = arith.constant 0 : index
      %c0_94 = arith.constant 0 : index
      %c3072_95 = arith.constant 3072 : index
      %116 = vector.load %arg5[%c0_93, %c0_94, %c3072_95] : memref<1x1x8192xf32, #tpu.memory_space<vmem>>, vector<1x1x1024xf32>
      tpu.vector_store %arg5[%c0_93, %c0_94, %c3072_95], %115 {strides = array<i32>} : memref<1x1x8192xf32, #tpu.memory_space<vmem>>, vector<1x1x1024xf32>,
      %117 = vector.extract_strided_slice %75 {offsets = [0, 0, 4096], sizes = [1, 1, 1024], strides = [1, 1, 1]} : vector<1x1x8192xf32> to vector<1x1x1024xf32>
      %118 = arith.mulf %117, %104 : vector<1x1x1024xf32>
      %c0_96 = arith.constant 0 : index
      %c0_97 = arith.constant 0 : index
      %c4096_98 = arith.constant 4096 : index
      %119 = vector.load %arg5[%c0_96, %c0_97, %c4096_98] : memref<1x1x8192xf32, #tpu.memory_space<vmem>>, vector<1x1x1024xf32>
      tpu.vector_store %arg5[%c0_96, %c0_97, %c4096_98], %118 {strides = array<i32>} : memref<1x1x8192xf32, #tpu.memory_space<vmem>>, vector<1x1x1024xf32>,
      %120 = vector.extract_strided_slice %75 {offsets = [0, 0, 5120], sizes = [1, 1, 1024], strides = [1, 1, 1]} : vector<1x1x8192xf32> to vector<1x1x1024xf32>
      %121 = arith.mulf %120, %104 : vector<1x1x1024xf32>
      %c0_99 = arith.constant 0 : index
      %c0_100 = arith.constant 0 : index
      %c5120_101 = arith.constant 5120 : index
      %122 = vector.load %arg5[%c0_99, %c0_100, %c5120_101] : memref<1x1x8192xf32, #tpu.memory_space<vmem>>, vector<1x1x1024xf32>
      tpu.vector_store %arg5[%c0_99, %c0_100, %c5120_101], %121 {strides = array<i32>} : memref<1x1x8192xf32, #tpu.memory_space<vmem>>, vector<1x1x1024xf32>,
      %123 = vector.extract_strided_slice %75 {offsets = [0, 0, 6144], sizes = [1, 1, 1024], strides = [1, 1, 1]} : vector<1x1x8192xf32> to vector<1x1x1024xf32>
      %124 = arith.mulf %123, %104 : vector<1x1x1024xf32>
      %c0_102 = arith.constant 0 : index
      %c0_103 = arith.constant 0 : index
      %c6144_104 = arith.constant 6144 : index
      %125 = vector.load %arg5[%c0_102, %c0_103, %c6144_104] : memref<1x1x8192xf32, #tpu.memory_space<vmem>>, vector<1x1x1024xf32>
      tpu.vector_store %arg5[%c0_102, %c0_103, %c6144_104], %124 {strides = array<i32>} : memref<1x1x8192xf32, #tpu.memory_space<vmem>>, vector<1x1x1024xf32>,
      %126 = vector.extract_strided_slice %75 {offsets = [0, 0, 7168], sizes = [1, 1, 1024], strides = [1, 1, 1]} : vector<1x1x8192xf32> to vector<1x1x1024xf32>
      %127 = arith.mulf %126, %104 : vector<1x1x1024xf32>
      %c0_105 = arith.constant 0 : index
      %c0_106 = arith.constant 0 : index
      %c7168_107 = arith.constant 7168 : index
      %128 = vector.load %arg5[%c0_105, %c0_106, %c7168_107] : memref<1x1x8192xf32, #tpu.memory_space<vmem>>, vector<1x1x1024xf32>
      tpu.vector_store %arg5[%c0_105, %c0_106, %c7168_107], %127 {strides = array<i32>} : memref<1x1x8192xf32, #tpu.memory_space<vmem>>, vector<1x1x1024xf32>,
    } else {
    }
    return
  }
  func.func @transform_0(%arg0: i32, %arg1: i32) -> (i32, i32, i32) {
    %c0_i32 = arith.constant 0 : i32
    %c0_i32_0 = arith.constant 0 : i32
    return %arg0, %arg1, %c0_i32 : i32, i32, i32
  }
  func.func @transform_1(%arg0: i32, %arg1: i32) -> (i32, i32) {
    %c0_i32 = arith.constant 0 : i32
    %c0_i32_0 = arith.constant 0 : i32
    %c0_i32_1 = arith.constant 0 : i32
    return %c0_i32, %c0_i32_0 : i32, i32
  }
  func.func @transform_2(%arg0: i32, %arg1: i32) -> (i32, i32) {
    %c0_i32 = arith.constant 0 : i32
    %c0_i32_0 = arith.constant 0 : i32
    %c0_i32_1 = arith.constant 0 : i32
    return %c0_i32, %c0_i32_0 : i32, i32
  }
  func.func @transform_3(%arg0: i32, %arg1: i32) -> (i32, i32, i32) {
    %c0_i32 = arith.constant 0 : i32
    %c0_i32_0 = arith.constant 0 : i32
    %c0_i32_1 = arith.constant 0 : i32
    return %arg0, %c0_i32, %c0_i32_0 : i32, i32, i32
  }
}

</mosaic_0001>

<llo_original>
// kernel: tpu_custom_call.1
$region0: #{tpu_custom_call.1}
  #allocation0 [shape = 'u32[]', space=smem, size = 0x4, offset = 0x4, fixed_abs, tag = 'smem constant byte address 0x4 - core index']
  #allocation1 [shape = 'u32[144,128]{1,0:T(1,128)}', space=vmem, size = 0x12000, scoped, tag = 'internal scratch']
  %s0 = inlined_call_operand.hbm [shape: bf16[2,64,128], index: 0, kind: input, shape index: {}]
  %s1 = inlined_call_operand.hbm [shape: bf16[128,8192], index: 1, kind: input, shape index: {}]
  %s2 = inlined_call_operand.hbm [shape: f32[1,8192], index: 2, kind: input, shape index: {}]
  %s3 = inlined_call_operand.hbm [shape: f32[2,1,8192], index: 3, kind: output, shape index: {}]
  %s4 = sld [smem:[#allocation0]]
  $region65: #{tpu_custom_call.1} parent=0
    _
  %s6 = ssub.s32 1, %s4
  %s7 = scalar_select 0, %s6, %s4
  $region1: #{tpu_custom_call.1} parent=0
    #allocation2 [shape = 'u8[32768]{0}', space=vmem, size = 0x8000, scoped, tag = 'input window, operand 0']
    #allocation3 [shape = 's32[2]{0}', space=sflag, size = 0x8, scoped, tag = 'scoped memory for tpu_custom_call.1']
    #allocation4 [shape = 's32[2]{0}', space=sflag, size = 0x8, scoped, tag = 'scoped memory for tpu_custom_call.1']
    #allocation5 [shape = 'u8[2097152]{0}', space=vmem, size = 0x200000, scoped, tag = 'input window, operand 1, single buffered']
    #allocation6 [shape = 's32[1]{0}', space=sflag, size = 0x4, scoped, tag = 'scoped memory for tpu_custom_call.1']
    #allocation7 [shape = 'u8[32768]{0}', space=vmem, size = 0x8000, scoped, tag = 'input window, operand 2, single buffered']
    #allocation8 [shape = 'u8[65536]{0}', space=vmem, size = 0x10000, scoped, tag = 'output window, operand 0']
    %8 = vsyncpa [#allocation3], 0
    %s9 = scalar_lea.sflag [#allocation3], 1
    %10 = vsyncpa %s9, 0
    %11 = vsyncpa [#allocation6], 0
    %12 = vsyncpa [#allocation4], 0
    %s13 = scalar_lea.sflag [#allocation4], 1
    %14 = vsyncpa %s13, 0
    loop: start=0, step=1, limit=4
    $region2: #{tpu_custom_call.1} parent=1 // loop_pre_header
      _
    $region3: #{tpu_custom_call.1} parent=1 // loop_header
      %s16 = sphi 0, %s20
      %p17 = scmp.ge.s32.totalorder %s16, 4
      %s23 = sphi 0, %s35
      %s24 = sphi 0, %s31
      %s25 = sphi 0, %s23
      %s26 = sphi 0, %s24
      %s27 = sphi 0, %s25
      %s28 = sphi 0, %s26
      %s40 = sphi 0, %s42
      %s43 = sphi 0, %s40
      %s44 = sphi 0, %s43
      %s60 = sphi 0, %s44
      %s64 = sphi 0, %s64
      %s66 = sphi 0, %s64
      %s67 = sphi 0, %s66
      %s81 = sphi 0, %s67
      %s85 = sphi 0, %s85
      %s87 = sphi 0, %s85
      %s88 = sphi 0, %s87
      %s102 = sphi 0, %s88
      %s108 = sphi 0, %s110
      %s111 = sphi 0, %s108
      %s112 = sphi 0, %s111
      %s128 = sphi 0, %s112
    $region4: #{tpu_custom_call.1} parent=1 // loop_header_branch
      %19 = sbr.rel (%p17) target = $region8
    $region5: #{tpu_custom_call.1} parent=1 // loop_body
      %s21 = ssub.s32 %s16, 1
      %s22 = ssub.s32 %s16, 2
      %s29 = sadd.s32 1, %s24
      %p30 = scmp.ge.s32.totalorder %s29, 1
      %s31 = scalar_select %p30, 0, %s29
      %s32 = sadd.s32 1, %s23
      %s33 = scalar_select %p30, %s32, %s23
      %p34 = scmp.ge.s32.totalorder %s33, 2
      %s35 = scalar_select %p34, 0, %s33
      %s36 = ssub.s32 %s23, %s35
      %s37 = ssub.s32 %s24, %s31
      %s38 = sor.u32 %s36, %s37
      %p39 = scmp.eq.s32.totalorder %s38, 0
      %s41 = sadd.s32 %s40, 1
      %s42 = scalar_select %p39, %s40, %s41
      %p45 = pneg %p39
      %p46 = scmp.eq.s32.totalorder %s16, 1
      %p47 = por %p45, %p46
      %p48 = scmp.ne.s32.totalorder %s40, %s43
      %p49 = scmp.eq.s32.totalorder %s16, 0
      %p50 = por %p48, %p49
      %p51 = scmp.ne.s32.totalorder %s40, %s43
      %p52 = scmp.eq.s32.totalorder %s21, 1
      %p53 = por %p51, %p52
      %p54 = scmp.ne.s32.totalorder %s43, %s44
      %p55 = scmp.eq.s32.totalorder %s21, 0
      %p56 = por %p54, %p55
      %p57 = scmp.ne.s32.totalorder %s43, %s44
      %p58 = scmp.eq.s32.totalorder %s22, 1
      %p59 = por %p57, %p58
      %p61 = scmp.ne.s32.totalorder %s44, %s60
      %p62 = scmp.eq.s32.totalorder %s22, 0
      %p63 = por %p61, %p62
      %s65 = sadd.s32 %s64, 1
      %p68 = scmp.eq.s32.totalorder %s16, 1
      %p69 = scmp.ne.s32.totalorder %s64, %s66
      %p70 = scmp.eq.s32.totalorder %s16, 0
      %p71 = por %p69, %p70
      %p72 = scmp.ne.s32.totalorder %s64, %s66
      %p73 = scmp.eq.s32.totalorder %s21, 1
      %p74 = por %p72, %p73
      %p75 = scmp.ne.s32.totalorder %s66, %s67
      %p76 = scmp.eq.s32.totalorder %s21, 0
      %p77 = por %p75, %p76
      %p78 = scmp.ne.s32.totalorder %s66, %s67
      %p79 = scmp.eq.s32.totalorder %s22, 1
      %p80 = por %p78, %p79
      %p82 = scmp.ne.s32.totalorder %s67, %s81
      %p83 = scmp.eq.s32.totalorder %s22, 0
      %p84 = por %p82, %p83
      %s86 = sadd.s32 %s85, 1
      %p89 = scmp.eq.s32.totalorder %s16, 1
      %p90 = scmp.ne.s32.totalorder %s85, %s87
      %p91 = scmp.eq.s32.totalorder %s16, 0
      %p92 = por %p90, %p91
      %p93 = scmp.ne.s32.totalorder %s85, %s87
      %p94 = scmp.eq.s32.totalorder %s21, 1
      %p95 = por %p93, %p94
      %p96 = scmp.ne.s32.totalorder %s87, %s88
      %p97 = scmp.eq.s32.totalorder %s21, 0
      %p98 = por %p96, %p97
      %p99 = scmp.ne.s32.totalorder %s87, %s88
      %p100 = scmp.eq.s32.totalorder %s22, 1
      %p101 = por %p99, %p100
      %p103 = scmp.ne.s32.totalorder %s88, %s102
      %p104 = scmp.eq.s32.totalorder %s22, 0
      %p105 = por %p103, %p104
      %s106 = ssub.s32 %s23, %s35
      %p107 = scmp.eq.s32.totalorder %s106, 0
      %s109 = sadd.s32 %s108, 1
      %s110 = scalar_select %p107, %s108, %s109
      %p113 = pneg %p107
      %p114 = scmp.eq.s32.totalorder %s16, 1
      %p115 = por %p113, %p114
      %p116 = scmp.ne.s32.totalorder %s108, %s111
      %p117 = scmp.eq.s32.totalorder %s16, 0
      %p118 = por %p116, %p117
      %p119 = scmp.ne.s32.totalorder %s108, %s111
      %p120 = scmp.eq.s32.totalorder %s21, 1
      %p121 = por %p119, %p120
      %p122 = scmp.ne.s32.totalorder %s111, %s112
      %p123 = scmp.eq.s32.totalorder %s21, 0
      %p124 = por %p122, %p123
      %p125 = scmp.ne.s32.totalorder %s111, %s112
      %p126 = scmp.eq.s32.totalorder %s22, 1
      %p127 = por %p125, %p126
      %p129 = scmp.ne.s32.totalorder %s112, %s128
      %p130 = scmp.eq.s32.totalorder %s22, 0
      %p131 = por %p129, %p130
      %p132 = scmp.le.s32.totalorder 1, %s16
      %p133 = scmp.lt.s32.totalorder %s16, 3
      %p134 = pnand %p132, %p133
      %p135 = pneg %p134
      // Predicated region
      $region9: #{tpu_custom_call.1} parent=5 // pred_check
        _
      $region10: #{tpu_custom_call.1} parent=5 // pred_check_branch
        %137 = sbr.rel (%p134) target = $region12
      $region11: #{tpu_custom_call.1} parent=5 // pred_region
        %s138 = ssub.s32 %s16, 1
        // Predicated region
        $region13: #{tpu_custom_call.1} parent=11 // pred_check
          %p139 = pneg %p77
        $region14: #{tpu_custom_call.1} parent=11 // pred_check_branch
          %141 = sbr.rel (%p139) target = $region16
        $region15: #{tpu_custom_call.1} parent=11 // pred_region
          %s143 = ssub.s32 65536, 65536
          %144 = vsyncadd [#allocation6], %s143
          %s145 = sshll.u32 [#allocation5], 4
          %s146 = int_to_ptr.vmem [resolvable:$true] %s145
          %151 = dma.hbm_to_vmem [thread:$0]  %s1, 65536, %s146, [#allocation6], 4096, 4096, 256
        $region16: #{tpu_custom_call.1} parent=11 // pred_fallthru
          _
        // Predicated region
        $region17: #{tpu_custom_call.1} parent=11 // pred_check
          %p152 = pneg %p98
        $region18: #{tpu_custom_call.1} parent=11 // pred_check_branch
          %154 = sbr.rel (%p152) target = $region20
        $region19: #{tpu_custom_call.1} parent=11 // pred_region
          %s156 = ssub.s32 1024, 1024
          %157 = vsyncadd [#allocation6], %s156
          %s159 = sshll.u32 [#allocation7], 4
          %s160 = int_to_ptr.vmem [resolvable:$true] %s159
          %162 = dma.hbm_to_vmem [thread:$0]  %s2, 1024, %s160, [#allocation6]
        $region20: #{tpu_custom_call.1} parent=11 // pred_fallthru
          _
      $region12: #{tpu_custom_call.1} parent=5 // pred_fallthru
        _
      %p163 = scmp.lt.s32.totalorder %s16, 2
      // Predicated region
      $region21: #{tpu_custom_call.1} parent=5 // pred_check
        %p164 = pneg %p163
      $region22: #{tpu_custom_call.1} parent=5 // pred_check_branch
        %166 = sbr.rel (%p164) target = $region24
      $region23: #{tpu_custom_call.1} parent=5 // pred_region
        // Predicated region
        $region25: #{tpu_custom_call.1} parent=23 // pred_check
          %p167 = pneg %p50
        $region26: #{tpu_custom_call.1} parent=23 // pred_check_branch
          %169 = sbr.rel (%p167) target = $region28
        $region27: #{tpu_custom_call.1} parent=23 // pred_region
          %s170 = sand.u32 %s40, 1
          %s171 = scalar_lea.sflag [#allocation3], %s170
          %s172 = sand.u32 %s40, 1
          %s173 = smul.addr %s172, 32
          %s174 = scalar_lea.vmem [#allocation2], %s173
          %s175 = smul.u32 8, %s24
          %s177 = ssub.s32 512, 512
          %178 = vsyncadd %s171, %s177
          %s179 = smul.addr %s23, 8
          %s180 = sadd.s32 %s175, %s179
          %s181 = smul.addr %s180, 64
          %s182 = scalar_lea.hbm %s0, %s181
          %s183 = sshll.u32 %s174, 4
          %s184 = int_to_ptr.vmem [resolvable:$true] %s183
          %189 = dma.hbm_to_vmem [thread:$0]  %s182, 512, %s184, %s171, 64, 64, 4
        $region28: #{tpu_custom_call.1} parent=23 // pred_fallthru
          _
      $region24: #{tpu_custom_call.1} parent=5 // pred_fallthru
        _
      %p190 = scmp.le.s32.totalorder 1, %s16
      %p191 = scmp.lt.s32.totalorder %s16, 3
      %p192 = pnand %p190, %p191
      %p193 = pneg %p192
      // Predicated region
      $region29: #{tpu_custom_call.1} parent=5 // pred_check
        _
      $region30: #{tpu_custom_call.1} parent=5 // pred_check_branch
        %195 = sbr.rel (%p192) target = $region32
      $region31: #{tpu_custom_call.1} parent=5 // pred_region
        %s196 = ssub.s32 %s16, 1
        %s197 = sand.u32 %s43, 1
        %s198 = scalar_lea.sflag [#allocation3], %s197
        %s199 = sand.u32 %s43, 1
        %s200 = smul.addr %s199, 32
        %s201 = scalar_lea.vmem [#allocation2], %s200
        // Predicated region
        $region33: #{tpu_custom_call.1} parent=31 // pred_check
          %p202 = pneg %p56
        $region34: #{tpu_custom_call.1} parent=31 // pred_check_branch
          %204 = sbr.rel (%p202) target = $region36
        $region35: #{tpu_custom_call.1} parent=31 // pred_region
          %205 = dma.done %s198, 512
        $region36: #{tpu_custom_call.1} parent=31 // pred_fallthru
          _
        // Predicated region
        $region37: #{tpu_custom_call.1} parent=31 // pred_check
          %p206 = pneg %p77
        $region38: #{tpu_custom_call.1} parent=31 // pred_check_branch
          %208 = sbr.rel (%p206) target = $region40
        $region39: #{tpu_custom_call.1} parent=31 // pred_region
          %209 = dma.done [#allocation6], 65536
        $region40: #{tpu_custom_call.1} parent=31 // pred_fallthru
          _
        // Predicated region
        $region41: #{tpu_custom_call.1} parent=31 // pred_check
          %p210 = pneg %p98
        $region42: #{tpu_custom_call.1} parent=31 // pred_check_branch
          %212 = sbr.rel (%p210) target = $region44
        $region43: #{tpu_custom_call.1} parent=31 // pred_region
          %213 = dma.done [#allocation6], 1024
        $region44: #{tpu_custom_call.1} parent=31 // pred_fallthru
          _
        %s214 = sand.u32 %s43, 1
        %s215 = scalar_lea.sflag [#allocation3], %s214
        %s216 = sand.u32 %s43, 1
        %s217 = smul.addr %s216, 32
        %s218 = scalar_lea.vmem [#allocation2], %s217
        %p219 = pneg %p56
        %p220 = pneg %p53
        %p221 = pneg %p77
        %p222 = pneg %p74
        %p223 = pneg %p98
        %p224 = pneg %p95
        %p225 = pneg %p124
        %p226 = pneg %p121
        %s227 = sand.u32 %s111, 1
        %s228 = scalar_lea.sflag [#allocation4], %s227
        %s229 = sand.u32 %s111, 1
        %s230 = smul.addr %s229, 64
        %s231 = scalar_lea.vmem [#allocation8], %s230
        %s232 = smul.u32 8, %s26
        %p234 = scmp.eq.s32.totalorder %s26, 0
        // Predicated region
        $region45: #{tpu_custom_call.1} parent=31 // pred_check
          %p235 = pneg %p234
        $region46: #{tpu_custom_call.1} parent=31 // pred_check_branch
          %237 = sbr.rel (%p235) target = $region48
        $region47: #{tpu_custom_call.1} parent=31 // pred_region
          %238 = vst [vmem:[%s231] sm:$0xff] -inf
          %239 = vst [vmem:[%s231 + $0x8] sm:$0xff] -inf
          %240 = vst [vmem:[%s231 + $0x10] sm:$0xff] -inf
          %241 = vst [vmem:[%s231 + $0x18] sm:$0xff] -inf
          %242 = vst [vmem:[%s231 + $0x20] sm:$0xff] -inf
          %243 = vst [vmem:[%s231 + $0x28] sm:$0xff] -inf
          %244 = vst [vmem:[%s231 + $0x30] sm:$0xff] -inf
          %245 = vst [vmem:[%s231 + $0x38] sm:$0xff] -inf
        $region48: #{tpu_custom_call.1} parent=31 // pred_fallthru
          _
        %v246 = vld [vmem:[%s201] sm:$0xf]
        %v247 = vld [vmem:[%s201 + $0x4] sm:$0xf]
        %v248 = vld [vmem:[%s201 + $0x8] sm:$0xf]
        %v249 = vld [vmem:[%s201 + $0xc] sm:$0xf]
        %v250 = vld [vmem:[%s201 + $0x10] sm:$0xf]
        %v251 = vld [vmem:[%s201 + $0x14] sm:$0xf]
        %v252 = vld [vmem:[%s201 + $0x18] sm:$0xf]
        %v253 = vld [vmem:[%s201 + $0x1c] sm:$0xf]
        %v254 = vld [vmem:[#allocation5] sm:$0xff]
        %v255 = vld [vmem:[#allocation5 + $0x8] sm:$0xff]
        %v256 = vld [vmem:[#allocation5 + $0x10] sm:$0xff]
        %v257 = vld [vmem:[#allocation5 + $0x18] sm:$0xff]
        %v258 = vld [vmem:[#allocation5 + $0x100] sm:$0xff]
        %v259 = vld [vmem:[#allocation5 + $0x108] sm:$0xff]
        %v260 = vld [vmem:[#allocation5 + $0x110] sm:$0xff]
        %v261 = vld [vmem:[#allocation5 + $0x118] sm:$0xff]
        %v262 = vld [vmem:[#allocation5 + $0x200] sm:$0xff]
        %v263 = vld [vmem:[#allocation5 + $0x208] sm:$0xff]
        %v264 = vld [vmem:[#allocation5 + $0x210] sm:$0xff]
        %v265 = vld [vmem:[#allocation5 + $0x218] sm:$0xff]
        %v266 = vld [vmem:[#allocation5 + $0x300] sm:$0xff]
        %v267 = vld [vmem:[#allocation5 + $0x308] sm:$0xff]
        %v268 = vld [vmem:[#allocation5 + $0x310] sm:$0xff]
        %v269 = vld [vmem:[#allocation5 + $0x318] sm:$0xff]
        %v270 = vld [vmem:[#allocation5 + $0x400] sm:$0xff]
        %v271 = vld [vmem:[#allocation5 + $0x408] sm:$0xff]
        %v272 = vld [vmem:[#allocation5 + $0x410] sm:$0xff]
        %v273 = vld [vmem:[#allocation5 + $0x418] sm:$0xff]
        %v274 = vld [vmem:[#allocation5 + $0x500] sm:$0xff]
        %v275 = vld [vmem:[#allocation5 + $0x508] sm:$0xff]
        %v276 = vld [vmem:[#allocation5 + $0x510] sm:$0xff]
        %v277 = vld [vmem:[#allocation5 + $0x518] sm:$0xff]
        %v278 = vld [vmem:[#allocation5 + $0x600] sm:$0xff]
        %v279 = vld [vmem:[#allocation5 + $0x608] sm:$0xff]
        %v280 = vld [vmem:[#allocation5 + $0x610] sm:$0xff]
        %v281 = vld [vmem:[#allocation5 + $0x618] sm:$0xff]
        %v282 = vld [vmem:[#allocation5 + $0x700] sm:$0xff]
        %v283 = vld [vmem:[#allocation5 + $0x708] sm:$0xff]
        %v284 = vld [vmem:[#allocation5 + $0x710] sm:$0xff]
        %v285 = vld [vmem:[#allocation5 + $0x718] sm:$0xff]
        %v286 = vld [vmem:[#allocation5 + $0x800] sm:$0xff]
        %v287 = vld [vmem:[#allocation5 + $0x808] sm:$0xff]
        %v288 = vld [vmem:[#allocation5 + $0x810] sm:$0xff]
        %v289 = vld [vmem:[#allocation5 + $0x818] sm:$0xff]
        %v290 = vld [vmem:[#allocation5 + $0x900] sm:$0xff]
        %v291 = vld [vmem:[#allocation5 + $0x908] sm:$0xff]
        %v292 = vld [vmem:[#allocation5 + $0x910] sm:$0xff]
        %v293 = vld [vmem:[#allocation5 + $0x918] sm:$0xff]
        %v294 = vld [vmem:[#allocation5 + $0xa00] sm:$0xff]
        %v295 = vld [vmem:[#allocation5 + $0xa08] sm:$0xff]
        %v296 = vld [vmem:[#allocation5 + $0xa10] sm:$0xff]
        %v297 = vld [vmem:[#allocation5 + $0xa18] sm:$0xff]
        %v298 = vld [vmem:[#allocation5 + $0xb00] sm:$0xff]
        %v299 = vld [vmem:[#allocation5 + $0xb08] sm:$0xff]
        %v300 = vld [vmem:[#allocation5 + $0xb10] sm:$0xff]
        %v301 = vld [vmem:[#allocation5 + $0xb18] sm:$0xff]
        %v302 = vld [vmem:[#allocation5 + $0xc00] sm:$0xff]
        %v303 = vld [vmem:[#allocation5 + $0xc08] sm:$0xff]
        %v304 = vld [vmem:[#allocation5 + $0xc10] sm:$0xff]
        %v305 = vld [vmem:[#allocation5 + $0xc18] sm:$0xff]
        %v306 = vld [vmem:[#allocation5 + $0xd00] sm:$0xff]
        %v307 = vld [vmem:[#allocation5 + $0xd08] sm:$0xff]
        %v308 = vld [vmem:[#allocation5 + $0xd10] sm:$0xff]
        %v309 = vld [vmem:[#allocation5 + $0xd18] sm:$0xff]
        %v310 = vld [vmem:[#allocation5 + $0xe00] sm:$0xff]
        %v311 = vld [vmem:[#allocation5 + $0xe08] sm:$0xff]
        %v312 = vld [vmem:[#allocation5 + $0xe10] sm:$0xff]
        %v313 = vld [vmem:[#allocation5 + $0xe18] sm:$0xff]
        %v314 = vld [vmem:[#allocation5 + $0xf00] sm:$0xff]
        %v315 = vld [vmem:[#allocation5 + $0xf08] sm:$0xff]
        %v316 = vld [vmem:[#allocation5 + $0xf10] sm:$0xff]
        %v317 = vld [vmem:[#allocation5 + $0xf18] sm:$0xff]
        %v326 = vunpack.c.l.b16 %v246
        %v327 = vunpack.c.l.b16 %v247
        %v328 = vunpack.c.l.b16 %v248
        %v329 = vunpack.c.l.b16 %v249
        %v330 = vunpack.c.l.b16 %v250
        %v331 = vunpack.c.l.b16 %v251
        %v332 = vunpack.c.l.b16 %v252
        %v333 = vunpack.c.l.b16 %v253
        %v334 = vpack.c.b16 %v327, %v326
        %v335 = vpack.c.b16 %v329, %v328
        %v336 = vpack.c.b16 %v331, %v330
        %v337 = vpack.c.b16 %v333, %v332
        %v406 = vunpack.c.l.b16 %v254
        %v407 = vunpack.c.h.b16 %v254
        %v408 = vunpack.c.l.b16 %v255
        %v409 = vunpack.c.h.b16 %v255
        %v410 = vunpack.c.l.b16 %v256
        %v411 = vunpack.c.h.b16 %v256
        %v412 = vunpack.c.l.b16 %v257
        %v413 = vunpack.c.h.b16 %v257
        %v414 = vunpack.c.l.b16 %v258
        %v415 = vunpack.c.h.b16 %v258
        %v416 = vunpack.c.l.b16 %v259
        %v417 = vunpack.c.h.b16 %v259
        %v418 = vunpack.c.l.b16 %v260
        %v419 = vunpack.c.h.b16 %v260
        %v420 = vunpack.c.l.b16 %v261
        %v421 = vunpack.c.h.b16 %v261
        %v422 = vunpack.c.l.b16 %v262
        %v423 = vunpack.c.h.b16 %v262
        %v424 = vunpack.c.l.b16 %v263
        %v425 = vunpack.c.h.b16 %v263
        %v426 = vunpack.c.l.b16 %v264
        %v427 = vunpack.c.h.b16 %v264
        %v428 = vunpack.c.l.b16 %v265
        %v429 = vunpack.c.h.b16 %v265
        %v430 = vunpack.c.l.b16 %v266
        %v431 = vunpack.c.h.b16 %v266
        %v432 = vunpack.c.l.b16 %v267
        %v433 = vunpack.c.h.b16 %v267
        %v434 = vunpack.c.l.b16 %v268
        %v435 = vunpack.c.h.b16 %v268
        %v436 = vunpack.c.l.b16 %v269
        %v437 = vunpack.c.h.b16 %v269
        %v438 = vunpack.c.l.b16 %v270
        %v439 = vunpack.c.h.b16 %v270
        %v440 = vunpack.c.l.b16 %v271
        %v441 = vunpack.c.h.b16 %v271
        %v442 = vunpack.c.l.b16 %v272
        %v443 = vunpack.c.h.b16 %v272
        %v444 = vunpack.c.l.b16 %v273
        %v445 = vunpack.c.h.b16 %v273
        %v446 = vunpack.c.l.b16 %v274
        %v447 = vunpack.c.h.b16 %v274
        %v448 = vunpack.c.l.b16 %v275
        %v449 = vunpack.c.h.b16 %v275
        %v450 = vunpack.c.l.b16 %v276
        %v451 = vunpack.c.h.b16 %v276
        %v452 = vunpack.c.l.b16 %v277
        %v453 = vunpack.c.h.b16 %v277
        %v454 = vunpack.c.l.b16 %v278
        %v455 = vunpack.c.h.b16 %v278
        %v456 = vunpack.c.l.b16 %v279
        %v457 = vunpack.c.h.b16 %v279
        %v458 = vunpack.c.l.b16 %v280
        %v459 = vunpack.c.h.b16 %v280
        %v460 = vunpack.c.l.b16 %v281
        %v461 = vunpack.c.h.b16 %v281
        %v462 = vunpack.c.l.b16 %v282
        %v463 = vunpack.c.h.b16 %v282
        %v464 = vunpack.c.l.b16 %v283
        %v465 = vunpack.c.h.b16 %v283
        %v466 = vunpack.c.l.b16 %v284
        %v467 = vunpack.c.h.b16 %v284
        %v468 = vunpack.c.l.b16 %v285
        %v469 = vunpack.c.h.b16 %v285
        %v470 = vunpack.c.l.b16 %v286
        %v471 = vunpack.c.h.b16 %v286
        %v472 = vunpack.c.l.b16 %v287
        %v473 = vunpack.c.h.b16 %v287
        %v474 = vunpack.c.l.b16 %v288
        %v475 = vunpack.c.h.b16 %v288
        %v476 = vunpack.c.l.b16 %v289
        %v477 = vunpack.c.h.b16 %v289
        %v478 = vunpack.c.l.b16 %v290
        %v479 = vunpack.c.h.b16 %v290
        %v480 = vunpack.c.l.b16 %v291
        %v481 = vunpack.c.h.b16 %v291
        %v482 = vunpack.c.l.b16 %v292
        %v483 = vunpack.c.h.b16 %v292
        %v484 = vunpack.c.l.b16 %v293
        %v485 = vunpack.c.h.b16 %v293
        %v486 = vunpack.c.l.b16 %v294
        %v487 = vunpack.c.h.b16 %v294
        %v488 = vunpack.c.l.b16 %v295
        %v489 = vunpack.c.h.b16 %v295
        %v490 = vunpack.c.l.b16 %v296
        %v491 = vunpack.c.h.b16 %v296
        %v492 = vunpack.c.l.b16 %v297
        %v493 = vunpack.c.h.b16 %v297
        %v494 = vunpack.c.l.b16 %v298
        %v495 = vunpack.c.h.b16 %v298
        %v496 = vunpack.c.l.b16 %v299
        %v497 = vunpack.c.h.b16 %v299
        %v498 = vunpack.c.l.b16 %v300
        %v499 = vunpack.c.h.b16 %v300
        %v500 = vunpack.c.l.b16 %v301
        %v501 = vunpack.c.h.b16 %v301
        %v502 = vunpack.c.l.b16 %v302
        %v503 = vunpack.c.h.b16 %v302
        %v504 = vunpack.c.l.b16 %v303
        %v505 = vunpack.c.h.b16 %v303
        %v506 = vunpack.c.l.b16 %v304
        %v507 = vunpack.c.h.b16 %v304
        %v508 = vunpack.c.l.b16 %v305
        %v509 = vunpack.c.h.b16 %v305
        %v510 = vunpack.c.l.b16 %v306
        %v511 = vunpack.c.h.b16 %v306
        %v512 = vunpack.c.l.b16 %v307
        %v513 = vunpack.c.h.b16 %v307
        %v514 = vunpack.c.l.b16 %v308
        %v515 = vunpack.c.h.b16 %v308
        %v516 = vunpack.c.l.b16 %v309
        %v517 = vunpack.c.h.b16 %v309
        %v518 = vunpack.c.l.b16 %v310
        %v519 = vunpack.c.h.b16 %v310
        %v520 = vunpack.c.l.b16 %v311
        %v521 = vunpack.c.h.b16 %v311
        %v522 = vunpack.c.l.b16 %v312
        %v523 = vunpack.c.h.b16 %v312
        %v524 = vunpack.c.l.b16 %v313
        %v525 = vunpack.c.h.b16 %v313
        %v526 = vunpack.c.l.b16 %v314
        %v527 = vunpack.c.h.b16 %v314
        %v528 = vunpack.c.l.b16 %v315
        %v529 = vunpack.c.h.b16 %v315
        %v530 = vunpack.c.l.b16 %v316
        %v531 = vunpack.c.h.b16 %v316
        %v532 = vunpack.c.l.b16 %v317
        %v533 = vunpack.c.h.b16 %v317
        %v534 = vpack.c.b16 %v414, %v406
        %v535 = vpack.c.b16 %v415, %v407
        %v536 = vpack.c.b16 %v416, %v408
        %v537 = vpack.c.b16 %v417, %v409
        %v538 = vpack.c.b16 %v418, %v410
        %v539 = vpack.c.b16 %v419, %v411
        %v540 = vpack.c.b16 %v420, %v412
        %v541 = vpack.c.b16 %v421, %v413
        %v542 = vpack.c.b16 %v430, %v422
        %v543 = vpack.c.b16 %v431, %v423
        %v544 = vpack.c.b16 %v432, %v424
        %v545 = vpack.c.b16 %v433, %v425
        %v546 = vpack.c.b16 %v434, %v426
        %v547 = vpack.c.b16 %v435, %v427
        %v548 = vpack.c.b16 %v436, %v428
        %v549 = vpack.c.b16 %v437, %v429
        %v550 = vpack.c.b16 %v446, %v438
        %v551 = vpack.c.b16 %v447, %v439
        %v552 = vpack.c.b16 %v448, %v440
        %v553 = vpack.c.b16 %v449, %v441
        %v554 = vpack.c.b16 %v450, %v442
        %v555 = vpack.c.b16 %v451, %v443
        %v556 = vpack.c.b16 %v452, %v444
        %v557 = vpack.c.b16 %v453, %v445
        %v558 = vpack.c.b16 %v462, %v454
        %v559 = vpack.c.b16 %v463, %v455
        %v560 = vpack.c.b16 %v464, %v456
        %v561 = vpack.c.b16 %v465, %v457
        %v562 = vpack.c.b16 %v466, %v458
        %v563 = vpack.c.b16 %v467, %v459
        %v564 = vpack.c.b16 %v468, %v460
        %v565 = vpack.c.b16 %v469, %v461
        %v566 = vpack.c.b16 %v478, %v470
        %v567 = vpack.c.b16 %v479, %v471
        %v568 = vpack.c.b16 %v480, %v472
        %v569 = vpack.c.b16 %v481, %v473
        %v570 = vpack.c.b16 %v482, %v474
        %v571 = vpack.c.b16 %v483, %v475
        %v572 = vpack.c.b16 %v484, %v476
        %v573 = vpack.c.b16 %v485, %v477
        %v574 = vpack.c.b16 %v494, %v486
        %v575 = vpack.c.b16 %v495, %v487
        %v576 = vpack.c.b16 %v496, %v488
        %v577 = vpack.c.b16 %v497, %v489
        %v578 = vpack.c.b16 %v498, %v490
        %v579 = vpack.c.b16 %v499, %v491
        %v580 = vpack.c.b16 %v500, %v492
        %v581 = vpack.c.b16 %v501, %v493
        %v582 = vpack.c.b16 %v510, %v502
        %v583 = vpack.c.b16 %v511, %v503
        %v584 = vpack.c.b16 %v512, %v504
        %v585 = vpack.c.b16 %v513, %v505
        %v586 = vpack.c.b16 %v514, %v506
        %v587 = vpack.c.b16 %v515, %v507
        %v588 = vpack.c.b16 %v516, %v508
        %v589 = vpack.c.b16 %v517, %v509
        %v590 = vpack.c.b16 %v526, %v518
        %v591 = vpack.c.b16 %v527, %v519
        %v592 = vpack.c.b16 %v528, %v520
        %v593 = vpack.c.b16 %v529, %v521
        %v594 = vpack.c.b16 %v530, %v522
        %v595 = vpack.c.b16 %v531, %v523
        %v596 = vpack.c.b16 %v532, %v524
        %v597 = vpack.c.b16 %v533, %v525
        %662 = vmatprep.subr.bf16.mxu0 %v535
        %663 = vmatpush1.bf16.msra.mxu0 %v534
        %664 = vmatprep.subr.bf16.mxu0 %v543
        %665 = vmatpush1.bf16.msra.mxu0 %v542
        %666 = vmatprep.subr.bf16.mxu0 %v551
        %667 = vmatpush1.bf16.msra.mxu0 %v550
        %668 = vmatprep.subr.bf16.mxu0 %v559
        %669 = vmatpush1.bf16.msra.mxu0 %v558
        %670 = vmatprep.subr.bf16.mxu0 %v567
        %671 = vmatpush1.bf16.msra.mxu0 %v566
        %672 = vmatprep.subr.bf16.mxu0 %v575
        %673 = vmatpush1.bf16.msra.mxu0 %v574
        %674 = vmatprep.subr.bf16.mxu0 %v583
        %675 = vmatpush1.bf16.msra.mxu0 %v582
        %676 = vmatprep.subr.bf16.mxu0 %v591
        %677 = vmatpush1.bf16.msra.mxu0 %v590
        %678 = vmatprep.subr.bf16.mxu0 0
        %679 = vmatpush1.bf16.msra.mxu0 0
        %680 = vmatprep.subr.bf16.mxu0 0
        %681 = vmatpush1.bf16.msra.mxu0 0
        %682 = vmatprep.subr.bf16.mxu0 0
        %683 = vmatpush1.bf16.msra.mxu0 0
        %684 = vmatprep.subr.bf16.mxu0 0
        %685 = vmatpush1.bf16.msra.mxu0 0
        %686 = vmatprep.subr.bf16.mxu0 0
        %687 = vmatpush1.bf16.msra.mxu0 0
        %688 = vmatprep.subr.bf16.mxu0 0
        %689 = vmatpush1.bf16.msra.mxu0 0
        %690 = vmatprep.subr.bf16.mxu0 0
        %691 = vmatpush1.bf16.msra.mxu0 0
        %692 = vmatprep.subr.bf16.mxu0 0
        %693 = vmatpush1.bf16.msra.mxu0 0
        %694 = vmatprep.mubr.bf16.mxu0 0
        %695 = vmatmul.mubr.bf16.gmra.mrb[0].mxu0 %v334
        %v696 = vpop.f32.mrb[0].mxu0
        %v697 = vadd.f32 0.0, %v696
        %v698 = vpop.f32.mrb[0].mxu0
        %v699 = vadd.f32 0.0, %v698
        %v700 = vpop.f32.mrb[0].mxu0
        %v701 = vadd.f32 0.0, %v700
        %v702 = vpop.f32.mrb[0].mxu0
        %v703 = vadd.f32 0.0, %v702
        %704 = vmatprep.mubr.bf16.mxu0 0
        %705 = vmatmul.mubr.bf16.gmra.mrb[0].mxu0 %v335
        %v706 = vpop.f32.mrb[0].mxu0
        %v707 = vadd.f32 0.0, %v706
        %v708 = vpop.f32.mrb[0].mxu0
        %v709 = vadd.f32 0.0, %v708
        %v710 = vpop.f32.mrb[0].mxu0
        %v711 = vadd.f32 0.0, %v710
        %v712 = vpop.f32.mrb[0].mxu0
        %v713 = vadd.f32 0.0, %v712
        %714 = vmatprep.mubr.bf16.mxu0 0
        %715 = vmatmul.mubr.bf16.gmra.mrb[0].mxu0 %v336
        %v716 = vpop.f32.mrb[0].mxu0
        %v717 = vadd.f32 0.0, %v716
        %v718 = vpop.f32.mrb[0].mxu0
        %v719 = vadd.f32 0.0, %v718
        %v720 = vpop.f32.mrb[0].mxu0
        %v721 = vadd.f32 0.0, %v720
        %v722 = vpop.f32.mrb[0].mxu0
        %v723 = vadd.f32 0.0, %v722
        %724 = vmatprep.mubr.bf16.mxu0 0
        %725 = vmatmul.mubr.bf16.gmra.mrb[0].mxu0 %v337
        %v726 = vpop.f32.mrb[0].mxu0
        %v727 = vadd.f32 0.0, %v726
        %v728 = vpop.f32.mrb[0].mxu0
        %v729 = vadd.f32 0.0, %v728
        %v730 = vpop.f32.mrb[0].mxu0
        %v731 = vadd.f32 0.0, %v730
        %v732 = vpop.f32.mrb[0].mxu0
        %v733 = vadd.f32 0.0, %v732
        %734 = vdwg.mxu0
        %735 = vmatprep.subr.bf16.mxu0 %v537
        %736 = vmatpush1.bf16.msra.mxu0 %v536
        %737 = vmatprep.subr.bf16.mxu0 %v545
        %738 = vmatpush1.bf16.msra.mxu0 %v544
        %739 = vmatprep.subr.bf16.mxu0 %v553
        %740 = vmatpush1.bf16.msra.mxu0 %v552
        %741 = vmatprep.subr.bf16.mxu0 %v561
        %742 = vmatpush1.bf16.msra.mxu0 %v560
        %743 = vmatprep.subr.bf16.mxu0 %v569
        %744 = vmatpush1.bf16.msra.mxu0 %v568
        %745 = vmatprep.subr.bf16.mxu0 %v577
        %746 = vmatpush1.bf16.msra.mxu0 %v576
        %747 = vmatprep.subr.bf16.mxu0 %v585
        %748 = vmatpush1.bf16.msra.mxu0 %v584
        %749 = vmatprep.subr.bf16.mxu0 %v593
        %750 = vmatpush1.bf16.msra.mxu0 %v592
        %751 = vmatprep.subr.bf16.mxu0 0
        %752 = vmatpush1.bf16.msra.mxu0 0
        %753 = vmatprep.subr.bf16.mxu0 0
        %754 = vmatpush1.bf16.msra.mxu0 0
        %755 = vmatprep.subr.bf16.mxu0 0
        %756 = vmatpush1.bf16.msra.mxu0 0
        %757 = vmatprep.subr.bf16.mxu0 0
        %758 = vmatpush1.bf16.msra.mxu0 0
        %759 = vmatprep.subr.bf16.mxu0 0
        %760 = vmatpush1.bf16.msra.mxu0 0
        %761 = vmatprep.subr.bf16.mxu0 0
        %762 = vmatpush1.bf16.msra.mxu0 0
        %763 = vmatprep.subr.bf16.mxu0 0
        %764 = vmatpush1.bf16.msra.mxu0 0
        %765 = vmatprep.subr.bf16.mxu0 0
        %766 = vmatpush1.bf16.msra.mxu0 0
        %767 = vmatprep.mubr.bf16.mxu0 0
        %768 = vmatmul.mubr.bf16.gmra.mrb[0].mxu0 %v334
        %v769 = vpop.f32.mrb[0].mxu0
        %v770 = vadd.f32 0.0, %v769
        %v771 = vpop.f32.mrb[0].mxu0
        %v772 = vadd.f32 0.0, %v771
        %v773 = vpop.f32.mrb[0].mxu0
        %v774 = vadd.f32 0.0, %v773
        %v775 = vpop.f32.mrb[0].mxu0
        %v776 = vadd.f32 0.0, %v775
        %777 = vmatprep.mubr.bf16.mxu0 0
        %778 = vmatmul.mubr.bf16.gmra.mrb[0].mxu0 %v335
        %v779 = vpop.f32.mrb[0].mxu0
        %v780 = vadd.f32 0.0, %v779
        %v781 = vpop.f32.mrb[0].mxu0
        %v782 = vadd.f32 0.0, %v781
        %v783 = vpop.f32.mrb[0].mxu0
        %v784 = vadd.f32 0.0, %v783
        %v785 = vpop.f32.mrb[0].mxu0
        %v786 = vadd.f32 0.0, %v785
        %787 = vmatprep.mubr.bf16.mxu0 0
        %788 = vmatmul.mubr.bf16.gmra.mrb[0].mxu0 %v336
        %v789 = vpop.f32.mrb[0].mxu0
        %v790 = vadd.f32 0.0, %v789
        %v791 = vpop.f32.mrb[0].mxu0
        %v792 = vadd.f32 0.0, %v791
        %v793 = vpop.f32.mrb[0].mxu0
        %v794 = vadd.f32 0.0, %v793
        %v795 = vpop.f32.mrb[0].mxu0
        %v796 = vadd.f32 0.0, %v795
        %797 = vmatprep.mubr.bf16.mxu0 0
        %798 = vmatmul.mubr.bf16.gmra.mrb[0].mxu0 %v337
        %v799 = vpop.f32.mrb[0].mxu0
        %v800 = vadd.f32 0.0, %v799
        %v801 = vpop.f32.mrb[0].mxu0
        %v802 = vadd.f32 0.0, %v801
        %v803 = vpop.f32.mrb[0].mxu0
        %v804 = vadd.f32 0.0, %v803
        %v805 = vpop.f32.mrb[0].mxu0
        %v806 = vadd.f32 0.0, %v805
        %807 = vdwg.mxu0
        %808 = vmatprep.subr.bf16.mxu0 %v539
        %809 = vmatpush1.bf16.msra.mxu0 %v538
        %810 = vmatprep.subr.bf16.mxu0 %v547
        %811 = vmatpush1.bf16.msra.mxu0 %v546
        %812 = vmatprep.subr.bf16.mxu0 %v555
        %813 = vmatpush1.bf16.msra.mxu0 %v554
        %814 = vmatprep.subr.bf16.mxu0 %v563
        %815 = vmatpush1.bf16.msra.mxu0 %v562
        %816 = vmatprep.subr.bf16.mxu0 %v571
        %817 = vmatpush1.bf16.msra.mxu0 %v570
        %818 = vmatprep.subr.bf16.mxu0 %v579
        %819 = vmatpush1.bf16.msra.mxu0 %v578
        %820 = vmatprep.subr.bf16.mxu0 %v587
        %821 = vmatpush1.bf16.msra.mxu0 %v586
        %822 = vmatprep.subr.bf16.mxu0 %v595
        %823 = vmatpush1.bf16.msra.mxu0 %v594
        %824 = vmatprep.subr.bf16.mxu0 0
        %825 = vmatpush1.bf16.msra.mxu0 0
        %826 = vmatprep.subr.bf16.mxu0 0
        %827 = vmatpush1.bf16.msra.mxu0 0
        %828 = vmatprep.subr.bf16.mxu0 0
        %829 = vmatpush1.bf16.msra.mxu0 0
        %830 = vmatprep.subr.bf16.mxu0 0
        %831 = vmatpush1.bf16.msra.mxu0 0
        %832 = vmatprep.subr.bf16.mxu0 0
        %833 = vmatpush1.bf16.msra.mxu0 0
        %834 = vmatprep.subr.bf16.mxu0 0
        %835 = vmatpush1.bf16.msra.mxu0 0
        %836 = vmatprep.subr.bf16.mxu0 0
        %837 = vmatpush1.bf16.msra.mxu0 0
        %838 = vmatprep.subr.bf16.mxu0 0
        %839 = vmatpush1.bf16.msra.mxu0 0
        %840 = vmatprep.mubr.bf16.mxu0 0
        %841 = vmatmul.mubr.bf16.gmra.mrb[0].mxu0 %v334
        %v842 = vpop.f32.mrb[0].mxu0
        %v843 = vadd.f32 0.0, %v842
        %v844 = vpop.f32.mrb[0].mxu0
        %v845 = vadd.f32 0.0, %v844
        %v846 = vpop.f32.mrb[0].mxu0
        %v847 = vadd.f32 0.0, %v846
        %v848 = vpop.f32.mrb[0].mxu0
        %v849 = vadd.f32 0.0, %v848
        %850 = vmatprep.mubr.bf16.mxu0 0
        %851 = vmatmul.mubr.bf16.gmra.mrb[0].mxu0 %v335
        %v852 = vpop.f32.mrb[0].mxu0
        %v853 = vadd.f32 0.0, %v852
        %v854 = vpop.f32.mrb[0].mxu0
        %v855 = vadd.f32 0.0, %v854
        %v856 = vpop.f32.mrb[0].mxu0
        %v857 = vadd.f32 0.0, %v856
        %v858 = vpop.f32.mrb[0].mxu0
        %v859 = vadd.f32 0.0, %v858
        %860 = vmatprep.mubr.bf16.mxu0 0
        %861 = vmatmul.mubr.bf16.gmra.mrb[0].mxu0 %v336
        %v862 = vpop.f32.mrb[0].mxu0
        %v863 = vadd.f32 0.0, %v862
        %v864 = vpop.f32.mrb[0].mxu0
        %v865 = vadd.f32 0.0, %v864
        %v866 = vpop.f32.mrb[0].mxu0
        %v867 = vadd.f32 0.0, %v866
        %v868 = vpop.f32.mrb[0].mxu0
        %v869 = vadd.f32 0.0, %v868
        %870 = vmatprep.mubr.bf16.mxu0 0
        %871 = vmatmul.mubr.bf16.gmra.mrb[0].mxu0 %v337
        %v872 = vpop.f32.mrb[0].mxu0
        %v873 = vadd.f32 0.0, %v872
        %v874 = vpop.f32.mrb[0].mxu0
        %v875 = vadd.f32 0.0, %v874
        %v876 = vpop.f32.mrb[0].mxu0
        %v877 = vadd.f32 0.0, %v876
        %v878 = vpop.f32.mrb[0].mxu0
        %v879 = vadd.f32 0.0, %v878
        %880 = vdwg.mxu0
        %881 = vmatprep.subr.bf16.mxu0 %v541
        %882 = vmatpush1.bf16.msra.mxu0 %v540
        %883 = vmatprep.subr.bf16.mxu0 %v549
        %884 = vmatpush1.bf16.msra.mxu0 %v548
        %885 = vmatprep.subr.bf16.mxu0 %v557
        %886 = vmatpush1.bf16.msra.mxu0 %v556
        %887 = vmatprep.subr.bf16.mxu0 %v565
        %888 = vmatpush1.bf16.msra.mxu0 %v564
        %889 = vmatprep.subr.bf16.mxu0 %v573
        %890 = vmatpush1.bf16.msra.mxu0 %v572
        %891 = vmatprep.subr.bf16.mxu0 %v581
        %892 = vmatpush1.bf16.msra.mxu0 %v580
        %893 = vmatprep.subr.bf16.mxu0 %v589
        %894 = vmatpush1.bf16.msra.mxu0 %v588
        %895 = vmatprep.subr.bf16.mxu0 %v597
        %896 = vmatpush1.bf16.msra.mxu0 %v596
        %897 = vmatprep.subr.bf16.mxu0 0
        %898 = vmatpush1.bf16.msra.mxu0 0
        %899 = vmatprep.subr.bf16.mxu0 0
        %900 = vmatpush1.bf16.msra.mxu0 0
        %901 = vmatprep.subr.bf16.mxu0 0
        %902 = vmatpush1.bf16.msra.mxu0 0
        %903 = vmatprep.subr.bf16.mxu0 0
        %904 = vmatpush1.bf16.msra.mxu0 0
        %905 = vmatprep.subr.bf16.mxu0 0
        %906 = vmatpush1.bf16.msra.mxu0 0
        %907 = vmatprep.subr.bf16.mxu0 0
        %908 = vmatpush1.bf16.msra.mxu0 0
        %909 = vmatprep.subr.bf16.mxu0 0
        %910 = vmatpush1.bf16.msra.mxu0 0
        %911 = vmatprep.subr.bf16.mxu0 0
        %912 = vmatpush1.bf16.msra.mxu0 0
        %913 = vmatprep.mubr.bf16.mxu0 0
        %914 = vmatmul.mubr.bf16.gmra.mrb[0].mxu0 %v334
        %v915 = vpop.f32.mrb[0].mxu0
        %v916 = vadd.f32 0.0, %v915
        %v917 = vpop.f32.mrb[0].mxu0
        %v918 = vadd.f32 0.0, %v917
        %v919 = vpop.f32.mrb[0].mxu0
        %v920 = vadd.f32 0.0, %v919
        %v921 = vpop.f32.mrb[0].mxu0
        %v922 = vadd.f32 0.0, %v921
        %923 = vmatprep.mubr.bf16.mxu0 0
        %924 = vmatmul.mubr.bf16.gmra.mrb[0].mxu0 %v335
        %v925 = vpop.f32.mrb[0].mxu0
        %v926 = vadd.f32 0.0, %v925
        %v927 = vpop.f32.mrb[0].mxu0
        %v928 = vadd.f32 0.0, %v927
        %v929 = vpop.f32.mrb[0].mxu0
        %v930 = vadd.f32 0.0, %v929
        %v931 = vpop.f32.mrb[0].mxu0
        %v932 = vadd.f32 0.0, %v931
        %933 = vmatprep.mubr.bf16.mxu0 0
        %934 = vmatmul.mubr.bf16.gmra.mrb[0].mxu0 %v336
        %v935 = vpop.f32.mrb[0].mxu0
        %v936 = vadd.f32 0.0, %v935
        %v937 = vpop.f32.mrb[0].mxu0
        %v938 = vadd.f32 0.0, %v937
        %v939 = vpop.f32.mrb[0].mxu0
        %v940 = vadd.f32 0.0, %v939
        %v941 = vpop.f32.mrb[0].mxu0
        %v942 = vadd.f32 0.0, %v941
        %943 = vmatprep.mubr.bf16.mxu0 0
        %944 = vmatmul.mubr.bf16.gmra.mrb[0].mxu0 %v337
        %v945 = vpop.f32.mrb[0].mxu0
        %v946 = vadd.f32 0.0, %v945
        %v947 = vpop.f32.mrb[0].mxu0
        %v948 = vadd.f32 0.0, %v947
        %v949 = vpop.f32.mrb[0].mxu0
        %v950 = vadd.f32 0.0, %v949
        %v951 = vpop.f32.mrb[0].mxu0
        %v952 = vadd.f32 0.0, %v951
        %953 = vdwg.mxu0
        %v954 = vmax.f32 %v697, %v701
        %v955 = vmax.f32 %v954, %v707
        %v956 = vmax.f32 %v955, %v711
        %v957 = vmax.f32 %v956, %v717
        %v958 = vmax.f32 %v957, %v721
        %v959 = vmax.f32 %v958, %v727
        %v960 = vmax.f32 %v959, %v731
        %v961 = vrot.slane %v960, 4
        %v962 = vmax.f32 %v960, %v961
        %v963 = vrot.slane %v962, 2
        %v964 = vmax.f32 %v962, %v963
        %v965 = vrot.slane %v964, 1
        %v966 = vmax.f32 %v964, %v965
        %v967 = vmax.f32 %v699, %v703
        %v968 = vmax.f32 %v967, %v709
        %v969 = vmax.f32 %v968, %v713
        %v970 = vmax.f32 %v969, %v719
        %v971 = vmax.f32 %v970, %v723
        %v972 = vmax.f32 %v971, %v729
        %v973 = vmax.f32 %v972, %v733
        %v974 = vrot.slane %v973, 4
        %v975 = vmax.f32 %v973, %v974
        %v976 = vrot.slane %v975, 2
        %v977 = vmax.f32 %v975, %v976
        %v978 = vrot.slane %v977, 1
        %v979 = vmax.f32 %v977, %v978
        %v980 = vmax.f32 %v770, %v774
        %v981 = vmax.f32 %v980, %v780
        %v982 = vmax.f32 %v981, %v784
        %v983 = vmax.f32 %v982, %v790
        %v984 = vmax.f32 %v983, %v794
        %v985 = vmax.f32 %v984, %v800
        %v986 = vmax.f32 %v985, %v804
        %v987 = vrot.slane %v986, 4
        %v988 = vmax.f32 %v986, %v987
        %v989 = vrot.slane %v988, 2
        %v990 = vmax.f32 %v988, %v989
        %v991 = vrot.slane %v990, 1
        %v992 = vmax.f32 %v990, %v991
        %v993 = vmax.f32 %v772, %v776
        %v994 = vmax.f32 %v993, %v782
        %v995 = vmax.f32 %v994, %v786
        %v996 = vmax.f32 %v995, %v792
        %v997 = vmax.f32 %v996, %v796
        %v998 = vmax.f32 %v997, %v802
        %v999 = vmax.f32 %v998, %v806
        %v1000 = vrot.slane %v999, 4
        %v1001 = vmax.f32 %v999, %v1000
        %v1002 = vrot.slane %v1001, 2
        %v1003 = vmax.f32 %v1001, %v1002
        %v1004 = vrot.slane %v1003, 1
        %v1005 = vmax.f32 %v1003, %v1004
        %v1006 = vmax.f32 %v843, %v847
        %v1007 = vmax.f32 %v1006, %v853
        %v1008 = vmax.f32 %v1007, %v857
        %v1009 = vmax.f32 %v1008, %v863
        %v1010 = vmax.f32 %v1009, %v867
        %v1011 = vmax.f32 %v1010, %v873
        %v1012 = vmax.f32 %v1011, %v877
        %v1013 = vrot.slane %v1012, 4
        %v1014 = vmax.f32 %v1012, %v1013
        %v1015 = vrot.slane %v1014, 2
        %v1016 = vmax.f32 %v1014, %v1015
        %v1017 = vrot.slane %v1016, 1
        %v1018 = vmax.f32 %v1016, %v1017
        %v1019 = vmax.f32 %v845, %v849
        %v1020 = vmax.f32 %v1019, %v855
        %v1021 = vmax.f32 %v1020, %v859
        %v1022 = vmax.f32 %v1021, %v865
        %v1023 = vmax.f32 %v1022, %v869
        %v1024 = vmax.f32 %v1023, %v875
        %v1025 = vmax.f32 %v1024, %v879
        %v1026 = vrot.slane %v1025, 4
        %v1027 = vmax.f32 %v1025, %v1026
        %v1028 = vrot.slane %v1027, 2
        %v1029 = vmax.f32 %v1027, %v1028
        %v1030 = vrot.slane %v1029, 1
        %v1031 = vmax.f32 %v1029, %v1030
        %v1032 = vmax.f32 %v916, %v920
        %v1033 = vmax.f32 %v1032, %v926
        %v1034 = vmax.f32 %v1033, %v930
        %v1035 = vmax.f32 %v1034, %v936
        %v1036 = vmax.f32 %v1035, %v940
        %v1037 = vmax.f32 %v1036, %v946
        %v1038 = vmax.f32 %v1037, %v950
        %v1039 = vrot.slane %v1038, 4
        %v1040 = vmax.f32 %v1038, %v1039
        %v1041 = vrot.slane %v1040, 2
        %v1042 = vmax.f32 %v1040, %v1041
        %v1043 = vrot.slane %v1042, 1
        %v1044 = vmax.f32 %v1042, %v1043
        %v1045 = vmax.f32 %v918, %v922
        %v1046 = vmax.f32 %v1045, %v928
        %v1047 = vmax.f32 %v1046, %v932
        %v1048 = vmax.f32 %v1047, %v938
        %v1049 = vmax.f32 %v1048, %v942
        %v1050 = vmax.f32 %v1049, %v948
        %v1051 = vmax.f32 %v1050, %v952
        %v1052 = vrot.slane %v1051, 4
        %v1053 = vmax.f32 %v1051, %v1052
        %v1054 = vrot.slane %v1053, 2
        %v1055 = vmax.f32 %v1053, %v1054
        %v1056 = vrot.slane %v1055, 1
        %v1057 = vmax.f32 %v1055, %v1056
        %v1058 = vld [vmem:[%s231] sm:$0xff]
        %v1067 = vcombine.low %v966, %v979
        %v1068 = vcombine.low %v992, %v1005
        %v1069 = vcombine.low %v1018, %v1031
        %v1070 = vcombine.low %v1044, %v1057
        %v1072 = vunpack.c.l.s4 1966171168
        %v1073 = vunpack.c.0.s8 %v1072
        %v1074 = vlaneseq
        %v1075 = vshrl.u32 %v1074, 7
        %v1076 = vsub.s32 %v1073, %v1075
        %v1077 = vrot.slane %v1067, %v1076
        %v1079 = vunpack.c.l.s4 1966171168
        %v1080 = vunpack.c.0.s8 %v1079
        %v1081 = vlaneseq
        %v1082 = vshrl.u32 %v1081, 7
        %v1083 = vsub.s32 %v1080, %v1082
        %v1084 = vrot.slane %v1068, %v1083
        %v1086 = vunpack.c.l.s4 1966171168
        %v1087 = vunpack.c.0.s8 %v1086
        %v1088 = vlaneseq
        %v1089 = vshrl.u32 %v1088, 7
        %v1090 = vsub.s32 %v1087, %v1089
        %v1091 = vrot.slane %v1069, %v1090
        %v1093 = vunpack.c.l.s4 1966171168
        %v1094 = vunpack.c.0.s8 %v1093
        %v1095 = vlaneseq
        %v1096 = vshrl.u32 %v1095, 7
        %v1097 = vsub.s32 %v1094, %v1096
        %v1098 = vrot.slane %v1070, %v1097
        %v1099 = vcombine.low %v1077, %v1084
        %v1100 = vcombine.low %v1091, %v1098
        %v1102 = vunpack.c.l.s4 1966171168
        %v1103 = vunpack.c.0.s8 %v1102
        %v1104 = vlaneseq
        %v1105 = vshrl.u32 %v1104, 7
        %v1106 = vsub.s32 %v1103, %v1105
        %v1107 = vrot.slane %v1099, %v1106
        %v1109 = vunpack.c.l.s4 1966171168
        %v1110 = vunpack.c.0.s8 %v1109
        %v1111 = vlaneseq
        %v1112 = vshrl.u32 %v1111, 7
        %v1113 = vsub.s32 %v1110, %v1112
        %v1114 = vrot.slane %v1100, %v1113
        %v1115 = vcombine.low %v1107, %v1114
        %v1117 = vmax.f32 %v1058, %v1115
        %1118 = vst [vmem:[%s231] sm:$0xff] %v1117
        %v1119 = vld [vmem:[#allocation5 + $0x20] sm:$0xff]
        %v1120 = vld [vmem:[#allocation5 + $0x28] sm:$0xff]
        %v1121 = vld [vmem:[#allocation5 + $0x30] sm:$0xff]
        %v1122 = vld [vmem:[#allocation5 + $0x38] sm:$0xff]
        %v1123 = vld [vmem:[#allocation5 + $0x120] sm:$0xff]
        %v1124 = vld [vmem:[#allocation5 + $0x128] sm:$0xff]
        %v1125 = vld [vmem:[#allocation5 + $0x130] sm:$0xff]
        %v1126 = vld [vmem:[#allocation5 + $0x138] sm:$0xff]
        %v1127 = vld [vmem:[#allocation5 + $0x220] sm:$0xff]
        %v1128 = vld [vmem:[#allocation5 + $0x228] sm:$0xff]
        %v1129 = vld [vmem:[#allocation5 + $0x230] sm:$0xff]
        %v1130 = vld [vmem:[#allocation5 + $0x238] sm:$0xff]
        %v1131 = vld [vmem:[#allocation5 + $0x320] sm:$0xff]
        %v1132 = vld [vmem:[#allocation5 + $0x328] sm:$0xff]
        %v1133 = vld [vmem:[#allocation5 + $0x330] sm:$0xff]
        %v1134 = vld [vmem:[#allocation5 + $0x338] sm:$0xff]
        %v1135 = vld [vmem:[#allocation5 + $0x420] sm:$0xff]
        %v1136 = vld [vmem:[#allocation5 + $0x428] sm:$0xff]
        %v1137 = vld [vmem:[#allocation5 + $0x430] sm:$0xff]
        %v1138 = vld [vmem:[#allocation5 + $0x438] sm:$0xff]
        %v1139 = vld [vmem:[#allocation5 + $0x520] sm:$0xff]
        %v1140 = vld [vmem:[#allocation5 + $0x528] sm:$0xff]
        %v1141 = vld [vmem:[#allocation5 + $0x530] sm:$0xff]
        %v1142 = vld [vmem:[#allocation5 + $0x538] sm:$0xff]
        %v1143 = vld [vmem:[#allocation5 + $0x620] sm:$0xff]
        %v1144 = vld [vmem:[#allocation5 + $0x628] sm:$0xff]
        %v1145 = vld [vmem:[#allocation5 + $0x630] sm:$0xff]
        %v1146 = vld [vmem:[#allocation5 + $0x638] sm:$0xff]
        %v1147 = vld [vmem:[#allocation5 + $0x720] sm:$0xff]
        %v1148 = vld [vmem:[#allocation5 + $0x728] sm:$0xff]
        %v1149 = vld [vmem:[#allocation5 + $0x730] sm:$0xff]
        %v1150 = vld [vmem:[#allocation5 + $0x738] sm:$0xff]
        %v1151 = vld [vmem:[#allocation5 + $0x820] sm:$0xff]
        %v1152 = vld [vmem:[#allocation5 + $0x828] sm:$0xff]
        %v1153 = vld [vmem:[#allocation5 + $0x830] sm:$0xff]
        %v1154 = vld [vmem:[#allocation5 + $0x838] sm:$0xff]
        %v1155 = vld [vmem:[#allocation5 + $0x920] sm:$0xff]
        %v1156 = vld [vmem:[#allocation5 + $0x928] sm:$0xff]
        %v1157 = vld [vmem:[#allocation5 + $0x930] sm:$0xff]
        %v1158 = vld [vmem:[#allocation5 + $0x938] sm:$0xff]
        %v1159 = vld [vmem:[#allocation5 + $0xa20] sm:$0xff]
        %v1160 = vld [vmem:[#allocation5 + $0xa28] sm:$0xff]
        %v1161 = vld [vmem:[#allocation5 + $0xa30] sm:$0xff]
        %v1162 = vld [vmem:[#allocation5 + $0xa38] sm:$0xff]
        %v1163 = vld [vmem:[#allocation5 + $0xb20] sm:$0xff]
        %v1164 = vld [vmem:[#allocation5 + $0xb28] sm:$0xff]
        %v1165 = vld [vmem:[#allocation5 + $0xb30] sm:$0xff]
        %v1166 = vld [vmem:[#allocation5 + $0xb38] sm:$0xff]
        %v1167 = vld [vmem:[#allocation5 + $0xc20] sm:$0xff]
        %v1168 = vld [vmem:[#allocation5 + $0xc28] sm:$0xff]
        %v1169 = vld [vmem:[#allocation5 + $0xc30] sm:$0xff]
        %v1170 = vld [vmem:[#allocation5 + $0xc38] sm:$0xff]
        %v1171 = vld [vmem:[#allocation5 + $0xd20] sm:$0xff]
        %v1172 = vld [vmem:[#allocation5 + $0xd28] sm:$0xff]
        %v1173 = vld [vmem:[#allocation5 + $0xd30] sm:$0xff]
        %v1174 = vld [vmem:[#allocation5 + $0xd38] sm:$0xff]
        %v1175 = vld [vmem:[#allocation5 + $0xe20] sm:$0xff]
        %v1176 = vld [vmem:[#allocation5 + $0xe28] sm:$0xff]
        %v1177 = vld [vmem:[#allocation5 + $0xe30] sm:$0xff]
        %v1178 = vld [vmem:[#allocation5 + $0xe38] sm:$0xff]
        %v1179 = vld [vmem:[#allocation5 + $0xf20] sm:$0xff]
        %v1180 = vld [vmem:[#allocation5 + $0xf28] sm:$0xff]
        %v1181 = vld [vmem:[#allocation5 + $0xf30] sm:$0xff]
        %v1182 = vld [vmem:[#allocation5 + $0xf38] sm:$0xff]
        %v1247 = vunpack.c.l.b16 %v1119
        %v1248 = vunpack.c.h.b16 %v1119
        %v1249 = vunpack.c.l.b16 %v1120
        %v1250 = vunpack.c.h.b16 %v1120
        %v1251 = vunpack.c.l.b16 %v1121
        %v1252 = vunpack.c.h.b16 %v1121
        %v1253 = vunpack.c.l.b16 %v1122
        %v1254 = vunpack.c.h.b16 %v1122
        %v1255 = vunpack.c.l.b16 %v1123
        %v1256 = vunpack.c.h.b16 %v1123
        %v1257 = vunpack.c.l.b16 %v1124
        %v1258 = vunpack.c.h.b16 %v1124
        %v1259 = vunpack.c.l.b16 %v1125
        %v1260 = vunpack.c.h.b16 %v1125
        %v1261 = vunpack.c.l.b16 %v1126
        %v1262 = vunpack.c.h.b16 %v1126
        %v1263 = vunpack.c.l.b16 %v1127
        %v1264 = vunpack.c.h.b16 %v1127
        %v1265 = vunpack.c.l.b16 %v1128
        %v1266 = vunpack.c.h.b16 %v1128
        %v1267 = vunpack.c.l.b16 %v1129
        %v1268 = vunpack.c.h.b16 %v1129
        %v1269 = vunpack.c.l.b16 %v1130
        %v1270 = vunpack.c.h.b16 %v1130
        %v1271 = vunpack.c.l.b16 %v1131
        %v1272 = vunpack.c.h.b16 %v1131
        %v1273 = vunpack.c.l.b16 %v1132
        %v1274 = vunpack.c.h.b16 %v1132
        %v1275 = vunpack.c.l.b16 %v1133
        %v1276 = vunpack.c.h.b16 %v1133
        %v1277 = vunpack.c.l.b16 %v1134
        %v1278 = vunpack.c.h.b16 %v1134
        %v1279 = vunpack.c.l.b16 %v1135
        %v1280 = vunpack.c.h.b16 %v1135
        %v1281 = vunpack.c.l.b16 %v1136
        %v1282 = vunpack.c.h.b16 %v1136
        %v1283 = vunpack.c.l.b16 %v1137
        %v1284 = vunpack.c.h.b16 %v1137
        %v1285 = vunpack.c.l.b16 %v1138
        %v1286 = vunpack.c.h.b16 %v1138
        %v1287 = vunpack.c.l.b16 %v1139
        %v1288 = vunpack.c.h.b16 %v1139
        %v1289 = vunpack.c.l.b16 %v1140
        %v1290 = vunpack.c.h.b16 %v1140
        %v1291 = vunpack.c.l.b16 %v1141
        %v1292 = vunpack.c.h.b16 %v1141
        %v1293 = vunpack.c.l.b16 %v1142
        %v1294 = vunpack.c.h.b16 %v1142
        %v1295 = vunpack.c.l.b16 %v1143
        %v1296 = vunpack.c.h.b16 %v1143
        %v1297 = vunpack.c.l.b16 %v1144
        %v1298 = vunpack.c.h.b16 %v1144
        %v1299 = vunpack.c.l.b16 %v1145
        %v1300 = vunpack.c.h.b16 %v1145
        %v1301 = vunpack.c.l.b16 %v1146
        %v1302 = vunpack.c.h.b16 %v1146
        %v1303 = vunpack.c.l.b16 %v1147
        %v1304 = vunpack.c.h.b16 %v1147
        %v1305 = vunpack.c.l.b16 %v1148
        %v1306 = vunpack.c.h.b16 %v1148
        %v1307 = vunpack.c.l.b16 %v1149
        %v1308 = vunpack.c.h.b16 %v1149
        %v1309 = vunpack.c.l.b16 %v1150
        %v1310 = vunpack.c.h.b16 %v1150
        %v1311 = vunpack.c.l.b16 %v1151
        %v1312 = vunpack.c.h.b16 %v1151
        %v1313 = vunpack.c.l.b16 %v1152
        %v1314 = vunpack.c.h.b16 %v1152
        %v1315 = vunpack.c.l.b16 %v1153
        %v1316 = vunpack.c.h.b16 %v1153
        %v1317 = vunpack.c.l.b16 %v1154
        %v1318 = vunpack.c.h.b16 %v1154
        %v1319 = vunpack.c.l.b16 %v1155
        %v1320 = vunpack.c.h.b16 %v1155
        %v1321 = vunpack.c.l.b16 %v1156
        %v1322 = vunpack.c.h.b16 %v1156
        %v1323 = vunpack.c.l.b16 %v1157
        %v1324 = vunpack.c.h.b16 %v1157
        %v1325 = vunpack.c.l.b16 %v1158
        %v1326 = vunpack.c.h.b16 %v1158
        %v1327 = vunpack.c.l.b16 %v1159
        %v1328 = vunpack.c.h.b16 %v1159
        %v1329 = vunpack.c.l.b16 %v1160
        %v1330 = vunpack.c.h.b16 %v1160
        %v1331 = vunpack.c.l.b16 %v1161
        %v1332 = vunpack.c.h.b16 %v1161
        %v1333 = vunpack.c.l.b16 %v1162
        %v1334 = vunpack.c.h.b16 %v1162
        %v1335 = vunpack.c.l.b16 %v1163
        %v1336 = vunpack.c.h.b16 %v1163
        %v1337 = vunpack.c.l.b16 %v1164
        %v1338 = vunpack.c.h.b16 %v1164
        %v1339 = vunpack.c.l.b16 %v1165
        %v1340 = vunpack.c.h.b16 %v1165
        %v1341 = vunpack.c.l.b16 %v1166
        %v1342 = vunpack.c.h.b16 %v1166
        %v1343 = vunpack.c.l.b16 %v1167
        %v1344 = vunpack.c.h.b16 %v1167
        %v1345 = vunpack.c.l.b16 %v1168
        %v1346 = vunpack.c.h.b16 %v1168
        %v1347 = vunpack.c.l.b16 %v1169
        %v1348 = vunpack.c.h.b16 %v1169
        %v1349 = vunpack.c.l.b16 %v1170
        %v1350 = vunpack.c.h.b16 %v1170
        %v1351 = vunpack.c.l.b16 %v1171
        %v1352 = vunpack.c.h.b16 %v1171
        %v1353 = vunpack.c.l.b16 %v1172
        %v1354 = vunpack.c.h.b16 %v1172
        %v1355 = vunpack.c.l.b16 %v1173
        %v1356 = vunpack.c.h.b16 %v1173
        %v1357 = vunpack.c.l.b16 %v1174
        %v1358 = vunpack.c.h.b16 %v1174
        %v1359 = vunpack.c.l.b16 %v1175
        %v1360 = vunpack.c.h.b16 %v1175
        %v1361 = vunpack.c.l.b16 %v1176
        %v1362 = vunpack.c.h.b16 %v1176
        %v1363 = vunpack.c.l.b16 %v1177
        %v1364 = vunpack.c.h.b16 %v1177
        %v1365 = vunpack.c.l.b16 %v1178
        %v1366 = vunpack.c.h.b16 %v1178
        %v1367 = vunpack.c.l.b16 %v1179
        %v1368 = vunpack.c.h.b16 %v1179
        %v1369 = vunpack.c.l.b16 %v1180
        %v1370 = vunpack.c.h.b16 %v1180
        %v1371 = vunpack.c.l.b16 %v1181
        %v1372 = vunpack.c.h.b16 %v1181
        %v1373 = vunpack.c.l.b16 %v1182
        %v1374 = vunpack.c.h.b16 %v1182
        %v1375 = vpack.c.b16 %v1255, %v1247
        %v1376 = vpack.c.b16 %v1256, %v1248
        %v1377 = vpack.c.b16 %v1257, %v1249
        %v1378 = vpack.c.b16 %v1258, %v1250
        %v1379 = vpack.c.b16 %v1259, %v1251
        %v1380 = vpack.c.b16 %v1260, %v1252
        %v1381 = vpack.c.b16 %v1261, %v1253
        %v1382 = vpack.c.b16 %v1262, %v1254
        %v1383 = vpack.c.b16 %v1271, %v1263
        %v1384 = vpack.c.b16 %v1272, %v1264
        %v1385 = vpack.c.b16 %v1273, %v1265
        %v1386 = vpack.c.b16 %v1274, %v1266
        %v1387 = vpack.c.b16 %v1275, %v1267
        %v1388 = vpack.c.b16 %v1276, %v1268
        %v1389 = vpack.c.b16 %v1277, %v1269
        %v1390 = vpack.c.b16 %v1278, %v1270
        %v1391 = vpack.c.b16 %v1287, %v1279
        %v1392 = vpack.c.b16 %v1288, %v1280
        %v1393 = vpack.c.b16 %v1289, %v1281
        %v1394 = vpack.c.b16 %v1290, %v1282
        %v1395 = vpack.c.b16 %v1291, %v1283
        %v1396 = vpack.c.b16 %v1292, %v1284
        %v1397 = vpack.c.b16 %v1293, %v1285
        %v1398 = vpack.c.b16 %v1294, %v1286
        %v1399 = vpack.c.b16 %v1303, %v1295
        %v1400 = vpack.c.b16 %v1304, %v1296
        %v1401 = vpack.c.b16 %v1305, %v1297
        %v1402 = vpack.c.b16 %v1306, %v1298
        %v1403 = vpack.c.b16 %v1307, %v1299
        %v1404 = vpack.c.b16 %v1308, %v1300
        %v1405 = vpack.c.b16 %v1309, %v1301
        %v1406 = vpack.c.b16 %v1310, %v1302
        %v1407 = vpack.c.b16 %v1319, %v1311
        %v1408 = vpack.c.b16 %v1320, %v1312
        %v1409 = vpack.c.b16 %v1321, %v1313
        %v1410 = vpack.c.b16 %v1322, %v1314
        %v1411 = vpack.c.b16 %v1323, %v1315
        %v1412 = vpack.c.b16 %v1324, %v1316
        %v1413 = vpack.c.b16 %v1325, %v1317
        %v1414 = vpack.c.b16 %v1326, %v1318
        %v1415 = vpack.c.b16 %v1335, %v1327
        %v1416 = vpack.c.b16 %v1336, %v1328
        %v1417 = vpack.c.b16 %v1337, %v1329
        %v1418 = vpack.c.b16 %v1338, %v1330
        %v1419 = vpack.c.b16 %v1339, %v1331
        %v1420 = vpack.c.b16 %v1340, %v1332
        %v1421 = vpack.c.b16 %v1341, %v1333
        %v1422 = vpack.c.b16 %v1342, %v1334
        %v1423 = vpack.c.b16 %v1351, %v1343
        %v1424 = vpack.c.b16 %v1352, %v1344
        %v1425 = vpack.c.b16 %v1353, %v1345
        %v1426 = vpack.c.b16 %v1354, %v1346
        %v1427 = vpack.c.b16 %v1355, %v1347
        %v1428 = vpack.c.b16 %v1356, %v1348
        %v1429 = vpack.c.b16 %v1357, %v1349
        %v1430 = vpack.c.b16 %v1358, %v1350
        %v1431 = vpack.c.b16 %v1367, %v1359
        %v1432 = vpack.c.b16 %v1368, %v1360
        %v1433 = vpack.c.b16 %v1369, %v1361
        %v1434 = vpack.c.b16 %v1370, %v1362
        %v1435 = vpack.c.b16 %v1371, %v1363
        %v1436 = vpack.c.b16 %v1372, %v1364
        %v1437 = vpack.c.b16 %v1373, %v1365
        %v1438 = vpack.c.b16 %v1374, %v1366
        %1503 = vmatprep.subr.bf16.mxu0 %v1376
        %1504 = vmatpush1.bf16.msra.mxu0 %v1375
        %1505 = vmatprep.subr.bf16.mxu0 %v1384
        %1506 = vmatpush1.bf16.msra.mxu0 %v1383
        %1507 = vmatprep.subr.bf16.mxu0 %v1392
        %1508 = vmatpush1.bf16.msra.mxu0 %v1391
        %1509 = vmatprep.subr.bf16.mxu0 %v1400
        %1510 = vmatpush1.bf16.msra.mxu0 %v1399
        %1511 = vmatprep.subr.bf16.mxu0 %v1408
        %1512 = vmatpush1.bf16.msra.mxu0 %v1407
        %1513 = vmatprep.subr.bf16.mxu0 %v1416
        %1514 = vmatpush1.bf16.msra.mxu0 %v1415
        %1515 = vmatprep.subr.bf16.mxu0 %v1424
        %1516 = vmatpush1.bf16.msra.mxu0 %v1423
        %1517 = vmatprep.subr.bf16.mxu0 %v1432
        %1518 = vmatpush1.bf16.msra.mxu0 %v1431
        %1519 = vmatprep.subr.bf16.mxu0 0
        %1520 = vmatpush1.bf16.msra.mxu0 0
        %1521 = vmatprep.subr.bf16.mxu0 0
        %1522 = vmatpush1.bf16.msra.mxu0 0
        %1523 = vmatprep.subr.bf16.mxu0 0
        %1524 = vmatpush1.bf16.msra.mxu0 0
        %1525 = vmatprep.subr.bf16.mxu0 0
        %1526 = vmatpush1.bf16.msra.mxu0 0
        %1527 = vmatprep.subr.bf16.mxu0 0
        %1528 = vmatpush1.bf16.msra.mxu0 0
        %1529 = vmatprep.subr.bf16.mxu0 0
        %1530 = vmatpush1.bf16.msra.mxu0 0
        %1531 = vmatprep.subr.bf16.mxu0 0
        %1532 = vmatpush1.bf16.msra.mxu0 0
        %1533 = vmatprep.subr.bf16.mxu0 0
        %1534 = vmatpush1.bf16.msra.mxu0 0
        %1535 = vmatprep.mubr.bf16.mxu0 0
        %1536 = vmatmul.mubr.bf16.gmra.mrb[0].mxu0 %v334
        %v1537 = vpop.f32.mrb[0].mxu0
        %v1538 = vadd.f32 0.0, %v1537
        %v1539 = vpop.f32.mrb[0].mxu0
        %v1540 = vadd.f32 0.0, %v1539
        %v1541 = vpop.f32.mrb[0].mxu0
        %v1542 = vadd.f32 0.0, %v1541
        %v1543 = vpop.f32.mrb[0].mxu0
        %v1544 = vadd.f32 0.0, %v1543
        %1545 = vmatprep.mubr.bf16.mxu0 0
        %1546 = vmatmul.mubr.bf16.gmra.mrb[0].mxu0 %v335
        %v1547 = vpop.f32.mrb[0].mxu0
        %v1548 = vadd.f32 0.0, %v1547
        %v1549 = vpop.f32.mrb[0].mxu0
        %v1550 = vadd.f32 0.0, %v1549
        %v1551 = vpop.f32.mrb[0].mxu0
        %v1552 = vadd.f32 0.0, %v1551
        %v1553 = vpop.f32.mrb[0].mxu0
        %v1554 = vadd.f32 0.0, %v1553
        %1555 = vmatprep.mubr.bf16.mxu0 0
        %1556 = vmatmul.mubr.bf16.gmra.mrb[0].mxu0 %v336
        %v1557 = vpop.f32.mrb[0].mxu0
        %v1558 = vadd.f32 0.0, %v1557
        %v1559 = vpop.f32.mrb[0].mxu0
        %v1560 = vadd.f32 0.0, %v1559
        %v1561 = vpop.f32.mrb[0].mxu0
        %v1562 = vadd.f32 0.0, %v1561
        %v1563 = vpop.f32.mrb[0].mxu0
        %v1564 = vadd.f32 0.0, %v1563
        %1565 = vmatprep.mubr.bf16.mxu0 0
        %1566 = vmatmul.mubr.bf16.gmra.mrb[0].mxu0 %v337
        %v1567 = vpop.f32.mrb[0].mxu0
        %v1568 = vadd.f32 0.0, %v1567
        %v1569 = vpop.f32.mrb[0].mxu0
        %v1570 = vadd.f32 0.0, %v1569
        %v1571 = vpop.f32.mrb[0].mxu0
        %v1572 = vadd.f32 0.0, %v1571
        %v1573 = vpop.f32.mrb[0].mxu0
        %v1574 = vadd.f32 0.0, %v1573
        %1575 = vdwg.mxu0
        %1576 = vmatprep.subr.bf16.mxu0 %v1378
        %1577 = vmatpush1.bf16.msra.mxu0 %v1377
        %1578 = vmatprep.subr.bf16.mxu0 %v1386
        %1579 = vmatpush1.bf16.msra.mxu0 %v1385
        %1580 = vmatprep.subr.bf16.mxu0 %v1394
        %1581 = vmatpush1.bf16.msra.mxu0 %v1393
        %1582 = vmatprep.subr.bf16.mxu0 %v1402
        %1583 = vmatpush1.bf16.msra.mxu0 %v1401
        %1584 = vmatprep.subr.bf16.mxu0 %v1410
        %1585 = vmatpush1.bf16.msra.mxu0 %v1409
        %1586 = vmatprep.subr.bf16.mxu0 %v1418
        %1587 = vmatpush1.bf16.msra.mxu0 %v1417
        %1588 = vmatprep.subr.bf16.mxu0 %v1426
        %1589 = vmatpush1.bf16.msra.mxu0 %v1425
        %1590 = vmatprep.subr.bf16.mxu0 %v1434
        %1591 = vmatpush1.bf16.msra.mxu0 %v1433
        %1592 = vmatprep.subr.bf16.mxu0 0
        %1593 = vmatpush1.bf16.msra.mxu0 0
        %1594 = vmatprep.subr.bf16.mxu0 0
        %1595 = vmatpush1.bf16.msra.mxu0 0
        %1596 = vmatprep.subr.bf16.mxu0 0
        %1597 = vmatpush1.bf16.msra.mxu0 0
        %1598 = vmatprep.subr.bf16.mxu0 0
        %1599 = vmatpush1.bf16.msra.mxu0 0
        %1600 = vmatprep.subr.bf16.mxu0 0
        %1601 = vmatpush1.bf16.msra.mxu0 0
        %1602 = vmatprep.subr.bf16.mxu0 0
        %1603 = vmatpush1.bf16.msra.mxu0 0
        %1604 = vmatprep.subr.bf16.mxu0 0
        %1605 = vmatpush1.bf16.msra.mxu0 0
        %1606 = vmatprep.subr.bf16.mxu0 0
        %1607 = vmatpush1.bf16.msra.mxu0 0
        %1608 = vmatprep.mubr.bf16.mxu0 0
        %1609 = vmatmul.mubr.bf16.gmra.mrb[0].mxu0 %v334
        %v1610 = vpop.f32.mrb[0].mxu0
        %v1611 = vadd.f32 0.0, %v1610
        %v1612 = vpop.f32.mrb[0].mxu0
        %v1613 = vadd.f32 0.0, %v1612
        %v1614 = vpop.f32.mrb[0].mxu0
        %v1615 = vadd.f32 0.0, %v1614
        %v1616 = vpop.f32.mrb[0].mxu0
        %v1617 = vadd.f32 0.0, %v1616
        %1618 = vmatprep.mubr.bf16.mxu0 0
        %1619 = vmatmul.mubr.bf16.gmra.mrb[0].mxu0 %v335
        %v1620 = vpop.f32.mrb[0].mxu0
        %v1621 = vadd.f32 0.0, %v1620
        %v1622 = vpop.f32.mrb[0].mxu0
        %v1623 = vadd.f32 0.0, %v1622
        %v1624 = vpop.f32.mrb[0].mxu0
        %v1625 = vadd.f32 0.0, %v1624
        %v1626 = vpop.f32.mrb[0].mxu0
        %v1627 = vadd.f32 0.0, %v1626
        %1628 = vmatprep.mubr.bf16.mxu0 0
        %1629 = vmatmul.mubr.bf16.gmra.mrb[0].mxu0 %v336
        %v1630 = vpop.f32.mrb[0].mxu0
        %v1631 = vadd.f32 0.0, %v1630
        %v1632 = vpop.f32.mrb[0].mxu0
        %v1633 = vadd.f32 0.0, %v1632
        %v1634 = vpop.f32.mrb[0].mxu0
        %v1635 = vadd.f32 0.0, %v1634
        %v1636 = vpop.f32.mrb[0].mxu0
        %v1637 = vadd.f32 0.0, %v1636
        %1638 = vmatprep.mubr.bf16.mxu0 0
        %1639 = vmatmul.mubr.bf16.gmra.mrb[0].mxu0 %v337
        %v1640 = vpop.f32.mrb[0].mxu0
        %v1641 = vadd.f32 0.0, %v1640
        %v1642 = vpop.f32.mrb[0].mxu0
        %v1643 = vadd.f32 0.0, %v1642
        %v1644 = vpop.f32.mrb[0].mxu0
        %v1645 = vadd.f32 0.0, %v1644
        %v1646 = vpop.f32.mrb[0].mxu0
        %v1647 = vadd.f32 0.0, %v1646
        %1648 = vdwg.mxu0
        %1649 = vmatprep.subr.bf16.mxu0 %v1380
        %1650 = vmatpush1.bf16.msra.mxu0 %v1379
        %1651 = vmatprep.subr.bf16.mxu0 %v1388
        %1652 = vmatpush1.bf16.msra.mxu0 %v1387
        %1653 = vmatprep.subr.bf16.mxu0 %v1396
        %1654 = vmatpush1.bf16.msra.mxu0 %v1395
        %1655 = vmatprep.subr.bf16.mxu0 %v1404
        %1656 = vmatpush1.bf16.msra.mxu0 %v1403
        %1657 = vmatprep.subr.bf16.mxu0 %v1412
        %1658 = vmatpush1.bf16.msra.mxu0 %v1411
        %1659 = vmatprep.subr.bf16.mxu0 %v1420
        %1660 = vmatpush1.bf16.msra.mxu0 %v1419
        %1661 = vmatprep.subr.bf16.mxu0 %v1428
        %1662 = vmatpush1.bf16.msra.mxu0 %v1427
        %1663 = vmatprep.subr.bf16.mxu0 %v1436
        %1664 = vmatpush1.bf16.msra.mxu0 %v1435
        %1665 = vmatprep.subr.bf16.mxu0 0
        %1666 = vmatpush1.bf16.msra.mxu0 0
        %1667 = vmatprep.subr.bf16.mxu0 0
        %1668 = vmatpush1.bf16.msra.mxu0 0
        %1669 = vmatprep.subr.bf16.mxu0 0
        %1670 = vmatpush1.bf16.msra.mxu0 0
        %1671 = vmatprep.subr.bf16.mxu0 0
        %1672 = vmatpush1.bf16.msra.mxu0 0
        %1673 = vmatprep.subr.bf16.mxu0 0
        %1674 = vmatpush1.bf16.msra.mxu0 0
        %1675 = vmatprep.subr.bf16.mxu0 0
        %1676 = vmatpush1.bf16.msra.mxu0 0
        %1677 = vmatprep.subr.bf16.mxu0 0
        %1678 = vmatpush1.bf16.msra.mxu0 0
        %1679 = vmatprep.subr.bf16.mxu0 0
        %1680 = vmatpush1.bf16.msra.mxu0 0
        %1681 = vmatprep.mubr.bf16.mxu0 0
        %1682 = vmatmul.mubr.bf16.gmra.mrb[0].mxu0 %v334
        %v1683 = vpop.f32.mrb[0].mxu0
        %v1684 = vadd.f32 0.0, %v1683
        %v1685 = vpop.f32.mrb[0].mxu0
        %v1686 = vadd.f32 0.0, %v1685
        %v1687 = vpop.f32.mrb[0].mxu0
        %v1688 = vadd.f32 0.0, %v1687
        %v1689 = vpop.f32.mrb[0].mxu0
        %v1690 = vadd.f32 0.0, %v1689
        %1691 = vmatprep.mubr.bf16.mxu0 0
        %1692 = vmatmul.mubr.bf16.gmra.mrb[0].mxu0 %v335
        %v1693 = vpop.f32.mrb[0].mxu0
        %v1694 = vadd.f32 0.0, %v1693
        %v1695 = vpop.f32.mrb[0].mxu0
        %v1696 = vadd.f32 0.0, %v1695
        %v1697 = vpop.f32.mrb[0].mxu0
        %v1698 = vadd.f32 0.0, %v1697
        %v1699 = vpop.f32.mrb[0].mxu0
        %v1700 = vadd.f32 0.0, %v1699
        %1701 = vmatprep.mubr.bf16.mxu0 0
        %1702 = vmatmul.mubr.bf16.gmra.mrb[0].mxu0 %v336
        %v1703 = vpop.f32.mrb[0].mxu0
        %v1704 = vadd.f32 0.0, %v1703
        %v1705 = vpop.f32.mrb[0].mxu0
        %v1706 = vadd.f32 0.0, %v1705
        %v1707 = vpop.f32.mrb[0].mxu0
        %v1708 = vadd.f32 0.0, %v1707
        %v1709 = vpop.f32.mrb[0].mxu0
        %v1710 = vadd.f32 0.0, %v1709
        %1711 = vmatprep.mubr.bf16.mxu0 0
        %1712 = vmatmul.mubr.bf16.gmra.mrb[0].mxu0 %v337
        %v1713 = vpop.f32.mrb[0].mxu0
        %v1714 = vadd.f32 0.0, %v1713
        %v1715 = vpop.f32.mrb[0].mxu0
        %v1716 = vadd.f32 0.0, %v1715
        %v1717 = vpop.f32.mrb[0].mxu0
        %v1718 = vadd.f32 0.0, %v1717
        %v1719 = vpop.f32.mrb[0].mxu0
        %v1720 = vadd.f32 0.0, %v1719
        %1721 = vdwg.mxu0
        %1722 = vmatprep.subr.bf16.mxu0 %v1382
        %1723 = vmatpush1.bf16.msra.mxu0 %v1381
        %1724 = vmatprep.subr.bf16.mxu0 %v1390
        %1725 = vmatpush1.bf16.msra.mxu0 %v1389
        %1726 = vmatprep.subr.bf16.mxu0 %v1398
        %1727 = vmatpush1.bf16.msra.mxu0 %v1397
        %1728 = vmatprep.subr.bf16.mxu0 %v1406
        %1729 = vmatpush1.bf16.msra.mxu0 %v1405
        %1730 = vmatprep.subr.bf16.mxu0 %v1414
        %1731 = vmatpush1.bf16.msra.mxu0 %v1413
        %1732 = vmatprep.subr.bf16.mxu0 %v1422
        %1733 = vmatpush1.bf16.msra.mxu0 %v1421
        %1734 = vmatprep.subr.bf16.mxu0 %v1430
        %1735 = vmatpush1.bf16.msra.mxu0 %v1429
        %1736 = vmatprep.subr.bf16.mxu0 %v1438
        %1737 = vmatpush1.bf16.msra.mxu0 %v1437
        %1738 = vmatprep.subr.bf16.mxu0 0
        %1739 = vmatpush1.bf16.msra.mxu0 0
        %1740 = vmatprep.subr.bf16.mxu0 0
        %1741 = vmatpush1.bf16.msra.mxu0 0
        %1742 = vmatprep.subr.bf16.mxu0 0
        %1743 = vmatpush1.bf16.msra.mxu0 0
        %1744 = vmatprep.subr.bf16.mxu0 0
        %1745 = vmatpush1.bf16.msra.mxu0 0
        %1746 = vmatprep.subr.bf16.mxu0 0
        %1747 = vmatpush1.bf16.msra.mxu0 0
        %1748 = vmatprep.subr.bf16.mxu0 0
        %1749 = vmatpush1.bf16.msra.mxu0 0
        %1750 = vmatprep.subr.bf16.mxu0 0
        %1751 = vmatpush1.bf16.msra.mxu0 0
        %1752 = vmatprep.subr.bf16.mxu0 0
        %1753 = vmatpush1.bf16.msra.mxu0 0
        %1754 = vmatprep.mubr.bf16.mxu0 0
        %1755 = vmatmul.mubr.bf16.gmra.mrb[0].mxu0 %v334
        %v1756 = vpop.f32.mrb[0].mxu0
        %v1757 = vadd.f32 0.0, %v1756
        %v1758 = vpop.f32.mrb[0].mxu0
        %v1759 = vadd.f32 0.0, %v1758
        %v1760 = vpop.f32.mrb[0].mxu0
        %v1761 = vadd.f32 0.0, %v1760
        %v1762 = vpop.f32.mrb[0].mxu0
        %v1763 = vadd.f32 0.0, %v1762
        %1764 = vmatprep.mubr.bf16.mxu0 0
        %1765 = vmatmul.mubr.bf16.gmra.mrb[0].mxu0 %v335
        %v1766 = vpop.f32.mrb[0].mxu0
        %v1767 = vadd.f32 0.0, %v1766
        %v1768 = vpop.f32.mrb[0].mxu0
        %v1769 = vadd.f32 0.0, %v1768
        %v1770 = vpop.f32.mrb[0].mxu0
        %v1771 = vadd.f32 0.0, %v1770
        %v1772 = vpop.f32.mrb[0].mxu0
        %v1773 = vadd.f32 0.0, %v1772
        %1774 = vmatprep.mubr.bf16.mxu0 0
        %1775 = vmatmul.mubr.bf16.gmra.mrb[0].mxu0 %v336
        %v1776 = vpop.f32.mrb[0].mxu0
        %v1777 = vadd.f32 0.0, %v1776
        %v1778 = vpop.f32.mrb[0].mxu0
        %v1779 = vadd.f32 0.0, %v1778
        %v1780 = vpop.f32.mrb[0].mxu0
        %v1781 = vadd.f32 0.0, %v1780
        %v1782 = vpop.f32.mrb[0].mxu0
        %v1783 = vadd.f32 0.0, %v1782
        %1784 = vmatprep.mubr.bf16.mxu0 0
        %1785 = vmatmul.mubr.bf16.gmra.mrb[0].mxu0 %v337
        %v1786 = vpop.f32.mrb[0].mxu0
        %v1787 = vadd.f32 0.0, %v1786
        %v1788 = vpop.f32.mrb[0].mxu0
        %v1789 = vadd.f32 0.0, %v1788
        %v1790 = vpop.f32.mrb[0].mxu0
        %v1791 = vadd.f32 0.0, %v1790
        %v1792 = vpop.f32.mrb[0].mxu0
        %v1793 = vadd.f32 0.0, %v1792
        %1794 = vdwg.mxu0
        %v1795 = vmax.f32 %v1538, %v1542
        %v1796 = vmax.f32 %v1795, %v1548
        %v1797 = vmax.f32 %v1796, %v1552
        %v1798 = vmax.f32 %v1797, %v1558
        %v1799 = vmax.f32 %v1798, %v1562
        %v1800 = vmax.f32 %v1799, %v1568
        %v1801 = vmax.f32 %v1800, %v1572
        %v1802 = vrot.slane %v1801, 4
        %v1803 = vmax.f32 %v1801, %v1802
        %v1804 = vrot.slane %v1803, 2
        %v1805 = vmax.f32 %v1803, %v1804
        %v1806 = vrot.slane %v1805, 1
        %v1807 = vmax.f32 %v1805, %v1806
        %v1808 = vmax.f32 %v1540, %v1544
        %v1809 = vmax.f32 %v1808, %v1550
        %v1810 = vmax.f32 %v1809, %v1554
        %v1811 = vmax.f32 %v1810, %v1560
        %v1812 = vmax.f32 %v1811, %v1564
        %v1813 = vmax.f32 %v1812, %v1570
        %v1814 = vmax.f32 %v1813, %v1574
        %v1815 = vrot.slane %v1814, 4
        %v1816 = vmax.f32 %v1814, %v1815
        %v1817 = vrot.slane %v1816, 2
        %v1818 = vmax.f32 %v1816, %v1817
        %v1819 = vrot.slane %v1818, 1
        %v1820 = vmax.f32 %v1818, %v1819
        %v1821 = vmax.f32 %v1611, %v1615
        %v1822 = vmax.f32 %v1821, %v1621
        %v1823 = vmax.f32 %v1822, %v1625
        %v1824 = vmax.f32 %v1823, %v1631
        %v1825 = vmax.f32 %v1824, %v1635
        %v1826 = vmax.f32 %v1825, %v1641
        %v1827 = vmax.f32 %v1826, %v1645
        %v1828 = vrot.slane %v1827, 4
        %v1829 = vmax.f32 %v1827, %v1828
        %v1830 = vrot.slane %v1829, 2
        %v1831 = vmax.f32 %v1829, %v1830
        %v1832 = vrot.slane %v1831, 1
        %v1833 = vmax.f32 %v1831, %v1832
        %v1834 = vmax.f32 %v1613, %v1617
        %v1835 = vmax.f32 %v1834, %v1623
        %v1836 = vmax.f32 %v1835, %v1627
        %v1837 = vmax.f32 %v1836, %v1633
        %v1838 = vmax.f32 %v1837, %v1637
        %v1839 = vmax.f32 %v1838, %v1643
        %v1840 = vmax.f32 %v1839, %v1647
        %v1841 = vrot.slane %v1840, 4
        %v1842 = vmax.f32 %v1840, %v1841
        %v1843 = vrot.slane %v1842, 2
        %v1844 = vmax.f32 %v1842, %v1843
        %v1845 = vrot.slane %v1844, 1
        %v1846 = vmax.f32 %v1844, %v1845
        %v1847 = vmax.f32 %v1684, %v1688
        %v1848 = vmax.f32 %v1847, %v1694
        %v1849 = vmax.f32 %v1848, %v1698
        %v1850 = vmax.f32 %v1849, %v1704
        %v1851 = vmax.f32 %v1850, %v1708
        %v1852 = vmax.f32 %v1851, %v1714
        %v1853 = vmax.f32 %v1852, %v1718
        %v1854 = vrot.slane %v1853, 4
        %v1855 = vmax.f32 %v1853, %v1854
        %v1856 = vrot.slane %v1855, 2
        %v1857 = vmax.f32 %v1855, %v1856
        %v1858 = vrot.slane %v1857, 1
        %v1859 = vmax.f32 %v1857, %v1858
        %v1860 = vmax.f32 %v1686, %v1690
        %v1861 = vmax.f32 %v1860, %v1696
        %v1862 = vmax.f32 %v1861, %v1700
        %v1863 = vmax.f32 %v1862, %v1706
        %v1864 = vmax.f32 %v1863, %v1710
        %v1865 = vmax.f32 %v1864, %v1716
        %v1866 = vmax.f32 %v1865, %v1720
        %v1867 = vrot.slane %v1866, 4
        %v1868 = vmax.f32 %v1866, %v1867
        %v1869 = vrot.slane %v1868, 2
        %v1870 = vmax.f32 %v1868, %v1869
        %v1871 = vrot.slane %v1870, 1
        %v1872 = vmax.f32 %v1870, %v1871
        %v1873 = vmax.f32 %v1757, %v1761
        %v1874 = vmax.f32 %v1873, %v1767
        %v1875 = vmax.f32 %v1874, %v1771
        %v1876 = vmax.f32 %v1875, %v1777
        %v1877 = vmax.f32 %v1876, %v1781
        %v1878 = vmax.f32 %v1877, %v1787
        %v1879 = vmax.f32 %v1878, %v1791
        %v1880 = vrot.slane %v1879, 4
        %v1881 = vmax.f32 %v1879, %v1880
        %v1882 = vrot.slane %v1881, 2
        %v1883 = vmax.f32 %v1881, %v1882
        %v1884 = vrot.slane %v1883, 1
        %v1885 = vmax.f32 %v1883, %v1884
        %v1886 = vmax.f32 %v1759, %v1763
        %v1887 = vmax.f32 %v1886, %v1769
        %v1888 = vmax.f32 %v1887, %v1773
        %v1889 = vmax.f32 %v1888, %v1779
        %v1890 = vmax.f32 %v1889, %v1783
        %v1891 = vmax.f32 %v1890, %v1789
        %v1892 = vmax.f32 %v1891, %v1793
        %v1893 = vrot.slane %v1892, 4
        %v1894 = vmax.f32 %v1892, %v1893
        %v1895 = vrot.slane %v1894, 2
        %v1896 = vmax.f32 %v1894, %v1895
        %v1897 = vrot.slane %v1896, 1
        %v1898 = vmax.f32 %v1896, %v1897
        %v1899 = vld [vmem:[%s231 + $0x8] sm:$0xff]
        %v1908 = vcombine.low %v1807, %v1820
        %v1909 = vcombine.low %v1833, %v1846
        %v1910 = vcombine.low %v1859, %v1872
        %v1911 = vcombine.low %v1885, %v1898
        %v1913 = vunpack.c.l.s4 1966171168
        %v1914 = vunpack.c.0.s8 %v1913
        %v1915 = vlaneseq
        %v1916 = vshrl.u32 %v1915, 7
        %v1917 = vsub.s32 %v1914, %v1916
        %v1918 = vrot.slane %v1908, %v1917
        %v1920 = vunpack.c.l.s4 1966171168
        %v1921 = vunpack.c.0.s8 %v1920
        %v1922 = vlaneseq
        %v1923 = vshrl.u32 %v1922, 7
        %v1924 = vsub.s32 %v1921, %v1923
        %v1925 = vrot.slane %v1909, %v1924
        %v1927 = vunpack.c.l.s4 1966171168
        %v1928 = vunpack.c.0.s8 %v1927
        %v1929 = vlaneseq
        %v1930 = vshrl.u32 %v1929, 7
        %v1931 = vsub.s32 %v1928, %v1930
        %v1932 = vrot.slane %v1910, %v1931
        %v1934 = vunpack.c.l.s4 1966171168
        %v1935 = vunpack.c.0.s8 %v1934
        %v1936 = vlaneseq
        %v1937 = vshrl.u32 %v1936, 7
        %v1938 = vsub.s32 %v1935, %v1937
        %v1939 = vrot.slane %v1911, %v1938
        %v1940 = vcombine.low %v1918, %v1925
        %v1941 = vcombine.low %v1932, %v1939
        %v1943 = vunpack.c.l.s4 1966171168
        %v1944 = vunpack.c.0.s8 %v1943
        %v1945 = vlaneseq
        %v1946 = vshrl.u32 %v1945, 7
        %v1947 = vsub.s32 %v1944, %v1946
        %v1948 = vrot.slane %v1940, %v1947
        %v1950 = vunpack.c.l.s4 1966171168
        %v1951 = vunpack.c.0.s8 %v1950
        %v1952 = vlaneseq
        %v1953 = vshrl.u32 %v1952, 7
        %v1954 = vsub.s32 %v1951, %v1953
        %v1955 = vrot.slane %v1941, %v1954
        %v1956 = vcombine.low %v1948, %v1955
        %v1958 = vmax.f32 %v1899, %v1956
        %1959 = vst [vmem:[%s231 + $0x8] sm:$0xff] %v1958
        %v1960 = vld [vmem:[#allocation5 + $0x40] sm:$0xff]
        %v1961 = vld [vmem:[#allocation5 + $0x48] sm:$0xff]
        %v1962 = vld [vmem:[#allocation5 + $0x50] sm:$0xff]
        %v1963 = vld [vmem:[#allocation5 + $0x58] sm:$0xff]
        %v1964 = vld [vmem:[#allocation5 + $0x140] sm:$0xff]
        %v1965 = vld [vmem:[#allocation5 + $0x148] sm:$0xff]
        %v1966 = vld [vmem:[#allocation5 + $0x150] sm:$0xff]
        %v1967 = vld [vmem:[#allocation5 + $0x158] sm:$0xff]
        %v1968 = vld [vmem:[#allocation5 + $0x240] sm:$0xff]
        %v1969 = vld [vmem:[#allocation5 + $0x248] sm:$0xff]
        %v1970 = vld [vmem:[#allocation5 + $0x250] sm:$0xff]
        %v1971 = vld [vmem:[#allocation5 + $0x258] sm:$0xff]
        %v1972 = vld [vmem:[#allocation5 + $0x340] sm:$0xff]
        %v1973 = vld [vmem:[#allocation5 + $0x348] sm:$0xff]
        %v1974 = vld [vmem:[#allocation5 + $0x350] sm:$0xff]
        %v1975 = vld [vmem:[#allocation5 + $0x358] sm:$0xff]
        %v1976 = vld [vmem:[#allocation5 + $0x440] sm:$0xff]
        %v1977 = vld [vmem:[#allocation5 + $0x448] sm:$0xff]
        %v1978 = vld [vmem:[#allocation5 + $0x450] sm:$0xff]
        %v1979 = vld [vmem:[#allocation5 + $0x458] sm:$0xff]
        %v1980 = vld [vmem:[#allocation5 + $0x540] sm:$0xff]
        %v1981 = vld [vmem:[#allocation5 + $0x548] sm:$0xff]
        %v1982 = vld [vmem:[#allocation5 + $0x550] sm:$0xff]
        %v1983 = vld [vmem:[#allocation5 + $0x558] sm:$0xff]
        %v1984 = vld [vmem:[#allocation5 + $0x640] sm:$0xff]
        %v1985 = vld [vmem:[#allocation5 + $0x648] sm:$0xff]
        %v1986 = vld [vmem:[#allocation5 + $0x650] sm:$0xff]
        %v1987 = vld [vmem:[#allocation5 + $0x658] sm:$0xff]
        %v1988 = vld [vmem:[#allocation5 + $0x740] sm:$0xff]
        %v1989 = vld [vmem:[#allocation5 + $0x748] sm:$0xff]
        %v1990 = vld [vmem:[#allocation5 + $0x750] sm:$0xff]
        %v1991 = vld [vmem:[#allocation5 + $0x758] sm:$0xff]
        %v1992 = vld [vmem:[#allocation5 + $0x840] sm:$0xff]
        %v1993 = vld [vmem:[#allocation5 + $0x848] sm:$0xff]
        %v1994 = vld [vmem:[#allocation5 + $0x850] sm:$0xff]
        %v1995 = vld [vmem:[#allocation5 + $0x858] sm:$0xff]
        %v1996 = vld [vmem:[#allocation5 + $0x940] sm:$0xff]
        %v1997 = vld [vmem:[#allocation5 + $0x948] sm:$0xff]
        %v1998 = vld [vmem:[#allocation5 + $0x950] sm:$0xff]
        %v1999 = vld [vmem:[#allocation5 + $0x958] sm:$0xff]
        %v2000 = vld [vmem:[#allocation5 + $0xa40] sm:$0xff]
        %v2001 = vld [vmem:[#allocation5 + $0xa48] sm:$0xff]
        %v2002 = vld [vmem:[#allocation5 + $0xa50] sm:$0xff]
        %v2003 = vld [vmem:[#allocation5 + $0xa58] sm:$0xff]
        %v2004 = vld [vmem:[#allocation5 + $0xb40] sm:$0xff]
        %v2005 = vld [vmem:[#allocation5 + $0xb48] sm:$0xff]
        %v2006 = vld [vmem:[#allocation5 + $0xb50] sm:$0xff]
        %v2007 = vld [vmem:[#allocation5 + $0xb58] sm:$0xff]
        %v2008 = vld [vmem:[#allocation5 + $0xc40] sm:$0xff]
        %v2009 = vld [vmem:[#allocation5 + $0xc48] sm:$0xff]
        %v2010 = vld [vmem:[#allocation5 + $0xc50] sm:$0xff]
        %v2011 = vld [vmem:[#allocation5 + $0xc58] sm:$0xff]
        %v2012 = vld [vmem:[#allocation5 + $0xd40] sm:$0xff]
        %v2013 = vld [vmem:[#allocation5 + $0xd48] sm:$0xff]
        %v2014 = vld [vmem:[#allocation5 + $0xd50] sm:$0xff]
        %v2015 = vld [vmem:[#allocation5 + $0xd58] sm:$0xff]
        %v2016 = vld [vmem:[#allocation5 + $0xe40] sm:$0xff]
        %v2017 = vld [vmem:[#allocation5 + $0xe48] sm:$0xff]
        %v2018 = vld [vmem:[#allocation5 + $0xe50] sm:$0xff]
        %v2019 = vld [vmem:[#allocation5 + $0xe58] sm:$0xff]
        %v2020 = vld [vmem:[#allocation5 + $0xf40] sm:$0xff]
        %v2021 = vld [vmem:[#allocation5 + $0xf48] sm:$0xff]
        %v2022 = vld [vmem:[#allocation5 + $0xf50] sm:$0xff]
        %v2023 = vld [vmem:[#allocation5 + $0xf58] sm:$0xff]
        %v2088 = vunpack.c.l.b16 %v1960
        %v2089 = vunpack.c.h.b16 %v1960
        %v2090 = vunpack.c.l.b16 %v1961
        %v2091 = vunpack.c.h.b16 %v1961
        %v2092 = vunpack.c.l.b16 %v1962
        %v2093 = vunpack.c.h.b16 %v1962
        %v2094 = vunpack.c.l.b16 %v1963
        %v2095 = vunpack.c.h.b16 %v1963
        %v2096 = vunpack.c.l.b16 %v1964
        %v2097 = vunpack.c.h.b16 %v1964
        %v2098 = vunpack.c.l.b16 %v1965
        %v2099 = vunpack.c.h.b16 %v1965
        %v2100 = vunpack.c.l.b16 %v1966
        %v2101 = vunpack.c.h.b16 %v1966
        %v2102 = vunpack.c.l.b16 %v1967
        %v2103 = vunpack.c.h.b16 %v1967
        %v2104 = vunpack.c.l.b16 %v1968
        %v2105 = vunpack.c.h.b16 %v1968
        %v2106 = vunpack.c.l.b16 %v1969
        %v2107 = vunpack.c.h.b16 %v1969
        %v2108 = vunpack.c.l.b16 %v1970
        %v2109 = vunpack.c.h.b16 %v1970
        %v2110 = vunpack.c.l.b16 %v1971
        %v2111 = vunpack.c.h.b16 %v1971
        %v2112 = vunpack.c.l.b16 %v1972
        %v2113 = vunpack.c.h.b16 %v1972
        %v2114 = vunpack.c.l.b16 %v1973
        %v2115 = vunpack.c.h.b16 %v1973
        %v2116 = vunpack.c.l.b16 %v1974
        %v2117 = vunpack.c.h.b16 %v1974
        %v2118 = vunpack.c.l.b16 %v1975
        %v2119 = vunpack.c.h.b16 %v1975
        %v2120 = vunpack.c.l.b16 %v1976
        %v2121 = vunpack.c.h.b16 %v1976
        %v2122 = vunpack.c.l.b16 %v1977
        %v2123 = vunpack.c.h.b16 %v1977
        %v2124 = vunpack.c.l.b16 %v1978
        %v2125 = vunpack.c.h.b16 %v1978
        %v2126 = vunpack.c.l.b16 %v1979
        %v2127 = vunpack.c.h.b16 %v1979
        %v2128 = vunpack.c.l.b16 %v1980
        %v2129 = vunpack.c.h.b16 %v1980
        %v2130 = vunpack.c.l.b16 %v1981
        %v2131 = vunpack.c.h.b16 %v1981
        %v2132 = vunpack.c.l.b16 %v1982
        %v2133 = vunpack.c.h.b16 %v1982
        %v2134 = vunpack.c.l.b16 %v1983
        %v2135 = vunpack.c.h.b16 %v1983
        %v2136 = vunpack.c.l.b16 %v1984
        %v2137 = vunpack.c.h.b16 %v1984
        %v2138 = vunpack.c.l.b16 %v1985
        %v2139 = vunpack.c.h.b16 %v1985
        %v2140 = vunpack.c.l.b16 %v1986
        %v2141 = vunpack.c.h.b16 %v1986
        %v2142 = vunpack.c.l.b16 %v1987
        %v2143 = vunpack.c.h.b16 %v1987
        %v2144 = vunpack.c.l.b16 %v1988
        %v2145 = vunpack.c.h.b16 %v1988
        %v2146 = vunpack.c.l.b16 %v1989
        %v2147 = vunpack.c.h.b16 %v1989
        %v2148 = vunpack.c.l.b16 %v1990
        %v2149 = vunpack.c.h.b16 %v1990
        %v2150 = vunpack.c.l.b16 %v1991
        %v2151 = vunpack.c.h.b16 %v1991
        %v2152 = vunpack.c.l.b16 %v1992
        %v2153 = vunpack.c.h.b16 %v1992
        %v2154 = vunpack.c.l.b16 %v1993
        %v2155 = vunpack.c.h.b16 %v1993
        %v2156 = vunpack.c.l.b16 %v1994
        %v2157 = vunpack.c.h.b16 %v1994
        %v2158 = vunpack.c.l.b16 %v1995
        %v2159 = vunpack.c.h.b16 %v1995
        %v2160 = vunpack.c.l.b16 %v1996
        %v2161 = vunpack.c.h.b16 %v1996
        %v2162 = vunpack.c.l.b16 %v1997
        %v2163 = vunpack.c.h.b16 %v1997
        %v2164 = vunpack.c.l.b16 %v1998
        %v2165 = vunpack.c.h.b16 %v1998
        %v2166 = vunpack.c.l.b16 %v1999
        %v2167 = vunpack.c.h.b16 %v1999
        %v2168 = vunpack.c.l.b16 %v2000
        %v2169 = vunpack.c.h.b16 %v2000
        %v2170 = vunpack.c.l.b16 %v2001
        %v2171 = vunpack.c.h.b16 %v2001
        %v2172 = vunpack.c.l.b16 %v2002
        %v2173 = vunpack.c.h.b16 %v2002
        %v2174 = vunpack.c.l.b16 %v2003
        %v2175 = vunpack.c.h.b16 %v2003
        %v2176 = vunpack.c.l.b16 %v2004
        %v2177 = vunpack.c.h.b16 %v2004
        %v2178 = vunpack.c.l.b16 %v2005
        %v2179 = vunpack.c.h.b16 %v2005
        %v2180 = vunpack.c.l.b16 %v2006
        %v2181 = vunpack.c.h.b16 %v2006
        %v2182 = vunpack.c.l.b16 %v2007
        %v2183 = vunpack.c.h.b16 %v2007
        %v2184 = vunpack.c.l.b16 %v2008
        %v2185 = vunpack.c.h.b16 %v2008
        %v2186 = vunpack.c.l.b16 %v2009
        %v2187 = vunpack.c.h.b16 %v2009
        %v2188 = vunpack.c.l.b16 %v2010
        %v2189 = vunpack.c.h.b16 %v2010
        %v2190 = vunpack.c.l.b16 %v2011
        %v2191 = vunpack.c.h.b16 %v2011
        %v2192 = vunpack.c.l.b16 %v2012
        %v2193 = vunpack.c.h.b16 %v2012
        %v2194 = vunpack.c.l.b16 %v2013
        %v2195 = vunpack.c.h.b16 %v2013
        %v2196 = vunpack.c.l.b16 %v2014
        %v2197 = vunpack.c.h.b16 %v2014
        %v2198 = vunpack.c.l.b16 %v2015
        %v2199 = vunpack.c.h.b16 %v2015
        %v2200 = vunpack.c.l.b16 %v2016
        %v2201 = vunpack.c.h.b16 %v2016
        %v2202 = vunpack.c.l.b16 %v2017
        %v2203 = vunpack.c.h.b16 %v2017
        %v2204 = vunpack.c.l.b16 %v2018
        %v2205 = vunpack.c.h.b16 %v2018
        %v2206 = vunpack.c.l.b16 %v2019
        %v2207 = vunpack.c.h.b16 %v2019
        %v2208 = vunpack.c.l.b16 %v2020
        %v2209 = vunpack.c.h.b16 %v2020
        %v2210 = vunpack.c.l.b16 %v2021
        %v2211 = vunpack.c.h.b16 %v2021
        %v2212 = vunpack.c.l.b16 %v2022
        %v2213 = vunpack.c.h.b16 %v2022
        %v2214 = vunpack.c.l.b16 %v2023
        %v2215 = vunpack.c.h.b16 %v2023
        %v2216 = vpack.c.b16 %v2096, %v2088
        %v2217 = vpack.c.b16 %v2097, %v2089
        %v2218 = vpack.c.b16 %v2098, %v2090
        %v2219 = vpack.c.b16 %v2099, %v2091
        %v2220 = vpack.c.b16 %v2100, %v2092
        %v2221 = vpack.c.b16 %v2101, %v2093
        %v2222 = vpack.c.b16 %v2102, %v2094
        %v2223 = vpack.c.b16 %v2103, %v2095
        %v2224 = vpack.c.b16 %v2112, %v2104
        %v2225 = vpack.c.b16 %v2113, %v2105
        %v2226 = vpack.c.b16 %v2114, %v2106
        %v2227 = vpack.c.b16 %v2115, %v2107
        %v2228 = vpack.c.b16 %v2116, %v2108
        %v2229 = vpack.c.b16 %v2117, %v2109
        %v2230 = vpack.c.b16 %v2118, %v2110
        %v2231 = vpack.c.b16 %v2119, %v2111
        %v2232 = vpack.c.b16 %v2128, %v2120
        %v2233 = vpack.c.b16 %v2129, %v2121
        %v2234 = vpack.c.b16 %v2130, %v2122
        %v2235 = vpack.c.b16 %v2131, %v2123
        %v2236 = vpack.c.b16 %v2132, %v2124
        %v2237 = vpack.c.b16 %v2133, %v2125
        %v2238 = vpack.c.b16 %v2134, %v2126
        %v2239 = vpack.c.b16 %v2135, %v2127
        %v2240 = vpack.c.b16 %v2144, %v2136
        %v2241 = vpack.c.b16 %v2145, %v2137
        %v2242 = vpack.c.b16 %v2146, %v2138
        %v2243 = vpack.c.b16 %v2147, %v2139
        %v2244 = vpack.c.b16 %v2148, %v2140
        %v2245 = vpack.c.b16 %v2149, %v2141
        %v2246 = vpack.c.b16 %v2150, %v2142
        %v2247 = vpack.c.b16 %v2151, %v2143
        %v2248 = vpack.c.b16 %v2160, %v2152
        %v2249 = vpack.c.b16 %v2161, %v2153
        %v2250 = vpack.c.b16 %v2162, %v2154
        %v2251 = vpack.c.b16 %v2163, %v2155
        %v2252 = vpack.c.b16 %v2164, %v2156
        %v2253 = vpack.c.b16 %v2165, %v2157
        %v2254 = vpack.c.b16 %v2166, %v2158
        %v2255 = vpack.c.b16 %v2167, %v2159
        %v2256 = vpack.c.b16 %v2176, %v2168
        %v2257 = vpack.c.b16 %v2177, %v2169
        %v2258 = vpack.c.b16 %v2178, %v2170
        %v2259 = vpack.c.b16 %v2179, %v2171
        %v2260 = vpack.c.b16 %v2180, %v2172
        %v2261 = vpack.c.b16 %v2181, %v2173
        %v2262 = vpack.c.b16 %v2182, %v2174
        %v2263 = vpack.c.b16 %v2183, %v2175
        %v2264 = vpack.c.b16 %v2192, %v2184
        %v2265 = vpack.c.b16 %v2193, %v2185
        %v2266 = vpack.c.b16 %v2194, %v2186
        %v2267 = vpack.c.b16 %v2195, %v2187
        %v2268 = vpack.c.b16 %v2196, %v2188
        %v2269 = vpack.c.b16 %v2197, %v2189
        %v2270 = vpack.c.b16 %v2198, %v2190
        %v2271 = vpack.c.b16 %v2199, %v2191
        %v2272 = vpack.c.b16 %v2208, %v2200
        %v2273 = vpack.c.b16 %v2209, %v2201
        %v2274 = vpack.c.b16 %v2210, %v2202
        %v2275 = vpack.c.b16 %v2211, %v2203
        %v2276 = vpack.c.b16 %v2212, %v2204
        %v2277 = vpack.c.b16 %v2213, %v2205
        %v2278 = vpack.c.b16 %v2214, %v2206
        %v2279 = vpack.c.b16 %v2215, %v2207
        %2344 = vmatprep.subr.bf16.mxu0 %v2217
        %2345 = vmatpush1.bf16.msra.mxu0 %v2216
        %2346 = vmatprep.subr.bf16.mxu0 %v2225
        %2347 = vmatpush1.bf16.msra.mxu0 %v2224
        %2348 = vmatprep.subr.bf16.mxu0 %v2233
        %2349 = vmatpush1.bf16.msra.mxu0 %v2232
        %2350 = vmatprep.subr.bf16.mxu0 %v2241
        %2351 = vmatpush1.bf16.msra.mxu0 %v2240
        %2352 = vmatprep.subr.bf16.mxu0 %v2249
        %2353 = vmatpush1.bf16.msra.mxu0 %v2248
        %2354 = vmatprep.subr.bf16.mxu0 %v2257
        %2355 = vmatpush1.bf16.msra.mxu0 %v2256
        %2356 = vmatprep.subr.bf16.mxu0 %v2265
        %2357 = vmatpush1.bf16.msra.mxu0 %v2264
        %2358 = vmatprep.subr.bf16.mxu0 %v2273
        %2359 = vmatpush1.bf16.msra.mxu0 %v2272
        %2360 = vmatprep.subr.bf16.mxu0 0
        %2361 = vmatpush1.bf16.msra.mxu0 0
        %2362 = vmatprep.subr.bf16.mxu0 0
        %2363 = vmatpush1.bf16.msra.mxu0 0
        %2364 = vmatprep.subr.bf16.mxu0 0
        %2365 = vmatpush1.bf16.msra.mxu0 0
        %2366 = vmatprep.subr.bf16.mxu0 0
        %2367 = vmatpush1.bf16.msra.mxu0 0
        %2368 = vmatprep.subr.bf16.mxu0 0
        %2369 = vmatpush1.bf16.msra.mxu0 0
        %2370 = vmatprep.subr.bf16.mxu0 0
        %2371 = vmatpush1.bf16.msra.mxu0 0
        %2372 = vmatprep.subr.bf16.mxu0 0
        %2373 = vmatpush1.bf16.msra.mxu0 0
        %2374 = vmatprep.subr.bf16.mxu0 0
        %2375 = vmatpush1.bf16.msra.mxu0 0
        %2376 = vmatprep.mubr.bf16.mxu0 0
        %2377 = vmatmul.mubr.bf16.gmra.mrb[0].mxu0 %v334
        %v2378 = vpop.f32.mrb[0].mxu0
        %v2379 = vadd.f32 0.0, %v2378
        %v2380 = vpop.f32.mrb[0].mxu0
        %v2381 = vadd.f32 0.0, %v2380
        %v2382 = vpop.f32.mrb[0].mxu0
        %v2383 = vadd.f32 0.0, %v2382
        %v2384 = vpop.f32.mrb[0].mxu0
        %v2385 = vadd.f32 0.0, %v2384
        %2386 = vmatprep.mubr.bf16.mxu0 0
        %2387 = vmatmul.mubr.bf16.gmra.mrb[0].mxu0 %v335
        %v2388 = vpop.f32.mrb[0].mxu0
        %v2389 = vadd.f32 0.0, %v2388
        %v2390 = vpop.f32.mrb[0].mxu0
        %v2391 = vadd.f32 0.0, %v2390
        %v2392 = vpop.f32.mrb[0].mxu0
        %v2393 = vadd.f32 0.0, %v2392
        %v2394 = vpop.f32.mrb[0].mxu0
        %v2395 = vadd.f32 0.0, %v2394
        %2396 = vmatprep.mubr.bf16.mxu0 0
        %2397 = vmatmul.mubr.bf16.gmra.mrb[0].mxu0 %v336
        %v2398 = vpop.f32.mrb[0].mxu0
        %v2399 = vadd.f32 0.0, %v2398
        %v2400 = vpop.f32.mrb[0].mxu0
        %v2401 = vadd.f32 0.0, %v2400
        %v2402 = vpop.f32.mrb[0].mxu0
        %v2403 = vadd.f32 0.0, %v2402
        %v2404 = vpop.f32.mrb[0].mxu0
        %v2405 = vadd.f32 0.0, %v2404
        %2406 = vmatprep.mubr.bf16.mxu0 0
        %2407 = vmatmul.mubr.bf16.gmra.mrb[0].mxu0 %v337
        %v2408 = vpop.f32.mrb[0].mxu0
        %v2409 = vadd.f32 0.0, %v2408
        %v2410 = vpop.f32.mrb[0].mxu0
        %v2411 = vadd.f32 0.0, %v2410
        %v2412 = vpop.f32.mrb[0].mxu0
        %v2413 = vadd.f32 0.0, %v2412
        %v2414 = vpop.f32.mrb[0].mxu0
        %v2415 = vadd.f32 0.0, %v2414
        %2416 = vdwg.mxu0
        %2417 = vmatprep.subr.bf16.mxu0 %v2219
        %2418 = vmatpush1.bf16.msra.mxu0 %v2218
        %2419 = vmatprep.subr.bf16.mxu0 %v2227
        %2420 = vmatpush1.bf16.msra.mxu0 %v2226
        %2421 = vmatprep.subr.bf16.mxu0 %v2235
        %2422 = vmatpush1.bf16.msra.mxu0 %v2234
        %2423 = vmatprep.subr.bf16.mxu0 %v2243
        %2424 = vmatpush1.bf16.msra.mxu0 %v2242
        %2425 = vmatprep.subr.bf16.mxu0 %v2251
        %2426 = vmatpush1.bf16.msra.mxu0 %v2250
        %2427 = vmatprep.subr.bf16.mxu0 %v2259
        %2428 = vmatpush1.bf16.msra.mxu0 %v2258
        %2429 = vmatprep.subr.bf16.mxu0 %v2267
        %2430 = vmatpush1.bf16.msra.mxu0 %v2266
        %2431 = vmatprep.subr.bf16.mxu0 %v2275
        %2432 = vmatpush1.bf16.msra.mxu0 %v2274
        %2433 = vmatprep.subr.bf16.mxu0 0
        %2434 = vmatpush1.bf16.msra.mxu0 0
        %2435 = vmatprep.subr.bf16.mxu0 0
        %2436 = vmatpush1.bf16.msra.mxu0 0
        %2437 = vmatprep.subr.bf16.mxu0 0
        %2438 = vmatpush1.bf16.msra.mxu0 0
        %2439 = vmatprep.subr.bf16.mxu0 0
        %2440 = vmatpush1.bf16.msra.mxu0 0
        %2441 = vmatprep.subr.bf16.mxu0 0
        %2442 = vmatpush1.bf16.msra.mxu0 0
        %2443 = vmatprep.subr.bf16.mxu0 0
        %2444 = vmatpush1.bf16.msra.mxu0 0
        %2445 = vmatprep.subr.bf16.mxu0 0
        %2446 = vmatpush1.bf16.msra.mxu0 0
        %2447 = vmatprep.subr.bf16.mxu0 0
        %2448 = vmatpush1.bf16.msra.mxu0 0
        %2449 = vmatprep.mubr.bf16.mxu0 0
        %2450 = vmatmul.mubr.bf16.gmra.mrb[0].mxu0 %v334
        %v2451 = vpop.f32.mrb[0].mxu0
        %v2452 = vadd.f32 0.0, %v2451
        %v2453 = vpop.f32.mrb[0].mxu0
        %v2454 = vadd.f32 0.0, %v2453
        %v2455 = vpop.f32.mrb[0].mxu0
        %v2456 = vadd.f32 0.0, %v2455
        %v2457 = vpop.f32.mrb[0].mxu0
        %v2458 = vadd.f32 0.0, %v2457
        %2459 = vmatprep.mubr.bf16.mxu0 0
        %2460 = vmatmul.mubr.bf16.gmra.mrb[0].mxu0 %v335
        %v2461 = vpop.f32.mrb[0].mxu0
        %v2462 = vadd.f32 0.0, %v2461
        %v2463 = vpop.f32.mrb[0].mxu0
        %v2464 = vadd.f32 0.0, %v2463
        %v2465 = vpop.f32.mrb[0].mxu0
        %v2466 = vadd.f32 0.0, %v2465
        %v2467 = vpop.f32.mrb[0].mxu0
        %v2468 = vadd.f32 0.0, %v2467
        %2469 = vmatprep.mubr.bf16.mxu0 0
        %2470 = vmatmul.mubr.bf16.gmra.mrb[0].mxu0 %v336
        %v2471 = vpop.f32.mrb[0].mxu0
        %v2472 = vadd.f32 0.0, %v2471
        %v2473 = vpop.f32.mrb[0].mxu0
        %v2474 = vadd.f32 0.0, %v2473
        %v2475 = vpop.f32.mrb[0].mxu0
        %v2476 = vadd.f32 0.0, %v2475
        %v2477 = vpop.f32.mrb[0].mxu0
        %v2478 = vadd.f32 0.0, %v2477
        %2479 = vmatprep.mubr.bf16.mxu0 0
        %2480 = vmatmul.mubr.bf16.gmra.mrb[0].mxu0 %v337
        %v2481 = vpop.f32.mrb[0].mxu0
        %v2482 = vadd.f32 0.0, %v2481
        %v2483 = vpop.f32.mrb[0].mxu0
        %v2484 = vadd.f32 0.0, %v2483
        %v2485 = vpop.f32.mrb[0].mxu0
        %v2486 = vadd.f32 0.0, %v2485
        %v2487 = vpop.f32.mrb[0].mxu0
        %v2488 = vadd.f32 0.0, %v2487
        %2489 = vdwg.mxu0
        %2490 = vmatprep.subr.bf16.mxu0 %v2221
        %2491 = vmatpush1.bf16.msra.mxu0 %v2220
        %2492 = vmatprep.subr.bf16.mxu0 %v2229
        %2493 = vmatpush1.bf16.msra.mxu0 %v2228
        %2494 = vmatprep.subr.bf16.mxu0 %v2237
        %2495 = vmatpush1.bf16.msra.mxu0 %v2236
        %2496 = vmatprep.subr.bf16.mxu0 %v2245
        %2497 = vmatpush1.bf16.msra.mxu0 %v2244
        %2498 = vmatprep.subr.bf16.mxu0 %v2253
        %2499 = vmatpush1.bf16.msra.mxu0 %v2252
        %2500 = vmatprep.subr.bf16.mxu0 %v2261
        %2501 = vmatpush1.bf16.msra.mxu0 %v2260
        %2502 = vmatprep.subr.bf16.mxu0 %v2269
        %2503 = vmatpush1.bf16.msra.mxu0 %v2268
        %2504 = vmatprep.subr.bf16.mxu0 %v2277
        %2505 = vmatpush1.bf16.msra.mxu0 %v2276
        %2506 = vmatprep.subr.bf16.mxu0 0
        %2507 = vmatpush1.bf16.msra.mxu0 0
        %2508 = vmatprep.subr.bf16.mxu0 0
        %2509 = vmatpush1.bf16.msra.mxu0 0
        %2510 = vmatprep.subr.bf16.mxu0 0
        %2511 = vmatpush1.bf16.msra.mxu0 0
        %2512 = vmatprep.subr.bf16.mxu0 0
        %2513 = vmatpush1.bf16.msra.mxu0 0
        %2514 = vmatprep.subr.bf16.mxu0 0
        %2515 = vmatpush1.bf16.msra.mxu0 0
        %2516 = vmatprep.subr.bf16.mxu0 0
        %2517 = vmatpush1.bf16.msra.mxu0 0
        %2518 = vmatprep.subr.bf16.mxu0 0
        %2519 = vmatpush1.bf16.msra.mxu0 0
        %2520 = vmatprep.subr.bf16.mxu0 0
        %2521 = vmatpush1.bf16.msra.mxu0 0
        %2522 = vmatprep.mubr.bf16.mxu0 0
        %2523 = vmatmul.mubr.bf16.gmra.mrb[0].mxu0 %v334
        %v2524 = vpop.f32.mrb[0].mxu0
        %v2525 = vadd.f32 0.0, %v2524
        %v2526 = vpop.f32.mrb[0].mxu0
        %v2527 = vadd.f32 0.0, %v2526
        %v2528 = vpop.f32.mrb[0].mxu0
        %v2529 = vadd.f32 0.0, %v2528
        %v2530 = vpop.f32.mrb[0].mxu0
        %v2531 = vadd.f32 0.0, %v2530
        %2532 = vmatprep.mubr.bf16.mxu0 0
        %2533 = vmatmul.mubr.bf16.gmra.mrb[0].mxu0 %v335
        %v2534 = vpop.f32.mrb[0].mxu0
        %v2535 = vadd.f32 0.0, %v2534
        %v2536 = vpop.f32.mrb[0].mxu0
        %v2537 = vadd.f32 0.0, %v2536
        %v2538 = vpop.f32.mrb[0].mxu0
        %v2539 = vadd.f32 0.0, %v2538
        %v2540 = vpop.f32.mrb[0].mxu0
        %v2541 = vadd.f32 0.0, %v2540
        %2542 = vmatprep.mubr.bf16.mxu0 0
        %2543 = vmatmul.mubr.bf16.gmra.mrb[0].mxu0 %v336
        %v2544 = vpop.f32.mrb[0].mxu0
        %v2545 = vadd.f32 0.0, %v2544
        %v2546 = vpop.f32.mrb[0].mxu0
        %v2547 = vadd.f32 0.0, %v2546
        %v2548 = vpop.f32.mrb[0].mxu0
        %v2549 = vadd.f32 0.0, %v2548
        %v2550 = vpop.f32.mrb[0].mxu0
        %v2551 = vadd.f32 0.0, %v2550
        %2552 = vmatprep.mubr.bf16.mxu0 0
        %2553 = vmatmul.mubr.bf16.gmra.mrb[0].mxu0 %v337
        %v2554 = vpop.f32.mrb[0].mxu0
        %v2555 = vadd.f32 0.0, %v2554
        %v2556 = vpop.f32.mrb[0].mxu0
        %v2557 = vadd.f32 0.0, %v2556
        %v2558 = vpop.f32.mrb[0].mxu0
        %v2559 = vadd.f32 0.0, %v2558
        %v2560 = vpop.f32.mrb[0].mxu0
        %v2561 = vadd.f32 0.0, %v2560
        %2562 = vdwg.mxu0
        %2563 = vmatprep.subr.bf16.mxu0 %v2223
        %2564 = vmatpush1.bf16.msra.mxu0 %v2222
        %2565 = vmatprep.subr.bf16.mxu0 %v2231
        %2566 = vmatpush1.bf16.msra.mxu0 %v2230
        %2567 = vmatprep.subr.bf16.mxu0 %v2239
        %2568 = vmatpush1.bf16.msra.mxu0 %v2238
        %2569 = vmatprep.subr.bf16.mxu0 %v2247
        %2570 = vmatpush1.bf16.msra.mxu0 %v2246
        %2571 = vmatprep.subr.bf16.mxu0 %v2255
        %2572 = vmatpush1.bf16.msra.mxu0 %v2254
        %2573 = vmatprep.subr.bf16.mxu0 %v2263
        %2574 = vmatpush1.bf16.msra.mxu0 %v2262
        %2575 = vmatprep.subr.bf16.mxu0 %v2271
        %2576 = vmatpush1.bf16.msra.mxu0 %v2270
        %2577 = vmatprep.subr.bf16.mxu0 %v2279
        %2578 = vmatpush1.bf16.msra.mxu0 %v2278
        %2579 = vmatprep.subr.bf16.mxu0 0
        %2580 = vmatpush1.bf16.msra.mxu0 0
        %2581 = vmatprep.subr.bf16.mxu0 0
        %2582 = vmatpush1.bf16.msra.mxu0 0
        %2583 = vmatprep.subr.bf16.mxu0 0
        %2584 = vmatpush1.bf16.msra.mxu0 0
        %2585 = vmatprep.subr.bf16.mxu0 0
        %2586 = vmatpush1.bf16.msra.mxu0 0
        %2587 = vmatprep.subr.bf16.mxu0 0
        %2588 = vmatpush1.bf16.msra.mxu0 0
        %2589 = vmatprep.subr.bf16.mxu0 0
        %2590 = vmatpush1.bf16.msra.mxu0 0
        %2591 = vmatprep.subr.bf16.mxu0 0
        %2592 = vmatpush1.bf16.msra.mxu0 0
        %2593 = vmatprep.subr.bf16.mxu0 0
        %2594 = vmatpush1.bf16.msra.mxu0 0
        %2595 = vmatprep.mubr.bf16.mxu0 0
        %2596 = vmatmul.mubr.bf16.gmra.mrb[0].mxu0 %v334
        %v2597 = vpop.f32.mrb[0].mxu0
        %v2598 = vadd.f32 0.0, %v2597
        %v2599 = vpop.f32.mrb[0].mxu0
        %v2600 = vadd.f32 0.0, %v2599
        %v2601 = vpop.f32.mrb[0].mxu0
        %v2602 = vadd.f32 0.0, %v2601
        %v2603 = vpop.f32.mrb[0].mxu0
        %v2604 = vadd.f32 0.0, %v2603
        %2605 = vmatprep.mubr.bf16.mxu0 0
        %2606 = vmatmul.mubr.bf16.gmra.mrb[0].mxu0 %v335
        %v2607 = vpop.f32.mrb[0].mxu0
        %v2608 = vadd.f32 0.0, %v2607
        %v2609 = vpop.f32.mrb[0].mxu0
        %v2610 = vadd.f32 0.0, %v2609
        %v2611 = vpop.f32.mrb[0].mxu0
        %v2612 = vadd.f32 0.0, %v2611
        %v2613 = vpop.f32.mrb[0].mxu0
        %v2614 = vadd.f32 0.0, %v2613
        %2615 = vmatprep.mubr.bf16.mxu0 0
        %2616 = vmatmul.mubr.bf16.gmra.mrb[0].mxu0 %v336
        %v2617 = vpop.f32.mrb[0].mxu0
        %v2618 = vadd.f32 0.0, %v2617
        %v2619 = vpop.f32.mrb[0].mxu0
        %v2620 = vadd.f32 0.0, %v2619
        %v2621 = vpop.f32.mrb[0].mxu0
        %v2622 = vadd.f32 0.0, %v2621
        %v2623 = vpop.f32.mrb[0].mxu0
        %v2624 = vadd.f32 0.0, %v2623
        %2625 = vmatprep.mubr.bf16.mxu0 0
        %2626 = vmatmul.mubr.bf16.gmra.mrb[0].mxu0 %v337
        %v2627 = vpop.f32.mrb[0].mxu0
        %v2628 = vadd.f32 0.0, %v2627
        %v2629 = vpop.f32.mrb[0].mxu0
        %v2630 = vadd.f32 0.0, %v2629
        %v2631 = vpop.f32.mrb[0].mxu0
        %v2632 = vadd.f32 0.0, %v2631
        %v2633 = vpop.f32.mrb[0].mxu0
        %v2634 = vadd.f32 0.0, %v2633
        %2635 = vdwg.mxu0
        %v2636 = vmax.f32 %v2379, %v2383
        %v2637 = vmax.f32 %v2636, %v2389
        %v2638 = vmax.f32 %v2637, %v2393
        %v2639 = vmax.f32 %v2638, %v2399
        %v2640 = vmax.f32 %v2639, %v2403
        %v2641 = vmax.f32 %v2640, %v2409
        %v2642 = vmax.f32 %v2641, %v2413
        %v2643 = vrot.slane %v2642, 4
        %v2644 = vmax.f32 %v2642, %v2643
        %v2645 = vrot.slane %v2644, 2
        %v2646 = vmax.f32 %v2644, %v2645
        %v2647 = vrot.slane %v2646, 1
        %v2648 = vmax.f32 %v2646, %v2647
        %v2649 = vmax.f32 %v2381, %v2385
        %v2650 = vmax.f32 %v2649, %v2391
        %v2651 = vmax.f32 %v2650, %v2395
        %v2652 = vmax.f32 %v2651, %v2401
        %v2653 = vmax.f32 %v2652, %v2405
        %v2654 = vmax.f32 %v2653, %v2411
        %v2655 = vmax.f32 %v2654, %v2415
        %v2656 = vrot.slane %v2655, 4
        %v2657 = vmax.f32 %v2655, %v2656
        %v2658 = vrot.slane %v2657, 2
        %v2659 = vmax.f32 %v2657, %v2658
        %v2660 = vrot.slane %v2659, 1
        %v2661 = vmax.f32 %v2659, %v2660
        %v2662 = vmax.f32 %v2452, %v2456
        %v2663 = vmax.f32 %v2662, %v2462
        %v2664 = vmax.f32 %v2663, %v2466
        %v2665 = vmax.f32 %v2664, %v2472
        %v2666 = vmax.f32 %v2665, %v2476
        %v2667 = vmax.f32 %v2666, %v2482
        %v2668 = vmax.f32 %v2667, %v2486
        %v2669 = vrot.slane %v2668, 4
        %v2670 = vmax.f32 %v2668, %v2669
        %v2671 = vrot.slane %v2670, 2
        %v2672 = vmax.f32 %v2670, %v2671
        %v2673 = vrot.slane %v2672, 1
        %v2674 = vmax.f32 %v2672, %v2673
        %v2675 = vmax.f32 %v2454, %v2458
        %v2676 = vmax.f32 %v2675, %v2464
        %v2677 = vmax.f32 %v2676, %v2468
        %v2678 = vmax.f32 %v2677, %v2474
        %v2679 = vmax.f32 %v2678, %v2478
        %v2680 = vmax.f32 %v2679, %v2484
        %v2681 = vmax.f32 %v2680, %v2488
        %v2682 = vrot.slane %v2681, 4
        %v2683 = vmax.f32 %v2681, %v2682
        %v2684 = vrot.slane %v2683, 2
        %v2685 = vmax.f32 %v2683, %v2684
        %v2686 = vrot.slane %v2685, 1
        %v2687 = vmax.f32 %v2685, %v2686
        %v2688 = vmax.f32 %v2525, %v2529
        %v2689 = vmax.f32 %v2688, %v2535
        %v2690 = vmax.f32 %v2689, %v2539
        %v2691 = vmax.f32 %v2690, %v2545
        %v2692 = vmax.f32 %v2691, %v2549
        %v2693 = vmax.f32 %v2692, %v2555
        %v2694 = vmax.f32 %v2693, %v2559
        %v2695 = vrot.slane %v2694, 4
        %v2696 = vmax.f32 %v2694, %v2695
        %v2697 = vrot.slane %v2696, 2
        %v2698 = vmax.f32 %v2696, %v2697
        %v2699 = vrot.slane %v2698, 1
        %v2700 = vmax.f32 %v2698, %v2699
        %v2701 = vmax.f32 %v2527, %v2531
        %v2702 = vmax.f32 %v2701, %v2537
        %v2703 = vmax.f32 %v2702, %v2541
        %v2704 = vmax.f32 %v2703, %v2547
        %v2705 = vmax.f32 %v2704, %v2551
        %v2706 = vmax.f32 %v2705, %v2557
        %v2707 = vmax.f32 %v2706, %v2561
        %v2708 = vrot.slane %v2707, 4
        %v2709 = vmax.f32 %v2707, %v2708
        %v2710 = vrot.slane %v2709, 2
        %v2711 = vmax.f32 %v2709, %v2710
        %v2712 = vrot.slane %v2711, 1
        %v2713 = vmax.f32 %v2711, %v2712
        %v2714 = vmax.f32 %v2598, %v2602
        %v2715 = vmax.f32 %v2714, %v2608
        %v2716 = vmax.f32 %v2715, %v2612
        %v2717 = vmax.f32 %v2716, %v2618
        %v2718 = vmax.f32 %v2717, %v2622
        %v2719 = vmax.f32 %v2718, %v2628
        %v2720 = vmax.f32 %v2719, %v2632
        %v2721 = vrot.slane %v2720, 4
        %v2722 = vmax.f32 %v2720, %v2721
        %v2723 = vrot.slane %v2722, 2
        %v2724 = vmax.f32 %v2722, %v2723
        %v2725 = vrot.slane %v2724, 1
        %v2726 = vmax.f32 %v2724, %v2725
        %v2727 = vmax.f32 %v2600, %v2604
        %v2728 = vmax.f32 %v2727, %v2610
        %v2729 = vmax.f32 %v2728, %v2614
        %v2730 = vmax.f32 %v2729, %v2620
        %v2731 = vmax.f32 %v2730, %v2624
        %v2732 = vmax.f32 %v2731, %v2630
        %v2733 = vmax.f32 %v2732, %v2634
        %v2734 = vrot.slane %v2733, 4
        %v2735 = vmax.f32 %v2733, %v2734
        %v2736 = vrot.slane %v2735, 2
        %v2737 = vmax.f32 %v2735, %v2736
        %v2738 = vrot.slane %v2737, 1
        %v2739 = vmax.f32 %v2737, %v2738
        %v2740 = vld [vmem:[%s231 + $0x10] sm:$0xff]
        %v2749 = vcombine.low %v2648, %v2661
        %v2750 = vcombine.low %v2674, %v2687
        %v2751 = vcombine.low %v2700, %v2713
        %v2752 = vcombine.low %v2726, %v2739
        %v2754 = vunpack.c.l.s4 1966171168
        %v2755 = vunpack.c.0.s8 %v2754
        %v2756 = vlaneseq
        %v2757 = vshrl.u32 %v2756, 7
        %v2758 = vsub.s32 %v2755, %v2757
        %v2759 = vrot.slane %v2749, %v2758
        %v2761 = vunpack.c.l.s4 1966171168
        %v2762 = vunpack.c.0.s8 %v2761
        %v2763 = vlaneseq
        %v2764 = vshrl.u32 %v2763, 7
        %v2765 = vsub.s32 %v2762, %v2764
        %v2766 = vrot.slane %v2750, %v2765
        %v2768 = vunpack.c.l.s4 1966171168
        %v2769 = vunpack.c.0.s8 %v2768
        %v2770 = vlaneseq
        %v2771 = vshrl.u32 %v2770, 7
        %v2772 = vsub.s32 %v2769, %v2771
        %v2773 = vrot.slane %v2751, %v2772
        %v2775 = vunpack.c.l.s4 1966171168
        %v2776 = vunpack.c.0.s8 %v2775
        %v2777 = vlaneseq
        %v2778 = vshrl.u32 %v2777, 7
        %v2779 = vsub.s32 %v2776, %v2778
        %v2780 = vrot.slane %v2752, %v2779
        %v2781 = vcombine.low %v2759, %v2766
        %v2782 = vcombine.low %v2773, %v2780
        %v2784 = vunpack.c.l.s4 1966171168
        %v2785 = vunpack.c.0.s8 %v2784
        %v2786 = vlaneseq
        %v2787 = vshrl.u32 %v2786, 7
        %v2788 = vsub.s32 %v2785, %v2787
        %v2789 = vrot.slane %v2781, %v2788
        %v2791 = vunpack.c.l.s4 1966171168
        %v2792 = vunpack.c.0.s8 %v2791
        %v2793 = vlaneseq
        %v2794 = vshrl.u32 %v2793, 7
        %v2795 = vsub.s32 %v2792, %v2794
        %v2796 = vrot.slane %v2782, %v2795
        %v2797 = vcombine.low %v2789, %v2796
        %v2799 = vmax.f32 %v2740, %v2797
        %2800 = vst [vmem:[%s231 + $0x10] sm:$0xff] %v2799
        %v2801 = vld [vmem:[#allocation5 + $0x60] sm:$0xff]
        %v2802 = vld [vmem:[#allocation5 + $0x68] sm:$0xff]
        %v2803 = vld [vmem:[#allocation5 + $0x70] sm:$0xff]
        %v2804 = vld [vmem:[#allocation5 + $0x78] sm:$0xff]
        %v2805 = vld [vmem:[#allocation5 + $0x160] sm:$0xff]
        %v2806 = vld [vmem:[#allocation5 + $0x168] sm:$0xff]
        %v2807 = vld [vmem:[#allocation5 + $0x170] sm:$0xff]
        %v2808 = vld [vmem:[#allocation5 + $0x178] sm:$0xff]
        %v2809 = vld [vmem:[#allocation5 + $0x260] sm:$0xff]
        %v2810 = vld [vmem:[#allocation5 + $0x268] sm:$0xff]
        %v2811 = vld [vmem:[#allocation5 + $0x270] sm:$0xff]
        %v2812 = vld [vmem:[#allocation5 + $0x278] sm:$0xff]
        %v2813 = vld [vmem:[#allocation5 + $0x360] sm:$0xff]
        %v2814 = vld [vmem:[#allocation5 + $0x368] sm:$0xff]
        %v2815 = vld [vmem:[#allocation5 + $0x370] sm:$0xff]
        %v2816 = vld [vmem:[#allocation5 + $0x378] sm:$0xff]
        %v2817 = vld [vmem:[#allocation5 + $0x460] sm:$0xff]
        %v2818 = vld [vmem:[#allocation5 + $0x468] sm:$0xff]
        %v2819 = vld [vmem:[#allocation5 + $0x470] sm:$0xff]
        %v2820 = vld [vmem:[#allocation5 + $0x478] sm:$0xff]
        %v2821 = vld [vmem:[#allocation5 + $0x560] sm:$0xff]
        %v2822 = vld [vmem:[#allocation5 + $0x568] sm:$0xff]
        %v2823 = vld [vmem:[#allocation5 + $0x570] sm:$0xff]
        %v2824 = vld [vmem:[#allocation5 + $0x578] sm:$0xff]
        %v2825 = vld [vmem:[#allocation5 + $0x660] sm:$0xff]
        %v2826 = vld [vmem:[#allocation5 + $0x668] sm:$0xff]
        %v2827 = vld [vmem:[#allocation5 + $0x670] sm:$0xff]
        %v2828 = vld [vmem:[#allocation5 + $0x678] sm:$0xff]
        %v2829 = vld [vmem:[#allocation5 + $0x760] sm:$0xff]
        %v2830 = vld [vmem:[#allocation5 + $0x768] sm:$0xff]
        %v2831 = vld [vmem:[#allocation5 + $0x770] sm:$0xff]
        %v2832 = vld [vmem:[#allocation5 + $0x778] sm:$0xff]
        %v2833 = vld [vmem:[#allocation5 + $0x860] sm:$0xff]
        %v2834 = vld [vmem:[#allocation5 + $0x868] sm:$0xff]
        %v2835 = vld [vmem:[#allocation5 + $0x870] sm:$0xff]
        %v2836 = vld [vmem:[#allocation5 + $0x878] sm:$0xff]
        %v2837 = vld [vmem:[#allocation5 + $0x960] sm:$0xff]
        %v2838 = vld [vmem:[#allocation5 + $0x968] sm:$0xff]
        %v2839 = vld [vmem:[#allocation5 + $0x970] sm:$0xff]
        %v2840 = vld [vmem:[#allocation5 + $0x978] sm:$0xff]
        %v2841 = vld [vmem:[#allocation5 + $0xa60] sm:$0xff]
        %v2842 = vld [vmem:[#allocation5 + $0xa68] sm:$0xff]
        %v2843 = vld [vmem:[#allocation5 + $0xa70] sm:$0xff]
        %v2844 = vld [vmem:[#allocation5 + $0xa78] sm:$0xff]
        %v2845 = vld [vmem:[#allocation5 + $0xb60] sm:$0xff]
        %v2846 = vld [vmem:[#allocation5 + $0xb68] sm:$0xff]
        %v2847 = vld [vmem:[#allocation5 + $0xb70] sm:$0xff]
        %v2848 = vld [vmem:[#allocation5 + $0xb78] sm:$0xff]
        %v2849 = vld [vmem:[#allocation5 + $0xc60] sm:$0xff]
        %v2850 = vld [vmem:[#allocation5 + $0xc68] sm:$0xff]
        %v2851 = vld [vmem:[#allocation5 + $0xc70] sm:$0xff]
        %v2852 = vld [vmem:[#allocation5 + $0xc78] sm:$0xff]
        %v2853 = vld [vmem:[#allocation5 + $0xd60] sm:$0xff]
        %v2854 = vld [vmem:[#allocation5 + $0xd68] sm:$0xff]
        %v2855 = vld [vmem:[#allocation5 + $0xd70] sm:$0xff]
        %v2856 = vld [vmem:[#allocation5 + $0xd78] sm:$0xff]
        %v2857 = vld [vmem:[#allocation5 + $0xe60] sm:$0xff]
        %v2858 = vld [vmem:[#allocation5 + $0xe68] sm:$0xff]
        %v2859 = vld [vmem:[#allocation5 + $0xe70] sm:$0xff]
        %v2860 = vld [vmem:[#allocation5 + $0xe78] sm:$0xff]
        %v2861 = vld [vmem:[#allocation5 + $0xf60] sm:$0xff]
        %v2862 = vld [vmem:[#allocation5 + $0xf68] sm:$0xff]
        %v2863 = vld [vmem:[#allocation5 + $0xf70] sm:$0xff]
        %v2864 = vld [vmem:[#allocation5 + $0xf78] sm:$0xff]
        %v2929 = vunpack.c.l.b16 %v2801
        %v2930 = vunpack.c.h.b16 %v2801
        %v2931 = vunpack.c.l.b16 %v2802
        %v2932 = vunpack.c.h.b16 %v2802
        %v2933 = vunpack.c.l.b16 %v2803
        %v2934 = vunpack.c.h.b16 %v2803
        %v2935 = vunpack.c.l.b16 %v2804
        %v2936 = vunpack.c.h.b16 %v2804
        %v2937 = vunpack.c.l.b16 %v2805
        %v2938 = vunpack.c.h.b16 %v2805
        %v2939 = vunpack.c.l.b16 %v2806
        %v2940 = vunpack.c.h.b16 %v2806
        %v2941 = vunpack.c.l.b16 %v2807
        %v2942 = vunpack.c.h.b16 %v2807
        %v2943 = vunpack.c.l.b16 %v2808
        %v2944 = vunpack.c.h.b16 %v2808
        %v2945 = vunpack.c.l.b16 %v2809
        %v2946 = vunpack.c.h.b16 %v2809
        %v2947 = vunpack.c.l.b16 %v2810
        %v2948 = vunpack.c.h.b16 %v2810
        %v2949 = vunpack.c.l.b16 %v2811
        %v2950 = vunpack.c.h.b16 %v2811
        %v2951 = vunpack.c.l.b16 %v2812
        %v2952 = vunpack.c.h.b16 %v2812
        %v2953 = vunpack.c.l.b16 %v2813
        %v2954 = vunpack.c.h.b16 %v2813
        %v2955 = vunpack.c.l.b16 %v2814
        %v2956 = vunpack.c.h.b16 %v2814
        %v2957 = vunpack.c.l.b16 %v2815
        %v2958 = vunpack.c.h.b16 %v2815
        %v2959 = vunpack.c.l.b16 %v2816
        %v2960 = vunpack.c.h.b16 %v2816
        %v2961 = vunpack.c.l.b16 %v2817
        %v2962 = vunpack.c.h.b16 %v2817
        %v2963 = vunpack.c.l.b16 %v2818
        %v2964 = vunpack.c.h.b16 %v2818
        %v2965 = vunpack.c.l.b16 %v2819
        %v2966 = vunpack.c.h.b16 %v2819
        %v2967 = vunpack.c.l.b16 %v2820
        %v2968 = vunpack.c.h.b16 %v2820
        %v2969 = vunpack.c.l.b16 %v2821
        %v2970 = vunpack.c.h.b16 %v2821
        %v2971 = vunpack.c.l.b16 %v2822
        %v2972 = vunpack.c.h.b16 %v2822
        %v2973 = vunpack.c.l.b16 %v2823
        %v2974 = vunpack.c.h.b16 %v2823
        %v2975 = vunpack.c.l.b16 %v2824
        %v2976 = vunpack.c.h.b16 %v2824
        %v2977 = vunpack.c.l.b16 %v2825
        %v2978 = vunpack.c.h.b16 %v2825
        %v2979 = vunpack.c.l.b16 %v2826
        %v2980 = vunpack.c.h.b16 %v2826
        %v2981 = vunpack.c.l.b16 %v2827
        %v2982 = vunpack.c.h.b16 %v2827
        %v2983 = vunpack.c.l.b16 %v2828
        %v2984 = vunpack.c.h.b16 %v2828
        %v2985 = vunpack.c.l.b16 %v2829
        %v2986 = vunpack.c.h.b16 %v2829
        %v2987 = vunpack.c.l.b16 %v2830
        %v2988 = vunpack.c.h.b16 %v2830
        %v2989 = vunpack.c.l.b16 %v2831
        %v2990 = vunpack.c.h.b16 %v2831
        %v2991 = vunpack.c.l.b16 %v2832
        %v2992 = vunpack.c.h.b16 %v2832
        %v2993 = vunpack.c.l.b16 %v2833
        %v2994 = vunpack.c.h.b16 %v2833
        %v2995 = vunpack.c.l.b16 %v2834
        %v2996 = vunpack.c.h.b16 %v2834
        %v2997 = vunpack.c.l.b16 %v2835
        %v2998 = vunpack.c.h.b16 %v2835
        %v2999 = vunpack.c.l.b16 %v2836
        %v3000 = vunpack.c.h.b16 %v2836
        %v3001 = vunpack.c.l.b16 %v2837
        %v3002 = vunpack.c.h.b16 %v2837
        %v3003 = vunpack.c.l.b16 %v2838
        %v3004 = vunpack.c.h.b16 %v2838
        %v3005 = vunpack.c.l.b16 %v2839
        %v3006 = vunpack.c.h.b16 %v2839
        %v3007 = vunpack.c.l.b16 %v2840
        %v3008 = vunpack.c.h.b16 %v2840
        %v3009 = vunpack.c.l.b16 %v2841
        %v3010 = vunpack.c.h.b16 %v2841
        %v3011 = vunpack.c.l.b16 %v2842
        %v3012 = vunpack.c.h.b16 %v2842
        %v3013 = vunpack.c.l.b16 %v2843
        %v3014 = vunpack.c.h.b16 %v2843
        %v3015 = vunpack.c.l.b16 %v2844
        %v3016 = vunpack.c.h.b16 %v2844
        %v3017 = vunpack.c.l.b16 %v2845
        %v3018 = vunpack.c.h.b16 %v2845
        %v3019 = vunpack.c.l.b16 %v2846
        %v3020 = vunpack.c.h.b16 %v2846
        %v3021 = vunpack.c.l.b16 %v2847
        %v3022 = vunpack.c.h.b16 %v2847
        %v3023 = vunpack.c.l.b16 %v2848
        %v3024 = vunpack.c.h.b16 %v2848
        %v3025 = vunpack.c.l.b16 %v2849
        %v3026 = vunpack.c.h.b16 %v2849
        %v3027 = vunpack.c.l.b16 %v2850
        %v3028 = vunpack.c.h.b16 %v2850
        %v3029 = vunpack.c.l.b16 %v2851
        %v3030 = vunpack.c.h.b16 %v2851
        %v3031 = vunpack.c.l.b16 %v2852
        %v3032 = vunpack.c.h.b16 %v2852
        %v3033 = vunpack.c.l.b16 %v2853
        %v3034 = vunpack.c.h.b16 %v2853
        %v3035 = vunpack.c.l.b16 %v2854
        %v3036 = vunpack.c.h.b16 %v2854
        %v3037 = vunpack.c.l.b16 %v2855
        %v3038 = vunpack.c.h.b16 %v2855
        %v3039 = vunpack.c.l.b16 %v2856
        %v3040 = vunpack.c.h.b16 %v2856
        %v3041 = vunpack.c.l.b16 %v2857
        %v3042 = vunpack.c.h.b16 %v2857
        %v3043 = vunpack.c.l.b16 %v2858
        %v3044 = vunpack.c.h.b16 %v2858
        %v3045 = vunpack.c.l.b16 %v2859
        %v3046 = vunpack.c.h.b16 %v2859
        %v3047 = vunpack.c.l.b16 %v2860
        %v3048 = vunpack.c.h.b16 %v2860
        %v3049 = vunpack.c.l.b16 %v2861
        %v3050 = vunpack.c.h.b16 %v2861
        %v3051 = vunpack.c.l.b16 %v2862
        %v3052 = vunpack.c.h.b16 %v2862
        %v3053 = vunpack.c.l.b16 %v2863
        %v3054 = vunpack.c.h.b16 %v2863
        %v3055 = vunpack.c.l.b16 %v2864
        %v3056 = vunpack.c.h.b16 %v2864
        %v3057 = vpack.c.b16 %v2937, %v2929
        %v3058 = vpack.c.b16 %v2938, %v2930
        %v3059 = vpack.c.b16 %v2939, %v2931
        %v3060 = vpack.c.b16 %v2940, %v2932
        %v3061 = vpack.c.b16 %v2941, %v2933
        %v3062 = vpack.c.b16 %v2942, %v2934
        %v3063 = vpack.c.b16 %v2943, %v2935
        %v3064 = vpack.c.b16 %v2944, %v2936
        %v3065 = vpack.c.b16 %v2953, %v2945
        %v3066 = vpack.c.b16 %v2954, %v2946
        %v3067 = vpack.c.b16 %v2955, %v2947
        %v3068 = vpack.c.b16 %v2956, %v2948
        %v3069 = vpack.c.b16 %v2957, %v2949
        %v3070 = vpack.c.b16 %v2958, %v2950
        %v3071 = vpack.c.b16 %v2959, %v2951
        %v3072 = vpack.c.b16 %v2960, %v2952
        %v3073 = vpack.c.b16 %v2969, %v2961
        %v3074 = vpack.c.b16 %v2970, %v2962
        %v3075 = vpack.c.b16 %v2971, %v2963
        %v3076 = vpack.c.b16 %v2972, %v2964
        %v3077 = vpack.c.b16 %v2973, %v2965
        %v3078 = vpack.c.b16 %v2974, %v2966
        %v3079 = vpack.c.b16 %v2975, %v2967
        %v3080 = vpack.c.b16 %v2976, %v2968
        %v3081 = vpack.c.b16 %v2985, %v2977
        %v3082 = vpack.c.b16 %v2986, %v2978
        %v3083 = vpack.c.b16 %v2987, %v2979
        %v3084 = vpack.c.b16 %v2988, %v2980
        %v3085 = vpack.c.b16 %v2989, %v2981
        %v3086 = vpack.c.b16 %v2990, %v2982
        %v3087 = vpack.c.b16 %v2991, %v2983
        %v3088 = vpack.c.b16 %v2992, %v2984
        %v3089 = vpack.c.b16 %v3001, %v2993
        %v3090 = vpack.c.b16 %v3002, %v2994
        %v3091 = vpack.c.b16 %v3003, %v2995
        %v3092 = vpack.c.b16 %v3004, %v2996
        %v3093 = vpack.c.b16 %v3005, %v2997
        %v3094 = vpack.c.b16 %v3006, %v2998
        %v3095 = vpack.c.b16 %v3007, %v2999
        %v3096 = vpack.c.b16 %v3008, %v3000
        %v3097 = vpack.c.b16 %v3017, %v3009
        %v3098 = vpack.c.b16 %v3018, %v3010
        %v3099 = vpack.c.b16 %v3019, %v3011
        %v3100 = vpack.c.b16 %v3020, %v3012
        %v3101 = vpack.c.b16 %v3021, %v3013
        %v3102 = vpack.c.b16 %v3022, %v3014
        %v3103 = vpack.c.b16 %v3023, %v3015
        %v3104 = vpack.c.b16 %v3024, %v3016
        %v3105 = vpack.c.b16 %v3033, %v3025
        %v3106 = vpack.c.b16 %v3034, %v3026
        %v3107 = vpack.c.b16 %v3035, %v3027
        %v3108 = vpack.c.b16 %v3036, %v3028
        %v3109 = vpack.c.b16 %v3037, %v3029
        %v3110 = vpack.c.b16 %v3038, %v3030
        %v3111 = vpack.c.b16 %v3039, %v3031
        %v3112 = vpack.c.b16 %v3040, %v3032
        %v3113 = vpack.c.b16 %v3049, %v3041
        %v3114 = vpack.c.b16 %v3050, %v3042
        %v3115 = vpack.c.b16 %v3051, %v3043
        %v3116 = vpack.c.b16 %v3052, %v3044
        %v3117 = vpack.c.b16 %v3053, %v3045
        %v3118 = vpack.c.b16 %v3054, %v3046
        %v3119 = vpack.c.b16 %v3055, %v3047
        %v3120 = vpack.c.b16 %v3056, %v3048
        %3185 = vmatprep.subr.bf16.mxu0 %v3058
        %3186 = vmatpush1.bf16.msra.mxu0 %v3057
        %3187 = vmatprep.subr.bf16.mxu0 %v3066
        %3188 = vmatpush1.bf16.msra.mxu0 %v3065
        %3189 = vmatprep.subr.bf16.mxu0 %v3074
        %3190 = vmatpush1.bf16.msra.mxu0 %v3073
        %3191 = vmatprep.subr.bf16.mxu0 %v3082
        %3192 = vmatpush1.bf16.msra.mxu0 %v3081
        %3193 = vmatprep.subr.bf16.mxu0 %v3090
        %3194 = vmatpush1.bf16.msra.mxu0 %v3089
        %3195 = vmatprep.subr.bf16.mxu0 %v3098
        %3196 = vmatpush1.bf16.msra.mxu0 %v3097
        %3197 = vmatprep.subr.bf16.mxu0 %v3106
        %3198 = vmatpush1.bf16.msra.mxu0 %v3105
        %3199 = vmatprep.subr.bf16.mxu0 %v3114
        %3200 = vmatpush1.bf16.msra.mxu0 %v3113
        %3201 = vmatprep.subr.bf16.mxu0 0
        %3202 = vmatpush1.bf16.msra.mxu0 0
        %3203 = vmatprep.subr.bf16.mxu0 0
        %3204 = vmatpush1.bf16.msra.mxu0 0
        %3205 = vmatprep.subr.bf16.mxu0 0
        %3206 = vmatpush1.bf16.msra.mxu0 0
        %3207 = vmatprep.subr.bf16.mxu0 0
        %3208 = vmatpush1.bf16.msra.mxu0 0
        %3209 = vmatprep.subr.bf16.mxu0 0
        %3210 = vmatpush1.bf16.msra.mxu0 0
        %3211 = vmatprep.subr.bf16.mxu0 0
        %3212 = vmatpush1.bf16.msra.mxu0 0
        %3213 = vmatprep.subr.bf16.mxu0 0
        %3214 = vmatpush1.bf16.msra.mxu0 0
        %3215 = vmatprep.subr.bf16.mxu0 0
        %3216 = vmatpush1.bf16.msra.mxu0 0
        %3217 = vmatprep.mubr.bf16.mxu0 0
        %3218 = vmatmul.mubr.bf16.gmra.mrb[0].mxu0 %v334
        %v3219 = vpop.f32.mrb[0].mxu0
        %v3220 = vadd.f32 0.0, %v3219
        %v3221 = vpop.f32.mrb[0].mxu0
        %v3222 = vadd.f32 0.0, %v3221
        %v3223 = vpop.f32.mrb[0].mxu0
        %v3224 = vadd.f32 0.0, %v3223
        %v3225 = vpop.f32.mrb[0].mxu0
        %v3226 = vadd.f32 0.0, %v3225
        %3227 = vmatprep.mubr.bf16.mxu0 0
        %3228 = vmatmul.mubr.bf16.gmra.mrb[0].mxu0 %v335
        %v3229 = vpop.f32.mrb[0].mxu0
        %v3230 = vadd.f32 0.0, %v3229
        %v3231 = vpop.f32.mrb[0].mxu0
        %v3232 = vadd.f32 0.0, %v3231
        %v3233 = vpop.f32.mrb[0].mxu0
        %v3234 = vadd.f32 0.0, %v3233
        %v3235 = vpop.f32.mrb[0].mxu0
        %v3236 = vadd.f32 0.0, %v3235
        %3237 = vmatprep.mubr.bf16.mxu0 0
        %3238 = vmatmul.mubr.bf16.gmra.mrb[0].mxu0 %v336
        %v3239 = vpop.f32.mrb[0].mxu0
        %v3240 = vadd.f32 0.0, %v3239
        %v3241 = vpop.f32.mrb[0].mxu0
        %v3242 = vadd.f32 0.0, %v3241
        %v3243 = vpop.f32.mrb[0].mxu0
        %v3244 = vadd.f32 0.0, %v3243
        %v3245 = vpop.f32.mrb[0].mxu0
        %v3246 = vadd.f32 0.0, %v3245
        %3247 = vmatprep.mubr.bf16.mxu0 0
        %3248 = vmatmul.mubr.bf16.gmra.mrb[0].mxu0 %v337
        %v3249 = vpop.f32.mrb[0].mxu0
        %v3250 = vadd.f32 0.0, %v3249
        %v3251 = vpop.f32.mrb[0].mxu0
        %v3252 = vadd.f32 0.0, %v3251
        %v3253 = vpop.f32.mrb[0].mxu0
        %v3254 = vadd.f32 0.0, %v3253
        %v3255 = vpop.f32.mrb[0].mxu0
        %v3256 = vadd.f32 0.0, %v3255
        %3257 = vdwg.mxu0
        %3258 = vmatprep.subr.bf16.mxu0 %v3060
        %3259 = vmatpush1.bf16.msra.mxu0 %v3059
        %3260 = vmatprep.subr.bf16.mxu0 %v3068
        %3261 = vmatpush1.bf16.msra.mxu0 %v3067
        %3262 = vmatprep.subr.bf16.mxu0 %v3076
        %3263 = vmatpush1.bf16.msra.mxu0 %v3075
        %3264 = vmatprep.subr.bf16.mxu0 %v3084
        %3265 = vmatpush1.bf16.msra.mxu0 %v3083
        %3266 = vmatprep.subr.bf16.mxu0 %v3092
        %3267 = vmatpush1.bf16.msra.mxu0 %v3091
        %3268 = vmatprep.subr.bf16.mxu0 %v3100
        %3269 = vmatpush1.bf16.msra.mxu0 %v3099
        %3270 = vmatprep.subr.bf16.mxu0 %v3108
        %3271 = vmatpush1.bf16.msra.mxu0 %v3107
        %3272 = vmatprep.subr.bf16.mxu0 %v3116
        %3273 = vmatpush1.bf16.msra.mxu0 %v3115
        %3274 = vmatprep.subr.bf16.mxu0 0
        %3275 = vmatpush1.bf16.msra.mxu0 0
        %3276 = vmatprep.subr.bf16.mxu0 0
        %3277 = vmatpush1.bf16.msra.mxu0 0
        %3278 = vmatprep.subr.bf16.mxu0 0
        %3279 = vmatpush1.bf16.msra.mxu0 0
        %3280 = vmatprep.subr.bf16.mxu0 0
        %3281 = vmatpush1.bf16.msra.mxu0 0
        %3282 = vmatprep.subr.bf16.mxu0 0
        %3283 = vmatpush1.bf16.msra.mxu0 0
        %3284 = vmatprep.subr.bf16.mxu0 0
        %3285 = vmatpush1.bf16.msra.mxu0 0
        %3286 = vmatprep.subr.bf16.mxu0 0
        %3287 = vmatpush1.bf16.msra.mxu0 0
        %3288 = vmatprep.subr.bf16.mxu0 0
        %3289 = vmatpush1.bf16.msra.mxu0 0
        %3290 = vmatprep.mubr.bf16.mxu0 0
        %3291 = vmatmul.mubr.bf16.gmra.mrb[0].mxu0 %v334
        %v3292 = vpop.f32.mrb[0].mxu0
        %v3293 = vadd.f32 0.0, %v3292
        %v3294 = vpop.f32.mrb[0].mxu0
        %v3295 = vadd.f32 0.0, %v3294
        %v3296 = vpop.f32.mrb[0].mxu0
        %v3297 = vadd.f32 0.0, %v3296
        %v3298 = vpop.f32.mrb[0].mxu0
        %v3299 = vadd.f32 0.0, %v3298
        %3300 = vmatprep.mubr.bf16.mxu0 0
        %3301 = vmatmul.mubr.bf16.gmra.mrb[0].mxu0 %v335
        %v3302 = vpop.f32.mrb[0].mxu0
        %v3303 = vadd.f32 0.0, %v3302
        %v3304 = vpop.f32.mrb[0].mxu0
        %v3305 = vadd.f32 0.0, %v3304
        %v3306 = vpop.f32.mrb[0].mxu0
        %v3307 = vadd.f32 0.0, %v3306
        %v3308 = vpop.f32.mrb[0].mxu0
        %v3309 = vadd.f32 0.0, %v3308
        %3310 = vmatprep.mubr.bf16.mxu0 0
        %3311 = vmatmul.mubr.bf16.gmra.mrb[0].mxu0 %v336
        %v3312 = vpop.f32.mrb[0].mxu0
        %v3313 = vadd.f32 0.0, %v3312
        %v3314 = vpop.f32.mrb[0].mxu0
        %v3315 = vadd.f32 0.0, %v3314
        %v3316 = vpop.f32.mrb[0].mxu0
        %v3317 = vadd.f32 0.0, %v3316
        %v3318 = vpop.f32.mrb[0].mxu0
        %v3319 = vadd.f32 0.0, %v3318
        %3320 = vmatprep.mubr.bf16.mxu0 0
        %3321 = vmatmul.mubr.bf16.gmra.mrb[0].mxu0 %v337
        %v3322 = vpop.f32.mrb[0].mxu0
        %v3323 = vadd.f32 0.0, %v3322
        %v3324 = vpop.f32.mrb[0].mxu0
        %v3325 = vadd.f32 0.0, %v3324
        %v3326 = vpop.f32.mrb[0].mxu0
        %v3327 = vadd.f32 0.0, %v3326
        %v3328 = vpop.f32.mrb[0].mxu0
        %v3329 = vadd.f32 0.0, %v3328
        %3330 = vdwg.mxu0
        %3331 = vmatprep.subr.bf16.mxu0 %v3062
        %3332 = vmatpush1.bf16.msra.mxu0 %v3061
        %3333 = vmatprep.subr.bf16.mxu0 %v3070
        %3334 = vmatpush1.bf16.msra.mxu0 %v3069
        %3335 = vmatprep.subr.bf16.mxu0 %v3078
        %3336 = vmatpush1.bf16.msra.mxu0 %v3077
        %3337 = vmatprep.subr.bf16.mxu0 %v3086
        %3338 = vmatpush1.bf16.msra.mxu0 %v3085
        %3339 = vmatprep.subr.bf16.mxu0 %v3094
        %3340 = vmatpush1.bf16.msra.mxu0 %v3093
        %3341 = vmatprep.subr.bf16.mxu0 %v3102
        %3342 = vmatpush1.bf16.msra.mxu0 %v3101
        %3343 = vmatprep.subr.bf16.mxu0 %v3110
        %3344 = vmatpush1.bf16.msra.mxu0 %v3109
        %3345 = vmatprep.subr.bf16.mxu0 %v3118
        %3346 = vmatpush1.bf16.msra.mxu0 %v3117
        %3347 = vmatprep.subr.bf16.mxu0 0
        %3348 = vmatpush1.bf16.msra.mxu0 0
        %3349 = vmatprep.subr.bf16.mxu0 0
        %3350 = vmatpush1.bf16.msra.mxu0 0
        %3351 = vmatprep.subr.bf16.mxu0 0
        %3352 = vmatpush1.bf16.msra.mxu0 0
        %3353 = vmatprep.subr.bf16.mxu0 0
        %3354 = vmatpush1.bf16.msra.mxu0 0
        %3355 = vmatprep.subr.bf16.mxu0 0
        %3356 = vmatpush1.bf16.msra.mxu0 0
        %3357 = vmatprep.subr.bf16.mxu0 0
        %3358 = vmatpush1.bf16.msra.mxu0 0
        %3359 = vmatprep.subr.bf16.mxu0 0
        %3360 = vmatpush1.bf16.msra.mxu0 0
        %3361 = vmatprep.subr.bf16.mxu0 0
        %3362 = vmatpush1.bf16.msra.mxu0 0
        %3363 = vmatprep.mubr.bf16.mxu0 0
        %3364 = vmatmul.mubr.bf16.gmra.mrb[0].mxu0 %v334
        %v3365 = vpop.f32.mrb[0].mxu0
        %v3366 = vadd.f32 0.0, %v3365
        %v3367 = vpop.f32.mrb[0].mxu0
        %v3368 = vadd.f32 0.0, %v3367
        %v3369 = vpop.f32.mrb[0].mxu0
        %v3370 = vadd.f32 0.0, %v3369
        %v3371 = vpop.f32.mrb[0].mxu0
        %v3372 = vadd.f32 0.0, %v3371
        %3373 = vmatprep.mubr.bf16.mxu0 0
        %3374 = vmatmul.mubr.bf16.gmra.mrb[0].mxu0 %v335
        %v3375 = vpop.f32.mrb[0].mxu0
        %v3376 = vadd.f32 0.0, %v3375
        %v3377 = vpop.f32.mrb[0].mxu0
        %v3378 = vadd.f32 0.0, %v3377
        %v3379 = vpop.f32.mrb[0].mxu0
        %v3380 = vadd.f32 0.0, %v3379
        %v3381 = vpop.f32.mrb[0].mxu0
        %v3382 = vadd.f32 0.0, %v3381
        %3383 = vmatprep.mubr.bf16.mxu0 0
        %3384 = vmatmul.mubr.bf16.gmra.mrb[0].mxu0 %v336
        %v3385 = vpop.f32.mrb[0].mxu0
        %v3386 = vadd.f32 0.0, %v3385
        %v3387 = vpop.f32.mrb[0].mxu0
        %v3388 = vadd.f32 0.0, %v3387
        %v3389 = vpop.f32.mrb[0].mxu0
        %v3390 = vadd.f32 0.0, %v3389
        %v3391 = vpop.f32.mrb[0].mxu0
        %v3392 = vadd.f32 0.0, %v3391
        %3393 = vmatprep.mubr.bf16.mxu0 0
        %3394 = vmatmul.mubr.bf16.gmra.mrb[0].mxu0 %v337
        %v3395 = vpop.f32.mrb[0].mxu0
        %v3396 = vadd.f32 0.0, %v3395
        %v3397 = vpop.f32.mrb[0].mxu0
        %v3398 = vadd.f32 0.0, %v3397
        %v3399 = vpop.f32.mrb[0].mxu0
        %v3400 = vadd.f32 0.0, %v3399
        %v3401 = vpop.f32.mrb[0].mxu0
        %v3402 = vadd.f32 0.0, %v3401
        %3403 = vdwg.mxu0
        %3404 = vmatprep.subr.bf16.mxu0 %v3064
        %3405 = vmatpush1.bf16.msra.mxu0 %v3063
        %3406 = vmatprep.subr.bf16.mxu0 %v3072
        %3407 = vmatpush1.bf16.msra.mxu0 %v3071
        %3408 = vmatprep.subr.bf16.mxu0 %v3080
        %3409 = vmatpush1.bf16.msra.mxu0 %v3079
        %3410 = vmatprep.subr.bf16.mxu0 %v3088
        %3411 = vmatpush1.bf16.msra.mxu0 %v3087
        %3412 = vmatprep.subr.bf16.mxu0 %v3096
        %3413 = vmatpush1.bf16.msra.mxu0 %v3095
        %3414 = vmatprep.subr.bf16.mxu0 %v3104
        %3415 = vmatpush1.bf16.msra.mxu0 %v3103
        %3416 = vmatprep.subr.bf16.mxu0 %v3112
        %3417 = vmatpush1.bf16.msra.mxu0 %v3111
        %3418 = vmatprep.subr.bf16.mxu0 %v3120
        %3419 = vmatpush1.bf16.msra.mxu0 %v3119
        %3420 = vmatprep.subr.bf16.mxu0 0
        %3421 = vmatpush1.bf16.msra.mxu0 0
        %3422 = vmatprep.subr.bf16.mxu0 0
        %3423 = vmatpush1.bf16.msra.mxu0 0
        %3424 = vmatprep.subr.bf16.mxu0 0
        %3425 = vmatpush1.bf16.msra.mxu0 0
        %3426 = vmatprep.subr.bf16.mxu0 0
        %3427 = vmatpush1.bf16.msra.mxu0 0
        %3428 = vmatprep.subr.bf16.mxu0 0
        %3429 = vmatpush1.bf16.msra.mxu0 0
        %3430 = vmatprep.subr.bf16.mxu0 0
        %3431 = vmatpush1.bf16.msra.mxu0 0
        %3432 = vmatprep.subr.bf16.mxu0 0
        %3433 = vmatpush1.bf16.msra.mxu0 0
        %3434 = vmatprep.subr.bf16.mxu0 0
        %3435 = vmatpush1.bf16.msra.mxu0 0
        %3436 = vmatprep.mubr.bf16.mxu0 0
        %3437 = vmatmul.mubr.bf16.gmra.mrb[0].mxu0 %v334
        %v3438 = vpop.f32.mrb[0].mxu0
        %v3439 = vadd.f32 0.0, %v3438
        %v3440 = vpop.f32.mrb[0].mxu0
        %v3441 = vadd.f32 0.0, %v3440
        %v3442 = vpop.f32.mrb[0].mxu0
        %v3443 = vadd.f32 0.0, %v3442
        %v3444 = vpop.f32.mrb[0].mxu0
        %v3445 = vadd.f32 0.0, %v3444
        %3446 = vmatprep.mubr.bf16.mxu0 0
        %3447 = vmatmul.mubr.bf16.gmra.mrb[0].mxu0 %v335
        %v3448 = vpop.f32.mrb[0].mxu0
        %v3449 = vadd.f32 0.0, %v3448
        %v3450 = vpop.f32.mrb[0].mxu0
        %v3451 = vadd.f32 0.0, %v3450
        %v3452 = vpop.f32.mrb[0].mxu0
        %v3453 = vadd.f32 0.0, %v3452
        %v3454 = vpop.f32.mrb[0].mxu0
        %v3455 = vadd.f32 0.0, %v3454
        %3456 = vmatprep.mubr.bf16.mxu0 0
        %3457 = vmatmul.mubr.bf16.gmra.mrb[0].mxu0 %v336
        %v3458 = vpop.f32.mrb[0].mxu0
        %v3459 = vadd.f32 0.0, %v3458
        %v3460 = vpop.f32.mrb[0].mxu0
        %v3461 = vadd.f32 0.0, %v3460
        %v3462 = vpop.f32.mrb[0].mxu0
        %v3463 = vadd.f32 0.0, %v3462
        %v3464 = vpop.f32.mrb[0].mxu0
        %v3465 = vadd.f32 0.0, %v3464
        %3466 = vmatprep.mubr.bf16.mxu0 0
        %3467 = vmatmul.mubr.bf16.gmra.mrb[0].mxu0 %v337
        %v3468 = vpop.f32.mrb[0].mxu0
        %v3469 = vadd.f32 0.0, %v3468
        %v3470 = vpop.f32.mrb[0].mxu0
        %v3471 = vadd.f32 0.0, %v3470
        %v3472 = vpop.f32.mrb[0].mxu0
        %v3473 = vadd.f32 0.0, %v3472
        %v3474 = vpop.f32.mrb[0].mxu0
        %v3475 = vadd.f32 0.0, %v3474
        %3476 = vdwg.mxu0
        %v3477 = vmax.f32 %v3220, %v3224
        %v3478 = vmax.f32 %v3477, %v3230
        %v3479 = vmax.f32 %v3478, %v3234
        %v3480 = vmax.f32 %v3479, %v3240
        %v3481 = vmax.f32 %v3480, %v3244
        %v3482 = vmax.f32 %v3481, %v3250
        %v3483 = vmax.f32 %v3482, %v3254
        %v3484 = vrot.slane %v3483, 4
        %v3485 = vmax.f32 %v3483, %v3484
        %v3486 = vrot.slane %v3485, 2
        %v3487 = vmax.f32 %v3485, %v3486
        %v3488 = vrot.slane %v3487, 1
        %v3489 = vmax.f32 %v3487, %v3488
        %v3490 = vmax.f32 %v3222, %v3226
        %v3491 = vmax.f32 %v3490, %v3232
        %v3492 = vmax.f32 %v3491, %v3236
        %v3493 = vmax.f32 %v3492, %v3242
        %v3494 = vmax.f32 %v3493, %v3246
        %v3495 = vmax.f32 %v3494, %v3252
        %v3496 = vmax.f32 %v3495, %v3256
        %v3497 = vrot.slane %v3496, 4
        %v3498 = vmax.f32 %v3496, %v3497
        %v3499 = vrot.slane %v3498, 2
        %v3500 = vmax.f32 %v3498, %v3499
        %v3501 = vrot.slane %v3500, 1
        %v3502 = vmax.f32 %v3500, %v3501
        %v3503 = vmax.f32 %v3293, %v3297
        %v3504 = vmax.f32 %v3503, %v3303
        %v3505 = vmax.f32 %v3504, %v3307
        %v3506 = vmax.f32 %v3505, %v3313
        %v3507 = vmax.f32 %v3506, %v3317
        %v3508 = vmax.f32 %v3507, %v3323
        %v3509 = vmax.f32 %v3508, %v3327
        %v3510 = vrot.slane %v3509, 4
        %v3511 = vmax.f32 %v3509, %v3510
        %v3512 = vrot.slane %v3511, 2
        %v3513 = vmax.f32 %v3511, %v3512
        %v3514 = vrot.slane %v3513, 1
        %v3515 = vmax.f32 %v3513, %v3514
        %v3516 = vmax.f32 %v3295, %v3299
        %v3517 = vmax.f32 %v3516, %v3305
        %v3518 = vmax.f32 %v3517, %v3309
        %v3519 = vmax.f32 %v3518, %v3315
        %v3520 = vmax.f32 %v3519, %v3319
        %v3521 = vmax.f32 %v3520, %v3325
        %v3522 = vmax.f32 %v3521, %v3329
        %v3523 = vrot.slane %v3522, 4
        %v3524 = vmax.f32 %v3522, %v3523
        %v3525 = vrot.slane %v3524, 2
        %v3526 = vmax.f32 %v3524, %v3525
        %v3527 = vrot.slane %v3526, 1
        %v3528 = vmax.f32 %v3526, %v3527
        %v3529 = vmax.f32 %v3366, %v3370
        %v3530 = vmax.f32 %v3529, %v3376
        %v3531 = vmax.f32 %v3530, %v3380
        %v3532 = vmax.f32 %v3531, %v3386
        %v3533 = vmax.f32 %v3532, %v3390
        %v3534 = vmax.f32 %v3533, %v3396
        %v3535 = vmax.f32 %v3534, %v3400
        %v3536 = vrot.slane %v3535, 4
        %v3537 = vmax.f32 %v3535, %v3536
        %v3538 = vrot.slane %v3537, 2
        %v3539 = vmax.f32 %v3537, %v3538
        %v3540 = vrot.slane %v3539, 1
        %v3541 = vmax.f32 %v3539, %v3540
        %v3542 = vmax.f32 %v3368, %v3372
        %v3543 = vmax.f32 %v3542, %v3378
        %v3544 = vmax.f32 %v3543, %v3382
        %v3545 = vmax.f32 %v3544, %v3388
        %v3546 = vmax.f32 %v3545, %v3392
        %v3547 = vmax.f32 %v3546, %v3398
        %v3548 = vmax.f32 %v3547, %v3402
        %v3549 = vrot.slane %v3548, 4
        %v3550 = vmax.f32 %v3548, %v3549
        %v3551 = vrot.slane %v3550, 2
        %v3552 = vmax.f32 %v3550, %v3551
        %v3553 = vrot.slane %v3552, 1
        %v3554 = vmax.f32 %v3552, %v3553
        %v3555 = vmax.f32 %v3439, %v3443
        %v3556 = vmax.f32 %v3555, %v3449
        %v3557 = vmax.f32 %v3556, %v3453
        %v3558 = vmax.f32 %v3557, %v3459
        %v3559 = vmax.f32 %v3558, %v3463
        %v3560 = vmax.f32 %v3559, %v3469
        %v3561 = vmax.f32 %v3560, %v3473
        %v3562 = vrot.slane %v3561, 4
        %v3563 = vmax.f32 %v3561, %v3562
        %v3564 = vrot.slane %v3563, 2
        %v3565 = vmax.f32 %v3563, %v3564
        %v3566 = vrot.slane %v3565, 1
        %v3567 = vmax.f32 %v3565, %v3566
        %v3568 = vmax.f32 %v3441, %v3445
        %v3569 = vmax.f32 %v3568, %v3451
        %v3570 = vmax.f32 %v3569, %v3455
        %v3571 = vmax.f32 %v3570, %v3461
        %v3572 = vmax.f32 %v3571, %v3465
        %v3573 = vmax.f32 %v3572, %v3471
        %v3574 = vmax.f32 %v3573, %v3475
        %v3575 = vrot.slane %v3574, 4
        %v3576 = vmax.f32 %v3574, %v3575
        %v3577 = vrot.slane %v3576, 2
        %v3578 = vmax.f32 %v3576, %v3577
        %v3579 = vrot.slane %v3578, 1
        %v3580 = vmax.f32 %v3578, %v3579
        %v3581 = vld [vmem:[%s231 + $0x18] sm:$0xff]
        %v3590 = vcombine.low %v3489, %v3502
        %v3591 = vcombine.low %v3515, %v3528
        %v3592 = vcombine.low %v3541, %v3554
        %v3593 = vcombine.low %v3567, %v3580
        %v3595 = vunpack.c.l.s4 1966171168
        %v3596 = vunpack.c.0.s8 %v3595
        %v3597 = vlaneseq
        %v3598 = vshrl.u32 %v3597, 7
        %v3599 = vsub.s32 %v3596, %v3598
        %v3600 = vrot.slane %v3590, %v3599
        %v3602 = vunpack.c.l.s4 1966171168
        %v3603 = vunpack.c.0.s8 %v3602
        %v3604 = vlaneseq
        %v3605 = vshrl.u32 %v3604, 7
        %v3606 = vsub.s32 %v3603, %v3605
        %v3607 = vrot.slane %v3591, %v3606
        %v3609 = vunpack.c.l.s4 1966171168
        %v3610 = vunpack.c.0.s8 %v3609
        %v3611 = vlaneseq
        %v3612 = vshrl.u32 %v3611, 7
        %v3613 = vsub.s32 %v3610, %v3612
        %v3614 = vrot.slane %v3592, %v3613
        %v3616 = vunpack.c.l.s4 1966171168
        %v3617 = vunpack.c.0.s8 %v3616
        %v3618 = vlaneseq
        %v3619 = vshrl.u32 %v3618, 7
        %v3620 = vsub.s32 %v3617, %v3619
        %v3621 = vrot.slane %v3593, %v3620
        %v3622 = vcombine.low %v3600, %v3607
        %v3623 = vcombine.low %v3614, %v3621
        %v3625 = vunpack.c.l.s4 1966171168
        %v3626 = vunpack.c.0.s8 %v3625
        %v3627 = vlaneseq
        %v3628 = vshrl.u32 %v3627, 7
        %v3629 = vsub.s32 %v3626, %v3628
        %v3630 = vrot.slane %v3622, %v3629
        %v3632 = vunpack.c.l.s4 1966171168
        %v3633 = vunpack.c.0.s8 %v3632
        %v3634 = vlaneseq
        %v3635 = vshrl.u32 %v3634, 7
        %v3636 = vsub.s32 %v3633, %v3635
        %v3637 = vrot.slane %v3623, %v3636
        %v3638 = vcombine.low %v3630, %v3637
        %v3640 = vmax.f32 %v3581, %v3638
        %3641 = vst [vmem:[%s231 + $0x18] sm:$0xff] %v3640
        %v3642 = vld [vmem:[#allocation5 + $0x80] sm:$0xff]
        %v3643 = vld [vmem:[#allocation5 + $0x88] sm:$0xff]
        %v3644 = vld [vmem:[#allocation5 + $0x90] sm:$0xff]
        %v3645 = vld [vmem:[#allocation5 + $0x98] sm:$0xff]
        %v3646 = vld [vmem:[#allocation5 + $0x180] sm:$0xff]
        %v3647 = vld [vmem:[#allocation5 + $0x188] sm:$0xff]
        %v3648 = vld [vmem:[#allocation5 + $0x190] sm:$0xff]
        %v3649 = vld [vmem:[#allocation5 + $0x198] sm:$0xff]
        %v3650 = vld [vmem:[#allocation5 + $0x280] sm:$0xff]
        %v3651 = vld [vmem:[#allocation5 + $0x288] sm:$0xff]
        %v3652 = vld [vmem:[#allocation5 + $0x290] sm:$0xff]
        %v3653 = vld [vmem:[#allocation5 + $0x298] sm:$0xff]
        %v3654 = vld [vmem:[#allocation5 + $0x380] sm:$0xff]
        %v3655 = vld [vmem:[#allocation5 + $0x388] sm:$0xff]
        %v3656 = vld [vmem:[#allocation5 + $0x390] sm:$0xff]
        %v3657 = vld [vmem:[#allocation5 + $0x398] sm:$0xff]
        %v3658 = vld [vmem:[#allocation5 + $0x480] sm:$0xff]
        %v3659 = vld [vmem:[#allocation5 + $0x488] sm:$0xff]
        %v3660 = vld [vmem:[#allocation5 + $0x490] sm:$0xff]
        %v3661 = vld [vmem:[#allocation5 + $0x498] sm:$0xff]
        %v3662 = vld [vmem:[#allocation5 + $0x580] sm:$0xff]
        %v3663 = vld [vmem:[#allocation5 + $0x588] sm:$0xff]
        %v3664 = vld [vmem:[#allocation5 + $0x590] sm:$0xff]
        %v3665 = vld [vmem:[#allocation5 + $0x598] sm:$0xff]
        %v3666 = vld [vmem:[#allocation5 + $0x680] sm:$0xff]
        %v3667 = vld [vmem:[#allocation5 + $0x688] sm:$0xff]
        %v3668 = vld [vmem:[#allocation5 + $0x690] sm:$0xff]
        %v3669 = vld [vmem:[#allocation5 + $0x698] sm:$0xff]
        %v3670 = vld [vmem:[#allocation5 + $0x780] sm:$0xff]
        %v3671 = vld [vmem:[#allocation5 + $0x788] sm:$0xff]
        %v3672 = vld [vmem:[#allocation5 + $0x790] sm:$0xff]
        %v3673 = vld [vmem:[#allocation5 + $0x798] sm:$0xff]
        %v3674 = vld [vmem:[#allocation5 + $0x880] sm:$0xff]
        %v3675 = vld [vmem:[#allocation5 + $0x888] sm:$0xff]
        %v3676 = vld [vmem:[#allocation5 + $0x890] sm:$0xff]
        %v3677 = vld [vmem:[#allocation5 + $0x898] sm:$0xff]
        %v3678 = vld [vmem:[#allocation5 + $0x980] sm:$0xff]
        %v3679 = vld [vmem:[#allocation5 + $0x988] sm:$0xff]
        %v3680 = vld [vmem:[#allocation5 + $0x990] sm:$0xff]
        %v3681 = vld [vmem:[#allocation5 + $0x998] sm:$0xff]
        %v3682 = vld [vmem:[#allocation5 + $0xa80] sm:$0xff]
        %v3683 = vld [vmem:[#allocation5 + $0xa88] sm:$0xff]
        %v3684 = vld [vmem:[#allocation5 + $0xa90] sm:$0xff]
        %v3685 = vld [vmem:[#allocation5 + $0xa98] sm:$0xff]
        %v3686 = vld [vmem:[#allocation5 + $0xb80] sm:$0xff]
        %v3687 = vld [vmem:[#allocation5 + $0xb88] sm:$0xff]
        %v3688 = vld [vmem:[#allocation5 + $0xb90] sm:$0xff]
        %v3689 = vld [vmem:[#allocation5 + $0xb98] sm:$0xff]
        %v3690 = vld [vmem:[#allocation5 + $0xc80] sm:$0xff]
        %v3691 = vld [vmem:[#allocation5 + $0xc88] sm:$0xff]
        %v3692 = vld [vmem:[#allocation5 + $0xc90] sm:$0xff]
        %v3693 = vld [vmem:[#allocation5 + $0xc98] sm:$0xff]
        %v3694 = vld [vmem:[#allocation5 + $0xd80] sm:$0xff]
        %v3695 = vld [vmem:[#allocation5 + $0xd88] sm:$0xff]
        %v3696 = vld [vmem:[#allocation5 + $0xd90] sm:$0xff]
        %v3697 = vld [vmem:[#allocation5 + $0xd98] sm:$0xff]
        %v3698 = vld [vmem:[#allocation5 + $0xe80] sm:$0xff]
        %v3699 = vld [vmem:[#allocation5 + $0xe88] sm:$0xff]
        %v3700 = vld [vmem:[#allocation5 + $0xe90] sm:$0xff]
        %v3701 = vld [vmem:[#allocation5 + $0xe98] sm:$0xff]
        %v3702 = vld [vmem:[#allocation5 + $0xf80] sm:$0xff]
        %v3703 = vld [vmem:[#allocation5 + $0xf88] sm:$0xff]
        %v3704 = vld [vmem:[#allocation5 + $0xf90] sm:$0xff]
        %v3705 = vld [vmem:[#allocation5 + $0xf98] sm:$0xff]
        %v3770 = vunpack.c.l.b16 %v3642
        %v3771 = vunpack.c.h.b16 %v3642
        %v3772 = vunpack.c.l.b16 %v3643
        %v3773 = vunpack.c.h.b16 %v3643
        %v3774 = vunpack.c.l.b16 %v3644
        %v3775 = vunpack.c.h.b16 %v3644
        %v3776 = vunpack.c.l.b16 %v3645
        %v3777 = vunpack.c.h.b16 %v3645
        %v3778 = vunpack.c.l.b16 %v3646
        %v3779 = vunpack.c.h.b16 %v3646
        %v3780 = vunpack.c.l.b16 %v3647
        %v3781 = vunpack.c.h.b16 %v3647
        %v3782 = vunpack.c.l.b16 %v3648
        %v3783 = vunpack.c.h.b16 %v3648
        %v3784 = vunpack.c.l.b16 %v3649
        %v3785 = vunpack.c.h.b16 %v3649
        %v3786 = vunpack.c.l.b16 %v3650
        %v3787 = vunpack.c.h.b16 %v3650
        %v3788 = vunpack.c.l.b16 %v3651
        %v3789 = vunpack.c.h.b16 %v3651
        %v3790 = vunpack.c.l.b16 %v3652
        %v3791 = vunpack.c.h.b16 %v3652
        %v3792 = vunpack.c.l.b16 %v3653
        %v3793 = vunpack.c.h.b16 %v3653
        %v3794 = vunpack.c.l.b16 %v3654
        %v3795 = vunpack.c.h.b16 %v3654
        %v3796 = vunpack.c.l.b16 %v3655
        %v3797 = vunpack.c.h.b16 %v3655
        %v3798 = vunpack.c.l.b16 %v3656
        %v3799 = vunpack.c.h.b16 %v3656
        %v3800 = vunpack.c.l.b16 %v3657
        %v3801 = vunpack.c.h.b16 %v3657
        %v3802 = vunpack.c.l.b16 %v3658
        %v3803 = vunpack.c.h.b16 %v3658
        %v3804 = vunpack.c.l.b16 %v3659
        %v3805 = vunpack.c.h.b16 %v3659
        %v3806 = vunpack.c.l.b16 %v3660
        %v3807 = vunpack.c.h.b16 %v3660
        %v3808 = vunpack.c.l.b16 %v3661
        %v3809 = vunpack.c.h.b16 %v3661
        %v3810 = vunpack.c.l.b16 %v3662
        %v3811 = vunpack.c.h.b16 %v3662
        %v3812 = vunpack.c.l.b16 %v3663
        %v3813 = vunpack.c.h.b16 %v3663
        %v3814 = vunpack.c.l.b16 %v3664
        %v3815 = vunpack.c.h.b16 %v3664
        %v3816 = vunpack.c.l.b16 %v3665
        %v3817 = vunpack.c.h.b16 %v3665
        %v3818 = vunpack.c.l.b16 %v3666
        %v3819 = vunpack.c.h.b16 %v3666
        %v3820 = vunpack.c.l.b16 %v3667
        %v3821 = vunpack.c.h.b16 %v3667
        %v3822 = vunpack.c.l.b16 %v3668
        %v3823 = vunpack.c.h.b16 %v3668
        %v3824 = vunpack.c.l.b16 %v3669
        %v3825 = vunpack.c.h.b16 %v3669
        %v3826 = vunpack.c.l.b16 %v3670
        %v3827 = vunpack.c.h.b16 %v3670
        %v3828 = vunpack.c.l.b16 %v3671
        %v3829 = vunpack.c.h.b16 %v3671
        %v3830 = vunpack.c.l.b16 %v3672
        %v3831 = vunpack.c.h.b16 %v3672
        %v3832 = vunpack.c.l.b16 %v3673
        %v3833 = vunpack.c.h.b16 %v3673
        %v3834 = vunpack.c.l.b16 %v3674
        %v3835 = vunpack.c.h.b16 %v3674
        %v3836 = vunpack.c.l.b16 %v3675
        %v3837 = vunpack.c.h.b16 %v3675
        %v3838 = vunpack.c.l.b16 %v3676
        %v3839 = vunpack.c.h.b16 %v3676
        %v3840 = vunpack.c.l.b16 %v3677
        %v3841 = vunpack.c.h.b16 %v3677
        %v3842 = vunpack.c.l.b16 %v3678
        %v3843 = vunpack.c.h.b16 %v3678
        %v3844 = vunpack.c.l.b16 %v3679
        %v3845 = vunpack.c.h.b16 %v3679
        %v3846 = vunpack.c.l.b16 %v3680
        %v3847 = vunpack.c.h.b16 %v3680
        %v3848 = vunpack.c.l.b16 %v3681
        %v3849 = vunpack.c.h.b16 %v3681
        %v3850 = vunpack.c.l.b16 %v3682
        %v3851 = vunpack.c.h.b16 %v3682
        %v3852 = vunpack.c.l.b16 %v3683
        %v3853 = vunpack.c.h.b16 %v3683
        %v3854 = vunpack.c.l.b16 %v3684
        %v3855 = vunpack.c.h.b16 %v3684
        %v3856 = vunpack.c.l.b16 %v3685
        %v3857 = vunpack.c.h.b16 %v3685
        %v3858 = vunpack.c.l.b16 %v3686
        %v3859 = vunpack.c.h.b16 %v3686
        %v3860 = vunpack.c.l.b16 %v3687
        %v3861 = vunpack.c.h.b16 %v3687
        %v3862 = vunpack.c.l.b16 %v3688
        %v3863 = vunpack.c.h.b16 %v3688
        %v3864 = vunpack.c.l.b16 %v3689
        %v3865 = vunpack.c.h.b16 %v3689
        %v3866 = vunpack.c.l.b16 %v3690
        %v3867 = vunpack.c.h.b16 %v3690
        %v3868 = vunpack.c.l.b16 %v3691
        %v3869 = vunpack.c.h.b16 %v3691
        %v3870 = vunpack.c.l.b16 %v3692
        %v3871 = vunpack.c.h.b16 %v3692
        %v3872 = vunpack.c.l.b16 %v3693
        %v3873 = vunpack.c.h.b16 %v3693
        %v3874 = vunpack.c.l.b16 %v3694
        %v3875 = vunpack.c.h.b16 %v3694
        %v3876 = vunpack.c.l.b16 %v3695
        %v3877 = vunpack.c.h.b16 %v3695
        %v3878 = vunpack.c.l.b16 %v3696
        %v3879 = vunpack.c.h.b16 %v3696
        %v3880 = vunpack.c.l.b16 %v3697
        %v3881 = vunpack.c.h.b16 %v3697
        %v3882 = vunpack.c.l.b16 %v3698
        %v3883 = vunpack.c.h.b16 %v3698
        %v3884 = vunpack.c.l.b16 %v3699
        %v3885 = vunpack.c.h.b16 %v3699
        %v3886 = vunpack.c.l.b16 %v3700
        %v3887 = vunpack.c.h.b16 %v3700
        %v3888 = vunpack.c.l.b16 %v3701
        %v3889 = vunpack.c.h.b16 %v3701
        %v3890 = vunpack.c.l.b16 %v3702
        %v3891 = vunpack.c.h.b16 %v3702
        %v3892 = vunpack.c.l.b16 %v3703
        %v3893 = vunpack.c.h.b16 %v3703
        %v3894 = vunpack.c.l.b16 %v3704
        %v3895 = vunpack.c.h.b16 %v3704
        %v3896 = vunpack.c.l.b16 %v3705
        %v3897 = vunpack.c.h.b16 %v3705
        %v3898 = vpack.c.b16 %v3778, %v3770
        %v3899 = vpack.c.b16 %v3779, %v3771
        %v3900 = vpack.c.b16 %v3780, %v3772
        %v3901 = vpack.c.b16 %v3781, %v3773
        %v3902 = vpack.c.b16 %v3782, %v3774
        %v3903 = vpack.c.b16 %v3783, %v3775
        %v3904 = vpack.c.b16 %v3784, %v3776
        %v3905 = vpack.c.b16 %v3785, %v3777
        %v3906 = vpack.c.b16 %v3794, %v3786
        %v3907 = vpack.c.b16 %v3795, %v3787
        %v3908 = vpack.c.b16 %v3796, %v3788
        %v3909 = vpack.c.b16 %v3797, %v3789
        %v3910 = vpack.c.b16 %v3798, %v3790
        %v3911 = vpack.c.b16 %v3799, %v3791
        %v3912 = vpack.c.b16 %v3800, %v3792
        %v3913 = vpack.c.b16 %v3801, %v3793
        %v3914 = vpack.c.b16 %v3810, %v3802
        %v3915 = vpack.c.b16 %v3811, %v3803
        %v3916 = vpack.c.b16 %v3812, %v3804
        %v3917 = vpack.c.b16 %v3813, %v3805
        %v3918 = vpack.c.b16 %v3814, %v3806
        %v3919 = vpack.c.b16 %v3815, %v3807
        %v3920 = vpack.c.b16 %v3816, %v3808
        %v3921 = vpack.c.b16 %v3817, %v3809
        %v3922 = vpack.c.b16 %v3826, %v3818
        %v3923 = vpack.c.b16 %v3827, %v3819
        %v3924 = vpack.c.b16 %v3828, %v3820
        %v3925 = vpack.c.b16 %v3829, %v3821
        %v3926 = vpack.c.b16 %v3830, %v3822
        %v3927 = vpack.c.b16 %v3831, %v3823
        %v3928 = vpack.c.b16 %v3832, %v3824
        %v3929 = vpack.c.b16 %v3833, %v3825
        %v3930 = vpack.c.b16 %v3842, %v3834
        %v3931 = vpack.c.b16 %v3843, %v3835
        %v3932 = vpack.c.b16 %v3844, %v3836
        %v3933 = vpack.c.b16 %v3845, %v3837
        %v3934 = vpack.c.b16 %v3846, %v3838
        %v3935 = vpack.c.b16 %v3847, %v3839
        %v3936 = vpack.c.b16 %v3848, %v3840
        %v3937 = vpack.c.b16 %v3849, %v3841
        %v3938 = vpack.c.b16 %v3858, %v3850
        %v3939 = vpack.c.b16 %v3859, %v3851
        %v3940 = vpack.c.b16 %v3860, %v3852
        %v3941 = vpack.c.b16 %v3861, %v3853
        %v3942 = vpack.c.b16 %v3862, %v3854
        %v3943 = vpack.c.b16 %v3863, %v3855
        %v3944 = vpack.c.b16 %v3864, %v3856
        %v3945 = vpack.c.b16 %v3865, %v3857
        %v3946 = vpack.c.b16 %v3874, %v3866
        %v3947 = vpack.c.b16 %v3875, %v3867
        %v3948 = vpack.c.b16 %v3876, %v3868
        %v3949 = vpack.c.b16 %v3877, %v3869
        %v3950 = vpack.c.b16 %v3878, %v3870
        %v3951 = vpack.c.b16 %v3879, %v3871
        %v3952 = vpack.c.b16 %v3880, %v3872
        %v3953 = vpack.c.b16 %v3881, %v3873
        %v3954 = vpack.c.b16 %v3890, %v3882
        %v3955 = vpack.c.b16 %v3891, %v3883
        %v3956 = vpack.c.b16 %v3892, %v3884
        %v3957 = vpack.c.b16 %v3893, %v3885
        %v3958 = vpack.c.b16 %v3894, %v3886
        %v3959 = vpack.c.b16 %v3895, %v3887
        %v3960 = vpack.c.b16 %v3896, %v3888
        %v3961 = vpack.c.b16 %v3897, %v3889
        %4026 = vmatprep.subr.bf16.mxu0 %v3899
        %4027 = vmatpush1.bf16.msra.mxu0 %v3898
        %4028 = vmatprep.subr.bf16.mxu0 %v3907
        %4029 = vmatpush1.bf16.msra.mxu0 %v3906
        %4030 = vmatprep.subr.bf16.mxu0 %v3915
        %4031 = vmatpush1.bf16.msra.mxu0 %v3914
        %4032 = vmatprep.subr.bf16.mxu0 %v3923
        %4033 = vmatpush1.bf16.msra.mxu0 %v3922
        %4034 = vmatprep.subr.bf16.mxu0 %v3931
        %4035 = vmatpush1.bf16.msra.mxu0 %v3930
        %4036 = vmatprep.subr.bf16.mxu0 %v3939
        %4037 = vmatpush1.bf16.msra.mxu0 %v3938
        %4038 = vmatprep.subr.bf16.mxu0 %v3947
        %4039 = vmatpush1.bf16.msra.mxu0 %v3946
        %4040 = vmatprep.subr.bf16.mxu0 %v3955
        %4041 = vmatpush1.bf16.msra.mxu0 %v3954
        %4042 = vmatprep.subr.bf16.mxu0 0
        %4043 = vmatpush1.bf16.msra.mxu0 0
        %4044 = vmatprep.subr.bf16.mxu0 0
        %4045 = vmatpush1.bf16.msra.mxu0 0
        %4046 = vmatprep.subr.bf16.mxu0 0
        %4047 = vmatpush1.bf16.msra.mxu0 0
        %4048 = vmatprep.subr.bf16.mxu0 0
        %4049 = vmatpush1.bf16.msra.mxu0 0
        %4050 = vmatprep.subr.bf16.mxu0 0
        %4051 = vmatpush1.bf16.msra.mxu0 0
        %4052 = vmatprep.subr.bf16.mxu0 0
        %4053 = vmatpush1.bf16.msra.mxu0 0
        %4054 = vmatprep.subr.bf16.mxu0 0
        %4055 = vmatpush1.bf16.msra.mxu0 0
        %4056 = vmatprep.subr.bf16.mxu0 0
        %4057 = vmatpush1.bf16.msra.mxu0 0
        %4058 = vmatprep.mubr.bf16.mxu0 0
        %4059 = vmatmul.mubr.bf16.gmra.mrb[0].mxu0 %v334
        %v4060 = vpop.f32.mrb[0].mxu0
        %v4061 = vadd.f32 0.0, %v4060
        %v4062 = vpop.f32.mrb[0].mxu0
        %v4063 = vadd.f32 0.0, %v4062
        %v4064 = vpop.f32.mrb[0].mxu0
        %v4065 = vadd.f32 0.0, %v4064
        %v4066 = vpop.f32.mrb[0].mxu0
        %v4067 = vadd.f32 0.0, %v4066
        %4068 = vmatprep.mubr.bf16.mxu0 0
        %4069 = vmatmul.mubr.bf16.gmra.mrb[0].mxu0 %v335
        %v4070 = vpop.f32.mrb[0].mxu0
        %v4071 = vadd.f32 0.0, %v4070
        %v4072 = vpop.f32.mrb[0].mxu0
        %v4073 = vadd.f32 0.0, %v4072
        %v4074 = vpop.f32.mrb[0].mxu0
        %v4075 = vadd.f32 0.0, %v4074
        %v4076 = vpop.f32.mrb[0].mxu0
        %v4077 = vadd.f32 0.0, %v4076
        %4078 = vmatprep.mubr.bf16.mxu0 0
        %4079 = vmatmul.mubr.bf16.gmra.mrb[0].mxu0 %v336
        %v4080 = vpop.f32.mrb[0].mxu0
        %v4081 = vadd.f32 0.0, %v4080
        %v4082 = vpop.f32.mrb[0].mxu0
        %v4083 = vadd.f32 0.0, %v4082
        %v4084 = vpop.f32.mrb[0].mxu0
        %v4085 = vadd.f32 0.0, %v4084
        %v4086 = vpop.f32.mrb[0].mxu0
        %v4087 = vadd.f32 0.0, %v4086
        %4088 = vmatprep.mubr.bf16.mxu0 0
        %4089 = vmatmul.mubr.bf16.gmra.mrb[0].mxu0 %v337
        %v4090 = vpop.f32.mrb[0].mxu0
        %v4091 = vadd.f32 0.0, %v4090
        %v4092 = vpop.f32.mrb[0].mxu0
        %v4093 = vadd.f32 0.0, %v4092
        %v4094 = vpop.f32.mrb[0].mxu0
        %v4095 = vadd.f32 0.0, %v4094
        %v4096 = vpop.f32.mrb[0].mxu0
        %v4097 = vadd.f32 0.0, %v4096
        %4098 = vdwg.mxu0
        %4099 = vmatprep.subr.bf16.mxu0 %v3901
        %4100 = vmatpush1.bf16.msra.mxu0 %v3900
        %4101 = vmatprep.subr.bf16.mxu0 %v3909
        %4102 = vmatpush1.bf16.msra.mxu0 %v3908
        %4103 = vmatprep.subr.bf16.mxu0 %v3917
        %4104 = vmatpush1.bf16.msra.mxu0 %v3916
        %4105 = vmatprep.subr.bf16.mxu0 %v3925
        %4106 = vmatpush1.bf16.msra.mxu0 %v3924
        %4107 = vmatprep.subr.bf16.mxu0 %v3933
        %4108 = vmatpush1.bf16.msra.mxu0 %v3932
        %4109 = vmatprep.subr.bf16.mxu0 %v3941
        %4110 = vmatpush1.bf16.msra.mxu0 %v3940
        %4111 = vmatprep.subr.bf16.mxu0 %v3949
        %4112 = vmatpush1.bf16.msra.mxu0 %v3948
        %4113 = vmatprep.subr.bf16.mxu0 %v3957
        %4114 = vmatpush1.bf16.msra.mxu0 %v3956
        %4115 = vmatprep.subr.bf16.mxu0 0
        %4116 = vmatpush1.bf16.msra.mxu0 0
        %4117 = vmatprep.subr.bf16.mxu0 0
        %4118 = vmatpush1.bf16.msra.mxu0 0
        %4119 = vmatprep.subr.bf16.mxu0 0
        %4120 = vmatpush1.bf16.msra.mxu0 0
        %4121 = vmatprep.subr.bf16.mxu0 0
        %4122 = vmatpush1.bf16.msra.mxu0 0
        %4123 = vmatprep.subr.bf16.mxu0 0
        %4124 = vmatpush1.bf16.msra.mxu0 0
        %4125 = vmatprep.subr.bf16.mxu0 0
        %4126 = vmatpush1.bf16.msra.mxu0 0
        %4127 = vmatprep.subr.bf16.mxu0 0
        %4128 = vmatpush1.bf16.msra.mxu0 0
        %4129 = vmatprep.subr.bf16.mxu0 0
        %4130 = vmatpush1.bf16.msra.mxu0 0
        %4131 = vmatprep.mubr.bf16.mxu0 0
        %4132 = vmatmul.mubr.bf16.gmra.mrb[0].mxu0 %v334
        %v4133 = vpop.f32.mrb[0].mxu0
        %v4134 = vadd.f32 0.0, %v4133
        %v4135 = vpop.f32.mrb[0].mxu0
        %v4136 = vadd.f32 0.0, %v4135
        %v4137 = vpop.f32.mrb[0].mxu0
        %v4138 = vadd.f32 0.0, %v4137
        %v4139 = vpop.f32.mrb[0].mxu0
        %v4140 = vadd.f32 0.0, %v4139
        %4141 = vmatprep.mubr.bf16.mxu0 0
        %4142 = vmatmul.mubr.bf16.gmra.mrb[0].mxu0 %v335
        %v4143 = vpop.f32.mrb[0].mxu0
        %v4144 = vadd.f32 0.0, %v4143
        %v4145 = vpop.f32.mrb[0].mxu0
        %v4146 = vadd.f32 0.0, %v4145
        %v4147 = vpop.f32.mrb[0].mxu0
        %v4148 = vadd.f32 0.0, %v4147
        %v4149 = vpop.f32.mrb[0].mxu0
        %v4150 = vadd.f32 0.0, %v4149
        %4151 = vmatprep.mubr.bf16.mxu0 0
        %4152 = vmatmul.mubr.bf16.gmra.mrb[0].mxu0 %v336
        %v4153 = vpop.f32.mrb[0].mxu0
        %v4154 = vadd.f32 0.0, %v4153
        %v4155 = vpop.f32.mrb[0].mxu0
        %v4156 = vadd.f32 0.0, %v4155
        %v4157 = vpop.f32.mrb[0].mxu0
        %v4158 = vadd.f32 0.0, %v4157
        %v4159 = vpop.f32.mrb[0].mxu0
        %v4160 = vadd.f32 0.0, %v4159
        %4161 = vmatprep.mubr.bf16.mxu0 0
        %4162 = vmatmul.mubr.bf16.gmra.mrb[0].mxu0 %v337
        %v4163 = vpop.f32.mrb[0].mxu0
        %v4164 = vadd.f32 0.0, %v4163
        %v4165 = vpop.f32.mrb[0].mxu0
        %v4166 = vadd.f32 0.0, %v4165
        %v4167 = vpop.f32.mrb[0].mxu0
        %v4168 = vadd.f32 0.0, %v4167
        %v4169 = vpop.f32.mrb[0].mxu0
        %v4170 = vadd.f32 0.0, %v4169
        %4171 = vdwg.mxu0
        %4172 = vmatprep.subr.bf16.mxu0 %v3903
        %4173 = vmatpush1.bf16.msra.mxu0 %v3902
        %4174 = vmatprep.subr.bf16.mxu0 %v3911
        %4175 = vmatpush1.bf16.msra.mxu0 %v3910
        %4176 = vmatprep.subr.bf16.mxu0 %v3919
        %4177 = vmatpush1.bf16.msra.mxu0 %v3918
        %4178 = vmatprep.subr.bf16.mxu0 %v3927
        %4179 = vmatpush1.bf16.msra.mxu0 %v3926
        %4180 = vmatprep.subr.bf16.mxu0 %v3935
        %4181 = vmatpush1.bf16.msra.mxu0 %v3934
        %4182 = vmatprep.subr.bf16.mxu0 %v3943
        %4183 = vmatpush1.bf16.msra.mxu0 %v3942
        %4184 = vmatprep.subr.bf16.mxu0 %v3951
        %4185 = vmatpush1.bf16.msra.mxu0 %v3950
        %4186 = vmatprep.subr.bf16.mxu0 %v3959
        %4187 = vmatpush1.bf16.msra.mxu0 %v3958
        %4188 = vmatprep.subr.bf16.mxu0 0
        %4189 = vmatpush1.bf16.msra.mxu0 0
        %4190 = vmatprep.subr.bf16.mxu0 0
        %4191 = vmatpush1.bf16.msra.mxu0 0
        %4192 = vmatprep.subr.bf16.mxu0 0
        %4193 = vmatpush1.bf16.msra.mxu0 0
        %4194 = vmatprep.subr.bf16.mxu0 0
        %4195 = vmatpush1.bf16.msra.mxu0 0
        %4196 = vmatprep.subr.bf16.mxu0 0
        %4197 = vmatpush1.bf16.msra.mxu0 0
        %4198 = vmatprep.subr.bf16.mxu0 0
        %4199 = vmatpush1.bf16.msra.mxu0 0
        %4200 = vmatprep.subr.bf16.mxu0 0
        %4201 = vmatpush1.bf16.msra.mxu0 0
        %4202 = vmatprep.subr.bf16.mxu0 0
        %4203 = vmatpush1.bf16.msra.mxu0 0
        %4204 = vmatprep.mubr.bf16.mxu0 0
        %4205 = vmatmul.mubr.bf16.gmra.mrb[0].mxu0 %v334
        %v4206 = vpop.f32.mrb[0].mxu0
        %v4207 = vadd.f32 0.0, %v4206
        %v4208 = vpop.f32.mrb[0].mxu0
        %v4209 = vadd.f32 0.0, %v4208
        %v4210 = vpop.f32.mrb[0].mxu0
        %v4211 = vadd.f32 0.0, %v4210
        %v4212 = vpop.f32.mrb[0].mxu0
        %v4213 = vadd.f32 0.0, %v4212
        %4214 = vmatprep.mubr.bf16.mxu0 0
        %4215 = vmatmul.mubr.bf16.gmra.mrb[0].mxu0 %v335
        %v4216 = vpop.f32.mrb[0].mxu0
        %v4217 = vadd.f32 0.0, %v4216
        %v4218 = vpop.f32.mrb[0].mxu0
        %v4219 = vadd.f32 0.0, %v4218
        %v4220 = vpop.f32.mrb[0].mxu0
        %v4221 = vadd.f32 0.0, %v4220
        %v4222 = vpop.f32.mrb[0].mxu0
        %v4223 = vadd.f32 0.0, %v4222
        %4224 = vmatprep.mubr.bf16.mxu0 0
        %4225 = vmatmul.mubr.bf16.gmra.mrb[0].mxu0 %v336
        %v4226 = vpop.f32.mrb[0].mxu0
        %v4227 = vadd.f32 0.0, %v4226
        %v4228 = vpop.f32.mrb[0].mxu0
        %v4229 = vadd.f32 0.0, %v4228
        %v4230 = vpop.f32.mrb[0].mxu0
        %v4231 = vadd.f32 0.0, %v4230
        %v4232 = vpop.f32.mrb[0].mxu0
        %v4233 = vadd.f32 0.0, %v4232
        %4234 = vmatprep.mubr.bf16.mxu0 0
        %4235 = vmatmul.mubr.bf16.gmra.mrb[0].mxu0 %v337
        %v4236 = vpop.f32.mrb[0].mxu0
        %v4237 = vadd.f32 0.0, %v4236
        %v4238 = vpop.f32.mrb[0].mxu0
        %v4239 = vadd.f32 0.0, %v4238
        %v4240 = vpop.f32.mrb[0].mxu0
        %v4241 = vadd.f32 0.0, %v4240
        %v4242 = vpop.f32.mrb[0].mxu0
        %v4243 = vadd.f32 0.0, %v4242
        %4244 = vdwg.mxu0
        %4245 = vmatprep.subr.bf16.mxu0 %v3905
        %4246 = vmatpush1.bf16.msra.mxu0 %v3904
        %4247 = vmatprep.subr.bf16.mxu0 %v3913
        %4248 = vmatpush1.bf16.msra.mxu0 %v3912
        %4249 = vmatprep.subr.bf16.mxu0 %v3921
        %4250 = vmatpush1.bf16.msra.mxu0 %v3920
        %4251 = vmatprep.subr.bf16.mxu0 %v3929
        %4252 = vmatpush1.bf16.msra.mxu0 %v3928
        %4253 = vmatprep.subr.bf16.mxu0 %v3937
        %4254 = vmatpush1.bf16.msra.mxu0 %v3936
        %4255 = vmatprep.subr.bf16.mxu0 %v3945
        %4256 = vmatpush1.bf16.msra.mxu0 %v3944
        %4257 = vmatprep.subr.bf16.mxu0 %v3953
        %4258 = vmatpush1.bf16.msra.mxu0 %v3952
        %4259 = vmatprep.subr.bf16.mxu0 %v3961
        %4260 = vmatpush1.bf16.msra.mxu0 %v3960
        %4261 = vmatprep.subr.bf16.mxu0 0
        %4262 = vmatpush1.bf16.msra.mxu0 0
        %4263 = vmatprep.subr.bf16.mxu0 0
        %4264 = vmatpush1.bf16.msra.mxu0 0
        %4265 = vmatprep.subr.bf16.mxu0 0
        %4266 = vmatpush1.bf16.msra.mxu0 0
        %4267 = vmatprep.subr.bf16.mxu0 0
        %4268 = vmatpush1.bf16.msra.mxu0 0
        %4269 = vmatprep.subr.bf16.mxu0 0
        %4270 = vmatpush1.bf16.msra.mxu0 0
        %4271 = vmatprep.subr.bf16.mxu0 0
        %4272 = vmatpush1.bf16.msra.mxu0 0
        %4273 = vmatprep.subr.bf16.mxu0 0
        %4274 = vmatpush1.bf16.msra.mxu0 0
        %4275 = vmatprep.subr.bf16.mxu0 0
        %4276 = vmatpush1.bf16.msra.mxu0 0
        %4277 = vmatprep.mubr.bf16.mxu0 0
        %4278 = vmatmul.mubr.bf16.gmra.mrb[0].mxu0 %v334
        %v4279 = vpop.f32.mrb[0].mxu0
        %v4280 = vadd.f32 0.0, %v4279
        %v4281 = vpop.f32.mrb[0].mxu0
        %v4282 = vadd.f32 0.0, %v4281
        %v4283 = vpop.f32.mrb[0].mxu0
        %v4284 = vadd.f32 0.0, %v4283
        %v4285 = vpop.f32.mrb[0].mxu0
        %v4286 = vadd.f32 0.0, %v4285
        %4287 = vmatprep.mubr.bf16.mxu0 0
        %4288 = vmatmul.mubr.bf16.gmra.mrb[0].mxu0 %v335
        %v4289 = vpop.f32.mrb[0].mxu0
        %v4290 = vadd.f32 0.0, %v4289
        %v4291 = vpop.f32.mrb[0].mxu0
        %v4292 = vadd.f32 0.0, %v4291
        %v4293 = vpop.f32.mrb[0].mxu0
        %v4294 = vadd.f32 0.0, %v4293
        %v4295 = vpop.f32.mrb[0].mxu0
        %v4296 = vadd.f32 0.0, %v4295
        %4297 = vmatprep.mubr.bf16.mxu0 0
        %4298 = vmatmul.mubr.bf16.gmra.mrb[0].mxu0 %v336
        %v4299 = vpop.f32.mrb[0].mxu0
        %v4300 = vadd.f32 0.0, %v4299
        %v4301 = vpop.f32.mrb[0].mxu0
        %v4302 = vadd.f32 0.0, %v4301
        %v4303 = vpop.f32.mrb[0].mxu0
        %v4304 = vadd.f32 0.0, %v4303
        %v4305 = vpop.f32.mrb[0].mxu0
        %v4306 = vadd.f32 0.0, %v4305
        %4307 = vmatprep.mubr.bf16.mxu0 0
        %4308 = vmatmul.mubr.bf16.gmra.mrb[0].mxu0 %v337
        %v4309 = vpop.f32.mrb[0].mxu0
        %v4310 = vadd.f32 0.0, %v4309
        %v4311 = vpop.f32.mrb[0].mxu0
        %v4312 = vadd.f32 0.0, %v4311
        %v4313 = vpop.f32.mrb[0].mxu0
        %v4314 = vadd.f32 0.0, %v4313
        %v4315 = vpop.f32.mrb[0].mxu0
        %v4316 = vadd.f32 0.0, %v4315
        %4317 = vdwg.mxu0
        %v4318 = vmax.f32 %v4061, %v4065
        %v4319 = vmax.f32 %v4318, %v4071
        %v4320 = vmax.f32 %v4319, %v4075
        %v4321 = vmax.f32 %v4320, %v4081
        %v4322 = vmax.f32 %v4321, %v4085
        %v4323 = vmax.f32 %v4322, %v4091
        %v4324 = vmax.f32 %v4323, %v4095
        %v4325 = vrot.slane %v4324, 4
        %v4326 = vmax.f32 %v4324, %v4325
        %v4327 = vrot.slane %v4326, 2
        %v4328 = vmax.f32 %v4326, %v4327
        %v4329 = vrot.slane %v4328, 1
        %v4330 = vmax.f32 %v4328, %v4329
        %v4331 = vmax.f32 %v4063, %v4067
        %v4332 = vmax.f32 %v4331, %v4073
        %v4333 = vmax.f32 %v4332, %v4077
        %v4334 = vmax.f32 %v4333, %v4083
        %v4335 = vmax.f32 %v4334, %v4087
        %v4336 = vmax.f32 %v4335, %v4093
        %v4337 = vmax.f32 %v4336, %v4097
        %v4338 = vrot.slane %v4337, 4
        %v4339 = vmax.f32 %v4337, %v4338
        %v4340 = vrot.slane %v4339, 2
        %v4341 = vmax.f32 %v4339, %v4340
        %v4342 = vrot.slane %v4341, 1
        %v4343 = vmax.f32 %v4341, %v4342
        %v4344 = vmax.f32 %v4134, %v4138
        %v4345 = vmax.f32 %v4344, %v4144
        %v4346 = vmax.f32 %v4345, %v4148
        %v4347 = vmax.f32 %v4346, %v4154
        %v4348 = vmax.f32 %v4347, %v4158
        %v4349 = vmax.f32 %v4348, %v4164
        %v4350 = vmax.f32 %v4349, %v4168
        %v4351 = vrot.slane %v4350, 4
        %v4352 = vmax.f32 %v4350, %v4351
        %v4353 = vrot.slane %v4352, 2
        %v4354 = vmax.f32 %v4352, %v4353
        %v4355 = vrot.slane %v4354, 1
        %v4356 = vmax.f32 %v4354, %v4355
        %v4357 = vmax.f32 %v4136, %v4140
        %v4358 = vmax.f32 %v4357, %v4146
        %v4359 = vmax.f32 %v4358, %v4150
        %v4360 = vmax.f32 %v4359, %v4156
        %v4361 = vmax.f32 %v4360, %v4160
        %v4362 = vmax.f32 %v4361, %v4166
        %v4363 = vmax.f32 %v4362, %v4170
        %v4364 = vrot.slane %v4363, 4
        %v4365 = vmax.f32 %v4363, %v4364
        %v4366 = vrot.slane %v4365, 2
        %v4367 = vmax.f32 %v4365, %v4366
        %v4368 = vrot.slane %v4367, 1
        %v4369 = vmax.f32 %v4367, %v4368
        %v4370 = vmax.f32 %v4207, %v4211
        %v4371 = vmax.f32 %v4370, %v4217
        %v4372 = vmax.f32 %v4371, %v4221
        %v4373 = vmax.f32 %v4372, %v4227
        %v4374 = vmax.f32 %v4373, %v4231
        %v4375 = vmax.f32 %v4374, %v4237
        %v4376 = vmax.f32 %v4375, %v4241
        %v4377 = vrot.slane %v4376, 4
        %v4378 = vmax.f32 %v4376, %v4377
        %v4379 = vrot.slane %v4378, 2
        %v4380 = vmax.f32 %v4378, %v4379
        %v4381 = vrot.slane %v4380, 1
        %v4382 = vmax.f32 %v4380, %v4381
        %v4383 = vmax.f32 %v4209, %v4213
        %v4384 = vmax.f32 %v4383, %v4219
        %v4385 = vmax.f32 %v4384, %v4223
        %v4386 = vmax.f32 %v4385, %v4229
        %v4387 = vmax.f32 %v4386, %v4233
        %v4388 = vmax.f32 %v4387, %v4239
        %v4389 = vmax.f32 %v4388, %v4243
        %v4390 = vrot.slane %v4389, 4
        %v4391 = vmax.f32 %v4389, %v4390
        %v4392 = vrot.slane %v4391, 2
        %v4393 = vmax.f32 %v4391, %v4392
        %v4394 = vrot.slane %v4393, 1
        %v4395 = vmax.f32 %v4393, %v4394
        %v4396 = vmax.f32 %v4280, %v4284
        %v4397 = vmax.f32 %v4396, %v4290
        %v4398 = vmax.f32 %v4397, %v4294
        %v4399 = vmax.f32 %v4398, %v4300
        %v4400 = vmax.f32 %v4399, %v4304
        %v4401 = vmax.f32 %v4400, %v4310
        %v4402 = vmax.f32 %v4401, %v4314
        %v4403 = vrot.slane %v4402, 4
        %v4404 = vmax.f32 %v4402, %v4403
        %v4405 = vrot.slane %v4404, 2
        %v4406 = vmax.f32 %v4404, %v4405
        %v4407 = vrot.slane %v4406, 1
        %v4408 = vmax.f32 %v4406, %v4407
        %v4409 = vmax.f32 %v4282, %v4286
        %v4410 = vmax.f32 %v4409, %v4292
        %v4411 = vmax.f32 %v4410, %v4296
        %v4412 = vmax.f32 %v4411, %v4302
        %v4413 = vmax.f32 %v4412, %v4306
        %v4414 = vmax.f32 %v4413, %v4312
        %v4415 = vmax.f32 %v4414, %v4316
        %v4416 = vrot.slane %v4415, 4
        %v4417 = vmax.f32 %v4415, %v4416
        %v4418 = vrot.slane %v4417, 2
        %v4419 = vmax.f32 %v4417, %v4418
        %v4420 = vrot.slane %v4419, 1
        %v4421 = vmax.f32 %v4419, %v4420
        %v4422 = vld [vmem:[%s231 + $0x20] sm:$0xff]
        %v4431 = vcombine.low %v4330, %v4343
        %v4432 = vcombine.low %v4356, %v4369
        %v4433 = vcombine.low %v4382, %v4395
        %v4434 = vcombine.low %v4408, %v4421
        %v4436 = vunpack.c.l.s4 1966171168
        %v4437 = vunpack.c.0.s8 %v4436
        %v4438 = vlaneseq
        %v4439 = vshrl.u32 %v4438, 7
        %v4440 = vsub.s32 %v4437, %v4439
        %v4441 = vrot.slane %v4431, %v4440
        %v4443 = vunpack.c.l.s4 1966171168
        %v4444 = vunpack.c.0.s8 %v4443
        %v4445 = vlaneseq
        %v4446 = vshrl.u32 %v4445, 7
        %v4447 = vsub.s32 %v4444, %v4446
        %v4448 = vrot.slane %v4432, %v4447
        %v4450 = vunpack.c.l.s4 1966171168
        %v4451 = vunpack.c.0.s8 %v4450
        %v4452 = vlaneseq
        %v4453 = vshrl.u32 %v4452, 7
        %v4454 = vsub.s32 %v4451, %v4453
        %v4455 = vrot.slane %v4433, %v4454
        %v4457 = vunpack.c.l.s4 1966171168
        %v4458 = vunpack.c.0.s8 %v4457
        %v4459 = vlaneseq
        %v4460 = vshrl.u32 %v4459, 7
        %v4461 = vsub.s32 %v4458, %v4460
        %v4462 = vrot.slane %v4434, %v4461
        %v4463 = vcombine.low %v4441, %v4448
        %v4464 = vcombine.low %v4455, %v4462
        %v4466 = vunpack.c.l.s4 1966171168
        %v4467 = vunpack.c.0.s8 %v4466
        %v4468 = vlaneseq
        %v4469 = vshrl.u32 %v4468, 7
        %v4470 = vsub.s32 %v4467, %v4469
        %v4471 = vrot.slane %v4463, %v4470
        %v4473 = vunpack.c.l.s4 1966171168
        %v4474 = vunpack.c.0.s8 %v4473
        %v4475 = vlaneseq
        %v4476 = vshrl.u32 %v4475, 7
        %v4477 = vsub.s32 %v4474, %v4476
        %v4478 = vrot.slane %v4464, %v4477
        %v4479 = vcombine.low %v4471, %v4478
        %v4481 = vmax.f32 %v4422, %v4479
        %4482 = vst [vmem:[%s231 + $0x20] sm:$0xff] %v4481
        %v4483 = vld [vmem:[#allocation5 + $0xa0] sm:$0xff]
        %v4484 = vld [vmem:[#allocation5 + $0xa8] sm:$0xff]
        %v4485 = vld [vmem:[#allocation5 + $0xb0] sm:$0xff]
        %v4486 = vld [vmem:[#allocation5 + $0xb8] sm:$0xff]
        %v4487 = vld [vmem:[#allocation5 + $0x1a0] sm:$0xff]
        %v4488 = vld [vmem:[#allocation5 + $0x1a8] sm:$0xff]
        %v4489 = vld [vmem:[#allocation5 + $0x1b0] sm:$0xff]
        %v4490 = vld [vmem:[#allocation5 + $0x1b8] sm:$0xff]
        %v4491 = vld [vmem:[#allocation5 + $0x2a0] sm:$0xff]
        %v4492 = vld [vmem:[#allocation5 + $0x2a8] sm:$0xff]
        %v4493 = vld [vmem:[#allocation5 + $0x2b0] sm:$0xff]
        %v4494 = vld [vmem:[#allocation5 + $0x2b8] sm:$0xff]
        %v4495 = vld [vmem:[#allocation5 + $0x3a0] sm:$0xff]
        %v4496 = vld [vmem:[#allocation5 + $0x3a8] sm:$0xff]
        %v4497 = vld [vmem:[#allocation5 + $0x3b0] sm:$0xff]
        %v4498 = vld [vmem:[#allocation5 + $0x3b8] sm:$0xff]
        %v4499 = vld [vmem:[#allocation5 + $0x4a0] sm:$0xff]
        %v4500 = vld [vmem:[#allocation5 + $0x4a8] sm:$0xff]
        %v4501 = vld [vmem:[#allocation5 + $0x4b0] sm:$0xff]
        %v4502 = vld [vmem:[#allocation5 + $0x4b8] sm:$0xff]
        %v4503 = vld [vmem:[#allocation5 + $0x5a0] sm:$0xff]
        %v4504 = vld [vmem:[#allocation5 + $0x5a8] sm:$0xff]
        %v4505 = vld [vmem:[#allocation5 + $0x5b0] sm:$0xff]
        %v4506 = vld [vmem:[#allocation5 + $0x5b8] sm:$0xff]
        %v4507 = vld [vmem:[#allocation5 + $0x6a0] sm:$0xff]
        %v4508 = vld [vmem:[#allocation5 + $0x6a8] sm:$0xff]
        %v4509 = vld [vmem:[#allocation5 + $0x6b0] sm:$0xff]
        %v4510 = vld [vmem:[#allocation5 + $0x6b8] sm:$0xff]
        %v4511 = vld [vmem:[#allocation5 + $0x7a0] sm:$0xff]
        %v4512 = vld [vmem:[#allocation5 + $0x7a8] sm:$0xff]
        %v4513 = vld [vmem:[#allocation5 + $0x7b0] sm:$0xff]
        %v4514 = vld [vmem:[#allocation5 + $0x7b8] sm:$0xff]
        %v4515 = vld [vmem:[#allocation5 + $0x8a0] sm:$0xff]
        %v4516 = vld [vmem:[#allocation5 + $0x8a8] sm:$0xff]
        %v4517 = vld [vmem:[#allocation5 + $0x8b0] sm:$0xff]
        %v4518 = vld [vmem:[#allocation5 + $0x8b8] sm:$0xff]
        %v4519 = vld [vmem:[#allocation5 + $0x9a0] sm:$0xff]
        %v4520 = vld [vmem:[#allocation5 + $0x9a8] sm:$0xff]
        %v4521 = vld [vmem:[#allocation5 + $0x9b0] sm:$0xff]
        %v4522 = vld [vmem:[#allocation5 + $0x9b8] sm:$0xff]
        %v4523 = vld [vmem:[#allocation5 + $0xaa0] sm:$0xff]
        %v4524 = vld [vmem:[#allocation5 + $0xaa8] sm:$0xff]
        %v4525 = vld [vmem:[#allocation5 + $0xab0] sm:$0xff]
        %v4526 = vld [vmem:[#allocation5 + $0xab8] sm:$0xff]
        %v4527 = vld [vmem:[#allocation5 + $0xba0] sm:$0xff]
        %v4528 = vld [vmem:[#allocation5 + $0xba8] sm:$0xff]
        %v4529 = vld [vmem:[#allocation5 + $0xbb0] sm:$0xff]
        %v4530 = vld [vmem:[#allocation5 + $0xbb8] sm:$0xff]
        %v4531 = vld [vmem:[#allocation5 + $0xca0] sm:$0xff]
        %v4532 = vld [vmem:[#allocation5 + $0xca8] sm:$0xff]
        %v4533 = vld [vmem:[#allocation5 + $0xcb0] sm:$0xff]
        %v4534 = vld [vmem:[#allocation5 + $0xcb8] sm:$0xff]
        %v4535 = vld [vmem:[#allocation5 + $0xda0] sm:$0xff]
        %v4536 = vld [vmem:[#allocation5 + $0xda8] sm:$0xff]
        %v4537 = vld [vmem:[#allocation5 + $0xdb0] sm:$0xff]
        %v4538 = vld [vmem:[#allocation5 + $0xdb8] sm:$0xff]
        %v4539 = vld [vmem:[#allocation5 + $0xea0] sm:$0xff]
        %v4540 = vld [vmem:[#allocation5 + $0xea8] sm:$0xff]
        %v4541 = vld [vmem:[#allocation5 + $0xeb0] sm:$0xff]
        %v4542 = vld [vmem:[#allocation5 + $0xeb8] sm:$0xff]
        %v4543 = vld [vmem:[#allocation5 + $0xfa0] sm:$0xff]
        %v4544 = vld [vmem:[#allocation5 + $0xfa8] sm:$0xff]
        %v4545 = vld [vmem:[#allocation5 + $0xfb0] sm:$0xff]
        %v4546 = vld [vmem:[#allocation5 + $0xfb8] sm:$0xff]
        %v4611 = vunpack.c.l.b16 %v4483
        %v4612 = vunpack.c.h.b16 %v4483
        %v4613 = vunpack.c.l.b16 %v4484
        %v4614 = vunpack.c.h.b16 %v4484
        %v4615 = vunpack.c.l.b16 %v4485
        %v4616 = vunpack.c.h.b16 %v4485
        %v4617 = vunpack.c.l.b16 %v4486
        %v4618 = vunpack.c.h.b16 %v4486
        %v4619 = vunpack.c.l.b16 %v4487
        %v4620 = vunpack.c.h.b16 %v4487
        %v4621 = vunpack.c.l.b16 %v4488
        %v4622 = vunpack.c.h.b16 %v4488
        %v4623 = vunpack.c.l.b16 %v4489
        %v4624 = vunpack.c.h.b16 %v4489
        %v4625 = vunpack.c.l.b16 %v4490
        %v4626 = vunpack.c.h.b16 %v4490
        %v4627 = vunpack.c.l.b16 %v4491
        %v4628 = vunpack.c.h.b16 %v4491
        %v4629 = vunpack.c.l.b16 %v4492
        %v4630 = vunpack.c.h.b16 %v4492
        %v4631 = vunpack.c.l.b16 %v4493
        %v4632 = vunpack.c.h.b16 %v4493
        %v4633 = vunpack.c.l.b16 %v4494
        %v4634 = vunpack.c.h.b16 %v4494
        %v4635 = vunpack.c.l.b16 %v4495
        %v4636 = vunpack.c.h.b16 %v4495
        %v4637 = vunpack.c.l.b16 %v4496
        %v4638 = vunpack.c.h.b16 %v4496
        %v4639 = vunpack.c.l.b16 %v4497
        %v4640 = vunpack.c.h.b16 %v4497
        %v4641 = vunpack.c.l.b16 %v4498
        %v4642 = vunpack.c.h.b16 %v4498
        %v4643 = vunpack.c.l.b16 %v4499
        %v4644 = vunpack.c.h.b16 %v4499
        %v4645 = vunpack.c.l.b16 %v4500
        %v4646 = vunpack.c.h.b16 %v4500
        %v4647 = vunpack.c.l.b16 %v4501
        %v4648 = vunpack.c.h.b16 %v4501
        %v4649 = vunpack.c.l.b16 %v4502
        %v4650 = vunpack.c.h.b16 %v4502
        %v4651 = vunpack.c.l.b16 %v4503
        %v4652 = vunpack.c.h.b16 %v4503
        %v4653 = vunpack.c.l.b16 %v4504
        %v4654 = vunpack.c.h.b16 %v4504
        %v4655 = vunpack.c.l.b16 %v4505
        %v4656 = vunpack.c.h.b16 %v4505
        %v4657 = vunpack.c.l.b16 %v4506
        %v4658 = vunpack.c.h.b16 %v4506
        %v4659 = vunpack.c.l.b16 %v4507
        %v4660 = vunpack.c.h.b16 %v4507
        %v4661 = vunpack.c.l.b16 %v4508
        %v4662 = vunpack.c.h.b16 %v4508
        %v4663 = vunpack.c.l.b16 %v4509
        %v4664 = vunpack.c.h.b16 %v4509
        %v4665 = vunpack.c.l.b16 %v4510
        %v4666 = vunpack.c.h.b16 %v4510
        %v4667 = vunpack.c.l.b16 %v4511
        %v4668 = vunpack.c.h.b16 %v4511
        %v4669 = vunpack.c.l.b16 %v4512
        %v4670 = vunpack.c.h.b16 %v4512
        %v4671 = vunpack.c.l.b16 %v4513
        %v4672 = vunpack.c.h.b16 %v4513
        %v4673 = vunpack.c.l.b16 %v4514
        %v4674 = vunpack.c.h.b16 %v4514
        %v4675 = vunpack.c.l.b16 %v4515
        %v4676 = vunpack.c.h.b16 %v4515
        %v4677 = vunpack.c.l.b16 %v4516
        %v4678 = vunpack.c.h.b16 %v4516
        %v4679 = vunpack.c.l.b16 %v4517
        %v4680 = vunpack.c.h.b16 %v4517
        %v4681 = vunpack.c.l.b16 %v4518
        %v4682 = vunpack.c.h.b16 %v4518
        %v4683 = vunpack.c.l.b16 %v4519
        %v4684 = vunpack.c.h.b16 %v4519
        %v4685 = vunpack.c.l.b16 %v4520
        %v4686 = vunpack.c.h.b16 %v4520
        %v4687 = vunpack.c.l.b16 %v4521
        %v4688 = vunpack.c.h.b16 %v4521
        %v4689 = vunpack.c.l.b16 %v4522
        %v4690 = vunpack.c.h.b16 %v4522
        %v4691 = vunpack.c.l.b16 %v4523
        %v4692 = vunpack.c.h.b16 %v4523
        %v4693 = vunpack.c.l.b16 %v4524
        %v4694 = vunpack.c.h.b16 %v4524
        %v4695 = vunpack.c.l.b16 %v4525
        %v4696 = vunpack.c.h.b16 %v4525
        %v4697 = vunpack.c.l.b16 %v4526
        %v4698 = vunpack.c.h.b16 %v4526
        %v4699 = vunpack.c.l.b16 %v4527
        %v4700 = vunpack.c.h.b16 %v4527
        %v4701 = vunpack.c.l.b16 %v4528
        %v4702 = vunpack.c.h.b16 %v4528
        %v4703 = vunpack.c.l.b16 %v4529
        %v4704 = vunpack.c.h.b16 %v4529
        %v4705 = vunpack.c.l.b16 %v4530
        %v4706 = vunpack.c.h.b16 %v4530
        %v4707 = vunpack.c.l.b16 %v4531
        %v4708 = vunpack.c.h.b16 %v4531
        %v4709 = vunpack.c.l.b16 %v4532
        %v4710 = vunpack.c.h.b16 %v4532
        %v4711 = vunpack.c.l.b16 %v4533
        %v4712 = vunpack.c.h.b16 %v4533
        %v4713 = vunpack.c.l.b16 %v4534
        %v4714 = vunpack.c.h.b16 %v4534
        %v4715 = vunpack.c.l.b16 %v4535
        %v4716 = vunpack.c.h.b16 %v4535
        %v4717 = vunpack.c.l.b16 %v4536
        %v4718 = vunpack.c.h.b16 %v4536
        %v4719 = vunpack.c.l.b16 %v4537
        %v4720 = vunpack.c.h.b16 %v4537
        %v4721 = vunpack.c.l.b16 %v4538
        %v4722 = vunpack.c.h.b16 %v4538
        %v4723 = vunpack.c.l.b16 %v4539
        %v4724 = vunpack.c.h.b16 %v4539
        %v4725 = vunpack.c.l.b16 %v4540
        %v4726 = vunpack.c.h.b16 %v4540
        %v4727 = vunpack.c.l.b16 %v4541
        %v4728 = vunpack.c.h.b16 %v4541
        %v4729 = vunpack.c.l.b16 %v4542
        %v4730 = vunpack.c.h.b16 %v4542
        %v4731 = vunpack.c.l.b16 %v4543
        %v4732 = vunpack.c.h.b16 %v4543
        %v4733 = vunpack.c.l.b16 %v4544
        %v4734 = vunpack.c.h.b16 %v4544
        %v4735 = vunpack.c.l.b16 %v4545
        %v4736 = vunpack.c.h.b16 %v4545
        %v4737 = vunpack.c.l.b16 %v4546
        %v4738 = vunpack.c.h.b16 %v4546
        %v4739 = vpack.c.b16 %v4619, %v4611
        %v4740 = vpack.c.b16 %v4620, %v4612
        %v4741 = vpack.c.b16 %v4621, %v4613
        %v4742 = vpack.c.b16 %v4622, %v4614
        %v4743 = vpack.c.b16 %v4623, %v4615
        %v4744 = vpack.c.b16 %v4624, %v4616
        %v4745 = vpack.c.b16 %v4625, %v4617
        %v4746 = vpack.c.b16 %v4626, %v4618
        %v4747 = vpack.c.b16 %v4635, %v4627
        %v4748 = vpack.c.b16 %v4636, %v4628
        %v4749 = vpack.c.b16 %v4637, %v4629
        %v4750 = vpack.c.b16 %v4638, %v4630
        %v4751 = vpack.c.b16 %v4639, %v4631
        %v4752 = vpack.c.b16 %v4640, %v4632
        %v4753 = vpack.c.b16 %v4641, %v4633
        %v4754 = vpack.c.b16 %v4642, %v4634
        %v4755 = vpack.c.b16 %v4651, %v4643
        %v4756 = vpack.c.b16 %v4652, %v4644
        %v4757 = vpack.c.b16 %v4653, %v4645
        %v4758 = vpack.c.b16 %v4654, %v4646
        %v4759 = vpack.c.b16 %v4655, %v4647
        %v4760 = vpack.c.b16 %v4656, %v4648
        %v4761 = vpack.c.b16 %v4657, %v4649
        %v4762 = vpack.c.b16 %v4658, %v4650
        %v4763 = vpack.c.b16 %v4667, %v4659
        %v4764 = vpack.c.b16 %v4668, %v4660
        %v4765 = vpack.c.b16 %v4669, %v4661
        %v4766 = vpack.c.b16 %v4670, %v4662
        %v4767 = vpack.c.b16 %v4671, %v4663
        %v4768 = vpack.c.b16 %v4672, %v4664
        %v4769 = vpack.c.b16 %v4673, %v4665
        %v4770 = vpack.c.b16 %v4674, %v4666
        %v4771 = vpack.c.b16 %v4683, %v4675
        %v4772 = vpack.c.b16 %v4684, %v4676
        %v4773 = vpack.c.b16 %v4685, %v4677
        %v4774 = vpack.c.b16 %v4686, %v4678
        %v4775 = vpack.c.b16 %v4687, %v4679
        %v4776 = vpack.c.b16 %v4688, %v4680
        %v4777 = vpack.c.b16 %v4689, %v4681
        %v4778 = vpack.c.b16 %v4690, %v4682
        %v4779 = vpack.c.b16 %v4699, %v4691
        %v4780 = vpack.c.b16 %v4700, %v4692
        %v4781 = vpack.c.b16 %v4701, %v4693
        %v4782 = vpack.c.b16 %v4702, %v4694
        %v4783 = vpack.c.b16 %v4703, %v4695
        %v4784 = vpack.c.b16 %v4704, %v4696
        %v4785 = vpack.c.b16 %v4705, %v4697
        %v4786 = vpack.c.b16 %v4706, %v4698
        %v4787 = vpack.c.b16 %v4715, %v4707
        %v4788 = vpack.c.b16 %v4716, %v4708
        %v4789 = vpack.c.b16 %v4717, %v4709
        %v4790 = vpack.c.b16 %v4718, %v4710
        %v4791 = vpack.c.b16 %v4719, %v4711
        %v4792 = vpack.c.b16 %v4720, %v4712
        %v4793 = vpack.c.b16 %v4721, %v4713
        %v4794 = vpack.c.b16 %v4722, %v4714
        %v4795 = vpack.c.b16 %v4731, %v4723
        %v4796 = vpack.c.b16 %v4732, %v4724
        %v4797 = vpack.c.b16 %v4733, %v4725
        %v4798 = vpack.c.b16 %v4734, %v4726
        %v4799 = vpack.c.b16 %v4735, %v4727
        %v4800 = vpack.c.b16 %v4736, %v4728
        %v4801 = vpack.c.b16 %v4737, %v4729
        %v4802 = vpack.c.b16 %v4738, %v4730
        %4867 = vmatprep.subr.bf16.mxu0 %v4740
        %4868 = vmatpush1.bf16.msra.mxu0 %v4739
        %4869 = vmatprep.subr.bf16.mxu0 %v4748
        %4870 = vmatpush1.bf16.msra.mxu0 %v4747
        %4871 = vmatprep.subr.bf16.mxu0 %v4756
        %4872 = vmatpush1.bf16.msra.mxu0 %v4755
        %4873 = vmatprep.subr.bf16.mxu0 %v4764
        %4874 = vmatpush1.bf16.msra.mxu0 %v4763
        %4875 = vmatprep.subr.bf16.mxu0 %v4772
        %4876 = vmatpush1.bf16.msra.mxu0 %v4771
        %4877 = vmatprep.subr.bf16.mxu0 %v4780
        %4878 = vmatpush1.bf16.msra.mxu0 %v4779
        %4879 = vmatprep.subr.bf16.mxu0 %v4788
        %4880 = vmatpush1.bf16.msra.mxu0 %v4787
        %4881 = vmatprep.subr.bf16.mxu0 %v4796
        %4882 = vmatpush1.bf16.msra.mxu0 %v4795
        %4883 = vmatprep.subr.bf16.mxu0 0
        %4884 = vmatpush1.bf16.msra.mxu0 0
        %4885 = vmatprep.subr.bf16.mxu0 0
        %4886 = vmatpush1.bf16.msra.mxu0 0
        %4887 = vmatprep.subr.bf16.mxu0 0
        %4888 = vmatpush1.bf16.msra.mxu0 0
        %4889 = vmatprep.subr.bf16.mxu0 0
        %4890 = vmatpush1.bf16.msra.mxu0 0
        %4891 = vmatprep.subr.bf16.mxu0 0
        %4892 = vmatpush1.bf16.msra.mxu0 0
        %4893 = vmatprep.subr.bf16.mxu0 0
        %4894 = vmatpush1.bf16.msra.mxu0 0
        %4895 = vmatprep.subr.bf16.mxu0 0
        %4896 = vmatpush1.bf16.msra.mxu0 0
        %4897 = vmatprep.subr.bf16.mxu0 0
        %4898 = vmatpush1.bf16.msra.mxu0 0
        %4899 = vmatprep.mubr.bf16.mxu0 0
        %4900 = vmatmul.mubr.bf16.gmra.mrb[0].mxu0 %v334
        %v4901 = vpop.f32.mrb[0].mxu0
        %v4902 = vadd.f32 0.0, %v4901
        %v4903 = vpop.f32.mrb[0].mxu0
        %v4904 = vadd.f32 0.0, %v4903
        %v4905 = vpop.f32.mrb[0].mxu0
        %v4906 = vadd.f32 0.0, %v4905
        %v4907 = vpop.f32.mrb[0].mxu0
        %v4908 = vadd.f32 0.0, %v4907
        %4909 = vmatprep.mubr.bf16.mxu0 0
        %4910 = vmatmul.mubr.bf16.gmra.mrb[0].mxu0 %v335
        %v4911 = vpop.f32.mrb[0].mxu0
        %v4912 = vadd.f32 0.0, %v4911
        %v4913 = vpop.f32.mrb[0].mxu0
        %v4914 = vadd.f32 0.0, %v4913
        %v4915 = vpop.f32.mrb[0].mxu0
        %v4916 = vadd.f32 0.0, %v4915
        %v4917 = vpop.f32.mrb[0].mxu0
        %v4918 = vadd.f32 0.0, %v4917
        %4919 = vmatprep.mubr.bf16.mxu0 0
        %4920 = vmatmul.mubr.bf16.gmra.mrb[0].mxu0 %v336
        %v4921 = vpop.f32.mrb[0].mxu0
        %v4922 = vadd.f32 0.0, %v4921
        %v4923 = vpop.f32.mrb[0].mxu0
        %v4924 = vadd.f32 0.0, %v4923
        %v4925 = vpop.f32.mrb[0].mxu0
        %v4926 = vadd.f32 0.0, %v4925
        %v4927 = vpop.f32.mrb[0].mxu0
        %v4928 = vadd.f32 0.0, %v4927
        %4929 = vmatprep.mubr.bf16.mxu0 0
        %4930 = vmatmul.mubr.bf16.gmra.mrb[0].mxu0 %v337
        %v4931 = vpop.f32.mrb[0].mxu0
        %v4932 = vadd.f32 0.0, %v4931
        %v4933 = vpop.f32.mrb[0].mxu0
        %v4934 = vadd.f32 0.0, %v4933
        %v4935 = vpop.f32.mrb[0].mxu0
        %v4936 = vadd.f32 0.0, %v4935
        %v4937 = vpop.f32.mrb[0].mxu0
        %v4938 = vadd.f32 0.0, %v4937
        %4939 = vdwg.mxu0
        %4940 = vmatprep.subr.bf16.mxu0 %v4742
        %4941 = vmatpush1.bf16.msra.mxu0 %v4741
        %4942 = vmatprep.subr.bf16.mxu0 %v4750
        %4943 = vmatpush1.bf16.msra.mxu0 %v4749
        %4944 = vmatprep.subr.bf16.mxu0 %v4758
        %4945 = vmatpush1.bf16.msra.mxu0 %v4757
        %4946 = vmatprep.subr.bf16.mxu0 %v4766
        %4947 = vmatpush1.bf16.msra.mxu0 %v4765
        %4948 = vmatprep.subr.bf16.mxu0 %v4774
        %4949 = vmatpush1.bf16.msra.mxu0 %v4773
        %4950 = vmatprep.subr.bf16.mxu0 %v4782
        %4951 = vmatpush1.bf16.msra.mxu0 %v4781
        %4952 = vmatprep.subr.bf16.mxu0 %v4790
        %4953 = vmatpush1.bf16.msra.mxu0 %v4789
        %4954 = vmatprep.subr.bf16.mxu0 %v4798
        %4955 = vmatpush1.bf16.msra.mxu0 %v4797
        %4956 = vmatprep.subr.bf16.mxu0 0
        %4957 = vmatpush1.bf16.msra.mxu0 0
        %4958 = vmatprep.subr.bf16.mxu0 0
        %4959 = vmatpush1.bf16.msra.mxu0 0
        %4960 = vmatprep.subr.bf16.mxu0 0
        %4961 = vmatpush1.bf16.msra.mxu0 0
        %4962 = vmatprep.subr.bf16.mxu0 0
        %4963 = vmatpush1.bf16.msra.mxu0 0
        %4964 = vmatprep.subr.bf16.mxu0 0
        %4965 = vmatpush1.bf16.msra.mxu0 0
        %4966 = vmatprep.subr.bf16.mxu0 0
        %4967 = vmatpush1.bf16.msra.mxu0 0
        %4968 = vmatprep.subr.bf16.mxu0 0
        %4969 = vmatpush1.bf16.msra.mxu0 0
        %4970 = vmatprep.subr.bf16.mxu0 0
        %4971 = vmatpush1.bf16.msra.mxu0 0
        %4972 = vmatprep.mubr.bf16.mxu0 0
        %4973 = vmatmul.mubr.bf16.gmra.mrb[0].mxu0 %v334
        %v4974 = vpop.f32.mrb[0].mxu0
        %v4975 = vadd.f32 0.0, %v4974
        %v4976 = vpop.f32.mrb[0].mxu0
        %v4977 = vadd.f32 0.0, %v4976
        %v4978 = vpop.f32.mrb[0].mxu0
        %v4979 = vadd.f32 0.0, %v4978
        %v4980 = vpop.f32.mrb[0].mxu0
        %v4981 = vadd.f32 0.0, %v4980
        %4982 = vmatprep.mubr.bf16.mxu0 0
        %4983 = vmatmul.mubr.bf16.gmra.mrb[0].mxu0 %v335
        %v4984 = vpop.f32.mrb[0].mxu0
        %v4985 = vadd.f32 0.0, %v4984
        %v4986 = vpop.f32.mrb[0].mxu0
        %v4987 = vadd.f32 0.0, %v4986
        %v4988 = vpop.f32.mrb[0].mxu0
        %v4989 = vadd.f32 0.0, %v4988
        %v4990 = vpop.f32.mrb[0].mxu0
        %v4991 = vadd.f32 0.0, %v4990
        %4992 = vmatprep.mubr.bf16.mxu0 0
        %4993 = vmatmul.mubr.bf16.gmra.mrb[0].mxu0 %v336
        %v4994 = vpop.f32.mrb[0].mxu0
        %v4995 = vadd.f32 0.0, %v4994
        %v4996 = vpop.f32.mrb[0].mxu0
        %v4997 = vadd.f32 0.0, %v4996
        %v4998 = vpop.f32.mrb[0].mxu0
        %v4999 = vadd.f32 0.0, %v4998
        %v5000 = vpop.f32.mrb[0].mxu0
        %v5001 = vadd.f32 0.0, %v5000
        %5002 = vmatprep.mubr.bf16.mxu0 0
        %5003 = vmatmul.mubr.bf16.gmra.mrb[0].mxu0 %v337
        %v5004 = vpop.f32.mrb[0].mxu0
        %v5005 = vadd.f32 0.0, %v5004
        %v5006 = vpop.f32.mrb[0].mxu0
        %v5007 = vadd.f32 0.0, %v5006
        %v5008 = vpop.f32.mrb[0].mxu0
        %v5009 = vadd.f32 0.0, %v5008
        %v5010 = vpop.f32.mrb[0].mxu0
        %v5011 = vadd.f32 0.0, %v5010
        %5012 = vdwg.mxu0
        %5013 = vmatprep.subr.bf16.mxu0 %v4744
        %5014 = vmatpush1.bf16.msra.mxu0 %v4743
        %5015 = vmatprep.subr.bf16.mxu0 %v4752
        %5016 = vmatpush1.bf16.msra.mxu0 %v4751
        %5017 = vmatprep.subr.bf16.mxu0 %v4760
        %5018 = vmatpush1.bf16.msra.mxu0 %v4759
        %5019 = vmatprep.subr.bf16.mxu0 %v4768
        %5020 = vmatpush1.bf16.msra.mxu0 %v4767
        %5021 = vmatprep.subr.bf16.mxu0 %v4776
        %5022 = vmatpush1.bf16.msra.mxu0 %v4775
        %5023 = vmatprep.subr.bf16.mxu0 %v4784
        %5024 = vmatpush1.bf16.msra.mxu0 %v4783
        %5025 = vmatprep.subr.bf16.mxu0 %v4792
        %5026 = vmatpush1.bf16.msra.mxu0 %v4791
        %5027 = vmatprep.subr.bf16.mxu0 %v4800
        %5028 = vmatpush1.bf16.msra.mxu0 %v4799
        %5029 = vmatprep.subr.bf16.mxu0 0
        %5030 = vmatpush1.bf16.msra.mxu0 0
        %5031 = vmatprep.subr.bf16.mxu0 0
        %5032 = vmatpush1.bf16.msra.mxu0 0
        %5033 = vmatprep.subr.bf16.mxu0 0
        %5034 = vmatpush1.bf16.msra.mxu0 0
        %5035 = vmatprep.subr.bf16.mxu0 0
        %5036 = vmatpush1.bf16.msra.mxu0 0
        %5037 = vmatprep.subr.bf16.mxu0 0
        %5038 = vmatpush1.bf16.msra.mxu0 0
        %5039 = vmatprep.subr.bf16.mxu0 0
        %5040 = vmatpush1.bf16.msra.mxu0 0
        %5041 = vmatprep.subr.bf16.mxu0 0
        %5042 = vmatpush1.bf16.msra.mxu0 0
        %5043 = vmatprep.subr.bf16.mxu0 0
        %5044 = vmatpush1.bf16.msra.mxu0 0
        %5045 = vmatprep.mubr.bf16.mxu0 0
        %5046 = vmatmul.mubr.bf16.gmra.mrb[0].mxu0 %v334
        %v5047 = vpop.f32.mrb[0].mxu0
        %v5048 = vadd.f32 0.0, %v5047
        %v5049 = vpop.f32.mrb[0].mxu0
        %v5050 = vadd.f32 0.0, %v5049
        %v5051 = vpop.f32.mrb[0].mxu0
        %v5052 = vadd.f32 0.0, %v5051
        %v5053 = vpop.f32.mrb[0].mxu0
        %v5054 = vadd.f32 0.0, %v5053
        %5055 = vmatprep.mubr.bf16.mxu0 0
        %5056 = vmatmul.mubr.bf16.gmra.mrb[0].mxu0 %v335
        %v5057 = vpop.f32.mrb[0].mxu0
        %v5058 = vadd.f32 0.0, %v5057
        %v5059 = vpop.f32.mrb[0].mxu0
        %v5060 = vadd.f32 0.0, %v5059
        %v5061 = vpop.f32.mrb[0].mxu0
        %v5062 = vadd.f32 0.0, %v5061
        %v5063 = vpop.f32.mrb[0].mxu0
        %v5064 = vadd.f32 0.0, %v5063
        %5065 = vmatprep.mubr.bf16.mxu0 0
        %5066 = vmatmul.mubr.bf16.gmra.mrb[0].mxu0 %v336
        %v5067 = vpop.f32.mrb[0].mxu0
        %v5068 = vadd.f32 0.0, %v5067
        %v5069 = vpop.f32.mrb[0].mxu0
        %v5070 = vadd.f32 0.0, %v5069
        %v5071 = vpop.f32.mrb[0].mxu0
        %v5072 = vadd.f32 0.0, %v5071
        %v5073 = vpop.f32.mrb[0].mxu0
        %v5074 = vadd.f32 0.0, %v5073
        %5075 = vmatprep.mubr.bf16.mxu0 0
        %5076 = vmatmul.mubr.bf16.gmra.mrb[0].mxu0 %v337
        %v5077 = vpop.f32.mrb[0].mxu0
        %v5078 = vadd.f32 0.0, %v5077
        %v5079 = vpop.f32.mrb[0].mxu0
        %v5080 = vadd.f32 0.0, %v5079
        %v5081 = vpop.f32.mrb[0].mxu0
        %v5082 = vadd.f32 0.0, %v5081
        %v5083 = vpop.f32.mrb[0].mxu0
        %v5084 = vadd.f32 0.0, %v5083
        %5085 = vdwg.mxu0
        %5086 = vmatprep.subr.bf16.mxu0 %v4746
        %5087 = vmatpush1.bf16.msra.mxu0 %v4745
        %5088 = vmatprep.subr.bf16.mxu0 %v4754
        %5089 = vmatpush1.bf16.msra.mxu0 %v4753
        %5090 = vmatprep.subr.bf16.mxu0 %v4762
        %5091 = vmatpush1.bf16.msra.mxu0 %v4761
        %5092 = vmatprep.subr.bf16.mxu0 %v4770
        %5093 = vmatpush1.bf16.msra.mxu0 %v4769
        %5094 = vmatprep.subr.bf16.mxu0 %v4778
        %5095 = vmatpush1.bf16.msra.mxu0 %v4777
        %5096 = vmatprep.subr.bf16.mxu0 %v4786
        %5097 = vmatpush1.bf16.msra.mxu0 %v4785
        %5098 = vmatprep.subr.bf16.mxu0 %v4794
        %5099 = vmatpush1.bf16.msra.mxu0 %v4793
        %5100 = vmatprep.subr.bf16.mxu0 %v4802
        %5101 = vmatpush1.bf16.msra.mxu0 %v4801
        %5102 = vmatprep.subr.bf16.mxu0 0
        %5103 = vmatpush1.bf16.msra.mxu0 0
        %5104 = vmatprep.subr.bf16.mxu0 0
        %5105 = vmatpush1.bf16.msra.mxu0 0
        %5106 = vmatprep.subr.bf16.mxu0 0
        %5107 = vmatpush1.bf16.msra.mxu0 0
        %5108 = vmatprep.subr.bf16.mxu0 0
        %5109 = vmatpush1.bf16.msra.mxu0 0
        %5110 = vmatprep.subr.bf16.mxu0 0
        %5111 = vmatpush1.bf16.msra.mxu0 0
        %5112 = vmatprep.subr.bf16.mxu0 0
        %5113 = vmatpush1.bf16.msra.mxu0 0
        %5114 = vmatprep.subr.bf16.mxu0 0
        %5115 = vmatpush1.bf16.msra.mxu0 0
        %5116 = vmatprep.subr.bf16.mxu0 0
        %5117 = vmatpush1.bf16.msra.mxu0 0
        %5118 = vmatprep.mubr.bf16.mxu0 0
        %5119 = vmatmul.mubr.bf16.gmra.mrb[0].mxu0 %v334
        %v5120 = vpop.f32.mrb[0].mxu0
        %v5121 = vadd.f32 0.0, %v5120
        %v5122 = vpop.f32.mrb[0].mxu0
        %v5123 = vadd.f32 0.0, %v5122
        %v5124 = vpop.f32.mrb[0].mxu0
        %v5125 = vadd.f32 0.0, %v5124
        %v5126 = vpop.f32.mrb[0].mxu0
        %v5127 = vadd.f32 0.0, %v5126
        %5128 = vmatprep.mubr.bf16.mxu0 0
        %5129 = vmatmul.mubr.bf16.gmra.mrb[0].mxu0 %v335
        %v5130 = vpop.f32.mrb[0].mxu0
        %v5131 = vadd.f32 0.0, %v5130
        %v5132 = vpop.f32.mrb[0].mxu0
        %v5133 = vadd.f32 0.0, %v5132
        %v5134 = vpop.f32.mrb[0].mxu0
        %v5135 = vadd.f32 0.0, %v5134
        %v5136 = vpop.f32.mrb[0].mxu0
        %v5137 = vadd.f32 0.0, %v5136
        %5138 = vmatprep.mubr.bf16.mxu0 0
        %5139 = vmatmul.mubr.bf16.gmra.mrb[0].mxu0 %v336
        %v5140 = vpop.f32.mrb[0].mxu0
        %v5141 = vadd.f32 0.0, %v5140
        %v5142 = vpop.f32.mrb[0].mxu0
        %v5143 = vadd.f32 0.0, %v5142
        %v5144 = vpop.f32.mrb[0].mxu0
        %v5145 = vadd.f32 0.0, %v5144
        %v5146 = vpop.f32.mrb[0].mxu0
        %v5147 = vadd.f32 0.0, %v5146
        %5148 = vmatprep.mubr.bf16.mxu0 0
        %5149 = vmatmul.mubr.bf16.gmra.mrb[0].mxu0 %v337
        %v5150 = vpop.f32.mrb[0].mxu0
        %v5151 = vadd.f32 0.0, %v5150
        %v5152 = vpop.f32.mrb[0].mxu0
        %v5153 = vadd.f32 0.0, %v5152
        %v5154 = vpop.f32.mrb[0].mxu0
        %v5155 = vadd.f32 0.0, %v5154
        %v5156 = vpop.f32.mrb[0].mxu0
        %v5157 = vadd.f32 0.0, %v5156
        %5158 = vdwg.mxu0
        %v5159 = vmax.f32 %v4902, %v4906
        %v5160 = vmax.f32 %v5159, %v4912
        %v5161 = vmax.f32 %v5160, %v4916
        %v5162 = vmax.f32 %v5161, %v4922
        %v5163 = vmax.f32 %v5162, %v4926
        %v5164 = vmax.f32 %v5163, %v4932
        %v5165 = vmax.f32 %v5164, %v4936
        %v5166 = vrot.slane %v5165, 4
        %v5167 = vmax.f32 %v5165, %v5166
        %v5168 = vrot.slane %v5167, 2
        %v5169 = vmax.f32 %v5167, %v5168
        %v5170 = vrot.slane %v5169, 1
        %v5171 = vmax.f32 %v5169, %v5170
        %v5172 = vmax.f32 %v4904, %v4908
        %v5173 = vmax.f32 %v5172, %v4914
        %v5174 = vmax.f32 %v5173, %v4918
        %v5175 = vmax.f32 %v5174, %v4924
        %v5176 = vmax.f32 %v5175, %v4928
        %v5177 = vmax.f32 %v5176, %v4934
        %v5178 = vmax.f32 %v5177, %v4938
        %v5179 = vrot.slane %v5178, 4
        %v5180 = vmax.f32 %v5178, %v5179
        %v5181 = vrot.slane %v5180, 2
        %v5182 = vmax.f32 %v5180, %v5181
        %v5183 = vrot.slane %v5182, 1
        %v5184 = vmax.f32 %v5182, %v5183
        %v5185 = vmax.f32 %v4975, %v4979
        %v5186 = vmax.f32 %v5185, %v4985
        %v5187 = vmax.f32 %v5186, %v4989
        %v5188 = vmax.f32 %v5187, %v4995
        %v5189 = vmax.f32 %v5188, %v4999
        %v5190 = vmax.f32 %v5189, %v5005
        %v5191 = vmax.f32 %v5190, %v5009
        %v5192 = vrot.slane %v5191, 4
        %v5193 = vmax.f32 %v5191, %v5192
        %v5194 = vrot.slane %v5193, 2
        %v5195 = vmax.f32 %v5193, %v5194
        %v5196 = vrot.slane %v5195, 1
        %v5197 = vmax.f32 %v5195, %v5196
        %v5198 = vmax.f32 %v4977, %v4981
        %v5199 = vmax.f32 %v5198, %v4987
        %v5200 = vmax.f32 %v5199, %v4991
        %v5201 = vmax.f32 %v5200, %v4997
        %v5202 = vmax.f32 %v5201, %v5001
        %v5203 = vmax.f32 %v5202, %v5007
        %v5204 = vmax.f32 %v5203, %v5011
        %v5205 = vrot.slane %v5204, 4
        %v5206 = vmax.f32 %v5204, %v5205
        %v5207 = vrot.slane %v5206, 2
        %v5208 = vmax.f32 %v5206, %v5207
        %v5209 = vrot.slane %v5208, 1
        %v5210 = vmax.f32 %v5208, %v5209
        %v5211 = vmax.f32 %v5048, %v5052
        %v5212 = vmax.f32 %v5211, %v5058
        %v5213 = vmax.f32 %v5212, %v5062
        %v5214 = vmax.f32 %v5213, %v5068
        %v5215 = vmax.f32 %v5214, %v5072
        %v5216 = vmax.f32 %v5215, %v5078
        %v5217 = vmax.f32 %v5216, %v5082
        %v5218 = vrot.slane %v5217, 4
        %v5219 = vmax.f32 %v5217, %v5218
        %v5220 = vrot.slane %v5219, 2
        %v5221 = vmax.f32 %v5219, %v5220
        %v5222 = vrot.slane %v5221, 1
        %v5223 = vmax.f32 %v5221, %v5222
        %v5224 = vmax.f32 %v5050, %v5054
        %v5225 = vmax.f32 %v5224, %v5060
        %v5226 = vmax.f32 %v5225, %v5064
        %v5227 = vmax.f32 %v5226, %v5070
        %v5228 = vmax.f32 %v5227, %v5074
        %v5229 = vmax.f32 %v5228, %v5080
        %v5230 = vmax.f32 %v5229, %v5084
        %v5231 = vrot.slane %v5230, 4
        %v5232 = vmax.f32 %v5230, %v5231
        %v5233 = vrot.slane %v5232, 2
        %v5234 = vmax.f32 %v5232, %v5233
        %v5235 = vrot.slane %v5234, 1
        %v5236 = vmax.f32 %v5234, %v5235
        %v5237 = vmax.f32 %v5121, %v5125
        %v5238 = vmax.f32 %v5237, %v5131
        %v5239 = vmax.f32 %v5238, %v5135
        %v5240 = vmax.f32 %v5239, %v5141
        %v5241 = vmax.f32 %v5240, %v5145
        %v5242 = vmax.f32 %v5241, %v5151
        %v5243 = vmax.f32 %v5242, %v5155
        %v5244 = vrot.slane %v5243, 4
        %v5245 = vmax.f32 %v5243, %v5244
        %v5246 = vrot.slane %v5245, 2
        %v5247 = vmax.f32 %v5245, %v5246
        %v5248 = vrot.slane %v5247, 1
        %v5249 = vmax.f32 %v5247, %v5248
        %v5250 = vmax.f32 %v5123, %v5127
        %v5251 = vmax.f32 %v5250, %v5133
        %v5252 = vmax.f32 %v5251, %v5137
        %v5253 = vmax.f32 %v5252, %v5143
        %v5254 = vmax.f32 %v5253, %v5147
        %v5255 = vmax.f32 %v5254, %v5153
        %v5256 = vmax.f32 %v5255, %v5157
        %v5257 = vrot.slane %v5256, 4
        %v5258 = vmax.f32 %v5256, %v5257
        %v5259 = vrot.slane %v5258, 2
        %v5260 = vmax.f32 %v5258, %v5259
        %v5261 = vrot.slane %v5260, 1
        %v5262 = vmax.f32 %v5260, %v5261
        %v5263 = vld [vmem:[%s231 + $0x28] sm:$0xff]
        %v5272 = vcombine.low %v5171, %v5184
        %v5273 = vcombine.low %v5197, %v5210
        %v5274 = vcombine.low %v5223, %v5236
        %v5275 = vcombine.low %v5249, %v5262
        %v5277 = vunpack.c.l.s4 1966171168
        %v5278 = vunpack.c.0.s8 %v5277
        %v5279 = vlaneseq
        %v5280 = vshrl.u32 %v5279, 7
        %v5281 = vsub.s32 %v5278, %v5280
        %v5282 = vrot.slane %v5272, %v5281
        %v5284 = vunpack.c.l.s4 1966171168
        %v5285 = vunpack.c.0.s8 %v5284
        %v5286 = vlaneseq
        %v5287 = vshrl.u32 %v5286, 7
        %v5288 = vsub.s32 %v5285, %v5287
        %v5289 = vrot.slane %v5273, %v5288
        %v5291 = vunpack.c.l.s4 1966171168
        %v5292 = vunpack.c.0.s8 %v5291
        %v5293 = vlaneseq
        %v5294 = vshrl.u32 %v5293, 7
        %v5295 = vsub.s32 %v5292, %v5294
        %v5296 = vrot.slane %v5274, %v5295
        %v5298 = vunpack.c.l.s4 1966171168
        %v5299 = vunpack.c.0.s8 %v5298
        %v5300 = vlaneseq
        %v5301 = vshrl.u32 %v5300, 7
        %v5302 = vsub.s32 %v5299, %v5301
        %v5303 = vrot.slane %v5275, %v5302
        %v5304 = vcombine.low %v5282, %v5289
        %v5305 = vcombine.low %v5296, %v5303
        %v5307 = vunpack.c.l.s4 1966171168
        %v5308 = vunpack.c.0.s8 %v5307
        %v5309 = vlaneseq
        %v5310 = vshrl.u32 %v5309, 7
        %v5311 = vsub.s32 %v5308, %v5310
        %v5312 = vrot.slane %v5304, %v5311
        %v5314 = vunpack.c.l.s4 1966171168
        %v5315 = vunpack.c.0.s8 %v5314
        %v5316 = vlaneseq
        %v5317 = vshrl.u32 %v5316, 7
        %v5318 = vsub.s32 %v5315, %v5317
        %v5319 = vrot.slane %v5305, %v5318
        %v5320 = vcombine.low %v5312, %v5319
        %v5322 = vmax.f32 %v5263, %v5320
        %5323 = vst [vmem:[%s231 + $0x28] sm:$0xff] %v5322
        %v5324 = vld [vmem:[#allocation5 + $0xc0] sm:$0xff]
        %v5325 = vld [vmem:[#allocation5 + $0xc8] sm:$0xff]
        %v5326 = vld [vmem:[#allocation5 + $0xd0] sm:$0xff]
        %v5327 = vld [vmem:[#allocation5 + $0xd8] sm:$0xff]
        %v5328 = vld [vmem:[#allocation5 + $0x1c0] sm:$0xff]
        %v5329 = vld [vmem:[#allocation5 + $0x1c8] sm:$0xff]
        %v5330 = vld [vmem:[#allocation5 + $0x1d0] sm:$0xff]
        %v5331 = vld [vmem:[#allocation5 + $0x1d8] sm:$0xff]
        %v5332 = vld [vmem:[#allocation5 + $0x2c0] sm:$0xff]
        %v5333 = vld [vmem:[#allocation5 + $0x2c8] sm:$0xff]
        %v5334 = vld [vmem:[#allocation5 + $0x2d0] sm:$0xff]
        %v5335 = vld [vmem:[#allocation5 + $0x2d8] sm:$0xff]
        %v5336 = vld [vmem:[#allocation5 + $0x3c0] sm:$0xff]
        %v5337 = vld [vmem:[#allocation5 + $0x3c8] sm:$0xff]
        %v5338 = vld [vmem:[#allocation5 + $0x3d0] sm:$0xff]
        %v5339 = vld [vmem:[#allocation5 + $0x3d8] sm:$0xff]
        %v5340 = vld [vmem:[#allocation5 + $0x4c0] sm:$0xff]
        %v5341 = vld [vmem:[#allocation5 + $0x4c8] sm:$0xff]
        %v5342 = vld [vmem:[#allocation5 + $0x4d0] sm:$0xff]
        %v5343 = vld [vmem:[#allocation5 + $0x4d8] sm:$0xff]
        %v5344 = vld [vmem:[#allocation5 + $0x5c0] sm:$0xff]
        %v5345 = vld [vmem:[#allocation5 + $0x5c8] sm:$0xff]
        %v5346 = vld [vmem:[#allocation5 + $0x5d0] sm:$0xff]
        %v5347 = vld [vmem:[#allocation5 + $0x5d8] sm:$0xff]
        %v5348 = vld [vmem:[#allocation5 + $0x6c0] sm:$0xff]
        %v5349 = vld [vmem:[#allocation5 + $0x6c8] sm:$0xff]
        %v5350 = vld [vmem:[#allocation5 + $0x6d0] sm:$0xff]
        %v5351 = vld [vmem:[#allocation5 + $0x6d8] sm:$0xff]
        %v5352 = vld [vmem:[#allocation5 + $0x7c0] sm:$0xff]
        %v5353 = vld [vmem:[#allocation5 + $0x7c8] sm:$0xff]
        %v5354 = vld [vmem:[#allocation5 + $0x7d0] sm:$0xff]
        %v5355 = vld [vmem:[#allocation5 + $0x7d8] sm:$0xff]
        %v5356 = vld [vmem:[#allocation5 + $0x8c0] sm:$0xff]
        %v5357 = vld [vmem:[#allocation5 + $0x8c8] sm:$0xff]
        %v5358 = vld [vmem:[#allocation5 + $0x8d0] sm:$0xff]
        %v5359 = vld [vmem:[#allocation5 + $0x8d8] sm:$0xff]
        %v5360 = vld [vmem:[#allocation5 + $0x9c0] sm:$0xff]
        %v5361 = vld [vmem:[#allocation5 + $0x9c8] sm:$0xff]
        %v5362 = vld [vmem:[#allocation5 + $0x9d0] sm:$0xff]
        %v5363 = vld [vmem:[#allocation5 + $0x9d8] sm:$0xff]
        %v5364 = vld [vmem:[#allocation5 + $0xac0] sm:$0xff]
        %v5365 = vld [vmem:[#allocation5 + $0xac8] sm:$0xff]
        %v5366 = vld [vmem:[#allocation5 + $0xad0] sm:$0xff]
        %v5367 = vld [vmem:[#allocation5 + $0xad8] sm:$0xff]
        %v5368 = vld [vmem:[#allocation5 + $0xbc0] sm:$0xff]
        %v5369 = vld [vmem:[#allocation5 + $0xbc8] sm:$0xff]
        %v5370 = vld [vmem:[#allocation5 + $0xbd0] sm:$0xff]
        %v5371 = vld [vmem:[#allocation5 + $0xbd8] sm:$0xff]
        %v5372 = vld [vmem:[#allocation5 + $0xcc0] sm:$0xff]
        %v5373 = vld [vmem:[#allocation5 + $0xcc8] sm:$0xff]
        %v5374 = vld [vmem:[#allocation5 + $0xcd0] sm:$0xff]
        %v5375 = vld [vmem:[#allocation5 + $0xcd8] sm:$0xff]
        %v5376 = vld [vmem:[#allocation5 + $0xdc0] sm:$0xff]
        %v5377 = vld [vmem:[#allocation5 + $0xdc8] sm:$0xff]
        %v5378 = vld [vmem:[#allocation5 + $0xdd0] sm:$0xff]
        %v5379 = vld [vmem:[#allocation5 + $0xdd8] sm:$0xff]
        %v5380 = vld [vmem:[#allocation5 + $0xec0] sm:$0xff]
        %v5381 = vld [vmem:[#allocation5 + $0xec8] sm:$0xff]
        %v5382 = vld [vmem:[#allocation5 + $0xed0] sm:$0xff]
        %v5383 = vld [vmem:[#allocation5 + $0xed8] sm:$0xff]
        %v5384 = vld [vmem:[#allocation5 + $0xfc0] sm:$0xff]
        %v5385 = vld [vmem:[#allocation5 + $0xfc8] sm:$0xff]
        %v5386 = vld [vmem:[#allocation5 + $0xfd0] sm:$0xff]
        %v5387 = vld [vmem:[#allocation5 + $0xfd8] sm:$0xff]
        %v5452 = vunpack.c.l.b16 %v5324
        %v5453 = vunpack.c.h.b16 %v5324
        %v5454 = vunpack.c.l.b16 %v5325
        %v5455 = vunpack.c.h.b16 %v5325
        %v5456 = vunpack.c.l.b16 %v5326
        %v5457 = vunpack.c.h.b16 %v5326
        %v5458 = vunpack.c.l.b16 %v5327
        %v5459 = vunpack.c.h.b16 %v5327
        %v5460 = vunpack.c.l.b16 %v5328
        %v5461 = vunpack.c.h.b16 %v5328
        %v5462 = vunpack.c.l.b16 %v5329
        %v5463 = vunpack.c.h.b16 %v5329
        %v5464 = vunpack.c.l.b16 %v5330
        %v5465 = vunpack.c.h.b16 %v5330
        %v5466 = vunpack.c.l.b16 %v5331
        %v5467 = vunpack.c.h.b16 %v5331
        %v5468 = vunpack.c.l.b16 %v5332
        %v5469 = vunpack.c.h.b16 %v5332
        %v5470 = vunpack.c.l.b16 %v5333
        %v5471 = vunpack.c.h.b16 %v5333
        %v5472 = vunpack.c.l.b16 %v5334
        %v5473 = vunpack.c.h.b16 %v5334
        %v5474 = vunpack.c.l.b16 %v5335
        %v5475 = vunpack.c.h.b16 %v5335
        %v5476 = vunpack.c.l.b16 %v5336
        %v5477 = vunpack.c.h.b16 %v5336
        %v5478 = vunpack.c.l.b16 %v5337
        %v5479 = vunpack.c.h.b16 %v5337
        %v5480 = vunpack.c.l.b16 %v5338
        %v5481 = vunpack.c.h.b16 %v5338
        %v5482 = vunpack.c.l.b16 %v5339
        %v5483 = vunpack.c.h.b16 %v5339
        %v5484 = vunpack.c.l.b16 %v5340
        %v5485 = vunpack.c.h.b16 %v5340
        %v5486 = vunpack.c.l.b16 %v5341
        %v5487 = vunpack.c.h.b16 %v5341
        %v5488 = vunpack.c.l.b16 %v5342
        %v5489 = vunpack.c.h.b16 %v5342
        %v5490 = vunpack.c.l.b16 %v5343
        %v5491 = vunpack.c.h.b16 %v5343
        %v5492 = vunpack.c.l.b16 %v5344
        %v5493 = vunpack.c.h.b16 %v5344
        %v5494 = vunpack.c.l.b16 %v5345
        %v5495 = vunpack.c.h.b16 %v5345
        %v5496 = vunpack.c.l.b16 %v5346
        %v5497 = vunpack.c.h.b16 %v5346
        %v5498 = vunpack.c.l.b16 %v5347
        %v5499 = vunpack.c.h.b16 %v5347
        %v5500 = vunpack.c.l.b16 %v5348
        %v5501 = vunpack.c.h.b16 %v5348
        %v5502 = vunpack.c.l.b16 %v5349
        %v5503 = vunpack.c.h.b16 %v5349
        %v5504 = vunpack.c.l.b16 %v5350
        %v5505 = vunpack.c.h.b16 %v5350
        %v5506 = vunpack.c.l.b16 %v5351
        %v5507 = vunpack.c.h.b16 %v5351
        %v5508 = vunpack.c.l.b16 %v5352
        %v5509 = vunpack.c.h.b16 %v5352
        %v5510 = vunpack.c.l.b16 %v5353
        %v5511 = vunpack.c.h.b16 %v5353
        %v5512 = vunpack.c.l.b16 %v5354
        %v5513 = vunpack.c.h.b16 %v5354
        %v5514 = vunpack.c.l.b16 %v5355
        %v5515 = vunpack.c.h.b16 %v5355
        %v5516 = vunpack.c.l.b16 %v5356
        %v5517 = vunpack.c.h.b16 %v5356
        %v5518 = vunpack.c.l.b16 %v5357
        %v5519 = vunpack.c.h.b16 %v5357
        %v5520 = vunpack.c.l.b16 %v5358
        %v5521 = vunpack.c.h.b16 %v5358
        %v5522 = vunpack.c.l.b16 %v5359
        %v5523 = vunpack.c.h.b16 %v5359
        %v5524 = vunpack.c.l.b16 %v5360
        %v5525 = vunpack.c.h.b16 %v5360
        %v5526 = vunpack.c.l.b16 %v5361
        %v5527 = vunpack.c.h.b16 %v5361
        %v5528 = vunpack.c.l.b16 %v5362
        %v5529 = vunpack.c.h.b16 %v5362
        %v5530 = vunpack.c.l.b16 %v5363
        %v5531 = vunpack.c.h.b16 %v5363
        %v5532 = vunpack.c.l.b16 %v5364
        %v5533 = vunpack.c.h.b16 %v5364
        %v5534 = vunpack.c.l.b16 %v5365
        %v5535 = vunpack.c.h.b16 %v5365
        %v5536 = vunpack.c.l.b16 %v5366
        %v5537 = vunpack.c.h.b16 %v5366
        %v5538 = vunpack.c.l.b16 %v5367
        %v5539 = vunpack.c.h.b16 %v5367
        %v5540 = vunpack.c.l.b16 %v5368
        %v5541 = vunpack.c.h.b16 %v5368
        %v5542 = vunpack.c.l.b16 %v5369
        %v5543 = vunpack.c.h.b16 %v5369
        %v5544 = vunpack.c.l.b16 %v5370
        %v5545 = vunpack.c.h.b16 %v5370
        %v5546 = vunpack.c.l.b16 %v5371
        %v5547 = vunpack.c.h.b16 %v5371
        %v5548 = vunpack.c.l.b16 %v5372
        %v5549 = vunpack.c.h.b16 %v5372
        %v5550 = vunpack.c.l.b16 %v5373
        %v5551 = vunpack.c.h.b16 %v5373
        %v5552 = vunpack.c.l.b16 %v5374
        %v5553 = vunpack.c.h.b16 %v5374
        %v5554 = vunpack.c.l.b16 %v5375
        %v5555 = vunpack.c.h.b16 %v5375
        %v5556 = vunpack.c.l.b16 %v5376
        %v5557 = vunpack.c.h.b16 %v5376
        %v5558 = vunpack.c.l.b16 %v5377
        %v5559 = vunpack.c.h.b16 %v5377
        %v5560 = vunpack.c.l.b16 %v5378
        %v5561 = vunpack.c.h.b16 %v5378
        %v5562 = vunpack.c.l.b16 %v5379
        %v5563 = vunpack.c.h.b16 %v5379
        %v5564 = vunpack.c.l.b16 %v5380
        %v5565 = vunpack.c.h.b16 %v5380
        %v5566 = vunpack.c.l.b16 %v5381
        %v5567 = vunpack.c.h.b16 %v5381
        %v5568 = vunpack.c.l.b16 %v5382
        %v5569 = vunpack.c.h.b16 %v5382
        %v5570 = vunpack.c.l.b16 %v5383
        %v5571 = vunpack.c.h.b16 %v5383
        %v5572 = vunpack.c.l.b16 %v5384
        %v5573 = vunpack.c.h.b16 %v5384
        %v5574 = vunpack.c.l.b16 %v5385
        %v5575 = vunpack.c.h.b16 %v5385
        %v5576 = vunpack.c.l.b16 %v5386
        %v5577 = vunpack.c.h.b16 %v5386
        %v5578 = vunpack.c.l.b16 %v5387
        %v5579 = vunpack.c.h.b16 %v5387
        %v5580 = vpack.c.b16 %v5460, %v5452
        %v5581 = vpack.c.b16 %v5461, %v5453
        %v5582 = vpack.c.b16 %v5462, %v5454
        %v5583 = vpack.c.b16 %v5463, %v5455
        %v5584 = vpack.c.b16 %v5464, %v5456
        %v5585 = vpack.c.b16 %v5465, %v5457
        %v5586 = vpack.c.b16 %v5466, %v5458
        %v5587 = vpack.c.b16 %v5467, %v5459
        %v5588 = vpack.c.b16 %v5476, %v5468
        %v5589 = vpack.c.b16 %v5477, %v5469
        %v5590 = vpack.c.b16 %v5478, %v5470
        %v5591 = vpack.c.b16 %v5479, %v5471
        %v5592 = vpack.c.b16 %v5480, %v5472
        %v5593 = vpack.c.b16 %v5481, %v5473
        %v5594 = vpack.c.b16 %v5482, %v5474
        %v5595 = vpack.c.b16 %v5483, %v5475
        %v5596 = vpack.c.b16 %v5492, %v5484
        %v5597 = vpack.c.b16 %v5493, %v5485
        %v5598 = vpack.c.b16 %v5494, %v5486
        %v5599 = vpack.c.b16 %v5495, %v5487
        %v5600 = vpack.c.b16 %v5496, %v5488
        %v5601 = vpack.c.b16 %v5497, %v5489
        %v5602 = vpack.c.b16 %v5498, %v5490
        %v5603 = vpack.c.b16 %v5499, %v5491
        %v5604 = vpack.c.b16 %v5508, %v5500
        %v5605 = vpack.c.b16 %v5509, %v5501
        %v5606 = vpack.c.b16 %v5510, %v5502
        %v5607 = vpack.c.b16 %v5511, %v5503
        %v5608 = vpack.c.b16 %v5512, %v5504
        %v5609 = vpack.c.b16 %v5513, %v5505
        %v5610 = vpack.c.b16 %v5514, %v5506
        %v5611 = vpack.c.b16 %v5515, %v5507
        %v5612 = vpack.c.b16 %v5524, %v5516
        %v5613 = vpack.c.b16 %v5525, %v5517
        %v5614 = vpack.c.b16 %v5526, %v5518
        %v5615 = vpack.c.b16 %v5527, %v5519
        %v5616 = vpack.c.b16 %v5528, %v5520
        %v5617 = vpack.c.b16 %v5529, %v5521
        %v5618 = vpack.c.b16 %v5530, %v5522
        %v5619 = vpack.c.b16 %v5531, %v5523
        %v5620 = vpack.c.b16 %v5540, %v5532
        %v5621 = vpack.c.b16 %v5541, %v5533
        %v5622 = vpack.c.b16 %v5542, %v5534
        %v5623 = vpack.c.b16 %v5543, %v5535
        %v5624 = vpack.c.b16 %v5544, %v5536
        %v5625 = vpack.c.b16 %v5545, %v5537
        %v5626 = vpack.c.b16 %v5546, %v5538
        %v5627 = vpack.c.b16 %v5547, %v5539
        %v5628 = vpack.c.b16 %v5556, %v5548
        %v5629 = vpack.c.b16 %v5557, %v5549
        %v5630 = vpack.c.b16 %v5558, %v5550
        %v5631 = vpack.c.b16 %v5559, %v5551
        %v5632 = vpack.c.b16 %v5560, %v5552
        %v5633 = vpack.c.b16 %v5561, %v5553
        %v5634 = vpack.c.b16 %v5562, %v5554
        %v5635 = vpack.c.b16 %v5563, %v5555
        %v5636 = vpack.c.b16 %v5572, %v5564
        %v5637 = vpack.c.b16 %v5573, %v5565
        %v5638 = vpack.c.b16 %v5574, %v5566
        %v5639 = vpack.c.b16 %v5575, %v5567
        %v5640 = vpack.c.b16 %v5576, %v5568
        %v5641 = vpack.c.b16 %v5577, %v5569
        %v5642 = vpack.c.b16 %v5578, %v5570
        %v5643 = vpack.c.b16 %v5579, %v5571
        %5708 = vmatprep.subr.bf16.mxu0 %v5581
        %5709 = vmatpush1.bf16.msra.mxu0 %v5580
        %5710 = vmatprep.subr.bf16.mxu0 %v5589
        %5711 = vmatpush1.bf16.msra.mxu0 %v5588
        %5712 = vmatprep.subr.bf16.mxu0 %v5597
        %5713 = vmatpush1.bf16.msra.mxu0 %v5596
        %5714 = vmatprep.subr.bf16.mxu0 %v5605
        %5715 = vmatpush1.bf16.msra.mxu0 %v5604
        %5716 = vmatprep.subr.bf16.mxu0 %v5613
        %5717 = vmatpush1.bf16.msra.mxu0 %v5612
        %5718 = vmatprep.subr.bf16.mxu0 %v5621
        %5719 = vmatpush1.bf16.msra.mxu0 %v5620
        %5720 = vmatprep.subr.bf16.mxu0 %v5629
        %5721 = vmatpush1.bf16.msra.mxu0 %v5628
        %5722 = vmatprep.subr.bf16.mxu0 %v5637
        %5723 = vmatpush1.bf16.msra.mxu0 %v5636
        %5724 = vmatprep.subr.bf16.mxu0 0
        %5725 = vmatpush1.bf16.msra.mxu0 0
        %5726 = vmatprep.subr.bf16.mxu0 0
        %5727 = vmatpush1.bf16.msra.mxu0 0
        %5728 = vmatprep.subr.bf16.mxu0 0
        %5729 = vmatpush1.bf16.msra.mxu0 0
        %5730 = vmatprep.subr.bf16.mxu0 0
        %5731 = vmatpush1.bf16.msra.mxu0 0
        %5732 = vmatprep.subr.bf16.mxu0 0
        %5733 = vmatpush1.bf16.msra.mxu0 0
        %5734 = vmatprep.subr.bf16.mxu0 0
        %5735 = vmatpush1.bf16.msra.mxu0 0
        %5736 = vmatprep.subr.bf16.mxu0 0
        %5737 = vmatpush1.bf16.msra.mxu0 0
        %5738 = vmatprep.subr.bf16.mxu0 0
        %5739 = vmatpush1.bf16.msra.mxu0 0
        %5740 = vmatprep.mubr.bf16.mxu0 0
        %5741 = vmatmul.mubr.bf16.gmra.mrb[0].mxu0 %v334
        %v5742 = vpop.f32.mrb[0].mxu0
        %v5743 = vadd.f32 0.0, %v5742
        %v5744 = vpop.f32.mrb[0].mxu0
        %v5745 = vadd.f32 0.0, %v5744
        %v5746 = vpop.f32.mrb[0].mxu0
        %v5747 = vadd.f32 0.0, %v5746
        %v5748 = vpop.f32.mrb[0].mxu0
        %v5749 = vadd.f32 0.0, %v5748
        %5750 = vmatprep.mubr.bf16.mxu0 0
        %5751 = vmatmul.mubr.bf16.gmra.mrb[0].mxu0 %v335
        %v5752 = vpop.f32.mrb[0].mxu0
        %v5753 = vadd.f32 0.0, %v5752
        %v5754 = vpop.f32.mrb[0].mxu0
        %v5755 = vadd.f32 0.0, %v5754
        %v5756 = vpop.f32.mrb[0].mxu0
        %v5757 = vadd.f32 0.0, %v5756
        %v5758 = vpop.f32.mrb[0].mxu0
        %v5759 = vadd.f32 0.0, %v5758
        %5760 = vmatprep.mubr.bf16.mxu0 0
        %5761 = vmatmul.mubr.bf16.gmra.mrb[0].mxu0 %v336
        %v5762 = vpop.f32.mrb[0].mxu0
        %v5763 = vadd.f32 0.0, %v5762
        %v5764 = vpop.f32.mrb[0].mxu0
        %v5765 = vadd.f32 0.0, %v5764
        %v5766 = vpop.f32.mrb[0].mxu0
        %v5767 = vadd.f32 0.0, %v5766
        %v5768 = vpop.f32.mrb[0].mxu0
        %v5769 = vadd.f32 0.0, %v5768
        %5770 = vmatprep.mubr.bf16.mxu0 0
        %5771 = vmatmul.mubr.bf16.gmra.mrb[0].mxu0 %v337
        %v5772 = vpop.f32.mrb[0].mxu0
        %v5773 = vadd.f32 0.0, %v5772
        %v5774 = vpop.f32.mrb[0].mxu0
        %v5775 = vadd.f32 0.0, %v5774
        %v5776 = vpop.f32.mrb[0].mxu0
        %v5777 = vadd.f32 0.0, %v5776
        %v5778 = vpop.f32.mrb[0].mxu0
        %v5779 = vadd.f32 0.0, %v5778
        %5780 = vdwg.mxu0
        %5781 = vmatprep.subr.bf16.mxu0 %v5583
        %5782 = vmatpush1.bf16.msra.mxu0 %v5582
        %5783 = vmatprep.subr.bf16.mxu0 %v5591
        %5784 = vmatpush1.bf16.msra.mxu0 %v5590
        %5785 = vmatprep.subr.bf16.mxu0 %v5599
        %5786 = vmatpush1.bf16.msra.mxu0 %v5598
        %5787 = vmatprep.subr.bf16.mxu0 %v5607
        %5788 = vmatpush1.bf16.msra.mxu0 %v5606
        %5789 = vmatprep.subr.bf16.mxu0 %v5615
        %5790 = vmatpush1.bf16.msra.mxu0 %v5614
        %5791 = vmatprep.subr.bf16.mxu0 %v5623
        %5792 = vmatpush1.bf16.msra.mxu0 %v5622
        %5793 = vmatprep.subr.bf16.mxu0 %v5631
        %5794 = vmatpush1.bf16.msra.mxu0 %v5630
        %5795 = vmatprep.subr.bf16.mxu0 %v5639
        %5796 = vmatpush1.bf16.msra.mxu0 %v5638
        %5797 = vmatprep.subr.bf16.mxu0 0
        %5798 = vmatpush1.bf16.msra.mxu0 0
        %5799 = vmatprep.subr.bf16.mxu0 0
        %5800 = vmatpush1.bf16.msra.mxu0 0
        %5801 = vmatprep.subr.bf16.mxu0 0
        %5802 = vmatpush1.bf16.msra.mxu0 0
        %5803 = vmatprep.subr.bf16.mxu0 0
        %5804 = vmatpush1.bf16.msra.mxu0 0
        %5805 = vmatprep.subr.bf16.mxu0 0
        %5806 = vmatpush1.bf16.msra.mxu0 0
        %5807 = vmatprep.subr.bf16.mxu0 0
        %5808 = vmatpush1.bf16.msra.mxu0 0
        %5809 = vmatprep.subr.bf16.mxu0 0
        %5810 = vmatpush1.bf16.msra.mxu0 0
        %5811 = vmatprep.subr.bf16.mxu0 0
        %5812 = vmatpush1.bf16.msra.mxu0 0
        %5813 = vmatprep.mubr.bf16.mxu0 0
        %5814 = vmatmul.mubr.bf16.gmra.mrb[0].mxu0 %v334
        %v5815 = vpop.f32.mrb[0].mxu0
        %v5816 = vadd.f32 0.0, %v5815
        %v5817 = vpop.f32.mrb[0].mxu0
        %v5818 = vadd.f32 0.0, %v5817
        %v5819 = vpop.f32.mrb[0].mxu0
        %v5820 = vadd.f32 0.0, %v5819
        %v5821 = vpop.f32.mrb[0].mxu0
        %v5822 = vadd.f32 0.0, %v5821
        %5823 = vmatprep.mubr.bf16.mxu0 0
        %5824 = vmatmul.mubr.bf16.gmra.mrb[0].mxu0 %v335
        %v5825 = vpop.f32.mrb[0].mxu0
        %v5826 = vadd.f32 0.0, %v5825
        %v5827 = vpop.f32.mrb[0].mxu0
        %v5828 = vadd.f32 0.0, %v5827
        %v5829 = vpop.f32.mrb[0].mxu0
        %v5830 = vadd.f32 0.0, %v5829
        %v5831 = vpop.f32.mrb[0].mxu0
        %v5832 = vadd.f32 0.0, %v5831
        %5833 = vmatprep.mubr.bf16.mxu0 0
        %5834 = vmatmul.mubr.bf16.gmra.mrb[0].mxu0 %v336
        %v5835 = vpop.f32.mrb[0].mxu0
        %v5836 = vadd.f32 0.0, %v5835
        %v5837 = vpop.f32.mrb[0].mxu0
        %v5838 = vadd.f32 0.0, %v5837
        %v5839 = vpop.f32.mrb[0].mxu0
        %v5840 = vadd.f32 0.0, %v5839
        %v5841 = vpop.f32.mrb[0].mxu0
        %v5842 = vadd.f32 0.0, %v5841
        %5843 = vmatprep.mubr.bf16.mxu0 0
        %5844 = vmatmul.mubr.bf16.gmra.mrb[0].mxu0 %v337
        %v5845 = vpop.f32.mrb[0].mxu0
        %v5846 = vadd.f32 0.0, %v5845
        %v5847 = vpop.f32.mrb[0].mxu0
        %v5848 = vadd.f32 0.0, %v5847
        %v5849 = vpop.f32.mrb[0].mxu0
        %v5850 = vadd.f32 0.0, %v5849
        %v5851 = vpop.f32.mrb[0].mxu0
        %v5852 = vadd.f32 0.0, %v5851
        %5853 = vdwg.mxu0
        %5854 = vmatprep.subr.bf16.mxu0 %v5585
        %5855 = vmatpush1.bf16.msra.mxu0 %v5584
        %5856 = vmatprep.subr.bf16.mxu0 %v5593
        %5857 = vmatpush1.bf16.msra.mxu0 %v5592
        %5858 = vmatprep.subr.bf16.mxu0 %v5601
        %5859 = vmatpush1.bf16.msra.mxu0 %v5600
        %5860 = vmatprep.subr.bf16.mxu0 %v5609
        %5861 = vmatpush1.bf16.msra.mxu0 %v5608
        %5862 = vmatprep.subr.bf16.mxu0 %v5617
        %5863 = vmatpush1.bf16.msra.mxu0 %v5616
        %5864 = vmatprep.subr.bf16.mxu0 %v5625
        %5865 = vmatpush1.bf16.msra.mxu0 %v5624
        %5866 = vmatprep.subr.bf16.mxu0 %v5633
        %5867 = vmatpush1.bf16.msra.mxu0 %v5632
        %5868 = vmatprep.subr.bf16.mxu0 %v5641
        %5869 = vmatpush1.bf16.msra.mxu0 %v5640
        %5870 = vmatprep.subr.bf16.mxu0 0
        %5871 = vmatpush1.bf16.msra.mxu0 0
        %5872 = vmatprep.subr.bf16.mxu0 0
        %5873 = vmatpush1.bf16.msra.mxu0 0
        %5874 = vmatprep.subr.bf16.mxu0 0
        %5875 = vmatpush1.bf16.msra.mxu0 0
        %5876 = vmatprep.subr.bf16.mxu0 0
        %5877 = vmatpush1.bf16.msra.mxu0 0
        %5878 = vmatprep.subr.bf16.mxu0 0
        %5879 = vmatpush1.bf16.msra.mxu0 0
        %5880 = vmatprep.subr.bf16.mxu0 0
        %5881 = vmatpush1.bf16.msra.mxu0 0
        %5882 = vmatprep.subr.bf16.mxu0 0
        %5883 = vmatpush1.bf16.msra.mxu0 0
        %5884 = vmatprep.subr.bf16.mxu0 0
        %5885 = vmatpush1.bf16.msra.mxu0 0
        %5886 = vmatprep.mubr.bf16.mxu0 0
        %5887 = vmatmul.mubr.bf16.gmra.mrb[0].mxu0 %v334
        %v5888 = vpop.f32.mrb[0].mxu0
        %v5889 = vadd.f32 0.0, %v5888
        %v5890 = vpop.f32.mrb[0].mxu0
        %v5891 = vadd.f32 0.0, %v5890
        %v5892 = vpop.f32.mrb[0].mxu0
        %v5893 = vadd.f32 0.0, %v5892
        %v5894 = vpop.f32.mrb[0].mxu0
        %v5895 = vadd.f32 0.0, %v5894
        %5896 = vmatprep.mubr.bf16.mxu0 0
        %5897 = vmatmul.mubr.bf16.gmra.mrb[0].mxu0 %v335
        %v5898 = vpop.f32.mrb[0].mxu0
        %v5899 = vadd.f32 0.0, %v5898
        %v5900 = vpop.f32.mrb[0].mxu0
        %v5901 = vadd.f32 0.0, %v5900
        %v5902 = vpop.f32.mrb[0].mxu0
        %v5903 = vadd.f32 0.0, %v5902
        %v5904 = vpop.f32.mrb[0].mxu0
        %v5905 = vadd.f32 0.0, %v5904
        %5906 = vmatprep.mubr.bf16.mxu0 0
        %5907 = vmatmul.mubr.bf16.gmra.mrb[0].mxu0 %v336
        %v5908 = vpop.f32.mrb[0].mxu0
        %v5909 = vadd.f32 0.0, %v5908
        %v5910 = vpop.f32.mrb[0].mxu0
        %v5911 = vadd.f32 0.0, %v5910
        %v5912 = vpop.f32.mrb[0].mxu0
        %v5913 = vadd.f32 0.0, %v5912
        %v5914 = vpop.f32.mrb[0].mxu0
        %v5915 = vadd.f32 0.0, %v5914
        %5916 = vmatprep.mubr.bf16.mxu0 0
        %5917 = vmatmul.mubr.bf16.gmra.mrb[0].mxu0 %v337
        %v5918 = vpop.f32.mrb[0].mxu0
        %v5919 = vadd.f32 0.0, %v5918
        %v5920 = vpop.f32.mrb[0].mxu0
        %v5921 = vadd.f32 0.0, %v5920
        %v5922 = vpop.f32.mrb[0].mxu0
        %v5923 = vadd.f32 0.0, %v5922
        %v5924 = vpop.f32.mrb[0].mxu0
        %v5925 = vadd.f32 0.0, %v5924
        %5926 = vdwg.mxu0
        %5927 = vmatprep.subr.bf16.mxu0 %v5587
        %5928 = vmatpush1.bf16.msra.mxu0 %v5586
        %5929 = vmatprep.subr.bf16.mxu0 %v5595
        %5930 = vmatpush1.bf16.msra.mxu0 %v5594
        %5931 = vmatprep.subr.bf16.mxu0 %v5603
        %5932 = vmatpush1.bf16.msra.mxu0 %v5602
        %5933 = vmatprep.subr.bf16.mxu0 %v5611
        %5934 = vmatpush1.bf16.msra.mxu0 %v5610
        %5935 = vmatprep.subr.bf16.mxu0 %v5619
        %5936 = vmatpush1.bf16.msra.mxu0 %v5618
        %5937 = vmatprep.subr.bf16.mxu0 %v5627
        %5938 = vmatpush1.bf16.msra.mxu0 %v5626
        %5939 = vmatprep.subr.bf16.mxu0 %v5635
        %5940 = vmatpush1.bf16.msra.mxu0 %v5634
        %5941 = vmatprep.subr.bf16.mxu0 %v5643
        %5942 = vmatpush1.bf16.msra.mxu0 %v5642
        %5943 = vmatprep.subr.bf16.mxu0 0
        %5944 = vmatpush1.bf16.msra.mxu0 0
        %5945 = vmatprep.subr.bf16.mxu0 0
        %5946 = vmatpush1.bf16.msra.mxu0 0
        %5947 = vmatprep.subr.bf16.mxu0 0
        %5948 = vmatpush1.bf16.msra.mxu0 0
        %5949 = vmatprep.subr.bf16.mxu0 0
        %5950 = vmatpush1.bf16.msra.mxu0 0
        %5951 = vmatprep.subr.bf16.mxu0 0
        %5952 = vmatpush1.bf16.msra.mxu0 0
        %5953 = vmatprep.subr.bf16.mxu0 0
        %5954 = vmatpush1.bf16.msra.mxu0 0
        %5955 = vmatprep.subr.bf16.mxu0 0
        %5956 = vmatpush1.bf16.msra.mxu0 0
        %5957 = vmatprep.subr.bf16.mxu0 0
        %5958 = vmatpush1.bf16.msra.mxu0 0
        %5959 = vmatprep.mubr.bf16.mxu0 0
        %5960 = vmatmul.mubr.bf16.gmra.mrb[0].mxu0 %v334
        %v5961 = vpop.f32.mrb[0].mxu0
        %v5962 = vadd.f32 0.0, %v5961
        %v5963 = vpop.f32.mrb[0].mxu0
        %v5964 = vadd.f32 0.0, %v5963
        %v5965 = vpop.f32.mrb[0].mxu0
        %v5966 = vadd.f32 0.0, %v5965
        %v5967 = vpop.f32.mrb[0].mxu0
        %v5968 = vadd.f32 0.0, %v5967
        %5969 = vmatprep.mubr.bf16.mxu0 0
        %5970 = vmatmul.mubr.bf16.gmra.mrb[0].mxu0 %v335
        %v5971 = vpop.f32.mrb[0].mxu0
        %v5972 = vadd.f32 0.0, %v5971
        %v5973 = vpop.f32.mrb[0].mxu0
        %v5974 = vadd.f32 0.0, %v5973
        %v5975 = vpop.f32.mrb[0].mxu0
        %v5976 = vadd.f32 0.0, %v5975
        %v5977 = vpop.f32.mrb[0].mxu0
        %v5978 = vadd.f32 0.0, %v5977
        %5979 = vmatprep.mubr.bf16.mxu0 0
        %5980 = vmatmul.mubr.bf16.gmra.mrb[0].mxu0 %v336
        %v5981 = vpop.f32.mrb[0].mxu0
        %v5982 = vadd.f32 0.0, %v5981
        %v5983 = vpop.f32.mrb[0].mxu0
        %v5984 = vadd.f32 0.0, %v5983
        %v5985 = vpop.f32.mrb[0].mxu0
        %v5986 = vadd.f32 0.0, %v5985
        %v5987 = vpop.f32.mrb[0].mxu0
        %v5988 = vadd.f32 0.0, %v5987
        %5989 = vmatprep.mubr.bf16.mxu0 0
        %5990 = vmatmul.mubr.bf16.gmra.mrb[0].mxu0 %v337
        %v5991 = vpop.f32.mrb[0].mxu0
        %v5992 = vadd.f32 0.0, %v5991
        %v5993 = vpop.f32.mrb[0].mxu0
        %v5994 = vadd.f32 0.0, %v5993
        %v5995 = vpop.f32.mrb[0].mxu0
        %v5996 = vadd.f32 0.0, %v5995
        %v5997 = vpop.f32.mrb[0].mxu0
        %v5998 = vadd.f32 0.0, %v5997
        %5999 = vdwg.mxu0
        %v6000 = vmax.f32 %v5743, %v5747
        %v6001 = vmax.f32 %v6000, %v5753
        %v6002 = vmax.f32 %v6001, %v5757
        %v6003 = vmax.f32 %v6002, %v5763
        %v6004 = vmax.f32 %v6003, %v5767
        %v6005 = vmax.f32 %v6004, %v5773
        %v6006 = vmax.f32 %v6005, %v5777
        %v6007 = vrot.slane %v6006, 4
        %v6008 = vmax.f32 %v6006, %v6007
        %v6009 = vrot.slane %v6008, 2
        %v6010 = vmax.f32 %v6008, %v6009
        %v6011 = vrot.slane %v6010, 1
        %v6012 = vmax.f32 %v6010, %v6011
        %v6013 = vmax.f32 %v5745, %v5749
        %v6014 = vmax.f32 %v6013, %v5755
        %v6015 = vmax.f32 %v6014, %v5759
        %v6016 = vmax.f32 %v6015, %v5765
        %v6017 = vmax.f32 %v6016, %v5769
        %v6018 = vmax.f32 %v6017, %v5775
        %v6019 = vmax.f32 %v6018, %v5779
        %v6020 = vrot.slane %v6019, 4
        %v6021 = vmax.f32 %v6019, %v6020
        %v6022 = vrot.slane %v6021, 2
        %v6023 = vmax.f32 %v6021, %v6022
        %v6024 = vrot.slane %v6023, 1
        %v6025 = vmax.f32 %v6023, %v6024
        %v6026 = vmax.f32 %v5816, %v5820
        %v6027 = vmax.f32 %v6026, %v5826
        %v6028 = vmax.f32 %v6027, %v5830
        %v6029 = vmax.f32 %v6028, %v5836
        %v6030 = vmax.f32 %v6029, %v5840
        %v6031 = vmax.f32 %v6030, %v5846
        %v6032 = vmax.f32 %v6031, %v5850
        %v6033 = vrot.slane %v6032, 4
        %v6034 = vmax.f32 %v6032, %v6033
        %v6035 = vrot.slane %v6034, 2
        %v6036 = vmax.f32 %v6034, %v6035
        %v6037 = vrot.slane %v6036, 1
        %v6038 = vmax.f32 %v6036, %v6037
        %v6039 = vmax.f32 %v5818, %v5822
        %v6040 = vmax.f32 %v6039, %v5828
        %v6041 = vmax.f32 %v6040, %v5832
        %v6042 = vmax.f32 %v6041, %v5838
        %v6043 = vmax.f32 %v6042, %v5842
        %v6044 = vmax.f32 %v6043, %v5848
        %v6045 = vmax.f32 %v6044, %v5852
        %v6046 = vrot.slane %v6045, 4
        %v6047 = vmax.f32 %v6045, %v6046
        %v6048 = vrot.slane %v6047, 2
        %v6049 = vmax.f32 %v6047, %v6048
        %v6050 = vrot.slane %v6049, 1
        %v6051 = vmax.f32 %v6049, %v6050
        %v6052 = vmax.f32 %v5889, %v5893
        %v6053 = vmax.f32 %v6052, %v5899
        %v6054 = vmax.f32 %v6053, %v5903
        %v6055 = vmax.f32 %v6054, %v5909
        %v6056 = vmax.f32 %v6055, %v5913
        %v6057 = vmax.f32 %v6056, %v5919
        %v6058 = vmax.f32 %v6057, %v5923
        %v6059 = vrot.slane %v6058, 4
        %v6060 = vmax.f32 %v6058, %v6059
        %v6061 = vrot.slane %v6060, 2
        %v6062 = vmax.f32 %v6060, %v6061
        %v6063 = vrot.slane %v6062, 1
        %v6064 = vmax.f32 %v6062, %v6063
        %v6065 = vmax.f32 %v5891, %v5895
        %v6066 = vmax.f32 %v6065, %v5901
        %v6067 = vmax.f32 %v6066, %v5905
        %v6068 = vmax.f32 %v6067, %v5911
        %v6069 = vmax.f32 %v6068, %v5915
        %v6070 = vmax.f32 %v6069, %v5921
        %v6071 = vmax.f32 %v6070, %v5925
        %v6072 = vrot.slane %v6071, 4
        %v6073 = vmax.f32 %v6071, %v6072
        %v6074 = vrot.slane %v6073, 2
        %v6075 = vmax.f32 %v6073, %v6074
        %v6076 = vrot.slane %v6075, 1
        %v6077 = vmax.f32 %v6075, %v6076
        %v6078 = vmax.f32 %v5962, %v5966
        %v6079 = vmax.f32 %v6078, %v5972
        %v6080 = vmax.f32 %v6079, %v5976
        %v6081 = vmax.f32 %v6080, %v5982
        %v6082 = vmax.f32 %v6081, %v5986
        %v6083 = vmax.f32 %v6082, %v5992
        %v6084 = vmax.f32 %v6083, %v5996
        %v6085 = vrot.slane %v6084, 4
        %v6086 = vmax.f32 %v6084, %v6085
        %v6087 = vrot.slane %v6086, 2
        %v6088 = vmax.f32 %v6086, %v6087
        %v6089 = vrot.slane %v6088, 1
        %v6090 = vmax.f32 %v6088, %v6089
        %v6091 = vmax.f32 %v5964, %v5968
        %v6092 = vmax.f32 %v6091, %v5974
        %v6093 = vmax.f32 %v6092, %v5978
        %v6094 = vmax.f32 %v6093, %v5984
        %v6095 = vmax.f32 %v6094, %v5988
        %v6096 = vmax.f32 %v6095, %v5994
        %v6097 = vmax.f32 %v6096, %v5998
        %v6098 = vrot.slane %v6097, 4
        %v6099 = vmax.f32 %v6097, %v6098
        %v6100 = vrot.slane %v6099, 2
        %v6101 = vmax.f32 %v6099, %v6100
        %v6102 = vrot.slane %v6101, 1
        %v6103 = vmax.f32 %v6101, %v6102
        %v6104 = vld [vmem:[%s231 + $0x30] sm:$0xff]
        %v6113 = vcombine.low %v6012, %v6025
        %v6114 = vcombine.low %v6038, %v6051
        %v6115 = vcombine.low %v6064, %v6077
        %v6116 = vcombine.low %v6090, %v6103
        %v6118 = vunpack.c.l.s4 1966171168
        %v6119 = vunpack.c.0.s8 %v6118
        %v6120 = vlaneseq
        %v6121 = vshrl.u32 %v6120, 7
        %v6122 = vsub.s32 %v6119, %v6121
        %v6123 = vrot.slane %v6113, %v6122
        %v6125 = vunpack.c.l.s4 1966171168
        %v6126 = vunpack.c.0.s8 %v6125
        %v6127 = vlaneseq
        %v6128 = vshrl.u32 %v6127, 7
        %v6129 = vsub.s32 %v6126, %v6128
        %v6130 = vrot.slane %v6114, %v6129
        %v6132 = vunpack.c.l.s4 1966171168
        %v6133 = vunpack.c.0.s8 %v6132
        %v6134 = vlaneseq
        %v6135 = vshrl.u32 %v6134, 7
        %v6136 = vsub.s32 %v6133, %v6135
        %v6137 = vrot.slane %v6115, %v6136
        %v6139 = vunpack.c.l.s4 1966171168
        %v6140 = vunpack.c.0.s8 %v6139
        %v6141 = vlaneseq
        %v6142 = vshrl.u32 %v6141, 7
        %v6143 = vsub.s32 %v6140, %v6142
        %v6144 = vrot.slane %v6116, %v6143
        %v6145 = vcombine.low %v6123, %v6130
        %v6146 = vcombine.low %v6137, %v6144
        %v6148 = vunpack.c.l.s4 1966171168
        %v6149 = vunpack.c.0.s8 %v6148
        %v6150 = vlaneseq
        %v6151 = vshrl.u32 %v6150, 7
        %v6152 = vsub.s32 %v6149, %v6151
        %v6153 = vrot.slane %v6145, %v6152
        %v6155 = vunpack.c.l.s4 1966171168
        %v6156 = vunpack.c.0.s8 %v6155
        %v6157 = vlaneseq
        %v6158 = vshrl.u32 %v6157, 7
        %v6159 = vsub.s32 %v6156, %v6158
        %v6160 = vrot.slane %v6146, %v6159
        %v6161 = vcombine.low %v6153, %v6160
        %v6163 = vmax.f32 %v6104, %v6161
        %6164 = vst [vmem:[%s231 + $0x30] sm:$0xff] %v6163
        %v6165 = vld [vmem:[#allocation5 + $0xe0] sm:$0xff]
        %v6166 = vld [vmem:[#allocation5 + $0xe8] sm:$0xff]
        %v6167 = vld [vmem:[#allocation5 + $0xf0] sm:$0xff]
        %v6168 = vld [vmem:[#allocation5 + $0xf8] sm:$0xff]
        %v6169 = vld [vmem:[#allocation5 + $0x1e0] sm:$0xff]
        %v6170 = vld [vmem:[#allocation5 + $0x1e8] sm:$0xff]
        %v6171 = vld [vmem:[#allocation5 + $0x1f0] sm:$0xff]
        %v6172 = vld [vmem:[#allocation5 + $0x1f8] sm:$0xff]
        %v6173 = vld [vmem:[#allocation5 + $0x2e0] sm:$0xff]
        %v6174 = vld [vmem:[#allocation5 + $0x2e8] sm:$0xff]
        %v6175 = vld [vmem:[#allocation5 + $0x2f0] sm:$0xff]
        %v6176 = vld [vmem:[#allocation5 + $0x2f8] sm:$0xff]
        %v6177 = vld [vmem:[#allocation5 + $0x3e0] sm:$0xff]
        %v6178 = vld [vmem:[#allocation5 + $0x3e8] sm:$0xff]
        %v6179 = vld [vmem:[#allocation5 + $0x3f0] sm:$0xff]
        %v6180 = vld [vmem:[#allocation5 + $0x3f8] sm:$0xff]
        %v6181 = vld [vmem:[#allocation5 + $0x4e0] sm:$0xff]
        %v6182 = vld [vmem:[#allocation5 + $0x4e8] sm:$0xff]
        %v6183 = vld [vmem:[#allocation5 + $0x4f0] sm:$0xff]
        %v6184 = vld [vmem:[#allocation5 + $0x4f8] sm:$0xff]
        %v6185 = vld [vmem:[#allocation5 + $0x5e0] sm:$0xff]
        %v6186 = vld [vmem:[#allocation5 + $0x5e8] sm:$0xff]
        %v6187 = vld [vmem:[#allocation5 + $0x5f0] sm:$0xff]
        %v6188 = vld [vmem:[#allocation5 + $0x5f8] sm:$0xff]
        %v6189 = vld [vmem:[#allocation5 + $0x6e0] sm:$0xff]
        %v6190 = vld [vmem:[#allocation5 + $0x6e8] sm:$0xff]
        %v6191 = vld [vmem:[#allocation5 + $0x6f0] sm:$0xff]
        %v6192 = vld [vmem:[#allocation5 + $0x6f8] sm:$0xff]
        %v6193 = vld [vmem:[#allocation5 + $0x7e0] sm:$0xff]
        %v6194 = vld [vmem:[#allocation5 + $0x7e8] sm:$0xff]
        %v6195 = vld [vmem:[#allocation5 + $0x7f0] sm:$0xff]
        %v6196 = vld [vmem:[#allocation5 + $0x7f8] sm:$0xff]
        %v6197 = vld [vmem:[#allocation5 + $0x8e0] sm:$0xff]
        %v6198 = vld [vmem:[#allocation5 + $0x8e8] sm:$0xff]
        %v6199 = vld [vmem:[#allocation5 + $0x8f0] sm:$0xff]
        %v6200 = vld [vmem:[#allocation5 + $0x8f8] sm:$0xff]
        %v6201 = vld [vmem:[#allocation5 + $0x9e0] sm:$0xff]
        %v6202 = vld [vmem:[#allocation5 + $0x9e8] sm:$0xff]
        %v6203 = vld [vmem:[#allocation5 + $0x9f0] sm:$0xff]
        %v6204 = vld [vmem:[#allocation5 + $0x9f8] sm:$0xff]
        %v6205 = vld [vmem:[#allocation5 + $0xae0] sm:$0xff]
        %v6206 = vld [vmem:[#allocation5 + $0xae8] sm:$0xff]
        %v6207 = vld [vmem:[#allocation5 + $0xaf0] sm:$0xff]
        %v6208 = vld [vmem:[#allocation5 + $0xaf8] sm:$0xff]
        %v6209 = vld [vmem:[#allocation5 + $0xbe0] sm:$0xff]
        %v6210 = vld [vmem:[#allocation5 + $0xbe8] sm:$0xff]
        %v6211 = vld [vmem:[#allocation5 + $0xbf0] sm:$0xff]
        %v6212 = vld [vmem:[#allocation5 + $0xbf8] sm:$0xff]
        %v6213 = vld [vmem:[#allocation5 + $0xce0] sm:$0xff]
        %v6214 = vld [vmem:[#allocation5 + $0xce8] sm:$0xff]
        %v6215 = vld [vmem:[#allocation5 + $0xcf0] sm:$0xff]
        %v6216 = vld [vmem:[#allocation5 + $0xcf8] sm:$0xff]
        %v6217 = vld [vmem:[#allocation5 + $0xde0] sm:$0xff]
        %v6218 = vld [vmem:[#allocation5 + $0xde8] sm:$0xff]
        %v6219 = vld [vmem:[#allocation5 + $0xdf0] sm:$0xff]
        %v6220 = vld [vmem:[#allocation5 + $0xdf8] sm:$0xff]
        %v6221 = vld [vmem:[#allocation5 + $0xee0] sm:$0xff]
        %v6222 = vld [vmem:[#allocation5 + $0xee8] sm:$0xff]
        %v6223 = vld [vmem:[#allocation5 + $0xef0] sm:$0xff]
        %v6224 = vld [vmem:[#allocation5 + $0xef8] sm:$0xff]
        %v6225 = vld [vmem:[#allocation5 + $0xfe0] sm:$0xff]
        %v6226 = vld [vmem:[#allocation5 + $0xfe8] sm:$0xff]
        %v6227 = vld [vmem:[#allocation5 + $0xff0] sm:$0xff]
        %v6228 = vld [vmem:[#allocation5 + $0xff8] sm:$0xff]
        %v6293 = vunpack.c.l.b16 %v6165
        %v6294 = vunpack.c.h.b16 %v6165
        %v6295 = vunpack.c.l.b16 %v6166
        %v6296 = vunpack.c.h.b16 %v6166
        %v6297 = vunpack.c.l.b16 %v6167
        %v6298 = vunpack.c.h.b16 %v6167
        %v6299 = vunpack.c.l.b16 %v6168
        %v6300 = vunpack.c.h.b16 %v6168
        %v6301 = vunpack.c.l.b16 %v6169
        %v6302 = vunpack.c.h.b16 %v6169
        %v6303 = vunpack.c.l.b16 %v6170
        %v6304 = vunpack.c.h.b16 %v6170
        %v6305 = vunpack.c.l.b16 %v6171
        %v6306 = vunpack.c.h.b16 %v6171
        %v6307 = vunpack.c.l.b16 %v6172
        %v6308 = vunpack.c.h.b16 %v6172
        %v6309 = vunpack.c.l.b16 %v6173
        %v6310 = vunpack.c.h.b16 %v6173
        %v6311 = vunpack.c.l.b16 %v6174
        %v6312 = vunpack.c.h.b16 %v6174
        %v6313 = vunpack.c.l.b16 %v6175
        %v6314 = vunpack.c.h.b16 %v6175
        %v6315 = vunpack.c.l.b16 %v6176
        %v6316 = vunpack.c.h.b16 %v6176
        %v6317 = vunpack.c.l.b16 %v6177
        %v6318 = vunpack.c.h.b16 %v6177
        %v6319 = vunpack.c.l.b16 %v6178
        %v6320 = vunpack.c.h.b16 %v6178
        %v6321 = vunpack.c.l.b16 %v6179
        %v6322 = vunpack.c.h.b16 %v6179
        %v6323 = vunpack.c.l.b16 %v6180
        %v6324 = vunpack.c.h.b16 %v6180
        %v6325 = vunpack.c.l.b16 %v6181
        %v6326 = vunpack.c.h.b16 %v6181
        %v6327 = vunpack.c.l.b16 %v6182
        %v6328 = vunpack.c.h.b16 %v6182
        %v6329 = vunpack.c.l.b16 %v6183
        %v6330 = vunpack.c.h.b16 %v6183
        %v6331 = vunpack.c.l.b16 %v6184
        %v6332 = vunpack.c.h.b16 %v6184
        %v6333 = vunpack.c.l.b16 %v6185
        %v6334 = vunpack.c.h.b16 %v6185
        %v6335 = vunpack.c.l.b16 %v6186
        %v6336 = vunpack.c.h.b16 %v6186
        %v6337 = vunpack.c.l.b16 %v6187
        %v6338 = vunpack.c.h.b16 %v6187
        %v6339 = vunpack.c.l.b16 %v6188
        %v6340 = vunpack.c.h.b16 %v6188
        %v6341 = vunpack.c.l.b16 %v6189
        %v6342 = vunpack.c.h.b16 %v6189
        %v6343 = vunpack.c.l.b16 %v6190
        %v6344 = vunpack.c.h.b16 %v6190
        %v6345 = vunpack.c.l.b16 %v6191
        %v6346 = vunpack.c.h.b16 %v6191
        %v6347 = vunpack.c.l.b16 %v6192
        %v6348 = vunpack.c.h.b16 %v6192
        %v6349 = vunpack.c.l.b16 %v6193
        %v6350 = vunpack.c.h.b16 %v6193
        %v6351 = vunpack.c.l.b16 %v6194
        %v6352 = vunpack.c.h.b16 %v6194
        %v6353 = vunpack.c.l.b16 %v6195
        %v6354 = vunpack.c.h.b16 %v6195
        %v6355 = vunpack.c.l.b16 %v6196
        %v6356 = vunpack.c.h.b16 %v6196
        %v6357 = vunpack.c.l.b16 %v6197
        %v6358 = vunpack.c.h.b16 %v6197
        %v6359 = vunpack.c.l.b16 %v6198
        %v6360 = vunpack.c.h.b16 %v6198
        %v6361 = vunpack.c.l.b16 %v6199
        %v6362 = vunpack.c.h.b16 %v6199
        %v6363 = vunpack.c.l.b16 %v6200
        %v6364 = vunpack.c.h.b16 %v6200
        %v6365 = vunpack.c.l.b16 %v6201
        %v6366 = vunpack.c.h.b16 %v6201
        %v6367 = vunpack.c.l.b16 %v6202
        %v6368 = vunpack.c.h.b16 %v6202
        %v6369 = vunpack.c.l.b16 %v6203
        %v6370 = vunpack.c.h.b16 %v6203
        %v6371 = vunpack.c.l.b16 %v6204
        %v6372 = vunpack.c.h.b16 %v6204
        %v6373 = vunpack.c.l.b16 %v6205
        %v6374 = vunpack.c.h.b16 %v6205
        %v6375 = vunpack.c.l.b16 %v6206
        %v6376 = vunpack.c.h.b16 %v6206
        %v6377 = vunpack.c.l.b16 %v6207
        %v6378 = vunpack.c.h.b16 %v6207
        %v6379 = vunpack.c.l.b16 %v6208
        %v6380 = vunpack.c.h.b16 %v6208
        %v6381 = vunpack.c.l.b16 %v6209
        %v6382 = vunpack.c.h.b16 %v6209
        %v6383 = vunpack.c.l.b16 %v6210
        %v6384 = vunpack.c.h.b16 %v6210
        %v6385 = vunpack.c.l.b16 %v6211
        %v6386 = vunpack.c.h.b16 %v6211
        %v6387 = vunpack.c.l.b16 %v6212
        %v6388 = vunpack.c.h.b16 %v6212
        %v6389 = vunpack.c.l.b16 %v6213
        %v6390 = vunpack.c.h.b16 %v6213
        %v6391 = vunpack.c.l.b16 %v6214
        %v6392 = vunpack.c.h.b16 %v6214
        %v6393 = vunpack.c.l.b16 %v6215
        %v6394 = vunpack.c.h.b16 %v6215
        %v6395 = vunpack.c.l.b16 %v6216
        %v6396 = vunpack.c.h.b16 %v6216
        %v6397 = vunpack.c.l.b16 %v6217
        %v6398 = vunpack.c.h.b16 %v6217
        %v6399 = vunpack.c.l.b16 %v6218
        %v6400 = vunpack.c.h.b16 %v6218
        %v6401 = vunpack.c.l.b16 %v6219
        %v6402 = vunpack.c.h.b16 %v6219
        %v6403 = vunpack.c.l.b16 %v6220
        %v6404 = vunpack.c.h.b16 %v6220
        %v6405 = vunpack.c.l.b16 %v6221
        %v6406 = vunpack.c.h.b16 %v6221
        %v6407 = vunpack.c.l.b16 %v6222
        %v6408 = vunpack.c.h.b16 %v6222
        %v6409 = vunpack.c.l.b16 %v6223
        %v6410 = vunpack.c.h.b16 %v6223
        %v6411 = vunpack.c.l.b16 %v6224
        %v6412 = vunpack.c.h.b16 %v6224
        %v6413 = vunpack.c.l.b16 %v6225
        %v6414 = vunpack.c.h.b16 %v6225
        %v6415 = vunpack.c.l.b16 %v6226
        %v6416 = vunpack.c.h.b16 %v6226
        %v6417 = vunpack.c.l.b16 %v6227
        %v6418 = vunpack.c.h.b16 %v6227
        %v6419 = vunpack.c.l.b16 %v6228
        %v6420 = vunpack.c.h.b16 %v6228
        %v6421 = vpack.c.b16 %v6301, %v6293
        %v6422 = vpack.c.b16 %v6302, %v6294
        %v6423 = vpack.c.b16 %v6303, %v6295
        %v6424 = vpack.c.b16 %v6304, %v6296
        %v6425 = vpack.c.b16 %v6305, %v6297
        %v6426 = vpack.c.b16 %v6306, %v6298
        %v6427 = vpack.c.b16 %v6307, %v6299
        %v6428 = vpack.c.b16 %v6308, %v6300
        %v6429 = vpack.c.b16 %v6317, %v6309
        %v6430 = vpack.c.b16 %v6318, %v6310
        %v6431 = vpack.c.b16 %v6319, %v6311
        %v6432 = vpack.c.b16 %v6320, %v6312
        %v6433 = vpack.c.b16 %v6321, %v6313
        %v6434 = vpack.c.b16 %v6322, %v6314
        %v6435 = vpack.c.b16 %v6323, %v6315
        %v6436 = vpack.c.b16 %v6324, %v6316
        %v6437 = vpack.c.b16 %v6333, %v6325
        %v6438 = vpack.c.b16 %v6334, %v6326
        %v6439 = vpack.c.b16 %v6335, %v6327
        %v6440 = vpack.c.b16 %v6336, %v6328
        %v6441 = vpack.c.b16 %v6337, %v6329
        %v6442 = vpack.c.b16 %v6338, %v6330
        %v6443 = vpack.c.b16 %v6339, %v6331
        %v6444 = vpack.c.b16 %v6340, %v6332
        %v6445 = vpack.c.b16 %v6349, %v6341
        %v6446 = vpack.c.b16 %v6350, %v6342
        %v6447 = vpack.c.b16 %v6351, %v6343
        %v6448 = vpack.c.b16 %v6352, %v6344
        %v6449 = vpack.c.b16 %v6353, %v6345
        %v6450 = vpack.c.b16 %v6354, %v6346
        %v6451 = vpack.c.b16 %v6355, %v6347
        %v6452 = vpack.c.b16 %v6356, %v6348
        %v6453 = vpack.c.b16 %v6365, %v6357
        %v6454 = vpack.c.b16 %v6366, %v6358
        %v6455 = vpack.c.b16 %v6367, %v6359
        %v6456 = vpack.c.b16 %v6368, %v6360
        %v6457 = vpack.c.b16 %v6369, %v6361
        %v6458 = vpack.c.b16 %v6370, %v6362
        %v6459 = vpack.c.b16 %v6371, %v6363
        %v6460 = vpack.c.b16 %v6372, %v6364
        %v6461 = vpack.c.b16 %v6381, %v6373
        %v6462 = vpack.c.b16 %v6382, %v6374
        %v6463 = vpack.c.b16 %v6383, %v6375
        %v6464 = vpack.c.b16 %v6384, %v6376
        %v6465 = vpack.c.b16 %v6385, %v6377
        %v6466 = vpack.c.b16 %v6386, %v6378
        %v6467 = vpack.c.b16 %v6387, %v6379
        %v6468 = vpack.c.b16 %v6388, %v6380
        %v6469 = vpack.c.b16 %v6397, %v6389
        %v6470 = vpack.c.b16 %v6398, %v6390
        %v6471 = vpack.c.b16 %v6399, %v6391
        %v6472 = vpack.c.b16 %v6400, %v6392
        %v6473 = vpack.c.b16 %v6401, %v6393
        %v6474 = vpack.c.b16 %v6402, %v6394
        %v6475 = vpack.c.b16 %v6403, %v6395
        %v6476 = vpack.c.b16 %v6404, %v6396
        %v6477 = vpack.c.b16 %v6413, %v6405
        %v6478 = vpack.c.b16 %v6414, %v6406
        %v6479 = vpack.c.b16 %v6415, %v6407
        %v6480 = vpack.c.b16 %v6416, %v6408
        %v6481 = vpack.c.b16 %v6417, %v6409
        %v6482 = vpack.c.b16 %v6418, %v6410
        %v6483 = vpack.c.b16 %v6419, %v6411
        %v6484 = vpack.c.b16 %v6420, %v6412
        %6549 = vmatprep.subr.bf16.mxu0 %v6422
        %6550 = vmatpush1.bf16.msra.mxu0 %v6421
        %6551 = vmatprep.subr.bf16.mxu0 %v6430
        %6552 = vmatpush1.bf16.msra.mxu0 %v6429
        %6553 = vmatprep.subr.bf16.mxu0 %v6438
        %6554 = vmatpush1.bf16.msra.mxu0 %v6437
        %6555 = vmatprep.subr.bf16.mxu0 %v6446
        %6556 = vmatpush1.bf16.msra.mxu0 %v6445
        %6557 = vmatprep.subr.bf16.mxu0 %v6454
        %6558 = vmatpush1.bf16.msra.mxu0 %v6453
        %6559 = vmatprep.subr.bf16.mxu0 %v6462
        %6560 = vmatpush1.bf16.msra.mxu0 %v6461
        %6561 = vmatprep.subr.bf16.mxu0 %v6470
        %6562 = vmatpush1.bf16.msra.mxu0 %v6469
        %6563 = vmatprep.subr.bf16.mxu0 %v6478
        %6564 = vmatpush1.bf16.msra.mxu0 %v6477
        %6565 = vmatprep.subr.bf16.mxu0 0
        %6566 = vmatpush1.bf16.msra.mxu0 0
        %6567 = vmatprep.subr.bf16.mxu0 0
        %6568 = vmatpush1.bf16.msra.mxu0 0
        %6569 = vmatprep.subr.bf16.mxu0 0
        %6570 = vmatpush1.bf16.msra.mxu0 0
        %6571 = vmatprep.subr.bf16.mxu0 0
        %6572 = vmatpush1.bf16.msra.mxu0 0
        %6573 = vmatprep.subr.bf16.mxu0 0
        %6574 = vmatpush1.bf16.msra.mxu0 0
        %6575 = vmatprep.subr.bf16.mxu0 0
        %6576 = vmatpush1.bf16.msra.mxu0 0
        %6577 = vmatprep.subr.bf16.mxu0 0
        %6578 = vmatpush1.bf16.msra.mxu0 0
        %6579 = vmatprep.subr.bf16.mxu0 0
        %6580 = vmatpush1.bf16.msra.mxu0 0
        %6581 = vmatprep.mubr.bf16.mxu0 0
        %6582 = vmatmul.mubr.bf16.gmra.mrb[0].mxu0 %v334
        %v6583 = vpop.f32.mrb[0].mxu0
        %v6584 = vadd.f32 0.0, %v6583
        %v6585 = vpop.f32.mrb[0].mxu0
        %v6586 = vadd.f32 0.0, %v6585
        %v6587 = vpop.f32.mrb[0].mxu0
        %v6588 = vadd.f32 0.0, %v6587
        %v6589 = vpop.f32.mrb[0].mxu0
        %v6590 = vadd.f32 0.0, %v6589
        %6591 = vmatprep.mubr.bf16.mxu0 0
        %6592 = vmatmul.mubr.bf16.gmra.mrb[0].mxu0 %v335
        %v6593 = vpop.f32.mrb[0].mxu0
        %v6594 = vadd.f32 0.0, %v6593
        %v6595 = vpop.f32.mrb[0].mxu0
        %v6596 = vadd.f32 0.0, %v6595
        %v6597 = vpop.f32.mrb[0].mxu0
        %v6598 = vadd.f32 0.0, %v6597
        %v6599 = vpop.f32.mrb[0].mxu0
        %v6600 = vadd.f32 0.0, %v6599
        %6601 = vmatprep.mubr.bf16.mxu0 0
        %6602 = vmatmul.mubr.bf16.gmra.mrb[0].mxu0 %v336
        %v6603 = vpop.f32.mrb[0].mxu0
        %v6604 = vadd.f32 0.0, %v6603
        %v6605 = vpop.f32.mrb[0].mxu0
        %v6606 = vadd.f32 0.0, %v6605
        %v6607 = vpop.f32.mrb[0].mxu0
        %v6608 = vadd.f32 0.0, %v6607
        %v6609 = vpop.f32.mrb[0].mxu0
        %v6610 = vadd.f32 0.0, %v6609
        %6611 = vmatprep.mubr.bf16.mxu0 0
        %6612 = vmatmul.mubr.bf16.gmra.mrb[0].mxu0 %v337
        %v6613 = vpop.f32.mrb[0].mxu0
        %v6614 = vadd.f32 0.0, %v6613
        %v6615 = vpop.f32.mrb[0].mxu0
        %v6616 = vadd.f32 0.0, %v6615
        %v6617 = vpop.f32.mrb[0].mxu0
        %v6618 = vadd.f32 0.0, %v6617
        %v6619 = vpop.f32.mrb[0].mxu0
        %v6620 = vadd.f32 0.0, %v6619
        %6621 = vdwg.mxu0
        %6622 = vmatprep.subr.bf16.mxu0 %v6424
        %6623 = vmatpush1.bf16.msra.mxu0 %v6423
        %6624 = vmatprep.subr.bf16.mxu0 %v6432
        %6625 = vmatpush1.bf16.msra.mxu0 %v6431
        %6626 = vmatprep.subr.bf16.mxu0 %v6440
        %6627 = vmatpush1.bf16.msra.mxu0 %v6439
        %6628 = vmatprep.subr.bf16.mxu0 %v6448
        %6629 = vmatpush1.bf16.msra.mxu0 %v6447
        %6630 = vmatprep.subr.bf16.mxu0 %v6456
        %6631 = vmatpush1.bf16.msra.mxu0 %v6455
        %6632 = vmatprep.subr.bf16.mxu0 %v6464
        %6633 = vmatpush1.bf16.msra.mxu0 %v6463
        %6634 = vmatprep.subr.bf16.mxu0 %v6472
        %6635 = vmatpush1.bf16.msra.mxu0 %v6471
        %6636 = vmatprep.subr.bf16.mxu0 %v6480
        %6637 = vmatpush1.bf16.msra.mxu0 %v6479
        %6638 = vmatprep.subr.bf16.mxu0 0
        %6639 = vmatpush1.bf16.msra.mxu0 0
        %6640 = vmatprep.subr.bf16.mxu0 0
        %6641 = vmatpush1.bf16.msra.mxu0 0
        %6642 = vmatprep.subr.bf16.mxu0 0
        %6643 = vmatpush1.bf16.msra.mxu0 0
        %6644 = vmatprep.subr.bf16.mxu0 0
        %6645 = vmatpush1.bf16.msra.mxu0 0
        %6646 = vmatprep.subr.bf16.mxu0 0
        %6647 = vmatpush1.bf16.msra.mxu0 0
        %6648 = vmatprep.subr.bf16.mxu0 0
        %6649 = vmatpush1.bf16.msra.mxu0 0
        %6650 = vmatprep.subr.bf16.mxu0 0
        %6651 = vmatpush1.bf16.msra.mxu0 0
        %6652 = vmatprep.subr.bf16.mxu0 0
        %6653 = vmatpush1.bf16.msra.mxu0 0
        %6654 = vmatprep.mubr.bf16.mxu0 0
        %6655 = vmatmul.mubr.bf16.gmra.mrb[0].mxu0 %v334
        %v6656 = vpop.f32.mrb[0].mxu0
        %v6657 = vadd.f32 0.0, %v6656
        %v6658 = vpop.f32.mrb[0].mxu0
        %v6659 = vadd.f32 0.0, %v6658
        %v6660 = vpop.f32.mrb[0].mxu0
        %v6661 = vadd.f32 0.0, %v6660
        %v6662 = vpop.f32.mrb[0].mxu0
        %v6663 = vadd.f32 0.0, %v6662
        %6664 = vmatprep.mubr.bf16.mxu0 0
        %6665 = vmatmul.mubr.bf16.gmra.mrb[0].mxu0 %v335
        %v6666 = vpop.f32.mrb[0].mxu0
        %v6667 = vadd.f32 0.0, %v6666
        %v6668 = vpop.f32.mrb[0].mxu0
        %v6669 = vadd.f32 0.0, %v6668
        %v6670 = vpop.f32.mrb[0].mxu0
        %v6671 = vadd.f32 0.0, %v6670
        %v6672 = vpop.f32.mrb[0].mxu0
        %v6673 = vadd.f32 0.0, %v6672
        %6674 = vmatprep.mubr.bf16.mxu0 0
        %6675 = vmatmul.mubr.bf16.gmra.mrb[0].mxu0 %v336
        %v6676 = vpop.f32.mrb[0].mxu0
        %v6677 = vadd.f32 0.0, %v6676
        %v6678 = vpop.f32.mrb[0].mxu0
        %v6679 = vadd.f32 0.0, %v6678
        %v6680 = vpop.f32.mrb[0].mxu0
        %v6681 = vadd.f32 0.0, %v6680
        %v6682 = vpop.f32.mrb[0].mxu0
        %v6683 = vadd.f32 0.0, %v6682
        %6684 = vmatprep.mubr.bf16.mxu0 0
        %6685 = vmatmul.mubr.bf16.gmra.mrb[0].mxu0 %v337
        %v6686 = vpop.f32.mrb[0].mxu0
        %v6687 = vadd.f32 0.0, %v6686
        %v6688 = vpop.f32.mrb[0].mxu0
        %v6689 = vadd.f32 0.0, %v6688
        %v6690 = vpop.f32.mrb[0].mxu0
        %v6691 = vadd.f32 0.0, %v6690
        %v6692 = vpop.f32.mrb[0].mxu0
        %v6693 = vadd.f32 0.0, %v6692
        %6694 = vdwg.mxu0
        %6695 = vmatprep.subr.bf16.mxu0 %v6426
        %6696 = vmatpush1.bf16.msra.mxu0 %v6425
        %6697 = vmatprep.subr.bf16.mxu0 %v6434
        %6698 = vmatpush1.bf16.msra.mxu0 %v6433
        %6699 = vmatprep.subr.bf16.mxu0 %v6442
        %6700 = vmatpush1.bf16.msra.mxu0 %v6441
        %6701 = vmatprep.subr.bf16.mxu0 %v6450
        %6702 = vmatpush1.bf16.msra.mxu0 %v6449
        %6703 = vmatprep.subr.bf16.mxu0 %v6458
        %6704 = vmatpush1.bf16.msra.mxu0 %v6457
        %6705 = vmatprep.subr.bf16.mxu0 %v6466
        %6706 = vmatpush1.bf16.msra.mxu0 %v6465
        %6707 = vmatprep.subr.bf16.mxu0 %v6474
        %6708 = vmatpush1.bf16.msra.mxu0 %v6473
        %6709 = vmatprep.subr.bf16.mxu0 %v6482
        %6710 = vmatpush1.bf16.msra.mxu0 %v6481
        %6711 = vmatprep.subr.bf16.mxu0 0
        %6712 = vmatpush1.bf16.msra.mxu0 0
        %6713 = vmatprep.subr.bf16.mxu0 0
        %6714 = vmatpush1.bf16.msra.mxu0 0
        %6715 = vmatprep.subr.bf16.mxu0 0
        %6716 = vmatpush1.bf16.msra.mxu0 0
        %6717 = vmatprep.subr.bf16.mxu0 0
        %6718 = vmatpush1.bf16.msra.mxu0 0
        %6719 = vmatprep.subr.bf16.mxu0 0
        %6720 = vmatpush1.bf16.msra.mxu0 0
        %6721 = vmatprep.subr.bf16.mxu0 0
        %6722 = vmatpush1.bf16.msra.mxu0 0
        %6723 = vmatprep.subr.bf16.mxu0 0
        %6724 = vmatpush1.bf16.msra.mxu0 0
        %6725 = vmatprep.subr.bf16.mxu0 0
        %6726 = vmatpush1.bf16.msra.mxu0 0
        %6727 = vmatprep.mubr.bf16.mxu0 0
        %6728 = vmatmul.mubr.bf16.gmra.mrb[0].mxu0 %v334
        %v6729 = vpop.f32.mrb[0].mxu0
        %v6730 = vadd.f32 0.0, %v6729
        %v6731 = vpop.f32.mrb[0].mxu0
        %v6732 = vadd.f32 0.0, %v6731
        %v6733 = vpop.f32.mrb[0].mxu0
        %v6734 = vadd.f32 0.0, %v6733
        %v6735 = vpop.f32.mrb[0].mxu0
        %v6736 = vadd.f32 0.0, %v6735
        %6737 = vmatprep.mubr.bf16.mxu0 0
        %6738 = vmatmul.mubr.bf16.gmra.mrb[0].mxu0 %v335
        %v6739 = vpop.f32.mrb[0].mxu0
        %v6740 = vadd.f32 0.0, %v6739
        %v6741 = vpop.f32.mrb[0].mxu0
        %v6742 = vadd.f32 0.0, %v6741
        %v6743 = vpop.f32.mrb[0].mxu0
        %v6744 = vadd.f32 0.0, %v6743
        %v6745 = vpop.f32.mrb[0].mxu0
        %v6746 = vadd.f32 0.0, %v6745
        %6747 = vmatprep.mubr.bf16.mxu0 0
        %6748 = vmatmul.mubr.bf16.gmra.mrb[0].mxu0 %v336
        %v6749 = vpop.f32.mrb[0].mxu0
        %v6750 = vadd.f32 0.0, %v6749
        %v6751 = vpop.f32.mrb[0].mxu0
        %v6752 = vadd.f32 0.0, %v6751
        %v6753 = vpop.f32.mrb[0].mxu0
        %v6754 = vadd.f32 0.0, %v6753
        %v6755 = vpop.f32.mrb[0].mxu0
        %v6756 = vadd.f32 0.0, %v6755
        %6757 = vmatprep.mubr.bf16.mxu0 0
        %6758 = vmatmul.mubr.bf16.gmra.mrb[0].mxu0 %v337
        %v6759 = vpop.f32.mrb[0].mxu0
        %v6760 = vadd.f32 0.0, %v6759
        %v6761 = vpop.f32.mrb[0].mxu0
        %v6762 = vadd.f32 0.0, %v6761
        %v6763 = vpop.f32.mrb[0].mxu0
        %v6764 = vadd.f32 0.0, %v6763
        %v6765 = vpop.f32.mrb[0].mxu0
        %v6766 = vadd.f32 0.0, %v6765
        %6767 = vdwg.mxu0
        %6768 = vmatprep.subr.bf16.mxu0 %v6428
        %6769 = vmatpush1.bf16.msra.mxu0 %v6427
        %6770 = vmatprep.subr.bf16.mxu0 %v6436
        %6771 = vmatpush1.bf16.msra.mxu0 %v6435
        %6772 = vmatprep.subr.bf16.mxu0 %v6444
        %6773 = vmatpush1.bf16.msra.mxu0 %v6443
        %6774 = vmatprep.subr.bf16.mxu0 %v6452
        %6775 = vmatpush1.bf16.msra.mxu0 %v6451
        %6776 = vmatprep.subr.bf16.mxu0 %v6460
        %6777 = vmatpush1.bf16.msra.mxu0 %v6459
        %6778 = vmatprep.subr.bf16.mxu0 %v6468
        %6779 = vmatpush1.bf16.msra.mxu0 %v6467
        %6780 = vmatprep.subr.bf16.mxu0 %v6476
        %6781 = vmatpush1.bf16.msra.mxu0 %v6475
        %6782 = vmatprep.subr.bf16.mxu0 %v6484
        %6783 = vmatpush1.bf16.msra.mxu0 %v6483
        %6784 = vmatprep.subr.bf16.mxu0 0
        %6785 = vmatpush1.bf16.msra.mxu0 0
        %6786 = vmatprep.subr.bf16.mxu0 0
        %6787 = vmatpush1.bf16.msra.mxu0 0
        %6788 = vmatprep.subr.bf16.mxu0 0
        %6789 = vmatpush1.bf16.msra.mxu0 0
        %6790 = vmatprep.subr.bf16.mxu0 0
        %6791 = vmatpush1.bf16.msra.mxu0 0
        %6792 = vmatprep.subr.bf16.mxu0 0
        %6793 = vmatpush1.bf16.msra.mxu0 0
        %6794 = vmatprep.subr.bf16.mxu0 0
        %6795 = vmatpush1.bf16.msra.mxu0 0
        %6796 = vmatprep.subr.bf16.mxu0 0
        %6797 = vmatpush1.bf16.msra.mxu0 0
        %6798 = vmatprep.subr.bf16.mxu0 0
        %6799 = vmatpush1.bf16.msra.mxu0 0
        %6800 = vmatprep.mubr.bf16.mxu0 0
        %6801 = vmatmul.mubr.bf16.gmra.mrb[0].mxu0 %v334
        %v6802 = vpop.f32.mrb[0].mxu0
        %v6803 = vadd.f32 0.0, %v6802
        %v6804 = vpop.f32.mrb[0].mxu0
        %v6805 = vadd.f32 0.0, %v6804
        %v6806 = vpop.f32.mrb[0].mxu0
        %v6807 = vadd.f32 0.0, %v6806
        %v6808 = vpop.f32.mrb[0].mxu0
        %v6809 = vadd.f32 0.0, %v6808
        %6810 = vmatprep.mubr.bf16.mxu0 0
        %6811 = vmatmul.mubr.bf16.gmra.mrb[0].mxu0 %v335
        %v6812 = vpop.f32.mrb[0].mxu0
        %v6813 = vadd.f32 0.0, %v6812
        %v6814 = vpop.f32.mrb[0].mxu0
        %v6815 = vadd.f32 0.0, %v6814
        %v6816 = vpop.f32.mrb[0].mxu0
        %v6817 = vadd.f32 0.0, %v6816
        %v6818 = vpop.f32.mrb[0].mxu0
        %v6819 = vadd.f32 0.0, %v6818
        %6820 = vmatprep.mubr.bf16.mxu0 0
        %6821 = vmatmul.mubr.bf16.gmra.mrb[0].mxu0 %v336
        %v6822 = vpop.f32.mrb[0].mxu0
        %v6823 = vadd.f32 0.0, %v6822
        %v6824 = vpop.f32.mrb[0].mxu0
        %v6825 = vadd.f32 0.0, %v6824
        %v6826 = vpop.f32.mrb[0].mxu0
        %v6827 = vadd.f32 0.0, %v6826
        %v6828 = vpop.f32.mrb[0].mxu0
        %v6829 = vadd.f32 0.0, %v6828
        %6830 = vmatprep.mubr.bf16.mxu0 0
        %6831 = vmatmul.mubr.bf16.gmra.mrb[0].mxu0 %v337
        %v6832 = vpop.f32.mrb[0].mxu0
        %v6833 = vadd.f32 0.0, %v6832
        %v6834 = vpop.f32.mrb[0].mxu0
        %v6835 = vadd.f32 0.0, %v6834
        %v6836 = vpop.f32.mrb[0].mxu0
        %v6837 = vadd.f32 0.0, %v6836
        %v6838 = vpop.f32.mrb[0].mxu0
        %v6839 = vadd.f32 0.0, %v6838
        %6840 = vdwg.mxu0
        %v6841 = vmax.f32 %v6584, %v6588
        %v6842 = vmax.f32 %v6841, %v6594
        %v6843 = vmax.f32 %v6842, %v6598
        %v6844 = vmax.f32 %v6843, %v6604
        %v6845 = vmax.f32 %v6844, %v6608
        %v6846 = vmax.f32 %v6845, %v6614
        %v6847 = vmax.f32 %v6846, %v6618
        %v6848 = vrot.slane %v6847, 4
        %v6849 = vmax.f32 %v6847, %v6848
        %v6850 = vrot.slane %v6849, 2
        %v6851 = vmax.f32 %v6849, %v6850
        %v6852 = vrot.slane %v6851, 1
        %v6853 = vmax.f32 %v6851, %v6852
        %v6854 = vmax.f32 %v6586, %v6590
        %v6855 = vmax.f32 %v6854, %v6596
        %v6856 = vmax.f32 %v6855, %v6600
        %v6857 = vmax.f32 %v6856, %v6606
        %v6858 = vmax.f32 %v6857, %v6610
        %v6859 = vmax.f32 %v6858, %v6616
        %v6860 = vmax.f32 %v6859, %v6620
        %v6861 = vrot.slane %v6860, 4
        %v6862 = vmax.f32 %v6860, %v6861
        %v6863 = vrot.slane %v6862, 2
        %v6864 = vmax.f32 %v6862, %v6863
        %v6865 = vrot.slane %v6864, 1
        %v6866 = vmax.f32 %v6864, %v6865
        %v6867 = vmax.f32 %v6657, %v6661
        %v6868 = vmax.f32 %v6867, %v6667
        %v6869 = vmax.f32 %v6868, %v6671
        %v6870 = vmax.f32 %v6869, %v6677
        %v6871 = vmax.f32 %v6870, %v6681
        %v6872 = vmax.f32 %v6871, %v6687
        %v6873 = vmax.f32 %v6872, %v6691
        %v6874 = vrot.slane %v6873, 4
        %v6875 = vmax.f32 %v6873, %v6874
        %v6876 = vrot.slane %v6875, 2
        %v6877 = vmax.f32 %v6875, %v6876
        %v6878 = vrot.slane %v6877, 1
        %v6879 = vmax.f32 %v6877, %v6878
        %v6880 = vmax.f32 %v6659, %v6663
        %v6881 = vmax.f32 %v6880, %v6669
        %v6882 = vmax.f32 %v6881, %v6673
        %v6883 = vmax.f32 %v6882, %v6679
        %v6884 = vmax.f32 %v6883, %v6683
        %v6885 = vmax.f32 %v6884, %v6689
        %v6886 = vmax.f32 %v6885, %v6693
        %v6887 = vrot.slane %v6886, 4
        %v6888 = vmax.f32 %v6886, %v6887
        %v6889 = vrot.slane %v6888, 2
        %v6890 = vmax.f32 %v6888, %v6889
        %v6891 = vrot.slane %v6890, 1
        %v6892 = vmax.f32 %v6890, %v6891
        %v6893 = vmax.f32 %v6730, %v6734
        %v6894 = vmax.f32 %v6893, %v6740
        %v6895 = vmax.f32 %v6894, %v6744
        %v6896 = vmax.f32 %v6895, %v6750
        %v6897 = vmax.f32 %v6896, %v6754
        %v6898 = vmax.f32 %v6897, %v6760
        %v6899 = vmax.f32 %v6898, %v6764
        %v6900 = vrot.slane %v6899, 4
        %v6901 = vmax.f32 %v6899, %v6900
        %v6902 = vrot.slane %v6901, 2
        %v6903 = vmax.f32 %v6901, %v6902
        %v6904 = vrot.slane %v6903, 1
        %v6905 = vmax.f32 %v6903, %v6904
        %v6906 = vmax.f32 %v6732, %v6736
        %v6907 = vmax.f32 %v6906, %v6742
        %v6908 = vmax.f32 %v6907, %v6746
        %v6909 = vmax.f32 %v6908, %v6752
        %v6910 = vmax.f32 %v6909, %v6756
        %v6911 = vmax.f32 %v6910, %v6762
        %v6912 = vmax.f32 %v6911, %v6766
        %v6913 = vrot.slane %v6912, 4
        %v6914 = vmax.f32 %v6912, %v6913
        %v6915 = vrot.slane %v6914, 2
        %v6916 = vmax.f32 %v6914, %v6915
        %v6917 = vrot.slane %v6916, 1
        %v6918 = vmax.f32 %v6916, %v6917
        %v6919 = vmax.f32 %v6803, %v6807
        %v6920 = vmax.f32 %v6919, %v6813
        %v6921 = vmax.f32 %v6920, %v6817
        %v6922 = vmax.f32 %v6921, %v6823
        %v6923 = vmax.f32 %v6922, %v6827
        %v6924 = vmax.f32 %v6923, %v6833
        %v6925 = vmax.f32 %v6924, %v6837
        %v6926 = vrot.slane %v6925, 4
        %v6927 = vmax.f32 %v6925, %v6926
        %v6928 = vrot.slane %v6927, 2
        %v6929 = vmax.f32 %v6927, %v6928
        %v6930 = vrot.slane %v6929, 1
        %v6931 = vmax.f32 %v6929, %v6930
        %v6932 = vmax.f32 %v6805, %v6809
        %v6933 = vmax.f32 %v6932, %v6815
        %v6934 = vmax.f32 %v6933, %v6819
        %v6935 = vmax.f32 %v6934, %v6825
        %v6936 = vmax.f32 %v6935, %v6829
        %v6937 = vmax.f32 %v6936, %v6835
        %v6938 = vmax.f32 %v6937, %v6839
        %v6939 = vrot.slane %v6938, 4
        %v6940 = vmax.f32 %v6938, %v6939
        %v6941 = vrot.slane %v6940, 2
        %v6942 = vmax.f32 %v6940, %v6941
        %v6943 = vrot.slane %v6942, 1
        %v6944 = vmax.f32 %v6942, %v6943
        %v6945 = vld [vmem:[%s231 + $0x38] sm:$0xff]
        %v6954 = vcombine.low %v6853, %v6866
        %v6955 = vcombine.low %v6879, %v6892
        %v6956 = vcombine.low %v6905, %v6918
        %v6957 = vcombine.low %v6931, %v6944
        %v6959 = vunpack.c.l.s4 1966171168
        %v6960 = vunpack.c.0.s8 %v6959
        %v6961 = vlaneseq
        %v6962 = vshrl.u32 %v6961, 7
        %v6963 = vsub.s32 %v6960, %v6962
        %v6964 = vrot.slane %v6954, %v6963
        %v6966 = vunpack.c.l.s4 1966171168
        %v6967 = vunpack.c.0.s8 %v6966
        %v6968 = vlaneseq
        %v6969 = vshrl.u32 %v6968, 7
        %v6970 = vsub.s32 %v6967, %v6969
        %v6971 = vrot.slane %v6955, %v6970
        %v6973 = vunpack.c.l.s4 1966171168
        %v6974 = vunpack.c.0.s8 %v6973
        %v6975 = vlaneseq
        %v6976 = vshrl.u32 %v6975, 7
        %v6977 = vsub.s32 %v6974, %v6976
        %v6978 = vrot.slane %v6956, %v6977
        %v6980 = vunpack.c.l.s4 1966171168
        %v6981 = vunpack.c.0.s8 %v6980
        %v6982 = vlaneseq
        %v6983 = vshrl.u32 %v6982, 7
        %v6984 = vsub.s32 %v6981, %v6983
        %v6985 = vrot.slane %v6957, %v6984
        %v6986 = vcombine.low %v6964, %v6971
        %v6987 = vcombine.low %v6978, %v6985
        %v6989 = vunpack.c.l.s4 1966171168
        %v6990 = vunpack.c.0.s8 %v6989
        %v6991 = vlaneseq
        %v6992 = vshrl.u32 %v6991, 7
        %v6993 = vsub.s32 %v6990, %v6992
        %v6994 = vrot.slane %v6986, %v6993
        %v6996 = vunpack.c.l.s4 1966171168
        %v6997 = vunpack.c.0.s8 %v6996
        %v6998 = vlaneseq
        %v6999 = vshrl.u32 %v6998, 7
        %v7000 = vsub.s32 %v6997, %v6999
        %v7001 = vrot.slane %v6987, %v7000
        %v7002 = vcombine.low %v6994, %v7001
        %v7004 = vmax.f32 %v6945, %v7002
        %7005 = vst [vmem:[%s231 + $0x38] sm:$0xff] %v7004
        // Predicated region
        $region49: #{tpu_custom_call.1} parent=31 // pred_check
          %p7006 = pneg %p234
        $region50: #{tpu_custom_call.1} parent=31 // pred_check_branch
          %7008 = sbr.rel (%p7006) target = $region52
        $region51: #{tpu_custom_call.1} parent=31 // pred_region
          %v7009 = vld [vmem:[%s231] sm:$0xff]
          %v7010 = vld [vmem:[%s231 + $0x8] sm:$0xff]
          %v7011 = vld [vmem:[%s231 + $0x10] sm:$0xff]
          %v7012 = vld [vmem:[%s231 + $0x18] sm:$0xff]
          %v7013 = vld [vmem:[%s231 + $0x20] sm:$0xff]
          %v7014 = vld [vmem:[%s231 + $0x28] sm:$0xff]
          %v7015 = vld [vmem:[%s231 + $0x30] sm:$0xff]
          %v7016 = vld [vmem:[%s231 + $0x38] sm:$0xff]
          %v7017 = vld [vmem:[#allocation7] sm:$0xff]
          %v7018 = vld [vmem:[#allocation7 + $0x8] sm:$0xff]
          %v7019 = vld [vmem:[#allocation7 + $0x10] sm:$0xff]
          %v7020 = vld [vmem:[#allocation7 + $0x18] sm:$0xff]
          %v7021 = vld [vmem:[#allocation7 + $0x20] sm:$0xff]
          %v7022 = vld [vmem:[#allocation7 + $0x28] sm:$0xff]
          %v7023 = vld [vmem:[#allocation7 + $0x30] sm:$0xff]
          %v7024 = vld [vmem:[#allocation7 + $0x38] sm:$0xff]
          %v7025 = vadd.f32 %v7009, %v7017
          %v7026 = vadd.f32 %v7010, %v7018
          %v7027 = vadd.f32 %v7011, %v7019
          %v7028 = vadd.f32 %v7012, %v7020
          %v7029 = vadd.f32 %v7013, %v7021
          %v7030 = vadd.f32 %v7014, %v7022
          %v7031 = vadd.f32 %v7015, %v7023
          %v7032 = vadd.f32 %v7016, %v7024
          %v7033 = vmul.f32 %v7025, %v7025
          %v7034 = vadd.f32 %v7033, 0.0
          %v7035 = vmul.f32 %v7026, %v7026
          %v7036 = vadd.f32 %v7034, %v7035
          %v7037 = vmul.f32 %v7027, %v7027
          %v7038 = vadd.f32 %v7036, %v7037
          %v7039 = vmul.f32 %v7028, %v7028
          %v7040 = vadd.f32 %v7038, %v7039
          %v7041 = vmul.f32 %v7029, %v7029
          %v7042 = vadd.f32 %v7040, %v7041
          %v7043 = vmul.f32 %v7030, %v7030
          %v7044 = vadd.f32 %v7042, %v7043
          %v7045 = vmul.f32 %v7031, %v7031
          %v7046 = vadd.f32 %v7044, %v7045
          %v7047 = vmul.f32 %v7032, %v7032
          %v7048 = vadd.f32 %v7046, %v7047
          %v7049 = vrsqrt.pop %v7048
          %v7050 = vmul.f32 %v7048, %v7049
          %vm7051 = vcmp.eq.f32.partialorder %v7048, inf
          %v7052 = vsel %vm7051, %v7048, %v7050
          %vm7053 = vcmp.eq.f32.partialorder %v7048, 0.0
          %v7054 = vand.u32 %v7048, 2147483648
          %v7055 = vsel %vm7053, %v7054, %v7052
          %v7056 = vadd.f32 %v7048, 1.0
          %v7057 = vrcp.pop %v7056
          %v7058 = vmul.f32 %v7055, %v7057
          %v7059 = vmul.f32 %v7025, %v7058
          %7060 = vst [vmem:[%s231] sm:$0xff] %v7059
          %v7061 = vmul.f32 %v7026, %v7058
          %7062 = vst [vmem:[%s231 + $0x8] sm:$0xff] %v7061
          %v7063 = vmul.f32 %v7027, %v7058
          %7064 = vst [vmem:[%s231 + $0x10] sm:$0xff] %v7063
          %v7065 = vmul.f32 %v7028, %v7058
          %7066 = vst [vmem:[%s231 + $0x18] sm:$0xff] %v7065
          %v7067 = vmul.f32 %v7029, %v7058
          %7068 = vst [vmem:[%s231 + $0x20] sm:$0xff] %v7067
          %v7069 = vmul.f32 %v7030, %v7058
          %7070 = vst [vmem:[%s231 + $0x28] sm:$0xff] %v7069
          %v7071 = vmul.f32 %v7031, %v7058
          %7072 = vst [vmem:[%s231 + $0x30] sm:$0xff] %v7071
          %v7073 = vmul.f32 %v7032, %v7058
          %7074 = vst [vmem:[%s231 + $0x38] sm:$0xff] %v7073
        $region52: #{tpu_custom_call.1} parent=31 // pred_fallthru
          _
        %s7075 = sand.u32 %s111, 1
        %s7076 = scalar_lea.sflag [#allocation4], %s7075
        %s7077 = sand.u32 %s111, 1
        %s7078 = smul.addr %s7077, 64
        %s7079 = scalar_lea.vmem [#allocation8], %s7078
        // Predicated region
        $region53: #{tpu_custom_call.1} parent=31 // pred_check
          %p7080 = pneg %p121
        $region54: #{tpu_custom_call.1} parent=31 // pred_check_branch
          %7082 = sbr.rel (%p7080) target = $region56
        $region55: #{tpu_custom_call.1} parent=31 // pred_region
          %s7084 = ssub.s32 1024, 1024
          %7085 = vsyncadd %s7076, %s7084
          %s7086 = smul.addr %s25, 64
          %s7087 = smul.addr %s7086, 16
          %s7088 = scalar_lea.hbm %s3, %s7087
          %s7090 = sshll.u32 %s7079, 4
          %s7091 = int_to_ptr.vmem [resolvable:$true] %s7090
          %7093 = dma.vmem_to_hbm [thread:$0]  %s7091, 1024, %s7088, %s7076
        $region56: #{tpu_custom_call.1} parent=31 // pred_fallthru
          _
      $region32: #{tpu_custom_call.1} parent=5 // pred_fallthru
        _
      %p7094 = scmp.le.s32.totalorder 2, %s16
      // Predicated region
      $region57: #{tpu_custom_call.1} parent=5 // pred_check
        %p7095 = pneg %p7094
      $region58: #{tpu_custom_call.1} parent=5 // pred_check_branch
        %7097 = sbr.rel (%p7095) target = $region60
      $region59: #{tpu_custom_call.1} parent=5 // pred_region
        %s7098 = ssub.s32 %s16, 2
        // Predicated region
        $region61: #{tpu_custom_call.1} parent=59 // pred_check
          %p7099 = pneg %p127
        $region62: #{tpu_custom_call.1} parent=59 // pred_check_branch
          %7101 = sbr.rel (%p7099) target = $region64
        $region63: #{tpu_custom_call.1} parent=59 // pred_region
          %s7102 = sand.u32 %s112, 1
          %s7103 = scalar_lea.sflag [#allocation4], %s7102
          %s7104 = sand.u32 %s112, 1
          %s7105 = smul.addr %s7104, 64
          %s7106 = scalar_lea.vmem [#allocation8], %s7105
          %7107 = dma.done %s7103, 1024
        $region64: #{tpu_custom_call.1} parent=59 // pred_fallthru
          _
      $region60: #{tpu_custom_call.1} parent=5 // pred_fallthru
        _
    $region6: #{tpu_custom_call.1} parent=1 // loop_footer
      %s20 = sadd.s32 1, %s16
    $region7: #{tpu_custom_call.1} parent=1 // loop_footer_branch
      %15 = sbr.rel target = $region3
    $region8: #{tpu_custom_call.1} parent=1 // loop_exit
      _
    %7108 = vsyncpa [#allocation3], 1
    %s7109 = scalar_lea.sflag [#allocation3], 1
    %7110 = vsyncpa %s7109, 1
    %7111 = vsyncpa [#allocation6], 1
    %7112 = vsyncpa [#allocation4], 1
    %s7113 = scalar_lea.sflag [#allocation4], 1
    %7114 = vsyncpa %s7113, 1

</llo_original>
